<compile_context>
chip_gen: v6e
topology: v6e:2x2x1
jax: 0.10.0
libtpu: 0.0.40
codegen_flags: <defaults>
</compile_context>

<pallas_src>
import functools

import numpy as np

import jax
import jax.numpy as jnp
from jax.experimental import pallas as pl
from jax.experimental.pallas import tpu as pltpu


def _round_up(n, m):
    return (n + m - 1) // m * m


# ------------------------------ Pallas kernel ------------------------------- #

def _cnn5_kernel(x_ref, w1e_ref, w1o_ref, b1_ref, w2e_ref, w2o_ref, b2_ref,
                 w3_ref, b3_ref, w4_ref, b4_ref, w5_ref, b5_ref,
                 logits_ref, o_ref):
    """conv1+pool -> conv2+pool -> fc1 -> fc2 -> fc3 for one batch tile.

    x_ref:  (H, bn, W*Cin) f32; rows = image height, lanes = (width, channel).
    w{1,2}{e,o}_ref: (kh, Win*Cin, PW*Cout) bf16 banded ("Toeplitz along width")
        conv weights, one matrix per kernel row.  'e'/'o' hold the even / odd
        pooled-width output columns, so the width half of the 2x2 max-pool is
        a single elementwise max of the two matmul results.
    w3_ref: (PH2, PW2*C2, 500) bf16 fc1 weights grouped by pooled-height row
        (rows pre-permuted from the PyTorch NCHW flatten).
    All intermediates stay in VMEM; only (logits, o) go back to HBM.
    """
    bn = x_ref.shape[1]
    kh = w1e_ref.shape[0]

    def conv_relu_pool(x2, we_ref, wo_ref, b_ref):
        # x2: (h_in*bn, Win*Cin) f32 with rows ordered (h, n).
        # Returns ((h_out//2)*bn, PW*Cout) f32: relu(maxpool2x2(conv(x)+b)).
        h_in = x2.shape[0] // bn
        h_out = h_in - kh + 1
        cols = we_ref.shape[2]
        acc_e = acc_o = None
        for i in range(kh):                              # short fixed loop
            xs = x2[i * bn:(i + h_out) * bn].astype(jnp.bfloat16)
            pe = jnp.dot(xs, we_ref[i], preferred_element_type=jnp.float32)
            po = jnp.dot(xs, wo_ref[i], preferred_element_type=jnp.float32)
            acc_e = pe if acc_e is None else acc_e + pe
            acc_o = po if acc_o is None else acc_o + po
        m = jnp.maximum(acc_e, acc_o)                    # width half of the pool
        # rows (h, n) -> groups of 2*bn rows: first bn rows = even h, last bn = odd h
        m = m.reshape(h_out // 2, 2 * bn, cols)
        m = jnp.maximum(m[:, :bn, :], m[:, bn:, :])      # height half of the pool
        m = m.reshape((h_out // 2) * bn, cols)
        # bias + ReLU after the max is valid: per-channel bias, monotone ReLU.
        return jnp.maximum(m + b_ref[...], 0.0)

    x2 = x_ref[...].reshape(x_ref.shape[0] * bn, x_ref.shape[2])
    p1 = conv_relu_pool(x2, w1e_ref, w1o_ref, b1_ref)    # (14*bn, 14*C1)
    p2 = conv_relu_pool(p1, w2e_ref, w2o_ref, b2_ref)    # (5*bn, 5*C2)

    # fc1: sum over pooled-height rows of (bn, PW2*C2) @ (PW2*C2, 500).
    acc = None
    for h in range(w3_ref.shape[0]):
        xs = p2[h * bn:(h + 1) * bn].astype(jnp.bfloat16)
        part = jnp.dot(xs, w3_ref[h], preferred_element_type=jnp.float32)
        acc = part if acc is None else acc + part
    h1 = jnp.maximum(acc + b3_ref[...], 0.0).astype(jnp.bfloat16)     # (bn, 500)

    # fc2 (+ReLU) -> o, fc3 -> logits.
    o = jnp.maximum(
        jnp.dot(h1, w4_ref[...], preferred_element_type=jnp.float32) + b4_ref[...],
        0.0)
    o_ref[...] = o
    logits_ref[...] = (jnp.dot(o.astype(jnp.bfloat16), w5_ref[...],
                               preferred_element_type=jnp.float32) + b5_ref[...])


# ------------------------------- wrapper ------------------------------------ #

def forward(prep, x_nchw, *, batch_block=None):
    """Matches PyTorch CNN_5_homo_AFM.forward(x) -> (logits, o)."""
    N, cin, H, W = x_nchw.shape
    assert (H, W) == (32, 32), "CNN_5_homo_AFM requires 32x32 inputs"
    if batch_block is None:
        batch_block = min(64, _round_up(N, 8))
    bn = int(batch_block)
    assert bn % 8 == 0
    n_pad = _round_up(N, bn)

    # (N,C,H,W) -> (H, N, W*C): height leading, (batch, width*channel) tiled.
    xt = jnp.transpose(x_nchw, (2, 0, 3, 1)).reshape(H, N, W * cin)
    xt = xt.astype(jnp.float32)
    if n_pad != N:
        xt = jnp.pad(xt, ((0, 0), (0, n_pad - N), (0, 0)))

    weights = (prep["w1e"], prep["w1o"], prep["b1"],
               prep["w2e"], prep["w2o"], prep["b2"],
               prep["w3"], prep["b3"], prep["w4"], prep["b4"],
               prep["w5"], prep["b5"])

    def whole(a):
        nd = a.ndim
        return pl.BlockSpec(a.shape, lambda *_: (0,) * nd)

    in_specs = ([pl.BlockSpec((H, bn, W * cin), lambda b: (0, b, 0))]
                + [whole(w) for w in weights])

    n_out, n_hidden = prep["w5"].shape[1], prep["w4"].shape[1]
    out_shape = (jax.ShapeDtypeStruct((n_pad, n_out), jnp.float32),
                 jax.ShapeDtypeStruct((n_pad, n_hidden), jnp.float32))
    out_specs = (pl.BlockSpec((bn, n_out), lambda b: (b, 0)),
                 pl.BlockSpec((bn, n_hidden), lambda b: (b, 0)))

    # Advisory cost estimate (MXU MACs of the banded matmuls + FCs).
    kh = prep["w1e"].shape[0]
    h1, h2 = H - kh + 1, (H - kh + 1) // 2 - kh + 1
    conv_f = lambda h, w: 2 * kh * h * w.shape[1] * w.shape[2]
    flops_ps = (conv_f(h1, prep["w1e"]) + conv_f(h1, prep["w1o"])
                + conv_f(h2, prep["w2e"]) + conv_f(h2, prep["w2o"])
                + 2 * prep["w3"].shape[0] * prep["w3"].shape[1] * prep["w3"].shape[2]
                + 2 * prep["w4"].shape[0] * prep["w4"].shape[1]
                + 2 * prep["w5"].shape[0] * prep["w5"].shape[1])
    bytes_accessed = (xt.size * xt.dtype.itemsize
                      + sum(w.size * w.dtype.itemsize for w in weights)
                      + n_pad * (n_out + n_hidden) * 4)

    logits, o = pl.pallas_call(
        _cnn5_kernel,
        out_shape=out_shape,
        grid=(n_pad // bn,),
        in_specs=in_specs,
        out_specs=out_specs,
        compiler_params=pltpu.CompilerParams(
            dimension_semantics=("parallel",),
            vmem_limit_bytes=32 * 1024 * 1024),
        cost_estimate=pl.CostEstimate(flops=int(n_pad * flops_ps),
                                      transcendentals=0,
                                      bytes_accessed=int(bytes_accessed)),
    )(xt, *weights)
    return logits[:N], o[:N]


# ---------------------- parameter init & preparation ------------------------ #

def init_params(key, in_channels=3, n_kernels=16, out_dim=10):
    ks = jax.random.split(key, 10)

    def u(k, shape, fan_in):
        bound = 1.0 / float(fan_in) ** 0.5
        return jax.random.uniform(k, shape, jnp.float32, -bound, bound)

    d_flat = 2 * n_kernels * 5 * 5
    return {
        "conv1_w": u(ks[0], (n_kernels, in_channels, 5, 5), in_channels * 25),
        "conv1_b": u(ks[1], (n_kernels,), in_channels * 25),
        "conv2_w": u(ks[2], (2 * n_kernels, n_kernels, 5, 5), n_kernels * 25),
        "conv2_b": u(ks[3], (2 * n_kernels,), n_kernels * 25),
        "fc1_w": u(ks[4], (d_flat, 500), d_flat),          # stored (in, out)
        "fc1_b": u(ks[5], (500,), d_flat),
        "fc2_w": u(ks[6], (500, 500), 500),
        "fc2_b": u(ks[7], (500,), 500),
        "fc3_w": u(ks[8], (500, out_dim), 500),
        "fc3_b": u(ks[9], (out_dim,), 500),
    }


def _banded_conv_weight(w_oihw, in_w, pooled_w, parity):
    """(Cout,Cin,kh,kw) conv weight -> (kh, in_w*Cin, pooled_w*Cout) bf16 banded
    matrix.  For kernel row i, a (rows, in_w*Cin) input slab matmul'd against
    out[i] yields the conv output at width wo = 2*pw + parity for every pw."""
    co, ci, kh, kw = w_oihw.shape
    w = np.asarray(w_oihw, np.float32)
    out = np.zeros((kh, in_w * ci, pooled_w * co), np.float32)
    for i in range(kh):
        for pw in range(pooled_w):
            wo = 2 * pw + parity
            for j in range(kw):
                win = wo + j
                out[i, win * ci:(win + 1) * ci, pw * co:(pw + 1) * co] = w[:, :, i, j].T
    return jnp.asarray(out, jnp.bfloat16)


def prepare_params(params):
    """One-time (outside the hot path): banded conv weights (pool parity folded
    into the columns), tiled biases, fc1 row permutation from the PyTorch NCHW
    flatten to the kernel's (h, (w, c)) layout, bf16 casts for MXU operands."""
    kh = params["conv1_w"].shape[2]                  # 5
    c2 = params["conv2_w"].shape[0]                  # 2 * n_kernels
    hw_in = 32                                       # architecture-fixed (fc1 = C2*5*5)
    p1 = (hw_in - kh + 1) // 2                       # 14
    p2 = (p1 - kh + 1) // 2                          # 5

    w1e = _banded_conv_weight(params["conv1_w"], hw_in, p1, 0)
    w1o = _banded_conv_weight(params["conv1_w"], hw_in, p1, 1)
    w2e = _banded_conv_weight(params["conv2_w"], p1, p2, 0)
    w2o = _banded_conv_weight(params["conv2_w"], p1, p2, 1)

    # fc1 rows: PyTorch flattens (c, h, w); regroup to (h, (w, c)).
    n_fc = params["fc1_w"].shape[1]
    idx = np.empty((p2, p2 * c2), np.int32)
    for h in range(p2):
        for w in range(p2):
            for c in range(c2):
                idx[h, w * c2 + c] = c * p2 * p2 + h * p2 + w
    w3 = jnp.asarray(params["fc1_w"])[idx.reshape(-1), :]
    w3 = w3.reshape(p2, p2 * c2, n_fc).astype(jnp.bfloat16)

    return {
        "w1e": w1e, "w1o": w1o,
        "b1": jnp.tile(params["conv1_b"], p1).reshape(1, -1).astype(jnp.float32),
        "w2e": w2e, "w2o": w2o,
        "b2": jnp.tile(params["conv2_b"], p2).reshape(1, -1).astype(jnp.float32),
        "w3": w3, "b3": params["fc1_b"].reshape(1, -1).astype(jnp.float32),
        "w4": params["fc2_w"].astype(jnp.bfloat16),
        "b4": params["fc2_b"].reshape(1, -1).astype(jnp.float32),
        "w5": params["fc3_w"].astype(jnp.bfloat16),
        "b5": params["fc3_b"].reshape(1, -1).astype(jnp.float32),
    }


# ---------------------------- pure-JAX reference ---------------------------- #

def reference_forward(params, x_nchw):
    """Same math as the kernel (bf16 MXU operands, f32 accumulation/epilogues)."""
    bf = jnp.bfloat16
    x = jnp.transpose(x_nchw, (0, 2, 3, 1)).astype(bf)

    def conv(x, w_oihw, b):
        k = jnp.transpose(w_oihw, (2, 3, 1, 0)).astype(bf)   # OIHW -> HWIO
        y = jax.lax.conv_general_dilated(
            x, k, (1, 1), "VALID",
            dimension_numbers=("NHWC", "HWIO", "NHWC"),
            preferred_element_type=jnp.float32)
        return jnp.maximum(y + b, 0.0)

    def pool(x):
        N, H, W, C = x.shape
        return jnp.max(x.reshape(N, H // 2, 2, W // 2, 2, C), axis=(2, 4))

    def fc(x, w, b):
        return jnp.dot(x.astype(bf), w.astype(bf),
                       preferred_element_type=jnp.float32) + b

    h = pool(conv(x, params["conv1_w"], params["conv1_b"])).astype(bf)
    h = pool(conv(h, params["conv2_w"], params["conv2_b"]))
    h = jnp.transpose(h, (0, 3, 1, 2)).reshape(h.shape[0], -1)   # NCHW flatten
    h1 = jnp.maximum(fc(h, params["fc1_w"], params["fc1_b"]), 0.0)
    o = jnp.maximum(fc(h1, params["fc2_w"], params["fc2_b"]), 0.0)
    logits = fc(o, params["fc3_w"], params["fc3_b"])
    return logits, o


# ------------------------------------ main ----------------------------------- #

if __name__ == "__main__":
    key = jax.random.PRNGKey(0)
    k_param, k_x = jax.random.split(key)

    params = init_params(k_param, in_channels=3, n_kernels=16, out_dim=10)
    prep = prepare_params(params)

    batch = 2
    # 32x32 input is required by the module (fc1 expects 2*n_kernels*5*5 features)
    x = jax.random.normal(k_x, (batch, 3, 32, 32), jnp.float32)

    fwd = jax.jit(forward)
    logits, o = fwd(prep, x)
    jax.block_until_ready((logits, o))

    ref_logits, ref_o = reference_forward(params, x)
    assert logits.shape == (batch, 10) and o.shape == (batch, 500)
    assert jnp.allclose(logits, ref_logits, rtol=2e-2, atol=2e-2)
    assert jnp.allclose(o, ref_o, rtol=2e-2, atol=2e-2)

    print("KERNEL_OK")
</pallas_src>

<mosaic_0001>
module attributes {stable_mosaic.version = 11 : i64} {
  func.func @_cnn5_kernel(%arg0: i32, %arg1: memref<32x8x96xf32, #tpu.memory_space<vmem>>, %arg2: memref<5x96x224xbf16, #tpu.memory_space<vmem>>, %arg3: memref<5x96x224xbf16, #tpu.memory_space<vmem>>, %arg4: memref<1x224xf32, #tpu.memory_space<vmem>>, %arg5: memref<5x224x160xbf16, #tpu.memory_space<vmem>>, %arg6: memref<5x224x160xbf16, #tpu.memory_space<vmem>>, %arg7: memref<1x160xf32, #tpu.memory_space<vmem>>, %arg8: memref<5x160x500xbf16, #tpu.memory_space<vmem>>, %arg9: memref<1x500xf32, #tpu.memory_space<vmem>>, %arg10: memref<500x500xbf16, #tpu.memory_space<vmem>>, %arg11: memref<1x500xf32, #tpu.memory_space<vmem>>, %arg12: memref<500x10xbf16, #tpu.memory_space<vmem>>, %arg13: memref<1x10xf32, #tpu.memory_space<vmem>>, %arg14: memref<8x10xf32, #tpu.memory_space<vmem>>, %arg15: memref<8x500xf32, #tpu.memory_space<vmem>>) attributes {dimension_semantics = [#tpu.dimension_semantics<parallel>], iteration_bounds = array<i64: 1>, scalar_prefetch = 0 : i64, scratch_operands = 0 : i64, tpu.core_type = #tpu.core_type<tc>, window_params = [{transform_indices = @transform_0, window_bounds = array<i64: 32, 8, 96>}, {pipeline_mode = #tpu.pipeline_mode<synchronous>, transform_indices = @transform_1, window_bounds = array<i64: 5, 96, 224>}, {pipeline_mode = #tpu.pipeline_mode<synchronous>, transform_indices = @transform_2, window_bounds = array<i64: 5, 96, 224>}, {pipeline_mode = #tpu.pipeline_mode<synchronous>, transform_indices = @transform_3, window_bounds = array<i64: 1, 224>}, {pipeline_mode = #tpu.pipeline_mode<synchronous>, transform_indices = @transform_4, window_bounds = array<i64: 5, 224, 160>}, {pipeline_mode = #tpu.pipeline_mode<synchronous>, transform_indices = @transform_5, window_bounds = array<i64: 5, 224, 160>}, {pipeline_mode = #tpu.pipeline_mode<synchronous>, transform_indices = @transform_6, window_bounds = array<i64: 1, 160>}, {pipeline_mode = #tpu.pipeline_mode<synchronous>, transform_indices = @transform_7, window_bounds = array<i64: 5, 160, 500>}, {pipeline_mode = #tpu.pipeline_mode<synchronous>, transform_indices = @transform_8, window_bounds = array<i64: 1, 500>}, {pipeline_mode = #tpu.pipeline_mode<synchronous>, transform_indices = @transform_9, window_bounds = array<i64: 500, 500>}, {pipeline_mode = #tpu.pipeline_mode<synchronous>, transform_indices = @transform_10, window_bounds = array<i64: 1, 500>}, {pipeline_mode = #tpu.pipeline_mode<synchronous>, transform_indices = @transform_11, window_bounds = array<i64: 500, 10>}, {pipeline_mode = #tpu.pipeline_mode<synchronous>, transform_indices = @transform_12, window_bounds = array<i64: 1, 10>}, {transform_indices = @transform_13, window_bounds = array<i64: 8, 10>}, {transform_indices = @transform_14, window_bounds = array<i64: 8, 500>}]} {
    %c0 = arith.constant 0 : index
    %c0_0 = arith.constant 0 : index
    %c0_1 = arith.constant 0 : index
    %0 = vector.load %arg1[%c0, %c0_0, %c0_1] : memref<32x8x96xf32, #tpu.memory_space<vmem>>, vector<32x8x96xf32>
    %1 = vector.shape_cast %0 : vector<32x8x96xf32> to vector<256x96xf32>
    %2 = vector.extract_strided_slice %1 {offsets = [0, 0], sizes = [224, 96], strides = [1, 1]} : vector<256x96xf32> to vector<224x96xf32>
    %3 = arith.truncf %2 : vector<224x96xf32> to vector<224x96xbf16>
    %c0_2 = arith.constant 0 : index
    %c0_3 = arith.constant 0 : index
    %c0_4 = arith.constant 0 : index
    %4 = vector.load %arg2[%c0_2, %c0_3, %c0_4] : memref<5x96x224xbf16, #tpu.memory_space<vmem>>, vector<1x96x224xbf16>
    %5 = vector.shape_cast %4 : vector<1x96x224xbf16> to vector<96x224xbf16>
    %cst = arith.constant dense<0.000000e+00> : vector<224x224xf32>
    %6 = tpu.matmul %3, %5, %cst {dimension_numbers = #tpu.dot_dimension_numbers<[1], [0], [0], [1], [0, 0, 1, 1], [], []>} : vector<224x96xbf16>, vector<96x224xbf16>, vector<224x224xf32> -> vector<224x224xf32>
    %c0_5 = arith.constant 0 : index
    %c0_6 = arith.constant 0 : index
    %c0_7 = arith.constant 0 : index
    %7 = vector.load %arg3[%c0_5, %c0_6, %c0_7] : memref<5x96x224xbf16, #tpu.memory_space<vmem>>, vector<1x96x224xbf16>
    %8 = vector.shape_cast %7 : vector<1x96x224xbf16> to vector<96x224xbf16>
    %cst_8 = arith.constant dense<0.000000e+00> : vector<224x224xf32>
    %9 = tpu.matmul %3, %8, %cst_8 {dimension_numbers = #tpu.dot_dimension_numbers<[1], [0], [0], [1], [0, 0, 1, 1], [], []>} : vector<224x96xbf16>, vector<96x224xbf16>, vector<224x224xf32> -> vector<224x224xf32>
    %10 = vector.extract_strided_slice %1 {offsets = [8, 0], sizes = [224, 96], strides = [1, 1]} : vector<256x96xf32> to vector<224x96xf32>
    %11 = arith.truncf %10 : vector<224x96xf32> to vector<224x96xbf16>
    %c1 = arith.constant 1 : index
    %c0_9 = arith.constant 0 : index
    %c0_10 = arith.constant 0 : index
    %12 = vector.load %arg2[%c1, %c0_9, %c0_10] : memref<5x96x224xbf16, #tpu.memory_space<vmem>>, vector<1x96x224xbf16>
    %13 = vector.shape_cast %12 : vector<1x96x224xbf16> to vector<96x224xbf16>
    %cst_11 = arith.constant dense<0.000000e+00> : vector<224x224xf32>
    %14 = tpu.matmul %11, %13, %cst_11 {dimension_numbers = #tpu.dot_dimension_numbers<[1], [0], [0], [1], [0, 0, 1, 1], [], []>} : vector<224x96xbf16>, vector<96x224xbf16>, vector<224x224xf32> -> vector<224x224xf32>
    %c1_12 = arith.constant 1 : index
    %c0_13 = arith.constant 0 : index
    %c0_14 = arith.constant 0 : index
    %15 = vector.load %arg3[%c1_12, %c0_13, %c0_14] : memref<5x96x224xbf16, #tpu.memory_space<vmem>>, vector<1x96x224xbf16>
    %16 = vector.shape_cast %15 : vector<1x96x224xbf16> to vector<96x224xbf16>
    %cst_15 = arith.constant dense<0.000000e+00> : vector<224x224xf32>
    %17 = tpu.matmul %11, %16, %cst_15 {dimension_numbers = #tpu.dot_dimension_numbers<[1], [0], [0], [1], [0, 0, 1, 1], [], []>} : vector<224x96xbf16>, vector<96x224xbf16>, vector<224x224xf32> -> vector<224x224xf32>
    %18 = arith.addf %6, %14 : vector<224x224xf32>
    %19 = arith.addf %9, %17 : vector<224x224xf32>
    %20 = vector.extract_strided_slice %1 {offsets = [16, 0], sizes = [224, 96], strides = [1, 1]} : vector<256x96xf32> to vector<224x96xf32>
    %21 = arith.truncf %20 : vector<224x96xf32> to vector<224x96xbf16>
    %c2 = arith.constant 2 : index
    %c0_16 = arith.constant 0 : index
    %c0_17 = arith.constant 0 : index
    %22 = vector.load %arg2[%c2, %c0_16, %c0_17] : memref<5x96x224xbf16, #tpu.memory_space<vmem>>, vector<1x96x224xbf16>
    %23 = vector.shape_cast %22 : vector<1x96x224xbf16> to vector<96x224xbf16>
    %cst_18 = arith.constant dense<0.000000e+00> : vector<224x224xf32>
    %24 = tpu.matmul %21, %23, %cst_18 {dimension_numbers = #tpu.dot_dimension_numbers<[1], [0], [0], [1], [0, 0, 1, 1], [], []>} : vector<224x96xbf16>, vector<96x224xbf16>, vector<224x224xf32> -> vector<224x224xf32>
    %c2_19 = arith.constant 2 : index
    %c0_20 = arith.constant 0 : index
    %c0_21 = arith.constant 0 : index
    %25 = vector.load %arg3[%c2_19, %c0_20, %c0_21] : memref<5x96x224xbf16, #tpu.memory_space<vmem>>, vector<1x96x224xbf16>
    %26 = vector.shape_cast %25 : vector<1x96x224xbf16> to vector<96x224xbf16>
    %cst_22 = arith.constant dense<0.000000e+00> : vector<224x224xf32>
    %27 = tpu.matmul %21, %26, %cst_22 {dimension_numbers = #tpu.dot_dimension_numbers<[1], [0], [0], [1], [0, 0, 1, 1], [], []>} : vector<224x96xbf16>, vector<96x224xbf16>, vector<224x224xf32> -> vector<224x224xf32>
    %28 = arith.addf %18, %24 : vector<224x224xf32>
    %29 = arith.addf %19, %27 : vector<224x224xf32>
    %30 = vector.extract_strided_slice %1 {offsets = [24, 0], sizes = [224, 96], strides = [1, 1]} : vector<256x96xf32> to vector<224x96xf32>
    %31 = arith.truncf %30 : vector<224x96xf32> to vector<224x96xbf16>
    %c3 = arith.constant 3 : index
    %c0_23 = arith.constant 0 : index
    %c0_24 = arith.constant 0 : index
    %32 = vector.load %arg2[%c3, %c0_23, %c0_24] : memref<5x96x224xbf16, #tpu.memory_space<vmem>>, vector<1x96x224xbf16>
    %33 = vector.shape_cast %32 : vector<1x96x224xbf16> to vector<96x224xbf16>
    %cst_25 = arith.constant dense<0.000000e+00> : vector<224x224xf32>
    %34 = tpu.matmul %31, %33, %cst_25 {dimension_numbers = #tpu.dot_dimension_numbers<[1], [0], [0], [1], [0, 0, 1, 1], [], []>} : vector<224x96xbf16>, vector<96x224xbf16>, vector<224x224xf32> -> vector<224x224xf32>
    %c3_26 = arith.constant 3 : index
    %c0_27 = arith.constant 0 : index
    %c0_28 = arith.constant 0 : index
    %35 = vector.load %arg3[%c3_26, %c0_27, %c0_28] : memref<5x96x224xbf16, #tpu.memory_space<vmem>>, vector<1x96x224xbf16>
    %36 = vector.shape_cast %35 : vector<1x96x224xbf16> to vector<96x224xbf16>
    %cst_29 = arith.constant dense<0.000000e+00> : vector<224x224xf32>
    %37 = tpu.matmul %31, %36, %cst_29 {dimension_numbers = #tpu.dot_dimension_numbers<[1], [0], [0], [1], [0, 0, 1, 1], [], []>} : vector<224x96xbf16>, vector<96x224xbf16>, vector<224x224xf32> -> vector<224x224xf32>
    %38 = arith.addf %28, %34 : vector<224x224xf32>
    %39 = arith.addf %29, %37 : vector<224x224xf32>
    %40 = vector.extract_strided_slice %1 {offsets = [32, 0], sizes = [224, 96], strides = [1, 1]} : vector<256x96xf32> to vector<224x96xf32>
    %41 = arith.truncf %40 : vector<224x96xf32> to vector<224x96xbf16>
    %c4 = arith.constant 4 : index
    %c0_30 = arith.constant 0 : index
    %c0_31 = arith.constant 0 : index
    %42 = vector.load %arg2[%c4, %c0_30, %c0_31] : memref<5x96x224xbf16, #tpu.memory_space<vmem>>, vector<1x96x224xbf16>
    %43 = vector.shape_cast %42 : vector<1x96x224xbf16> to vector<96x224xbf16>
    %cst_32 = arith.constant dense<0.000000e+00> : vector<224x224xf32>
    %44 = tpu.matmul %41, %43, %cst_32 {dimension_numbers = #tpu.dot_dimension_numbers<[1], [0], [0], [1], [0, 0, 1, 1], [], []>} : vector<224x96xbf16>, vector<96x224xbf16>, vector<224x224xf32> -> vector<224x224xf32>
    %c4_33 = arith.constant 4 : index
    %c0_34 = arith.constant 0 : index
    %c0_35 = arith.constant 0 : index
    %45 = vector.load %arg3[%c4_33, %c0_34, %c0_35] : memref<5x96x224xbf16, #tpu.memory_space<vmem>>, vector<1x96x224xbf16>
    %46 = vector.shape_cast %45 : vector<1x96x224xbf16> to vector<96x224xbf16>
    %cst_36 = arith.constant dense<0.000000e+00> : vector<224x224xf32>
    %47 = tpu.matmul %41, %46, %cst_36 {dimension_numbers = #tpu.dot_dimension_numbers<[1], [0], [0], [1], [0, 0, 1, 1], [], []>} : vector<224x96xbf16>, vector<96x224xbf16>, vector<224x224xf32> -> vector<224x224xf32>
    %48 = arith.addf %38, %44 : vector<224x224xf32>
    %49 = arith.addf %39, %47 : vector<224x224xf32>
    %50 = arith.maximumf %48, %49 : vector<224x224xf32>
    %51 = vector.shape_cast %50 : vector<224x224xf32> to vector<14x16x224xf32>
    %52 = vector.extract_strided_slice %51 {offsets = [0, 0, 0], sizes = [14, 8, 224], strides = [1, 1, 1]} : vector<14x16x224xf32> to vector<14x8x224xf32>
    %53 = vector.extract_strided_slice %51 {offsets = [0, 8, 0], sizes = [14, 8, 224], strides = [1, 1, 1]} : vector<14x16x224xf32> to vector<14x8x224xf32>
    %54 = arith.maximumf %52, %53 : vector<14x8x224xf32>
    %55 = vector.shape_cast %54 : vector<14x8x224xf32> to vector<112x224xf32>
    %c0_37 = arith.constant 0 : index
    %c0_38 = arith.constant 0 : index
    %56 = vector.load %arg4[%c0_37, %c0_38] : memref<1x224xf32, #tpu.memory_space<vmem>>, vector<1x224xf32>
    %57 = vector.broadcast %56 : vector<1x224xf32> to vector<112x224xf32>
    %58 = arith.addf %55, %57 : vector<112x224xf32>
    %cst_39 = arith.constant 0.000000e+00 : f32
    %59 = vector.broadcast %cst_39 : f32 to vector<112x224xf32>
    %60 = arith.maximumf %58, %59 : vector<112x224xf32>
    %61 = vector.extract_strided_slice %60 {offsets = [0, 0], sizes = [80, 224], strides = [1, 1]} : vector<112x224xf32> to vector<80x224xf32>
    %62 = arith.truncf %61 : vector<80x224xf32> to vector<80x224xbf16>
    %c0_40 = arith.constant 0 : index
    %c0_41 = arith.constant 0 : index
    %c0_42 = arith.constant 0 : index
    %63 = vector.load %arg5[%c0_40, %c0_41, %c0_42] : memref<5x224x160xbf16, #tpu.memory_space<vmem>>, vector<1x224x160xbf16>
    %64 = vector.shape_cast %63 : vector<1x224x160xbf16> to vector<224x160xbf16>
    %cst_43 = arith.constant dense<0.000000e+00> : vector<80x160xf32>
    %65 = tpu.matmul %62, %64, %cst_43 {dimension_numbers = #tpu.dot_dimension_numbers<[1], [0], [0], [1], [0, 0, 1, 1], [], []>} : vector<80x224xbf16>, vector<224x160xbf16>, vector<80x160xf32> -> vector<80x160xf32>
    %c0_44 = arith.constant 0 : index
    %c0_45 = arith.constant 0 : index
    %c0_46 = arith.constant 0 : index
    %66 = vector.load %arg6[%c0_44, %c0_45, %c0_46] : memref<5x224x160xbf16, #tpu.memory_space<vmem>>, vector<1x224x160xbf16>
    %67 = vector.shape_cast %66 : vector<1x224x160xbf16> to vector<224x160xbf16>
    %cst_47 = arith.constant dense<0.000000e+00> : vector<80x160xf32>
    %68 = tpu.matmul %62, %67, %cst_47 {dimension_numbers = #tpu.dot_dimension_numbers<[1], [0], [0], [1], [0, 0, 1, 1], [], []>} : vector<80x224xbf16>, vector<224x160xbf16>, vector<80x160xf32> -> vector<80x160xf32>
    %69 = vector.extract_strided_slice %60 {offsets = [8, 0], sizes = [80, 224], strides = [1, 1]} : vector<112x224xf32> to vector<80x224xf32>
    %70 = arith.truncf %69 : vector<80x224xf32> to vector<80x224xbf16>
    %c1_48 = arith.constant 1 : index
    %c0_49 = arith.constant 0 : index
    %c0_50 = arith.constant 0 : index
    %71 = vector.load %arg5[%c1_48, %c0_49, %c0_50] : memref<5x224x160xbf16, #tpu.memory_space<vmem>>, vector<1x224x160xbf16>
    %72 = vector.shape_cast %71 : vector<1x224x160xbf16> to vector<224x160xbf16>
    %cst_51 = arith.constant dense<0.000000e+00> : vector<80x160xf32>
    %73 = tpu.matmul %70, %72, %cst_51 {dimension_numbers = #tpu.dot_dimension_numbers<[1], [0], [0], [1], [0, 0, 1, 1], [], []>} : vector<80x224xbf16>, vector<224x160xbf16>, vector<80x160xf32> -> vector<80x160xf32>
    %c1_52 = arith.constant 1 : index
    %c0_53 = arith.constant 0 : index
    %c0_54 = arith.constant 0 : index
    %74 = vector.load %arg6[%c1_52, %c0_53, %c0_54] : memref<5x224x160xbf16, #tpu.memory_space<vmem>>, vector<1x224x160xbf16>
    %75 = vector.shape_cast %74 : vector<1x224x160xbf16> to vector<224x160xbf16>
    %cst_55 = arith.constant dense<0.000000e+00> : vector<80x160xf32>
    %76 = tpu.matmul %70, %75, %cst_55 {dimension_numbers = #tpu.dot_dimension_numbers<[1], [0], [0], [1], [0, 0, 1, 1], [], []>} : vector<80x224xbf16>, vector<224x160xbf16>, vector<80x160xf32> -> vector<80x160xf32>
    %77 = arith.addf %65, %73 : vector<80x160xf32>
    %78 = arith.addf %68, %76 : vector<80x160xf32>
    %79 = vector.extract_strided_slice %60 {offsets = [16, 0], sizes = [80, 224], strides = [1, 1]} : vector<112x224xf32> to vector<80x224xf32>
    %80 = arith.truncf %79 : vector<80x224xf32> to vector<80x224xbf16>
    %c2_56 = arith.constant 2 : index
    %c0_57 = arith.constant 0 : index
    %c0_58 = arith.constant 0 : index
    %81 = vector.load %arg5[%c2_56, %c0_57, %c0_58] : memref<5x224x160xbf16, #tpu.memory_space<vmem>>, vector<1x224x160xbf16>
    %82 = vector.shape_cast %81 : vector<1x224x160xbf16> to vector<224x160xbf16>
    %cst_59 = arith.constant dense<0.000000e+00> : vector<80x160xf32>
    %83 = tpu.matmul %80, %82, %cst_59 {dimension_numbers = #tpu.dot_dimension_numbers<[1], [0], [0], [1], [0, 0, 1, 1], [], []>} : vector<80x224xbf16>, vector<224x160xbf16>, vector<80x160xf32> -> vector<80x160xf32>
    %c2_60 = arith.constant 2 : index
    %c0_61 = arith.constant 0 : index
    %c0_62 = arith.constant 0 : index
    %84 = vector.load %arg6[%c2_60, %c0_61, %c0_62] : memref<5x224x160xbf16, #tpu.memory_space<vmem>>, vector<1x224x160xbf16>
    %85 = vector.shape_cast %84 : vector<1x224x160xbf16> to vector<224x160xbf16>
    %cst_63 = arith.constant dense<0.000000e+00> : vector<80x160xf32>
    %86 = tpu.matmul %80, %85, %cst_63 {dimension_numbers = #tpu.dot_dimension_numbers<[1], [0], [0], [1], [0, 0, 1, 1], [], []>} : vector<80x224xbf16>, vector<224x160xbf16>, vector<80x160xf32> -> vector<80x160xf32>
    %87 = arith.addf %77, %83 : vector<80x160xf32>
    %88 = arith.addf %78, %86 : vector<80x160xf32>
    %89 = vector.extract_strided_slice %60 {offsets = [24, 0], sizes = [80, 224], strides = [1, 1]} : vector<112x224xf32> to vector<80x224xf32>
    %90 = arith.truncf %89 : vector<80x224xf32> to vector<80x224xbf16>
    %c3_64 = arith.constant 3 : index
    %c0_65 = arith.constant 0 : index
    %c0_66 = arith.constant 0 : index
    %91 = vector.load %arg5[%c3_64, %c0_65, %c0_66] : memref<5x224x160xbf16, #tpu.memory_space<vmem>>, vector<1x224x160xbf16>
    %92 = vector.shape_cast %91 : vector<1x224x160xbf16> to vector<224x160xbf16>
    %cst_67 = arith.constant dense<0.000000e+00> : vector<80x160xf32>
    %93 = tpu.matmul %90, %92, %cst_67 {dimension_numbers = #tpu.dot_dimension_numbers<[1], [0], [0], [1], [0, 0, 1, 1], [], []>} : vector<80x224xbf16>, vector<224x160xbf16>, vector<80x160xf32> -> vector<80x160xf32>
    %c3_68 = arith.constant 3 : index
    %c0_69 = arith.constant 0 : index
    %c0_70 = arith.constant 0 : index
    %94 = vector.load %arg6[%c3_68, %c0_69, %c0_70] : memref<5x224x160xbf16, #tpu.memory_space<vmem>>, vector<1x224x160xbf16>
    %95 = vector.shape_cast %94 : vector<1x224x160xbf16> to vector<224x160xbf16>
    %cst_71 = arith.constant dense<0.000000e+00> : vector<80x160xf32>
    %96 = tpu.matmul %90, %95, %cst_71 {dimension_numbers = #tpu.dot_dimension_numbers<[1], [0], [0], [1], [0, 0, 1, 1], [], []>} : vector<80x224xbf16>, vector<224x160xbf16>, vector<80x160xf32> -> vector<80x160xf32>
    %97 = arith.addf %87, %93 : vector<80x160xf32>
    %98 = arith.addf %88, %96 : vector<80x160xf32>
    %99 = vector.extract_strided_slice %60 {offsets = [32, 0], sizes = [80, 224], strides = [1, 1]} : vector<112x224xf32> to vector<80x224xf32>
    %100 = arith.truncf %99 : vector<80x224xf32> to vector<80x224xbf16>
    %c4_72 = arith.constant 4 : index
    %c0_73 = arith.constant 0 : index
    %c0_74 = arith.constant 0 : index
    %101 = vector.load %arg5[%c4_72, %c0_73, %c0_74] : memref<5x224x160xbf16, #tpu.memory_space<vmem>>, vector<1x224x160xbf16>
    %102 = vector.shape_cast %101 : vector<1x224x160xbf16> to vector<224x160xbf16>
    %cst_75 = arith.constant dense<0.000000e+00> : vector<80x160xf32>
    %103 = tpu.matmul %100, %102, %cst_75 {dimension_numbers = #tpu.dot_dimension_numbers<[1], [0], [0], [1], [0, 0, 1, 1], [], []>} : vector<80x224xbf16>, vector<224x160xbf16>, vector<80x160xf32> -> vector<80x160xf32>
    %c4_76 = arith.constant 4 : index
    %c0_77 = arith.constant 0 : index
    %c0_78 = arith.constant 0 : index
    %104 = vector.load %arg6[%c4_76, %c0_77, %c0_78] : memref<5x224x160xbf16, #tpu.memory_space<vmem>>, vector<1x224x160xbf16>
    %105 = vector.shape_cast %104 : vector<1x224x160xbf16> to vector<224x160xbf16>
    %cst_79 = arith.constant dense<0.000000e+00> : vector<80x160xf32>
    %106 = tpu.matmul %100, %105, %cst_79 {dimension_numbers = #tpu.dot_dimension_numbers<[1], [0], [0], [1], [0, 0, 1, 1], [], []>} : vector<80x224xbf16>, vector<224x160xbf16>, vector<80x160xf32> -> vector<80x160xf32>
    %107 = arith.addf %97, %103 : vector<80x160xf32>
    %108 = arith.addf %98, %106 : vector<80x160xf32>
    %109 = arith.maximumf %107, %108 : vector<80x160xf32>
    %110 = vector.shape_cast %109 : vector<80x160xf32> to vector<5x16x160xf32>
    %111 = vector.extract_strided_slice %110 {offsets = [0, 0, 0], sizes = [5, 8, 160], strides = [1, 1, 1]} : vector<5x16x160xf32> to vector<5x8x160xf32>
    %112 = vector.extract_strided_slice %110 {offsets = [0, 8, 0], sizes = [5, 8, 160], strides = [1, 1, 1]} : vector<5x16x160xf32> to vector<5x8x160xf32>
    %113 = arith.maximumf %111, %112 : vector<5x8x160xf32>
    %114 = vector.shape_cast %113 : vector<5x8x160xf32> to vector<40x160xf32>
    %c0_80 = arith.constant 0 : index
    %c0_81 = arith.constant 0 : index
    %115 = vector.load %arg7[%c0_80, %c0_81] : memref<1x160xf32, #tpu.memory_space<vmem>>, vector<1x160xf32>
    %116 = vector.broadcast %115 : vector<1x160xf32> to vector<40x160xf32>
    %117 = arith.addf %114, %116 : vector<40x160xf32>
    %cst_82 = arith.constant 0.000000e+00 : f32
    %118 = vector.broadcast %cst_82 : f32 to vector<40x160xf32>
    %119 = arith.maximumf %117, %118 : vector<40x160xf32>
    %120 = vector.extract_strided_slice %119 {offsets = [0, 0], sizes = [8, 160], strides = [1, 1]} : vector<40x160xf32> to vector<8x160xf32>
    %121 = arith.truncf %120 : vector<8x160xf32> to vector<8x160xbf16>
    %c0_83 = arith.constant 0 : index
    %c0_84 = arith.constant 0 : index
    %c0_85 = arith.constant 0 : index
    %122 = vector.load %arg8[%c0_83, %c0_84, %c0_85] : memref<5x160x500xbf16, #tpu.memory_space<vmem>>, vector<1x160x500xbf16>
    %123 = vector.shape_cast %122 : vector<1x160x500xbf16> to vector<160x500xbf16>
    %cst_86 = arith.constant dense<0.000000e+00> : vector<8x500xf32>
    %124 = tpu.matmul %121, %123, %cst_86 {dimension_numbers = #tpu.dot_dimension_numbers<[1], [0], [0], [1], [0, 0, 1, 1], [], []>} : vector<8x160xbf16>, vector<160x500xbf16>, vector<8x500xf32> -> vector<8x500xf32>
    %125 = vector.extract_strided_slice %119 {offsets = [8, 0], sizes = [8, 160], strides = [1, 1]} : vector<40x160xf32> to vector<8x160xf32>
    %126 = arith.truncf %125 : vector<8x160xf32> to vector<8x160xbf16>
    %c1_87 = arith.constant 1 : index
    %c0_88 = arith.constant 0 : index
    %c0_89 = arith.constant 0 : index
    %127 = vector.load %arg8[%c1_87, %c0_88, %c0_89] : memref<5x160x500xbf16, #tpu.memory_space<vmem>>, vector<1x160x500xbf16>
    %128 = vector.shape_cast %127 : vector<1x160x500xbf16> to vector<160x500xbf16>
    %cst_90 = arith.constant dense<0.000000e+00> : vector<8x500xf32>
    %129 = tpu.matmul %126, %128, %cst_90 {dimension_numbers = #tpu.dot_dimension_numbers<[1], [0], [0], [1], [0, 0, 1, 1], [], []>} : vector<8x160xbf16>, vector<160x500xbf16>, vector<8x500xf32> -> vector<8x500xf32>
    %130 = arith.addf %124, %129 : vector<8x500xf32>
    %131 = vector.extract_strided_slice %119 {offsets = [16, 0], sizes = [8, 160], strides = [1, 1]} : vector<40x160xf32> to vector<8x160xf32>
    %132 = arith.truncf %131 : vector<8x160xf32> to vector<8x160xbf16>
    %c2_91 = arith.constant 2 : index
    %c0_92 = arith.constant 0 : index
    %c0_93 = arith.constant 0 : index
    %133 = vector.load %arg8[%c2_91, %c0_92, %c0_93] : memref<5x160x500xbf16, #tpu.memory_space<vmem>>, vector<1x160x500xbf16>
    %134 = vector.shape_cast %133 : vector<1x160x500xbf16> to vector<160x500xbf16>
    %cst_94 = arith.constant dense<0.000000e+00> : vector<8x500xf32>
    %135 = tpu.matmul %132, %134, %cst_94 {dimension_numbers = #tpu.dot_dimension_numbers<[1], [0], [0], [1], [0, 0, 1, 1], [], []>} : vector<8x160xbf16>, vector<160x500xbf16>, vector<8x500xf32> -> vector<8x500xf32>
    %136 = arith.addf %130, %135 : vector<8x500xf32>
    %137 = vector.extract_strided_slice %119 {offsets = [24, 0], sizes = [8, 160], strides = [1, 1]} : vector<40x160xf32> to vector<8x160xf32>
    %138 = arith.truncf %137 : vector<8x160xf32> to vector<8x160xbf16>
    %c3_95 = arith.constant 3 : index
    %c0_96 = arith.constant 0 : index
    %c0_97 = arith.constant 0 : index
    %139 = vector.load %arg8[%c3_95, %c0_96, %c0_97] : memref<5x160x500xbf16, #tpu.memory_space<vmem>>, vector<1x160x500xbf16>
    %140 = vector.shape_cast %139 : vector<1x160x500xbf16> to vector<160x500xbf16>
    %cst_98 = arith.constant dense<0.000000e+00> : vector<8x500xf32>
    %141 = tpu.matmul %138, %140, %cst_98 {dimension_numbers = #tpu.dot_dimension_numbers<[1], [0], [0], [1], [0, 0, 1, 1], [], []>} : vector<8x160xbf16>, vector<160x500xbf16>, vector<8x500xf32> -> vector<8x500xf32>
    %142 = arith.addf %136, %141 : vector<8x500xf32>
    %143 = vector.extract_strided_slice %119 {offsets = [32, 0], sizes = [8, 160], strides = [1, 1]} : vector<40x160xf32> to vector<8x160xf32>
    %144 = arith.truncf %143 : vector<8x160xf32> to vector<8x160xbf16>
    %c4_99 = arith.constant 4 : index
    %c0_100 = arith.constant 0 : index
    %c0_101 = arith.constant 0 : index
    %145 = vector.load %arg8[%c4_99, %c0_100, %c0_101] : memref<5x160x500xbf16, #tpu.memory_space<vmem>>, vector<1x160x500xbf16>
    %146 = vector.shape_cast %145 : vector<1x160x500xbf16> to vector<160x500xbf16>
    %cst_102 = arith.constant dense<0.000000e+00> : vector<8x500xf32>
    %147 = tpu.matmul %144, %146, %cst_102 {dimension_numbers = #tpu.dot_dimension_numbers<[1], [0], [0], [1], [0, 0, 1, 1], [], []>} : vector<8x160xbf16>, vector<160x500xbf16>, vector<8x500xf32> -> vector<8x500xf32>
    %148 = arith.addf %142, %147 : vector<8x500xf32>
    %c0_103 = arith.constant 0 : index
    %c0_104 = arith.constant 0 : index
    %149 = vector.load %arg9[%c0_103, %c0_104] : memref<1x500xf32, #tpu.memory_space<vmem>>, vector<1x500xf32>
    %150 = vector.broadcast %149 : vector<1x500xf32> to vector<8x500xf32>
    %151 = arith.addf %148, %150 : vector<8x500xf32>
    %cst_105 = arith.constant 0.000000e+00 : f32
    %152 = vector.broadcast %cst_105 : f32 to vector<8x500xf32>
    %153 = arith.maximumf %151, %152 : vector<8x500xf32>
    %154 = arith.truncf %153 : vector<8x500xf32> to vector<8x500xbf16>
    %c0_106 = arith.constant 0 : index
    %c0_107 = arith.constant 0 : index
    %155 = vector.load %arg10[%c0_106, %c0_107] : memref<500x500xbf16, #tpu.memory_space<vmem>>, vector<500x500xbf16>
    %cst_108 = arith.constant dense<0.000000e+00> : vector<8x500xf32>
    %156 = tpu.matmul %154, %155, %cst_108 {dimension_numbers = #tpu.dot_dimension_numbers<[1], [0], [0], [1], [0, 0, 1, 1], [], []>} : vector<8x500xbf16>, vector<500x500xbf16>, vector<8x500xf32> -> vector<8x500xf32>
    %c0_109 = arith.constant 0 : index
    %c0_110 = arith.constant 0 : index
    %157 = vector.load %arg11[%c0_109, %c0_110] : memref<1x500xf32, #tpu.memory_space<vmem>>, vector<1x500xf32>
    %158 = vector.broadcast %157 : vector<1x500xf32> to vector<8x500xf32>
    %159 = arith.addf %156, %158 : vector<8x500xf32>
    %cst_111 = arith.constant 0.000000e+00 : f32
    %160 = vector.broadcast %cst_111 : f32 to vector<8x500xf32>
    %161 = arith.maximumf %159, %160 : vector<8x500xf32>
    %c0_112 = arith.constant 0 : index
    %c0_113 = arith.constant 0 : index
    %162 = vector.load %arg15[%c0_112, %c0_113] : memref<8x500xf32, #tpu.memory_space<vmem>>, vector<8x500xf32>
    tpu.vector_store %arg15[%c0_112, %c0_113], %161 {strides = array<i32>} : memref<8x500xf32, #tpu.memory_space<vmem>>, vector<8x500xf32>,
    %163 = arith.truncf %161 : vector<8x500xf32> to vector<8x500xbf16>
    %c0_114 = arith.constant 0 : index
    %c0_115 = arith.constant 0 : index
    %164 = vector.load %arg12[%c0_114, %c0_115] : memref<500x10xbf16, #tpu.memory_space<vmem>>, vector<500x10xbf16>
    %cst_116 = arith.constant dense<0.000000e+00> : vector<8x10xf32>
    %165 = tpu.matmul %163, %164, %cst_116 {dimension_numbers = #tpu.dot_dimension_numbers<[1], [0], [0], [1], [0, 0, 1, 1], [], []>} : vector<8x500xbf16>, vector<500x10xbf16>, vector<8x10xf32> -> vector<8x10xf32>
    %c0_117 = arith.constant 0 : index
    %c0_118 = arith.constant 0 : index
    %166 = vector.load %arg13[%c0_117, %c0_118] : memref<1x10xf32, #tpu.memory_space<vmem>>, vector<1x10xf32>
    %167 = vector.broadcast %166 : vector<1x10xf32> to vector<8x10xf32>
    %168 = arith.addf %165, %167 : vector<8x10xf32>
    %c0_119 = arith.constant 0 : index
    %c0_120 = arith.constant 0 : index
    %169 = vector.load %arg14[%c0_119, %c0_120] : memref<8x10xf32, #tpu.memory_space<vmem>>, vector<8x10xf32>
    tpu.vector_store %arg14[%c0_119, %c0_120], %168 {strides = array<i32>} : memref<8x10xf32, #tpu.memory_space<vmem>>, vector<8x10xf32>,
    return
  }
  func.func @transform_0(%arg0: i32) -> (i32, i32, i32) {
    %c0_i32 = arith.constant 0 : i32
    %c0_i32_0 = arith.constant 0 : i32
    %c0_i32_1 = arith.constant 0 : i32
    return %c0_i32, %arg0, %c0_i32_0 : i32, i32, i32
  }
  func.func @transform_1(%arg0: i32) -> (i32, i32, i32) {
    %c0_i32 = arith.constant 0 : i32
    %c0_i32_0 = arith.constant 0 : i32
    %c0_i32_1 = arith.constant 0 : i32
    %c0_i32_2 = arith.constant 0 : i32
    return %c0_i32, %c0_i32_0, %c0_i32_1 : i32, i32, i32
  }
  func.func @transform_2(%arg0: i32) -> (i32, i32, i32) {
    %c0_i32 = arith.constant 0 : i32
    %c0_i32_0 = arith.constant 0 : i32
    %c0_i32_1 = arith.constant 0 : i32
    %c0_i32_2 = arith.constant 0 : i32
    return %c0_i32, %c0_i32_0, %c0_i32_1 : i32, i32, i32
  }
  func.func @transform_3(%arg0: i32) -> (i32, i32) {
    %c0_i32 = arith.constant 0 : i32
    %c0_i32_0 = arith.constant 0 : i32
    %c0_i32_1 = arith.constant 0 : i32
    return %c0_i32, %c0_i32_0 : i32, i32
  }
  func.func @transform_4(%arg0: i32) -> (i32, i32, i32) {
    %c0_i32 = arith.constant 0 : i32
    %c0_i32_0 = arith.constant 0 : i32
    %c0_i32_1 = arith.constant 0 : i32
    %c0_i32_2 = arith.constant 0 : i32
    return %c0_i32, %c0_i32_0, %c0_i32_1 : i32, i32, i32
  }
  func.func @transform_5(%arg0: i32) -> (i32, i32, i32) {
    %c0_i32 = arith.constant 0 : i32
    %c0_i32_0 = arith.constant 0 : i32
    %c0_i32_1 = arith.constant 0 : i32
    %c0_i32_2 = arith.constant 0 : i32
    return %c0_i32, %c0_i32_0, %c0_i32_1 : i32, i32, i32
  }
  func.func @transform_6(%arg0: i32) -> (i32, i32) {
    %c0_i32 = arith.constant 0 : i32
    %c0_i32_0 = arith.constant 0 : i32
    %c0_i32_1 = arith.constant 0 : i32
    return %c0_i32, %c0_i32_0 : i32, i32
  }
  func.func @transform_7(%arg0: i32) -> (i32, i32, i32) {
    %c0_i32 = arith.constant 0 : i32
    %c0_i32_0 = arith.constant 0 : i32
    %c0_i32_1 = arith.constant 0 : i32
    %c0_i32_2 = arith.constant 0 : i32
    return %c0_i32, %c0_i32_0, %c0_i32_1 : i32, i32, i32
  }
  func.func @transform_8(%arg0: i32) -> (i32, i32) {
    %c0_i32 = arith.constant 0 : i32
    %c0_i32_0 = arith.constant 0 : i32
    %c0_i32_1 = arith.constant 0 : i32
    return %c0_i32, %c0_i32_0 : i32, i32
  }
  func.func @transform_9(%arg0: i32) -> (i32, i32) {
    %c0_i32 = arith.constant 0 : i32
    %c0_i32_0 = arith.constant 0 : i32
    %c0_i32_1 = arith.constant 0 : i32
    return %c0_i32, %c0_i32_0 : i32, i32
  }
  func.func @transform_10(%arg0: i32) -> (i32, i32) {
    %c0_i32 = arith.constant 0 : i32
    %c0_i32_0 = arith.constant 0 : i32
    %c0_i32_1 = arith.constant 0 : i32
    return %c0_i32, %c0_i32_0 : i32, i32
  }
  func.func @transform_11(%arg0: i32) -> (i32, i32) {
    %c0_i32 = arith.constant 0 : i32
    %c0_i32_0 = arith.constant 0 : i32
    %c0_i32_1 = arith.constant 0 : i32
    return %c0_i32, %c0_i32_0 : i32, i32
  }
  func.func @transform_12(%arg0: i32) -> (i32, i32) {
    %c0_i32 = arith.constant 0 : i32
    %c0_i32_0 = arith.constant 0 : i32
    %c0_i32_1 = arith.constant 0 : i32
    return %c0_i32, %c0_i32_0 : i32, i32
  }
  func.func @transform_13(%arg0: i32) -> (i32, i32) {
    %c0_i32 = arith.constant 0 : i32
    %c0_i32_0 = arith.constant 0 : i32
    return %arg0, %c0_i32 : i32, i32
  }
  func.func @transform_14(%arg0: i32) -> (i32, i32) {
    %c0_i32 = arith.constant 0 : i32
    %c0_i32_0 = arith.constant 0 : i32
    return %arg0, %c0_i32 : i32, i32
  }
}

</mosaic_0001>

<llo_original>
// kernel: forward.1
$region0: #{forward.1}
  #allocation0 [shape = 'u32[]', space=smem, size = 0x4, offset = 0x4, fixed_abs, tag = 'smem constant byte address 0x4 - core index']
  #allocation1 [shape = 'u32[144,128]{1,0:T(1,128)}', space=vmem, size = 0x12000, scoped, tag = 'internal scratch']
  %s0 = inlined_call_operand.vmem [shape: f32[32,8,96], index: 0, kind: input, shape index: {}]
  %s1 = inlined_call_operand.vmem [shape: bf16[5,96,224], index: 1, kind: input, shape index: {}]
  %s2 = inlined_call_operand.hbm [shape: bf16[5,96,224], index: 2, kind: input, shape index: {}]
  %s3 = inlined_call_operand.vmem [shape: f32[1,224], index: 3, kind: input, shape index: {}]
  %s4 = inlined_call_operand.vmem [shape: bf16[5,224,160], index: 4, kind: input, shape index: {}]
  %s5 = inlined_call_operand.vmem [shape: bf16[5,224,160], index: 5, kind: input, shape index: {}]
  %s6 = inlined_call_operand.vmem [shape: f32[1,160], index: 6, kind: input, shape index: {}]
  %s7 = inlined_call_operand.vmem [shape: bf16[5,160,500], index: 7, kind: input, shape index: {}]
  %s8 = inlined_call_operand.vmem [shape: f32[1,500], index: 8, kind: input, shape index: {}]
  %s9 = inlined_call_operand.vmem [shape: bf16[500,500], index: 9, kind: input, shape index: {}]
  %s10 = inlined_call_operand.vmem [shape: f32[1,500], index: 10, kind: input, shape index: {}]
  %s11 = inlined_call_operand.vmem [shape: bf16[500,10], index: 11, kind: input, shape index: {}]
  %s12 = inlined_call_operand.vmem [shape: f32[1,10], index: 12, kind: input, shape index: {}]
  %s13 = inlined_call_operand.vmem [shape: f32[8,10], index: 13, kind: output, shape index: {0}]
  %s14 = inlined_call_operand.vmem [shape: f32[8,500], index: 14, kind: output, shape index: {1}]
  %15 = xla_tuple %s13, %s14
  %s16 = sld [smem:[#allocation0]]
  $region74: #{forward.1} parent=0
    _
  %s18 = ssub.s32 1, %s16
  %s19 = scalar_select 0, %s18, %s16
  $region1: #{forward.1} parent=0
    #allocation2 [shape = 'u8[245760]{0}', space=vmem, size = 0x3c000, scoped, tag = 'input window, operand 2, single buffered']
    #allocation3 [shape = 's32[1]{0}', space=sflag, size = 0x4, scoped, tag = 'scoped memory for forward.1']
    %20 = vsyncpa [#allocation3], 0
    // Predicated region
    $region2: #{forward.1} parent=1 // pred_check
      _
    $region3: #{forward.1} parent=1 // pred_check_branch
      %22 = sbr.rel (0) target = $region5
    $region4: #{forward.1} parent=1 // pred_region
      _
    $region5: #{forward.1} parent=1 // pred_fallthru
      _
    // Predicated region
    $region6: #{forward.1} parent=1 // pred_check
      _
    $region7: #{forward.1} parent=1 // pred_check_branch
      %24 = sbr.rel (0) target = $region9
    $region8: #{forward.1} parent=1 // pred_region
      _
    $region9: #{forward.1} parent=1 // pred_fallthru
      _
    // Predicated region
    $region10: #{forward.1} parent=1 // pred_check
      _
    $region11: #{forward.1} parent=1 // pred_check_branch
      %26 = sbr.rel (0) target = $region13
    $region12: #{forward.1} parent=1 // pred_region
      %s28 = ssub.s32 7680, 7680
      %29 = vsyncadd [#allocation3], %s28
      %s30 = sshll.u32 [#allocation2], 4
      %s31 = int_to_ptr.vmem [resolvable:$true] %s30
      %36 = dma.hbm_to_vmem [thread:$0]  %s2, 7680, %s31, [#allocation3], 128, 128, 8
    $region13: #{forward.1} parent=1 // pred_fallthru
      _
    // Predicated region
    $region14: #{forward.1} parent=1 // pred_check
      _
    $region15: #{forward.1} parent=1 // pred_check_branch
      %38 = sbr.rel (0) target = $region17
    $region16: #{forward.1} parent=1 // pred_region
      _
    $region17: #{forward.1} parent=1 // pred_fallthru
      _
    // Predicated region
    $region18: #{forward.1} parent=1 // pred_check
      _
    $region19: #{forward.1} parent=1 // pred_check_branch
      %40 = sbr.rel (0) target = $region21
    $region20: #{forward.1} parent=1 // pred_region
      _
    $region21: #{forward.1} parent=1 // pred_fallthru
      _
    // Predicated region
    $region22: #{forward.1} parent=1 // pred_check
      _
    $region23: #{forward.1} parent=1 // pred_check_branch
      %42 = sbr.rel (0) target = $region25
    $region24: #{forward.1} parent=1 // pred_region
      _
    $region25: #{forward.1} parent=1 // pred_fallthru
      _
    // Predicated region
    $region26: #{forward.1} parent=1 // pred_check
      _
    $region27: #{forward.1} parent=1 // pred_check_branch
      %44 = sbr.rel (0) target = $region29
    $region28: #{forward.1} parent=1 // pred_region
      _
    $region29: #{forward.1} parent=1 // pred_fallthru
      _
    // Predicated region
    $region30: #{forward.1} parent=1 // pred_check
      _
    $region31: #{forward.1} parent=1 // pred_check_branch
      %46 = sbr.rel (0) target = $region33
    $region32: #{forward.1} parent=1 // pred_region
      _
    $region33: #{forward.1} parent=1 // pred_fallthru
      _
    // Predicated region
    $region34: #{forward.1} parent=1 // pred_check
      _
    $region35: #{forward.1} parent=1 // pred_check_branch
      %48 = sbr.rel (0) target = $region37
    $region36: #{forward.1} parent=1 // pred_region
      _
    $region37: #{forward.1} parent=1 // pred_fallthru
      _
    // Predicated region
    $region38: #{forward.1} parent=1 // pred_check
      _
    $region39: #{forward.1} parent=1 // pred_check_branch
      %50 = sbr.rel (0) target = $region41
    $region40: #{forward.1} parent=1 // pred_region
      _
    $region41: #{forward.1} parent=1 // pred_fallthru
      _
    // Predicated region
    $region42: #{forward.1} parent=1 // pred_check
      _
    $region43: #{forward.1} parent=1 // pred_check_branch
      %52 = sbr.rel (0) target = $region45
    $region44: #{forward.1} parent=1 // pred_region
      _
    $region45: #{forward.1} parent=1 // pred_fallthru
      _
    // Predicated region
    $region46: #{forward.1} parent=1 // pred_check
      _
    $region47: #{forward.1} parent=1 // pred_check_branch
      %54 = sbr.rel (0) target = $region49
    $region48: #{forward.1} parent=1 // pred_region
      _
    $region49: #{forward.1} parent=1 // pred_fallthru
      _
    // Predicated region
    $region50: #{forward.1} parent=1 // pred_check
      _
    $region51: #{forward.1} parent=1 // pred_check_branch
      %56 = sbr.rel (0) target = $region53
    $region52: #{forward.1} parent=1 // pred_region
      _
    $region53: #{forward.1} parent=1 // pred_fallthru
      _
    // Predicated region
    $region54: #{forward.1} parent=1 // pred_check
      _
    $region55: #{forward.1} parent=1 // pred_check_branch
      %58 = sbr.rel (0) target = $region57
    $region56: #{forward.1} parent=1 // pred_region
      %59 = dma.done [#allocation3], 7680
    $region57: #{forward.1} parent=1 // pred_fallthru
      _
    %v61 = vld [vmem:[%s0] sm:$0xff]
    %v62 = vld [vmem:[%s0 + $0x8] sm:$0xff]
    %v63 = vld [vmem:[%s0 + $0x10] sm:$0xff]
    %v64 = vld [vmem:[%s0 + $0x18] sm:$0xff]
    %v65 = vld [vmem:[%s0 + $0x20] sm:$0xff]
    %v66 = vld [vmem:[%s0 + $0x28] sm:$0xff]
    %v67 = vld [vmem:[%s0 + $0x30] sm:$0xff]
    %v68 = vld [vmem:[%s0 + $0x38] sm:$0xff]
    %v69 = vld [vmem:[%s0 + $0x40] sm:$0xff]
    %v70 = vld [vmem:[%s0 + $0x48] sm:$0xff]
    %v71 = vld [vmem:[%s0 + $0x50] sm:$0xff]
    %v72 = vld [vmem:[%s0 + $0x58] sm:$0xff]
    %v73 = vld [vmem:[%s0 + $0x60] sm:$0xff]
    %v74 = vld [vmem:[%s0 + $0x68] sm:$0xff]
    %v75 = vld [vmem:[%s0 + $0x70] sm:$0xff]
    %v76 = vld [vmem:[%s0 + $0x78] sm:$0xff]
    %v77 = vld [vmem:[%s0 + $0x80] sm:$0xff]
    %v78 = vld [vmem:[%s0 + $0x88] sm:$0xff]
    %v79 = vld [vmem:[%s0 + $0x90] sm:$0xff]
    %v80 = vld [vmem:[%s0 + $0x98] sm:$0xff]
    %v81 = vld [vmem:[%s0 + $0xa0] sm:$0xff]
    %v82 = vld [vmem:[%s0 + $0xa8] sm:$0xff]
    %v83 = vld [vmem:[%s0 + $0xb0] sm:$0xff]
    %v84 = vld [vmem:[%s0 + $0xb8] sm:$0xff]
    %v85 = vld [vmem:[%s0 + $0xc0] sm:$0xff]
    %v86 = vld [vmem:[%s0 + $0xc8] sm:$0xff]
    %v87 = vld [vmem:[%s0 + $0xd0] sm:$0xff]
    %v88 = vld [vmem:[%s0 + $0xd8] sm:$0xff]
    %v89 = vld [vmem:[%s0 + $0xe0] sm:$0xff]
    %v90 = vld [vmem:[%s0 + $0xe8] sm:$0xff]
    %v91 = vld [vmem:[%s0 + $0xf0] sm:$0xff]
    %v92 = vld [vmem:[%s0 + $0xf8] sm:$0xff]
    %v93 = vpack.c.bf16 %v62, %v61
    %v94 = vpack.c.bf16 %v64, %v63
    %v95 = vpack.c.bf16 %v66, %v65
    %v96 = vpack.c.bf16 %v68, %v67
    %v97 = vpack.c.bf16 %v70, %v69
    %v98 = vpack.c.bf16 %v72, %v71
    %v99 = vpack.c.bf16 %v74, %v73
    %v100 = vpack.c.bf16 %v76, %v75
    %v101 = vpack.c.bf16 %v78, %v77
    %v102 = vpack.c.bf16 %v80, %v79
    %v103 = vpack.c.bf16 %v82, %v81
    %v104 = vpack.c.bf16 %v84, %v83
    %v105 = vpack.c.bf16 %v86, %v85
    %v106 = vpack.c.bf16 %v88, %v87
    %v107 = vld [vmem:[%s1] sm:$0xff]
    %v108 = vld [vmem:[%s1 + $0x8] sm:$0xff]
    %v109 = vld [vmem:[%s1 + $0x10] sm:$0xff]
    %v110 = vld [vmem:[%s1 + $0x18] sm:$0xff]
    %v111 = vld [vmem:[%s1 + $0x20] sm:$0xff]
    %v112 = vld [vmem:[%s1 + $0x28] sm:$0xff]
    %v113 = vld [vmem:[%s1 + $0x30] sm:$0xff]
    %v114 = vld [vmem:[%s1 + $0x38] sm:$0xff]
    %v115 = vld [vmem:[%s1 + $0x40] sm:$0xff]
    %v116 = vld [vmem:[%s1 + $0x48] sm:$0xff]
    %v117 = vld [vmem:[%s1 + $0x50] sm:$0xff]
    %v118 = vld [vmem:[%s1 + $0x58] sm:$0xff]
    %v119 = vld [vmem:[#allocation2] sm:$0xff]
    %v120 = vld [vmem:[#allocation2 + $0x8] sm:$0xff]
    %v121 = vld [vmem:[#allocation2 + $0x10] sm:$0xff]
    %v122 = vld [vmem:[#allocation2 + $0x18] sm:$0xff]
    %v123 = vld [vmem:[#allocation2 + $0x20] sm:$0xff]
    %v124 = vld [vmem:[#allocation2 + $0x28] sm:$0xff]
    %v125 = vld [vmem:[#allocation2 + $0x30] sm:$0xff]
    %v126 = vld [vmem:[#allocation2 + $0x38] sm:$0xff]
    %v127 = vld [vmem:[#allocation2 + $0x40] sm:$0xff]
    %v128 = vld [vmem:[#allocation2 + $0x48] sm:$0xff]
    %v129 = vld [vmem:[#allocation2 + $0x50] sm:$0xff]
    %v130 = vld [vmem:[#allocation2 + $0x58] sm:$0xff]
    %v131 = vpack.c.bf16 %v63, %v62
    %v132 = vpack.c.bf16 %v65, %v64
    %v133 = vpack.c.bf16 %v67, %v66
    %v134 = vpack.c.bf16 %v69, %v68
    %v135 = vpack.c.bf16 %v71, %v70
    %v136 = vpack.c.bf16 %v73, %v72
    %v137 = vpack.c.bf16 %v75, %v74
    %v138 = vpack.c.bf16 %v77, %v76
    %v139 = vpack.c.bf16 %v79, %v78
    %v140 = vpack.c.bf16 %v81, %v80
    %v141 = vpack.c.bf16 %v83, %v82
    %v142 = vpack.c.bf16 %v85, %v84
    %v143 = vpack.c.bf16 %v87, %v86
    %v144 = vpack.c.bf16 %v89, %v88
    %s145 = scalar_lea.vmem %s1, 96
    %v146 = vld [vmem:[%s145] sm:$0xff]
    %v147 = vld [vmem:[%s145 + $0x8] sm:$0xff]
    %v148 = vld [vmem:[%s145 + $0x10] sm:$0xff]
    %v149 = vld [vmem:[%s145 + $0x18] sm:$0xff]
    %v150 = vld [vmem:[%s145 + $0x20] sm:$0xff]
    %v151 = vld [vmem:[%s145 + $0x28] sm:$0xff]
    %v152 = vld [vmem:[%s145 + $0x30] sm:$0xff]
    %v153 = vld [vmem:[%s145 + $0x38] sm:$0xff]
    %v154 = vld [vmem:[%s145 + $0x40] sm:$0xff]
    %v155 = vld [vmem:[%s145 + $0x48] sm:$0xff]
    %v156 = vld [vmem:[%s145 + $0x50] sm:$0xff]
    %v157 = vld [vmem:[%s145 + $0x58] sm:$0xff]
    %v170 = vunpack.c.l.b16 %v146
    %v171 = vunpack.c.h.b16 %v146
    %v172 = vunpack.c.l.b16 %v147
    %v173 = vunpack.c.h.b16 %v147
    %v174 = vunpack.c.l.b16 %v148
    %v175 = vunpack.c.h.b16 %v148
    %v176 = vunpack.c.l.b16 %v149
    %v177 = vunpack.c.h.b16 %v149
    %v178 = vunpack.c.l.b16 %v150
    %v179 = vunpack.c.h.b16 %v150
    %v180 = vunpack.c.l.b16 %v151
    %v181 = vunpack.c.h.b16 %v151
    %v182 = vunpack.c.l.b16 %v152
    %v183 = vunpack.c.h.b16 %v152
    %v184 = vunpack.c.l.b16 %v153
    %v185 = vunpack.c.h.b16 %v153
    %v186 = vunpack.c.l.b16 %v154
    %v187 = vunpack.c.h.b16 %v154
    %v188 = vunpack.c.l.b16 %v155
    %v189 = vunpack.c.h.b16 %v155
    %v190 = vunpack.c.l.b16 %v156
    %v191 = vunpack.c.h.b16 %v156
    %v192 = vunpack.c.l.b16 %v157
    %v193 = vunpack.c.h.b16 %v157
    %v194 = vpack.c.b16 %v172, %v170
    %v195 = vpack.c.b16 %v173, %v171
    %v196 = vpack.c.b16 %v176, %v174
    %v197 = vpack.c.b16 %v177, %v175
    %v198 = vpack.c.b16 %v180, %v178
    %v199 = vpack.c.b16 %v181, %v179
    %v200 = vpack.c.b16 %v184, %v182
    %v201 = vpack.c.b16 %v185, %v183
    %v202 = vpack.c.b16 %v188, %v186
    %v203 = vpack.c.b16 %v189, %v187
    %v204 = vpack.c.b16 %v192, %v190
    %v205 = vpack.c.b16 %v193, %v191
    %vm218 = vcmask 785408
    %v220 = vsel %vm218, %v131, 0
    %v223 = vsel %vm218, %v132, 0
    %v226 = vsel %vm218, %v133, 0
    %v229 = vsel %vm218, %v134, 0
    %v232 = vsel %vm218, %v135, 0
    %v235 = vsel %vm218, %v136, 0
    %v238 = vsel %vm218, %v137, 0
    %v241 = vsel %vm218, %v138, 0
    %v244 = vsel %vm218, %v139, 0
    %v247 = vsel %vm218, %v140, 0
    %v250 = vsel %vm218, %v141, 0
    %v253 = vsel %vm218, %v142, 0
    %v256 = vsel %vm218, %v143, 0
    %v259 = vsel %vm218, %v144, 0
    %261 = vmatprep.subr.bf16.mxu0 0
    %262 = vmatpush1.bf16.msra.mxu0 0
    %263 = vmatprep.subr.bf16.mxu0 0
    %264 = vmatpush1.bf16.msra.mxu0 0
    %265 = vmatprep.subr.bf16.mxu0 %v205
    %266 = vmatpush1.bf16.msra.mxu0 %v204
    %267 = vmatprep.subr.bf16.mxu0 %v203
    %268 = vmatpush1.bf16.msra.mxu0 %v202
    %269 = vmatprep.subr.bf16.mxu0 %v201
    %270 = vmatpush1.bf16.msra.mxu0 %v200
    %271 = vmatprep.subr.bf16.mxu0 %v199
    %272 = vmatpush1.bf16.msra.mxu0 %v198
    %273 = vmatprep.subr.bf16.mxu0 %v197
    %274 = vmatpush1.bf16.msra.mxu0 %v196
    %275 = vmatprep.subr.bf16.mxu0 %v195
    %276 = vmatpush1.bf16.msra.mxu0 %v194
    %277 = vmatprep.subr.bf16.mxu0 0
    %278 = vmatpush2.bf16.msra.mxu0 0
    %279 = vmatprep.subr.bf16.mxu0 0
    %280 = vmatpush2.bf16.msra.mxu0 0
    %281 = vmatprep.subr.bf16.mxu0 0
    %282 = vmatpush2.bf16.msra.mxu0 0
    %283 = vmatprep.subr.bf16.mxu0 0
    %284 = vmatpush2.bf16.msra.mxu0 0
    %285 = vmatprep.subr.bf16.mxu0 0
    %286 = vmatpush2.bf16.msra.mxu0 0
    %287 = vmatprep.subr.bf16.mxu0 0
    %288 = vmatpush2.bf16.msra.mxu0 0
    %289 = vmatprep.subr.bf16.mxu0 0
    %290 = vmatpush2.bf16.msra.mxu0 0
    %291 = vmatprep.subr.bf16.mxu0 0
    %292 = vmatpush2.bf16.msra.mxu0 0
    %293 = vmatprep.mubr.bf16.mxu0 0
    %294 = vmatmul.mubr.bf16.gmra.mxu0 %v220
    %v295 = vpop.f32.mrf.mxu0
    %v296 = vadd.f32 0.0, %v295
    %v297 = vpop.f32.mrf.mxu0
    %v298 = vadd.f32 0.0, %v297
    %v299 = vpop.f32.mrf.mxu0
    %v300 = vadd.f32 0.0, %v299
    %v301 = vpop.f32.mrf.mxu0
    %v302 = vadd.f32 0.0, %v301
    %303 = vmatprep.mubr.bf16.mxu0 0
    %304 = vmatmul.mubr.bf16.gmra.mxu0 %v223
    %v305 = vpop.f32.mrf.mxu0
    %v306 = vadd.f32 0.0, %v305
    %v307 = vpop.f32.mrf.mxu0
    %v308 = vadd.f32 0.0, %v307
    %v309 = vpop.f32.mrf.mxu0
    %v310 = vadd.f32 0.0, %v309
    %v311 = vpop.f32.mrf.mxu0
    %v312 = vadd.f32 0.0, %v311
    %313 = vmatprep.mubr.bf16.mxu0 0
    %314 = vmatmul.mubr.bf16.gmra.mxu0 %v226
    %v315 = vpop.f32.mrf.mxu0
    %v316 = vadd.f32 0.0, %v315
    %v317 = vpop.f32.mrf.mxu0
    %v318 = vadd.f32 0.0, %v317
    %v319 = vpop.f32.mrf.mxu0
    %v320 = vadd.f32 0.0, %v319
    %v321 = vpop.f32.mrf.mxu0
    %v322 = vadd.f32 0.0, %v321
    %323 = vmatprep.mubr.bf16.mxu0 0
    %324 = vmatmul.mubr.bf16.gmra.mxu0 %v229
    %v325 = vpop.f32.mrf.mxu0
    %v326 = vadd.f32 0.0, %v325
    %v327 = vpop.f32.mrf.mxu0
    %v328 = vadd.f32 0.0, %v327
    %v329 = vpop.f32.mrf.mxu0
    %v330 = vadd.f32 0.0, %v329
    %v331 = vpop.f32.mrf.mxu0
    %v332 = vadd.f32 0.0, %v331
    %333 = vmatprep.mubr.bf16.mxu0 0
    %334 = vmatmul.mubr.bf16.gmra.mxu0 %v232
    %v335 = vpop.f32.mrf.mxu0
    %v336 = vadd.f32 0.0, %v335
    %v337 = vpop.f32.mrf.mxu0
    %v338 = vadd.f32 0.0, %v337
    %v339 = vpop.f32.mrf.mxu0
    %v340 = vadd.f32 0.0, %v339
    %v341 = vpop.f32.mrf.mxu0
    %v342 = vadd.f32 0.0, %v341
    %343 = vmatprep.mubr.bf16.mxu0 0
    %344 = vmatmul.mubr.bf16.gmra.mxu0 %v235
    %v345 = vpop.f32.mrf.mxu0
    %v346 = vadd.f32 0.0, %v345
    %v347 = vpop.f32.mrf.mxu0
    %v348 = vadd.f32 0.0, %v347
    %v349 = vpop.f32.mrf.mxu0
    %v350 = vadd.f32 0.0, %v349
    %v351 = vpop.f32.mrf.mxu0
    %v352 = vadd.f32 0.0, %v351
    %353 = vmatprep.mubr.bf16.mxu0 0
    %354 = vmatmul.mubr.bf16.gmra.mxu0 %v238
    %v355 = vpop.f32.mrf.mxu0
    %v356 = vadd.f32 0.0, %v355
    %v357 = vpop.f32.mrf.mxu0
    %v358 = vadd.f32 0.0, %v357
    %v359 = vpop.f32.mrf.mxu0
    %v360 = vadd.f32 0.0, %v359
    %v361 = vpop.f32.mrf.mxu0
    %v362 = vadd.f32 0.0, %v361
    %363 = vmatprep.mubr.bf16.mxu0 0
    %364 = vmatmul.mubr.bf16.gmra.mxu0 %v241
    %v365 = vpop.f32.mrf.mxu0
    %v366 = vadd.f32 0.0, %v365
    %v367 = vpop.f32.mrf.mxu0
    %v368 = vadd.f32 0.0, %v367
    %v369 = vpop.f32.mrf.mxu0
    %v370 = vadd.f32 0.0, %v369
    %v371 = vpop.f32.mrf.mxu0
    %v372 = vadd.f32 0.0, %v371
    %373 = vmatprep.mubr.bf16.mxu0 0
    %374 = vmatmul.mubr.bf16.gmra.mxu0 %v244
    %v375 = vpop.f32.mrf.mxu0
    %v376 = vadd.f32 0.0, %v375
    %v377 = vpop.f32.mrf.mxu0
    %v378 = vadd.f32 0.0, %v377
    %v379 = vpop.f32.mrf.mxu0
    %v380 = vadd.f32 0.0, %v379
    %v381 = vpop.f32.mrf.mxu0
    %v382 = vadd.f32 0.0, %v381
    %383 = vmatprep.mubr.bf16.mxu0 0
    %384 = vmatmul.mubr.bf16.gmra.mxu0 %v247
    %v385 = vpop.f32.mrf.mxu0
    %v386 = vadd.f32 0.0, %v385
    %v387 = vpop.f32.mrf.mxu0
    %v388 = vadd.f32 0.0, %v387
    %v389 = vpop.f32.mrf.mxu0
    %v390 = vadd.f32 0.0, %v389
    %v391 = vpop.f32.mrf.mxu0
    %v392 = vadd.f32 0.0, %v391
    %393 = vmatprep.mubr.bf16.mxu0 0
    %394 = vmatmul.mubr.bf16.gmra.mxu0 %v250
    %v395 = vpop.f32.mrf.mxu0
    %v396 = vadd.f32 0.0, %v395
    %v397 = vpop.f32.mrf.mxu0
    %v398 = vadd.f32 0.0, %v397
    %v399 = vpop.f32.mrf.mxu0
    %v400 = vadd.f32 0.0, %v399
    %v401 = vpop.f32.mrf.mxu0
    %v402 = vadd.f32 0.0, %v401
    %403 = vmatprep.mubr.bf16.mxu0 0
    %404 = vmatmul.mubr.bf16.gmra.mxu0 %v253
    %v405 = vpop.f32.mrf.mxu0
    %v406 = vadd.f32 0.0, %v405
    %v407 = vpop.f32.mrf.mxu0
    %v408 = vadd.f32 0.0, %v407
    %v409 = vpop.f32.mrf.mxu0
    %v410 = vadd.f32 0.0, %v409
    %v411 = vpop.f32.mrf.mxu0
    %v412 = vadd.f32 0.0, %v411
    %413 = vmatprep.mubr.bf16.mxu0 0
    %414 = vmatmul.mubr.bf16.gmra.mxu0 %v256
    %v415 = vpop.f32.mrf.mxu0
    %v416 = vadd.f32 0.0, %v415
    %v417 = vpop.f32.mrf.mxu0
    %v418 = vadd.f32 0.0, %v417
    %v419 = vpop.f32.mrf.mxu0
    %v420 = vadd.f32 0.0, %v419
    %v421 = vpop.f32.mrf.mxu0
    %v422 = vadd.f32 0.0, %v421
    %423 = vmatprep.mubr.bf16.mxu0 0
    %424 = vmatmul.mubr.bf16.gmra.mxu0 %v259
    %v425 = vpop.f32.mrf.mxu0
    %v426 = vadd.f32 0.0, %v425
    %v427 = vpop.f32.mrf.mxu0
    %v428 = vadd.f32 0.0, %v427
    %v429 = vpop.f32.mrf.mxu0
    %v430 = vadd.f32 0.0, %v429
    %v431 = vpop.f32.mrf.mxu0
    %v432 = vadd.f32 0.0, %v431
    %433 = vdwg.mxu0
    %s434 = scalar_lea.vmem [#allocation2], 96
    %v435 = vld [vmem:[%s434] sm:$0xff]
    %v436 = vld [vmem:[%s434 + $0x8] sm:$0xff]
    %v437 = vld [vmem:[%s434 + $0x10] sm:$0xff]
    %v438 = vld [vmem:[%s434 + $0x18] sm:$0xff]
    %v439 = vld [vmem:[%s434 + $0x20] sm:$0xff]
    %v440 = vld [vmem:[%s434 + $0x28] sm:$0xff]
    %v441 = vld [vmem:[%s434 + $0x30] sm:$0xff]
    %v442 = vld [vmem:[%s434 + $0x38] sm:$0xff]
    %v443 = vld [vmem:[%s434 + $0x40] sm:$0xff]
    %v444 = vld [vmem:[%s434 + $0x48] sm:$0xff]
    %v445 = vld [vmem:[%s434 + $0x50] sm:$0xff]
    %v446 = vld [vmem:[%s434 + $0x58] sm:$0xff]
    %v459 = vunpack.c.l.b16 %v435
    %v460 = vunpack.c.h.b16 %v435
    %v461 = vunpack.c.l.b16 %v436
    %v462 = vunpack.c.h.b16 %v436
    %v463 = vunpack.c.l.b16 %v437
    %v464 = vunpack.c.h.b16 %v437
    %v465 = vunpack.c.l.b16 %v438
    %v466 = vunpack.c.h.b16 %v438
    %v467 = vunpack.c.l.b16 %v439
    %v468 = vunpack.c.h.b16 %v439
    %v469 = vunpack.c.l.b16 %v440
    %v470 = vunpack.c.h.b16 %v440
    %v471 = vunpack.c.l.b16 %v441
    %v472 = vunpack.c.h.b16 %v441
    %v473 = vunpack.c.l.b16 %v442
    %v474 = vunpack.c.h.b16 %v442
    %v475 = vunpack.c.l.b16 %v443
    %v476 = vunpack.c.h.b16 %v443
    %v477 = vunpack.c.l.b16 %v444
    %v478 = vunpack.c.h.b16 %v444
    %v479 = vunpack.c.l.b16 %v445
    %v480 = vunpack.c.h.b16 %v445
    %v481 = vunpack.c.l.b16 %v446
    %v482 = vunpack.c.h.b16 %v446
    %v483 = vpack.c.b16 %v461, %v459
    %v484 = vpack.c.b16 %v462, %v460
    %v485 = vpack.c.b16 %v465, %v463
    %v486 = vpack.c.b16 %v466, %v464
    %v487 = vpack.c.b16 %v469, %v467
    %v488 = vpack.c.b16 %v470, %v468
    %v489 = vpack.c.b16 %v473, %v471
    %v490 = vpack.c.b16 %v474, %v472
    %v491 = vpack.c.b16 %v477, %v475
    %v492 = vpack.c.b16 %v478, %v476
    %v493 = vpack.c.b16 %v481, %v479
    %v494 = vpack.c.b16 %v482, %v480
    %507 = vmatprep.subr.bf16.mxu0 0
    %508 = vmatpush1.bf16.msra.mxu0 0
    %509 = vmatprep.subr.bf16.mxu0 0
    %510 = vmatpush1.bf16.msra.mxu0 0
    %511 = vmatprep.subr.bf16.mxu0 %v494
    %512 = vmatpush1.bf16.msra.mxu0 %v493
    %513 = vmatprep.subr.bf16.mxu0 %v492
    %514 = vmatpush1.bf16.msra.mxu0 %v491
    %515 = vmatprep.subr.bf16.mxu0 %v490
    %516 = vmatpush1.bf16.msra.mxu0 %v489
    %517 = vmatprep.subr.bf16.mxu0 %v488
    %518 = vmatpush1.bf16.msra.mxu0 %v487
    %519 = vmatprep.subr.bf16.mxu0 %v486
    %520 = vmatpush1.bf16.msra.mxu0 %v485
    %521 = vmatprep.subr.bf16.mxu0 %v484
    %522 = vmatpush1.bf16.msra.mxu0 %v483
    %523 = vmatprep.subr.bf16.mxu0 0
    %524 = vmatpush2.bf16.msra.mxu0 0
    %525 = vmatprep.subr.bf16.mxu0 0
    %526 = vmatpush2.bf16.msra.mxu0 0
    %527 = vmatprep.subr.bf16.mxu0 0
    %528 = vmatpush2.bf16.msra.mxu0 0
    %529 = vmatprep.subr.bf16.mxu0 0
    %530 = vmatpush2.bf16.msra.mxu0 0
    %531 = vmatprep.subr.bf16.mxu0 0
    %532 = vmatpush2.bf16.msra.mxu0 0
    %533 = vmatprep.subr.bf16.mxu0 0
    %534 = vmatpush2.bf16.msra.mxu0 0
    %535 = vmatprep.subr.bf16.mxu0 0
    %536 = vmatpush2.bf16.msra.mxu0 0
    %537 = vmatprep.subr.bf16.mxu0 0
    %538 = vmatpush2.bf16.msra.mxu0 0
    %539 = vmatprep.mubr.bf16.mxu0 0
    %540 = vmatmul.mubr.bf16.gmra.mxu0 %v220
    %v541 = vpop.f32.mrf.mxu0
    %v542 = vadd.f32 0.0, %v541
    %v543 = vpop.f32.mrf.mxu0
    %v544 = vadd.f32 0.0, %v543
    %v545 = vpop.f32.mrf.mxu0
    %v546 = vadd.f32 0.0, %v545
    %v547 = vpop.f32.mrf.mxu0
    %v548 = vadd.f32 0.0, %v547
    %549 = vmatprep.mubr.bf16.mxu0 0
    %550 = vmatmul.mubr.bf16.gmra.mxu0 %v223
    %v551 = vpop.f32.mrf.mxu0
    %v552 = vadd.f32 0.0, %v551
    %v553 = vpop.f32.mrf.mxu0
    %v554 = vadd.f32 0.0, %v553
    %v555 = vpop.f32.mrf.mxu0
    %v556 = vadd.f32 0.0, %v555
    %v557 = vpop.f32.mrf.mxu0
    %v558 = vadd.f32 0.0, %v557
    %559 = vmatprep.mubr.bf16.mxu0 0
    %560 = vmatmul.mubr.bf16.gmra.mxu0 %v226
    %v561 = vpop.f32.mrf.mxu0
    %v562 = vadd.f32 0.0, %v561
    %v563 = vpop.f32.mrf.mxu0
    %v564 = vadd.f32 0.0, %v563
    %v565 = vpop.f32.mrf.mxu0
    %v566 = vadd.f32 0.0, %v565
    %v567 = vpop.f32.mrf.mxu0
    %v568 = vadd.f32 0.0, %v567
    %569 = vmatprep.mubr.bf16.mxu0 0
    %570 = vmatmul.mubr.bf16.gmra.mxu0 %v229
    %v571 = vpop.f32.mrf.mxu0
    %v572 = vadd.f32 0.0, %v571
    %v573 = vpop.f32.mrf.mxu0
    %v574 = vadd.f32 0.0, %v573
    %v575 = vpop.f32.mrf.mxu0
    %v576 = vadd.f32 0.0, %v575
    %v577 = vpop.f32.mrf.mxu0
    %v578 = vadd.f32 0.0, %v577
    %579 = vmatprep.mubr.bf16.mxu0 0
    %580 = vmatmul.mubr.bf16.gmra.mxu0 %v232
    %v581 = vpop.f32.mrf.mxu0
    %v582 = vadd.f32 0.0, %v581
    %v583 = vpop.f32.mrf.mxu0
    %v584 = vadd.f32 0.0, %v583
    %v585 = vpop.f32.mrf.mxu0
    %v586 = vadd.f32 0.0, %v585
    %v587 = vpop.f32.mrf.mxu0
    %v588 = vadd.f32 0.0, %v587
    %589 = vmatprep.mubr.bf16.mxu0 0
    %590 = vmatmul.mubr.bf16.gmra.mxu0 %v235
    %v591 = vpop.f32.mrf.mxu0
    %v592 = vadd.f32 0.0, %v591
    %v593 = vpop.f32.mrf.mxu0
    %v594 = vadd.f32 0.0, %v593
    %v595 = vpop.f32.mrf.mxu0
    %v596 = vadd.f32 0.0, %v595
    %v597 = vpop.f32.mrf.mxu0
    %v598 = vadd.f32 0.0, %v597
    %599 = vmatprep.mubr.bf16.mxu0 0
    %600 = vmatmul.mubr.bf16.gmra.mxu0 %v238
    %v601 = vpop.f32.mrf.mxu0
    %v602 = vadd.f32 0.0, %v601
    %v603 = vpop.f32.mrf.mxu0
    %v604 = vadd.f32 0.0, %v603
    %v605 = vpop.f32.mrf.mxu0
    %v606 = vadd.f32 0.0, %v605
    %v607 = vpop.f32.mrf.mxu0
    %v608 = vadd.f32 0.0, %v607
    %609 = vmatprep.mubr.bf16.mxu0 0
    %610 = vmatmul.mubr.bf16.gmra.mxu0 %v241
    %v611 = vpop.f32.mrf.mxu0
    %v612 = vadd.f32 0.0, %v611
    %v613 = vpop.f32.mrf.mxu0
    %v614 = vadd.f32 0.0, %v613
    %v615 = vpop.f32.mrf.mxu0
    %v616 = vadd.f32 0.0, %v615
    %v617 = vpop.f32.mrf.mxu0
    %v618 = vadd.f32 0.0, %v617
    %619 = vmatprep.mubr.bf16.mxu0 0
    %620 = vmatmul.mubr.bf16.gmra.mxu0 %v244
    %v621 = vpop.f32.mrf.mxu0
    %v622 = vadd.f32 0.0, %v621
    %v623 = vpop.f32.mrf.mxu0
    %v624 = vadd.f32 0.0, %v623
    %v625 = vpop.f32.mrf.mxu0
    %v626 = vadd.f32 0.0, %v625
    %v627 = vpop.f32.mrf.mxu0
    %v628 = vadd.f32 0.0, %v627
    %629 = vmatprep.mubr.bf16.mxu0 0
    %630 = vmatmul.mubr.bf16.gmra.mxu0 %v247
    %v631 = vpop.f32.mrf.mxu0
    %v632 = vadd.f32 0.0, %v631
    %v633 = vpop.f32.mrf.mxu0
    %v634 = vadd.f32 0.0, %v633
    %v635 = vpop.f32.mrf.mxu0
    %v636 = vadd.f32 0.0, %v635
    %v637 = vpop.f32.mrf.mxu0
    %v638 = vadd.f32 0.0, %v637
    %639 = vmatprep.mubr.bf16.mxu0 0
    %640 = vmatmul.mubr.bf16.gmra.mxu0 %v250
    %v641 = vpop.f32.mrf.mxu0
    %v642 = vadd.f32 0.0, %v641
    %v643 = vpop.f32.mrf.mxu0
    %v644 = vadd.f32 0.0, %v643
    %v645 = vpop.f32.mrf.mxu0
    %v646 = vadd.f32 0.0, %v645
    %v647 = vpop.f32.mrf.mxu0
    %v648 = vadd.f32 0.0, %v647
    %649 = vmatprep.mubr.bf16.mxu0 0
    %650 = vmatmul.mubr.bf16.gmra.mxu0 %v253
    %v651 = vpop.f32.mrf.mxu0
    %v652 = vadd.f32 0.0, %v651
    %v653 = vpop.f32.mrf.mxu0
    %v654 = vadd.f32 0.0, %v653
    %v655 = vpop.f32.mrf.mxu0
    %v656 = vadd.f32 0.0, %v655
    %v657 = vpop.f32.mrf.mxu0
    %v658 = vadd.f32 0.0, %v657
    %659 = vmatprep.mubr.bf16.mxu0 0
    %660 = vmatmul.mubr.bf16.gmra.mxu0 %v256
    %v661 = vpop.f32.mrf.mxu0
    %v662 = vadd.f32 0.0, %v661
    %v663 = vpop.f32.mrf.mxu0
    %v664 = vadd.f32 0.0, %v663
    %v665 = vpop.f32.mrf.mxu0
    %v666 = vadd.f32 0.0, %v665
    %v667 = vpop.f32.mrf.mxu0
    %v668 = vadd.f32 0.0, %v667
    %669 = vmatprep.mubr.bf16.mxu0 0
    %670 = vmatmul.mubr.bf16.gmra.mxu0 %v259
    %v671 = vpop.f32.mrf.mxu0
    %v672 = vadd.f32 0.0, %v671
    %v673 = vpop.f32.mrf.mxu0
    %v674 = vadd.f32 0.0, %v673
    %v675 = vpop.f32.mrf.mxu0
    %v676 = vadd.f32 0.0, %v675
    %v677 = vpop.f32.mrf.mxu0
    %v678 = vadd.f32 0.0, %v677
    %679 = vdwg.mxu0
    %v692 = vunpack.c.l.b16 %v107
    %v693 = vunpack.c.h.b16 %v107
    %v694 = vunpack.c.l.b16 %v108
    %v695 = vunpack.c.h.b16 %v108
    %v696 = vunpack.c.l.b16 %v109
    %v697 = vunpack.c.h.b16 %v109
    %v698 = vunpack.c.l.b16 %v110
    %v699 = vunpack.c.h.b16 %v110
    %v700 = vunpack.c.l.b16 %v111
    %v701 = vunpack.c.h.b16 %v111
    %v702 = vunpack.c.l.b16 %v112
    %v703 = vunpack.c.h.b16 %v112
    %v704 = vunpack.c.l.b16 %v113
    %v705 = vunpack.c.h.b16 %v113
    %v706 = vunpack.c.l.b16 %v114
    %v707 = vunpack.c.h.b16 %v114
    %v708 = vunpack.c.l.b16 %v115
    %v709 = vunpack.c.h.b16 %v115
    %v710 = vunpack.c.l.b16 %v116
    %v711 = vunpack.c.h.b16 %v116
    %v712 = vunpack.c.l.b16 %v117
    %v713 = vunpack.c.h.b16 %v117
    %v714 = vunpack.c.l.b16 %v118
    %v715 = vunpack.c.h.b16 %v118
    %v716 = vpack.c.b16 %v694, %v692
    %v717 = vpack.c.b16 %v695, %v693
    %v718 = vpack.c.b16 %v698, %v696
    %v719 = vpack.c.b16 %v699, %v697
    %v720 = vpack.c.b16 %v702, %v700
    %v721 = vpack.c.b16 %v703, %v701
    %v722 = vpack.c.b16 %v706, %v704
    %v723 = vpack.c.b16 %v707, %v705
    %v724 = vpack.c.b16 %v710, %v708
    %v725 = vpack.c.b16 %v711, %v709
    %v726 = vpack.c.b16 %v714, %v712
    %v727 = vpack.c.b16 %v715, %v713
    %v741 = vsel %vm218, %v93, 0
    %v744 = vsel %vm218, %v94, 0
    %v747 = vsel %vm218, %v95, 0
    %v750 = vsel %vm218, %v96, 0
    %v753 = vsel %vm218, %v97, 0
    %v756 = vsel %vm218, %v98, 0
    %v759 = vsel %vm218, %v99, 0
    %v762 = vsel %vm218, %v100, 0
    %v765 = vsel %vm218, %v101, 0
    %v768 = vsel %vm218, %v102, 0
    %v771 = vsel %vm218, %v103, 0
    %v774 = vsel %vm218, %v104, 0
    %v777 = vsel %vm218, %v105, 0
    %v780 = vsel %vm218, %v106, 0
    %782 = vmatprep.subr.bf16.mxu0 0
    %783 = vmatpush1.bf16.msra.mxu0 0
    %784 = vmatprep.subr.bf16.mxu0 0
    %785 = vmatpush1.bf16.msra.mxu0 0
    %786 = vmatprep.subr.bf16.mxu0 %v727
    %787 = vmatpush1.bf16.msra.mxu0 %v726
    %788 = vmatprep.subr.bf16.mxu0 %v725
    %789 = vmatpush1.bf16.msra.mxu0 %v724
    %790 = vmatprep.subr.bf16.mxu0 %v723
    %791 = vmatpush1.bf16.msra.mxu0 %v722
    %792 = vmatprep.subr.bf16.mxu0 %v721
    %793 = vmatpush1.bf16.msra.mxu0 %v720
    %794 = vmatprep.subr.bf16.mxu0 %v719
    %795 = vmatpush1.bf16.msra.mxu0 %v718
    %796 = vmatprep.subr.bf16.mxu0 %v717
    %797 = vmatpush1.bf16.msra.mxu0 %v716
    %798 = vmatprep.subr.bf16.mxu0 0
    %799 = vmatpush2.bf16.msra.mxu0 0
    %800 = vmatprep.subr.bf16.mxu0 0
    %801 = vmatpush2.bf16.msra.mxu0 0
    %802 = vmatprep.subr.bf16.mxu0 0
    %803 = vmatpush2.bf16.msra.mxu0 0
    %804 = vmatprep.subr.bf16.mxu0 0
    %805 = vmatpush2.bf16.msra.mxu0 0
    %806 = vmatprep.subr.bf16.mxu0 0
    %807 = vmatpush2.bf16.msra.mxu0 0
    %808 = vmatprep.subr.bf16.mxu0 0
    %809 = vmatpush2.bf16.msra.mxu0 0
    %810 = vmatprep.subr.bf16.mxu0 0
    %811 = vmatpush2.bf16.msra.mxu0 0
    %812 = vmatprep.subr.bf16.mxu0 0
    %813 = vmatpush2.bf16.msra.mxu0 0
    %814 = vmatprep.mubr.bf16.mxu0 0
    %815 = vmatmul.mubr.bf16.gmra.mxu0 %v741
    %v816 = vpop.f32.mrf.mxu0
    %v817 = vadd.f32 %v296, %v816
    %v818 = vpop.f32.mrf.mxu0
    %v819 = vadd.f32 %v298, %v818
    %v820 = vpop.f32.mrf.mxu0
    %v821 = vadd.f32 %v300, %v820
    %v822 = vpop.f32.mrf.mxu0
    %v823 = vadd.f32 %v302, %v822
    %824 = vmatprep.mubr.bf16.mxu0 0
    %825 = vmatmul.mubr.bf16.gmra.mxu0 %v744
    %v826 = vpop.f32.mrf.mxu0
    %v827 = vadd.f32 %v306, %v826
    %v828 = vpop.f32.mrf.mxu0
    %v829 = vadd.f32 %v308, %v828
    %v830 = vpop.f32.mrf.mxu0
    %v831 = vadd.f32 %v310, %v830
    %v832 = vpop.f32.mrf.mxu0
    %v833 = vadd.f32 %v312, %v832
    %834 = vmatprep.mubr.bf16.mxu0 0
    %835 = vmatmul.mubr.bf16.gmra.mxu0 %v747
    %v836 = vpop.f32.mrf.mxu0
    %v837 = vadd.f32 %v316, %v836
    %v838 = vpop.f32.mrf.mxu0
    %v839 = vadd.f32 %v318, %v838
    %v840 = vpop.f32.mrf.mxu0
    %v841 = vadd.f32 %v320, %v840
    %v842 = vpop.f32.mrf.mxu0
    %v843 = vadd.f32 %v322, %v842
    %844 = vmatprep.mubr.bf16.mxu0 0
    %845 = vmatmul.mubr.bf16.gmra.mxu0 %v750
    %v846 = vpop.f32.mrf.mxu0
    %v847 = vadd.f32 %v326, %v846
    %v848 = vpop.f32.mrf.mxu0
    %v849 = vadd.f32 %v328, %v848
    %v850 = vpop.f32.mrf.mxu0
    %v851 = vadd.f32 %v330, %v850
    %v852 = vpop.f32.mrf.mxu0
    %v853 = vadd.f32 %v332, %v852
    %854 = vmatprep.mubr.bf16.mxu0 0
    %855 = vmatmul.mubr.bf16.gmra.mxu0 %v753
    %v856 = vpop.f32.mrf.mxu0
    %v857 = vadd.f32 %v336, %v856
    %v858 = vpop.f32.mrf.mxu0
    %v859 = vadd.f32 %v338, %v858
    %v860 = vpop.f32.mrf.mxu0
    %v861 = vadd.f32 %v340, %v860
    %v862 = vpop.f32.mrf.mxu0
    %v863 = vadd.f32 %v342, %v862
    %864 = vmatprep.mubr.bf16.mxu0 0
    %865 = vmatmul.mubr.bf16.gmra.mxu0 %v756
    %v866 = vpop.f32.mrf.mxu0
    %v867 = vadd.f32 %v346, %v866
    %v868 = vpop.f32.mrf.mxu0
    %v869 = vadd.f32 %v348, %v868
    %v870 = vpop.f32.mrf.mxu0
    %v871 = vadd.f32 %v350, %v870
    %v872 = vpop.f32.mrf.mxu0
    %v873 = vadd.f32 %v352, %v872
    %874 = vmatprep.mubr.bf16.mxu0 0
    %875 = vmatmul.mubr.bf16.gmra.mxu0 %v759
    %v876 = vpop.f32.mrf.mxu0
    %v877 = vadd.f32 %v356, %v876
    %v878 = vpop.f32.mrf.mxu0
    %v879 = vadd.f32 %v358, %v878
    %v880 = vpop.f32.mrf.mxu0
    %v881 = vadd.f32 %v360, %v880
    %v882 = vpop.f32.mrf.mxu0
    %v883 = vadd.f32 %v362, %v882
    %884 = vmatprep.mubr.bf16.mxu0 0
    %885 = vmatmul.mubr.bf16.gmra.mxu0 %v762
    %v886 = vpop.f32.mrf.mxu0
    %v887 = vadd.f32 %v366, %v886
    %v888 = vpop.f32.mrf.mxu0
    %v889 = vadd.f32 %v368, %v888
    %v890 = vpop.f32.mrf.mxu0
    %v891 = vadd.f32 %v370, %v890
    %v892 = vpop.f32.mrf.mxu0
    %v893 = vadd.f32 %v372, %v892
    %894 = vmatprep.mubr.bf16.mxu0 0
    %895 = vmatmul.mubr.bf16.gmra.mxu0 %v765
    %v896 = vpop.f32.mrf.mxu0
    %v897 = vadd.f32 %v376, %v896
    %v898 = vpop.f32.mrf.mxu0
    %v899 = vadd.f32 %v378, %v898
    %v900 = vpop.f32.mrf.mxu0
    %v901 = vadd.f32 %v380, %v900
    %v902 = vpop.f32.mrf.mxu0
    %v903 = vadd.f32 %v382, %v902
    %904 = vmatprep.mubr.bf16.mxu0 0
    %905 = vmatmul.mubr.bf16.gmra.mxu0 %v768
    %v906 = vpop.f32.mrf.mxu0
    %v907 = vadd.f32 %v386, %v906
    %v908 = vpop.f32.mrf.mxu0
    %v909 = vadd.f32 %v388, %v908
    %v910 = vpop.f32.mrf.mxu0
    %v911 = vadd.f32 %v390, %v910
    %v912 = vpop.f32.mrf.mxu0
    %v913 = vadd.f32 %v392, %v912
    %914 = vmatprep.mubr.bf16.mxu0 0
    %915 = vmatmul.mubr.bf16.gmra.mxu0 %v771
    %v916 = vpop.f32.mrf.mxu0
    %v917 = vadd.f32 %v396, %v916
    %v918 = vpop.f32.mrf.mxu0
    %v919 = vadd.f32 %v398, %v918
    %v920 = vpop.f32.mrf.mxu0
    %v921 = vadd.f32 %v400, %v920
    %v922 = vpop.f32.mrf.mxu0
    %v923 = vadd.f32 %v402, %v922
    %924 = vmatprep.mubr.bf16.mxu0 0
    %925 = vmatmul.mubr.bf16.gmra.mxu0 %v774
    %v926 = vpop.f32.mrf.mxu0
    %v927 = vadd.f32 %v406, %v926
    %v928 = vpop.f32.mrf.mxu0
    %v929 = vadd.f32 %v408, %v928
    %v930 = vpop.f32.mrf.mxu0
    %v931 = vadd.f32 %v410, %v930
    %v932 = vpop.f32.mrf.mxu0
    %v933 = vadd.f32 %v412, %v932
    %934 = vmatprep.mubr.bf16.mxu0 0
    %935 = vmatmul.mubr.bf16.gmra.mxu0 %v777
    %v936 = vpop.f32.mrf.mxu0
    %v937 = vadd.f32 %v416, %v936
    %v938 = vpop.f32.mrf.mxu0
    %v939 = vadd.f32 %v418, %v938
    %v940 = vpop.f32.mrf.mxu0
    %v941 = vadd.f32 %v420, %v940
    %v942 = vpop.f32.mrf.mxu0
    %v943 = vadd.f32 %v422, %v942
    %944 = vmatprep.mubr.bf16.mxu0 0
    %945 = vmatmul.mubr.bf16.gmra.mxu0 %v780
    %v946 = vpop.f32.mrf.mxu0
    %v947 = vadd.f32 %v426, %v946
    %v948 = vpop.f32.mrf.mxu0
    %v949 = vadd.f32 %v428, %v948
    %v950 = vpop.f32.mrf.mxu0
    %v951 = vadd.f32 %v430, %v950
    %v952 = vpop.f32.mrf.mxu0
    %v953 = vadd.f32 %v432, %v952
    %954 = vdwg.mxu0
    %v967 = vunpack.c.l.b16 %v119
    %v968 = vunpack.c.h.b16 %v119
    %v969 = vunpack.c.l.b16 %v120
    %v970 = vunpack.c.h.b16 %v120
    %v971 = vunpack.c.l.b16 %v121
    %v972 = vunpack.c.h.b16 %v121
    %v973 = vunpack.c.l.b16 %v122
    %v974 = vunpack.c.h.b16 %v122
    %v975 = vunpack.c.l.b16 %v123
    %v976 = vunpack.c.h.b16 %v123
    %v977 = vunpack.c.l.b16 %v124
    %v978 = vunpack.c.h.b16 %v124
    %v979 = vunpack.c.l.b16 %v125
    %v980 = vunpack.c.h.b16 %v125
    %v981 = vunpack.c.l.b16 %v126
    %v982 = vunpack.c.h.b16 %v126
    %v983 = vunpack.c.l.b16 %v127
    %v984 = vunpack.c.h.b16 %v127
    %v985 = vunpack.c.l.b16 %v128
    %v986 = vunpack.c.h.b16 %v128
    %v987 = vunpack.c.l.b16 %v129
    %v988 = vunpack.c.h.b16 %v129
    %v989 = vunpack.c.l.b16 %v130
    %v990 = vunpack.c.h.b16 %v130
    %v991 = vpack.c.b16 %v969, %v967
    %v992 = vpack.c.b16 %v970, %v968
    %v993 = vpack.c.b16 %v973, %v971
    %v994 = vpack.c.b16 %v974, %v972
    %v995 = vpack.c.b16 %v977, %v975
    %v996 = vpack.c.b16 %v978, %v976
    %v997 = vpack.c.b16 %v981, %v979
    %v998 = vpack.c.b16 %v982, %v980
    %v999 = vpack.c.b16 %v985, %v983
    %v1000 = vpack.c.b16 %v986, %v984
    %v1001 = vpack.c.b16 %v989, %v987
    %v1002 = vpack.c.b16 %v990, %v988
    %1015 = vmatprep.subr.bf16.mxu0 0
    %1016 = vmatpush1.bf16.msra.mxu0 0
    %1017 = vmatprep.subr.bf16.mxu0 0
    %1018 = vmatpush1.bf16.msra.mxu0 0
    %1019 = vmatprep.subr.bf16.mxu0 %v1002
    %1020 = vmatpush1.bf16.msra.mxu0 %v1001
    %1021 = vmatprep.subr.bf16.mxu0 %v1000
    %1022 = vmatpush1.bf16.msra.mxu0 %v999
    %1023 = vmatprep.subr.bf16.mxu0 %v998
    %1024 = vmatpush1.bf16.msra.mxu0 %v997
    %1025 = vmatprep.subr.bf16.mxu0 %v996
    %1026 = vmatpush1.bf16.msra.mxu0 %v995
    %1027 = vmatprep.subr.bf16.mxu0 %v994
    %1028 = vmatpush1.bf16.msra.mxu0 %v993
    %1029 = vmatprep.subr.bf16.mxu0 %v992
    %1030 = vmatpush1.bf16.msra.mxu0 %v991
    %1031 = vmatprep.subr.bf16.mxu0 0
    %1032 = vmatpush2.bf16.msra.mxu0 0
    %1033 = vmatprep.subr.bf16.mxu0 0
    %1034 = vmatpush2.bf16.msra.mxu0 0
    %1035 = vmatprep.subr.bf16.mxu0 0
    %1036 = vmatpush2.bf16.msra.mxu0 0
    %1037 = vmatprep.subr.bf16.mxu0 0
    %1038 = vmatpush2.bf16.msra.mxu0 0
    %1039 = vmatprep.subr.bf16.mxu0 0
    %1040 = vmatpush2.bf16.msra.mxu0 0
    %1041 = vmatprep.subr.bf16.mxu0 0
    %1042 = vmatpush2.bf16.msra.mxu0 0
    %1043 = vmatprep.subr.bf16.mxu0 0
    %1044 = vmatpush2.bf16.msra.mxu0 0
    %1045 = vmatprep.subr.bf16.mxu0 0
    %1046 = vmatpush2.bf16.msra.mxu0 0
    %1047 = vmatprep.mubr.bf16.mxu0 0
    %1048 = vmatmul.mubr.bf16.gmra.mxu0 %v741
    %v1049 = vpop.f32.mrf.mxu0
    %v1050 = vadd.f32 %v542, %v1049
    %v1051 = vpop.f32.mrf.mxu0
    %v1052 = vadd.f32 %v544, %v1051
    %v1053 = vpop.f32.mrf.mxu0
    %v1054 = vadd.f32 %v546, %v1053
    %v1055 = vpop.f32.mrf.mxu0
    %v1056 = vadd.f32 %v548, %v1055
    %1057 = vmatprep.mubr.bf16.mxu0 0
    %1058 = vmatmul.mubr.bf16.gmra.mxu0 %v744
    %v1059 = vpop.f32.mrf.mxu0
    %v1060 = vadd.f32 %v552, %v1059
    %v1061 = vpop.f32.mrf.mxu0
    %v1062 = vadd.f32 %v554, %v1061
    %v1063 = vpop.f32.mrf.mxu0
    %v1064 = vadd.f32 %v556, %v1063
    %v1065 = vpop.f32.mrf.mxu0
    %v1066 = vadd.f32 %v558, %v1065
    %1067 = vmatprep.mubr.bf16.mxu0 0
    %1068 = vmatmul.mubr.bf16.gmra.mxu0 %v747
    %v1069 = vpop.f32.mrf.mxu0
    %v1070 = vadd.f32 %v562, %v1069
    %v1071 = vpop.f32.mrf.mxu0
    %v1072 = vadd.f32 %v564, %v1071
    %v1073 = vpop.f32.mrf.mxu0
    %v1074 = vadd.f32 %v566, %v1073
    %v1075 = vpop.f32.mrf.mxu0
    %v1076 = vadd.f32 %v568, %v1075
    %1077 = vmatprep.mubr.bf16.mxu0 0
    %1078 = vmatmul.mubr.bf16.gmra.mxu0 %v750
    %v1079 = vpop.f32.mrf.mxu0
    %v1080 = vadd.f32 %v572, %v1079
    %v1081 = vpop.f32.mrf.mxu0
    %v1082 = vadd.f32 %v574, %v1081
    %v1083 = vpop.f32.mrf.mxu0
    %v1084 = vadd.f32 %v576, %v1083
    %v1085 = vpop.f32.mrf.mxu0
    %v1086 = vadd.f32 %v578, %v1085
    %1087 = vmatprep.mubr.bf16.mxu0 0
    %1088 = vmatmul.mubr.bf16.gmra.mxu0 %v753
    %v1089 = vpop.f32.mrf.mxu0
    %v1090 = vadd.f32 %v582, %v1089
    %v1091 = vpop.f32.mrf.mxu0
    %v1092 = vadd.f32 %v584, %v1091
    %v1093 = vpop.f32.mrf.mxu0
    %v1094 = vadd.f32 %v586, %v1093
    %v1095 = vpop.f32.mrf.mxu0
    %v1096 = vadd.f32 %v588, %v1095
    %1097 = vmatprep.mubr.bf16.mxu0 0
    %1098 = vmatmul.mubr.bf16.gmra.mxu0 %v756
    %v1099 = vpop.f32.mrf.mxu0
    %v1100 = vadd.f32 %v592, %v1099
    %v1101 = vpop.f32.mrf.mxu0
    %v1102 = vadd.f32 %v594, %v1101
    %v1103 = vpop.f32.mrf.mxu0
    %v1104 = vadd.f32 %v596, %v1103
    %v1105 = vpop.f32.mrf.mxu0
    %v1106 = vadd.f32 %v598, %v1105
    %1107 = vmatprep.mubr.bf16.mxu0 0
    %1108 = vmatmul.mubr.bf16.gmra.mxu0 %v759
    %v1109 = vpop.f32.mrf.mxu0
    %v1110 = vadd.f32 %v602, %v1109
    %v1111 = vpop.f32.mrf.mxu0
    %v1112 = vadd.f32 %v604, %v1111
    %v1113 = vpop.f32.mrf.mxu0
    %v1114 = vadd.f32 %v606, %v1113
    %v1115 = vpop.f32.mrf.mxu0
    %v1116 = vadd.f32 %v608, %v1115
    %1117 = vmatprep.mubr.bf16.mxu0 0
    %1118 = vmatmul.mubr.bf16.gmra.mxu0 %v762
    %v1119 = vpop.f32.mrf.mxu0
    %v1120 = vadd.f32 %v612, %v1119
    %v1121 = vpop.f32.mrf.mxu0
    %v1122 = vadd.f32 %v614, %v1121
    %v1123 = vpop.f32.mrf.mxu0
    %v1124 = vadd.f32 %v616, %v1123
    %v1125 = vpop.f32.mrf.mxu0
    %v1126 = vadd.f32 %v618, %v1125
    %1127 = vmatprep.mubr.bf16.mxu0 0
    %1128 = vmatmul.mubr.bf16.gmra.mxu0 %v765
    %v1129 = vpop.f32.mrf.mxu0
    %v1130 = vadd.f32 %v622, %v1129
    %v1131 = vpop.f32.mrf.mxu0
    %v1132 = vadd.f32 %v624, %v1131
    %v1133 = vpop.f32.mrf.mxu0
    %v1134 = vadd.f32 %v626, %v1133
    %v1135 = vpop.f32.mrf.mxu0
    %v1136 = vadd.f32 %v628, %v1135
    %1137 = vmatprep.mubr.bf16.mxu0 0
    %1138 = vmatmul.mubr.bf16.gmra.mxu0 %v768
    %v1139 = vpop.f32.mrf.mxu0
    %v1140 = vadd.f32 %v632, %v1139
    %v1141 = vpop.f32.mrf.mxu0
    %v1142 = vadd.f32 %v634, %v1141
    %v1143 = vpop.f32.mrf.mxu0
    %v1144 = vadd.f32 %v636, %v1143
    %v1145 = vpop.f32.mrf.mxu0
    %v1146 = vadd.f32 %v638, %v1145
    %1147 = vmatprep.mubr.bf16.mxu0 0
    %1148 = vmatmul.mubr.bf16.gmra.mxu0 %v771
    %v1149 = vpop.f32.mrf.mxu0
    %v1150 = vadd.f32 %v642, %v1149
    %v1151 = vpop.f32.mrf.mxu0
    %v1152 = vadd.f32 %v644, %v1151
    %v1153 = vpop.f32.mrf.mxu0
    %v1154 = vadd.f32 %v646, %v1153
    %v1155 = vpop.f32.mrf.mxu0
    %v1156 = vadd.f32 %v648, %v1155
    %1157 = vmatprep.mubr.bf16.mxu0 0
    %1158 = vmatmul.mubr.bf16.gmra.mxu0 %v774
    %v1159 = vpop.f32.mrf.mxu0
    %v1160 = vadd.f32 %v652, %v1159
    %v1161 = vpop.f32.mrf.mxu0
    %v1162 = vadd.f32 %v654, %v1161
    %v1163 = vpop.f32.mrf.mxu0
    %v1164 = vadd.f32 %v656, %v1163
    %v1165 = vpop.f32.mrf.mxu0
    %v1166 = vadd.f32 %v658, %v1165
    %1167 = vmatprep.mubr.bf16.mxu0 0
    %1168 = vmatmul.mubr.bf16.gmra.mxu0 %v777
    %v1169 = vpop.f32.mrf.mxu0
    %v1170 = vadd.f32 %v662, %v1169
    %v1171 = vpop.f32.mrf.mxu0
    %v1172 = vadd.f32 %v664, %v1171
    %v1173 = vpop.f32.mrf.mxu0
    %v1174 = vadd.f32 %v666, %v1173
    %v1175 = vpop.f32.mrf.mxu0
    %v1176 = vadd.f32 %v668, %v1175
    %1177 = vmatprep.mubr.bf16.mxu0 0
    %1178 = vmatmul.mubr.bf16.gmra.mxu0 %v780
    %v1179 = vpop.f32.mrf.mxu0
    %v1180 = vadd.f32 %v672, %v1179
    %v1181 = vpop.f32.mrf.mxu0
    %v1182 = vadd.f32 %v674, %v1181
    %v1183 = vpop.f32.mrf.mxu0
    %v1184 = vadd.f32 %v676, %v1183
    %v1185 = vpop.f32.mrf.mxu0
    %v1186 = vadd.f32 %v678, %v1185
    %1187 = vdwg.mxu0
    %v1188 = vpack.c.bf16 %v90, %v89
    %s1189 = scalar_lea.vmem %s1, 192
    %v1190 = vld [vmem:[%s1189] sm:$0xff]
    %v1191 = vld [vmem:[%s1189 + $0x8] sm:$0xff]
    %v1192 = vld [vmem:[%s1189 + $0x10] sm:$0xff]
    %v1193 = vld [vmem:[%s1189 + $0x18] sm:$0xff]
    %v1194 = vld [vmem:[%s1189 + $0x20] sm:$0xff]
    %v1195 = vld [vmem:[%s1189 + $0x28] sm:$0xff]
    %v1196 = vld [vmem:[%s1189 + $0x30] sm:$0xff]
    %v1197 = vld [vmem:[%s1189 + $0x38] sm:$0xff]
    %v1198 = vld [vmem:[%s1189 + $0x40] sm:$0xff]
    %v1199 = vld [vmem:[%s1189 + $0x48] sm:$0xff]
    %v1200 = vld [vmem:[%s1189 + $0x50] sm:$0xff]
    %v1201 = vld [vmem:[%s1189 + $0x58] sm:$0xff]
    %v1214 = vunpack.c.l.b16 %v1190
    %v1215 = vunpack.c.h.b16 %v1190
    %v1216 = vunpack.c.l.b16 %v1191
    %v1217 = vunpack.c.h.b16 %v1191
    %v1218 = vunpack.c.l.b16 %v1192
    %v1219 = vunpack.c.h.b16 %v1192
    %v1220 = vunpack.c.l.b16 %v1193
    %v1221 = vunpack.c.h.b16 %v1193
    %v1222 = vunpack.c.l.b16 %v1194
    %v1223 = vunpack.c.h.b16 %v1194
    %v1224 = vunpack.c.l.b16 %v1195
    %v1225 = vunpack.c.h.b16 %v1195
    %v1226 = vunpack.c.l.b16 %v1196
    %v1227 = vunpack.c.h.b16 %v1196
    %v1228 = vunpack.c.l.b16 %v1197
    %v1229 = vunpack.c.h.b16 %v1197
    %v1230 = vunpack.c.l.b16 %v1198
    %v1231 = vunpack.c.h.b16 %v1198
    %v1232 = vunpack.c.l.b16 %v1199
    %v1233 = vunpack.c.h.b16 %v1199
    %v1234 = vunpack.c.l.b16 %v1200
    %v1235 = vunpack.c.h.b16 %v1200
    %v1236 = vunpack.c.l.b16 %v1201
    %v1237 = vunpack.c.h.b16 %v1201
    %v1238 = vpack.c.b16 %v1216, %v1214
    %v1239 = vpack.c.b16 %v1217, %v1215
    %v1240 = vpack.c.b16 %v1220, %v1218
    %v1241 = vpack.c.b16 %v1221, %v1219
    %v1242 = vpack.c.b16 %v1224, %v1222
    %v1243 = vpack.c.b16 %v1225, %v1223
    %v1244 = vpack.c.b16 %v1228, %v1226
    %v1245 = vpack.c.b16 %v1229, %v1227
    %v1246 = vpack.c.b16 %v1232, %v1230
    %v1247 = vpack.c.b16 %v1233, %v1231
    %v1248 = vpack.c.b16 %v1236, %v1234
    %v1249 = vpack.c.b16 %v1237, %v1235
    %v1263 = vsel %vm218, %v1188, 0
    %1265 = vmatprep.subr.bf16.mxu0 0
    %1266 = vmatpush1.bf16.msra.mxu0 0
    %1267 = vmatprep.subr.bf16.mxu0 0
    %1268 = vmatpush1.bf16.msra.mxu0 0
    %1269 = vmatprep.subr.bf16.mxu0 %v1249
    %1270 = vmatpush1.bf16.msra.mxu0 %v1248
    %1271 = vmatprep.subr.bf16.mxu0 %v1247
    %1272 = vmatpush1.bf16.msra.mxu0 %v1246
    %1273 = vmatprep.subr.bf16.mxu0 %v1245
    %1274 = vmatpush1.bf16.msra.mxu0 %v1244
    %1275 = vmatprep.subr.bf16.mxu0 %v1243
    %1276 = vmatpush1.bf16.msra.mxu0 %v1242
    %1277 = vmatprep.subr.bf16.mxu0 %v1241
    %1278 = vmatpush1.bf16.msra.mxu0 %v1240
    %1279 = vmatprep.subr.bf16.mxu0 %v1239
    %1280 = vmatpush1.bf16.msra.mxu0 %v1238
    %1281 = vmatprep.subr.bf16.mxu0 0
    %1282 = vmatpush2.bf16.msra.mxu0 0
    %1283 = vmatprep.subr.bf16.mxu0 0
    %1284 = vmatpush2.bf16.msra.mxu0 0
    %1285 = vmatprep.subr.bf16.mxu0 0
    %1286 = vmatpush2.bf16.msra.mxu0 0
    %1287 = vmatprep.subr.bf16.mxu0 0
    %1288 = vmatpush2.bf16.msra.mxu0 0
    %1289 = vmatprep.subr.bf16.mxu0 0
    %1290 = vmatpush2.bf16.msra.mxu0 0
    %1291 = vmatprep.subr.bf16.mxu0 0
    %1292 = vmatpush2.bf16.msra.mxu0 0
    %1293 = vmatprep.subr.bf16.mxu0 0
    %1294 = vmatpush2.bf16.msra.mxu0 0
    %1295 = vmatprep.subr.bf16.mxu0 0
    %1296 = vmatpush2.bf16.msra.mxu0 0
    %1297 = vmatprep.mubr.bf16.mxu0 0
    %1298 = vmatmul.mubr.bf16.gmra.mxu0 %v744
    %v1299 = vpop.f32.mrf.mxu0
    %v1300 = vadd.f32 0.0, %v1299
    %v1301 = vpop.f32.mrf.mxu0
    %v1302 = vadd.f32 0.0, %v1301
    %v1303 = vpop.f32.mrf.mxu0
    %v1304 = vadd.f32 0.0, %v1303
    %v1305 = vpop.f32.mrf.mxu0
    %v1306 = vadd.f32 0.0, %v1305
    %1307 = vmatprep.mubr.bf16.mxu0 0
    %1308 = vmatmul.mubr.bf16.gmra.mxu0 %v747
    %v1309 = vpop.f32.mrf.mxu0
    %v1310 = vadd.f32 0.0, %v1309
    %v1311 = vpop.f32.mrf.mxu0
    %v1312 = vadd.f32 0.0, %v1311
    %v1313 = vpop.f32.mrf.mxu0
    %v1314 = vadd.f32 0.0, %v1313
    %v1315 = vpop.f32.mrf.mxu0
    %v1316 = vadd.f32 0.0, %v1315
    %1317 = vmatprep.mubr.bf16.mxu0 0
    %1318 = vmatmul.mubr.bf16.gmra.mxu0 %v750
    %v1319 = vpop.f32.mrf.mxu0
    %v1320 = vadd.f32 0.0, %v1319
    %v1321 = vpop.f32.mrf.mxu0
    %v1322 = vadd.f32 0.0, %v1321
    %v1323 = vpop.f32.mrf.mxu0
    %v1324 = vadd.f32 0.0, %v1323
    %v1325 = vpop.f32.mrf.mxu0
    %v1326 = vadd.f32 0.0, %v1325
    %1327 = vmatprep.mubr.bf16.mxu0 0
    %1328 = vmatmul.mubr.bf16.gmra.mxu0 %v753
    %v1329 = vpop.f32.mrf.mxu0
    %v1330 = vadd.f32 0.0, %v1329
    %v1331 = vpop.f32.mrf.mxu0
    %v1332 = vadd.f32 0.0, %v1331
    %v1333 = vpop.f32.mrf.mxu0
    %v1334 = vadd.f32 0.0, %v1333
    %v1335 = vpop.f32.mrf.mxu0
    %v1336 = vadd.f32 0.0, %v1335
    %1337 = vmatprep.mubr.bf16.mxu0 0
    %1338 = vmatmul.mubr.bf16.gmra.mxu0 %v756
    %v1339 = vpop.f32.mrf.mxu0
    %v1340 = vadd.f32 0.0, %v1339
    %v1341 = vpop.f32.mrf.mxu0
    %v1342 = vadd.f32 0.0, %v1341
    %v1343 = vpop.f32.mrf.mxu0
    %v1344 = vadd.f32 0.0, %v1343
    %v1345 = vpop.f32.mrf.mxu0
    %v1346 = vadd.f32 0.0, %v1345
    %1347 = vmatprep.mubr.bf16.mxu0 0
    %1348 = vmatmul.mubr.bf16.gmra.mxu0 %v759
    %v1349 = vpop.f32.mrf.mxu0
    %v1350 = vadd.f32 0.0, %v1349
    %v1351 = vpop.f32.mrf.mxu0
    %v1352 = vadd.f32 0.0, %v1351
    %v1353 = vpop.f32.mrf.mxu0
    %v1354 = vadd.f32 0.0, %v1353
    %v1355 = vpop.f32.mrf.mxu0
    %v1356 = vadd.f32 0.0, %v1355
    %1357 = vmatprep.mubr.bf16.mxu0 0
    %1358 = vmatmul.mubr.bf16.gmra.mxu0 %v762
    %v1359 = vpop.f32.mrf.mxu0
    %v1360 = vadd.f32 0.0, %v1359
    %v1361 = vpop.f32.mrf.mxu0
    %v1362 = vadd.f32 0.0, %v1361
    %v1363 = vpop.f32.mrf.mxu0
    %v1364 = vadd.f32 0.0, %v1363
    %v1365 = vpop.f32.mrf.mxu0
    %v1366 = vadd.f32 0.0, %v1365
    %1367 = vmatprep.mubr.bf16.mxu0 0
    %1368 = vmatmul.mubr.bf16.gmra.mxu0 %v765
    %v1369 = vpop.f32.mrf.mxu0
    %v1370 = vadd.f32 0.0, %v1369
    %v1371 = vpop.f32.mrf.mxu0
    %v1372 = vadd.f32 0.0, %v1371
    %v1373 = vpop.f32.mrf.mxu0
    %v1374 = vadd.f32 0.0, %v1373
    %v1375 = vpop.f32.mrf.mxu0
    %v1376 = vadd.f32 0.0, %v1375
    %1377 = vmatprep.mubr.bf16.mxu0 0
    %1378 = vmatmul.mubr.bf16.gmra.mxu0 %v768
    %v1379 = vpop.f32.mrf.mxu0
    %v1380 = vadd.f32 0.0, %v1379
    %v1381 = vpop.f32.mrf.mxu0
    %v1382 = vadd.f32 0.0, %v1381
    %v1383 = vpop.f32.mrf.mxu0
    %v1384 = vadd.f32 0.0, %v1383
    %v1385 = vpop.f32.mrf.mxu0
    %v1386 = vadd.f32 0.0, %v1385
    %1387 = vmatprep.mubr.bf16.mxu0 0
    %1388 = vmatmul.mubr.bf16.gmra.mxu0 %v771
    %v1389 = vpop.f32.mrf.mxu0
    %v1390 = vadd.f32 0.0, %v1389
    %v1391 = vpop.f32.mrf.mxu0
    %v1392 = vadd.f32 0.0, %v1391
    %v1393 = vpop.f32.mrf.mxu0
    %v1394 = vadd.f32 0.0, %v1393
    %v1395 = vpop.f32.mrf.mxu0
    %v1396 = vadd.f32 0.0, %v1395
    %1397 = vmatprep.mubr.bf16.mxu0 0
    %1398 = vmatmul.mubr.bf16.gmra.mxu0 %v774
    %v1399 = vpop.f32.mrf.mxu0
    %v1400 = vadd.f32 0.0, %v1399
    %v1401 = vpop.f32.mrf.mxu0
    %v1402 = vadd.f32 0.0, %v1401
    %v1403 = vpop.f32.mrf.mxu0
    %v1404 = vadd.f32 0.0, %v1403
    %v1405 = vpop.f32.mrf.mxu0
    %v1406 = vadd.f32 0.0, %v1405
    %1407 = vmatprep.mubr.bf16.mxu0 0
    %1408 = vmatmul.mubr.bf16.gmra.mxu0 %v777
    %v1409 = vpop.f32.mrf.mxu0
    %v1410 = vadd.f32 0.0, %v1409
    %v1411 = vpop.f32.mrf.mxu0
    %v1412 = vadd.f32 0.0, %v1411
    %v1413 = vpop.f32.mrf.mxu0
    %v1414 = vadd.f32 0.0, %v1413
    %v1415 = vpop.f32.mrf.mxu0
    %v1416 = vadd.f32 0.0, %v1415
    %1417 = vmatprep.mubr.bf16.mxu0 0
    %1418 = vmatmul.mubr.bf16.gmra.mxu0 %v780
    %v1419 = vpop.f32.mrf.mxu0
    %v1420 = vadd.f32 0.0, %v1419
    %v1421 = vpop.f32.mrf.mxu0
    %v1422 = vadd.f32 0.0, %v1421
    %v1423 = vpop.f32.mrf.mxu0
    %v1424 = vadd.f32 0.0, %v1423
    %v1425 = vpop.f32.mrf.mxu0
    %v1426 = vadd.f32 0.0, %v1425
    %1427 = vmatprep.mubr.bf16.mxu0 0
    %1428 = vmatmul.mubr.bf16.gmra.mxu0 %v1263
    %v1429 = vpop.f32.mrf.mxu0
    %v1430 = vadd.f32 0.0, %v1429
    %v1431 = vpop.f32.mrf.mxu0
    %v1432 = vadd.f32 0.0, %v1431
    %v1433 = vpop.f32.mrf.mxu0
    %v1434 = vadd.f32 0.0, %v1433
    %v1435 = vpop.f32.mrf.mxu0
    %v1436 = vadd.f32 0.0, %v1435
    %1437 = vdwg.mxu0
    %s1438 = scalar_lea.vmem [#allocation2], 192
    %v1439 = vld [vmem:[%s1438] sm:$0xff]
    %v1440 = vld [vmem:[%s1438 + $0x8] sm:$0xff]
    %v1441 = vld [vmem:[%s1438 + $0x10] sm:$0xff]
    %v1442 = vld [vmem:[%s1438 + $0x18] sm:$0xff]
    %v1443 = vld [vmem:[%s1438 + $0x20] sm:$0xff]
    %v1444 = vld [vmem:[%s1438 + $0x28] sm:$0xff]
    %v1445 = vld [vmem:[%s1438 + $0x30] sm:$0xff]
    %v1446 = vld [vmem:[%s1438 + $0x38] sm:$0xff]
    %v1447 = vld [vmem:[%s1438 + $0x40] sm:$0xff]
    %v1448 = vld [vmem:[%s1438 + $0x48] sm:$0xff]
    %v1449 = vld [vmem:[%s1438 + $0x50] sm:$0xff]
    %v1450 = vld [vmem:[%s1438 + $0x58] sm:$0xff]
    %v1463 = vunpack.c.l.b16 %v1439
    %v1464 = vunpack.c.h.b16 %v1439
    %v1465 = vunpack.c.l.b16 %v1440
    %v1466 = vunpack.c.h.b16 %v1440
    %v1467 = vunpack.c.l.b16 %v1441
    %v1468 = vunpack.c.h.b16 %v1441
    %v1469 = vunpack.c.l.b16 %v1442
    %v1470 = vunpack.c.h.b16 %v1442
    %v1471 = vunpack.c.l.b16 %v1443
    %v1472 = vunpack.c.h.b16 %v1443
    %v1473 = vunpack.c.l.b16 %v1444
    %v1474 = vunpack.c.h.b16 %v1444
    %v1475 = vunpack.c.l.b16 %v1445
    %v1476 = vunpack.c.h.b16 %v1445
    %v1477 = vunpack.c.l.b16 %v1446
    %v1478 = vunpack.c.h.b16 %v1446
    %v1479 = vunpack.c.l.b16 %v1447
    %v1480 = vunpack.c.h.b16 %v1447
    %v1481 = vunpack.c.l.b16 %v1448
    %v1482 = vunpack.c.h.b16 %v1448
    %v1483 = vunpack.c.l.b16 %v1449
    %v1484 = vunpack.c.h.b16 %v1449
    %v1485 = vunpack.c.l.b16 %v1450
    %v1486 = vunpack.c.h.b16 %v1450
    %v1487 = vpack.c.b16 %v1465, %v1463
    %v1488 = vpack.c.b16 %v1466, %v1464
    %v1489 = vpack.c.b16 %v1469, %v1467
    %v1490 = vpack.c.b16 %v1470, %v1468
    %v1491 = vpack.c.b16 %v1473, %v1471
    %v1492 = vpack.c.b16 %v1474, %v1472
    %v1493 = vpack.c.b16 %v1477, %v1475
    %v1494 = vpack.c.b16 %v1478, %v1476
    %v1495 = vpack.c.b16 %v1481, %v1479
    %v1496 = vpack.c.b16 %v1482, %v1480
    %v1497 = vpack.c.b16 %v1485, %v1483
    %v1498 = vpack.c.b16 %v1486, %v1484
    %1511 = vmatprep.subr.bf16.mxu0 0
    %1512 = vmatpush1.bf16.msra.mxu0 0
    %1513 = vmatprep.subr.bf16.mxu0 0
    %1514 = vmatpush1.bf16.msra.mxu0 0
    %1515 = vmatprep.subr.bf16.mxu0 %v1498
    %1516 = vmatpush1.bf16.msra.mxu0 %v1497
    %1517 = vmatprep.subr.bf16.mxu0 %v1496
    %1518 = vmatpush1.bf16.msra.mxu0 %v1495
    %1519 = vmatprep.subr.bf16.mxu0 %v1494
    %1520 = vmatpush1.bf16.msra.mxu0 %v1493
    %1521 = vmatprep.subr.bf16.mxu0 %v1492
    %1522 = vmatpush1.bf16.msra.mxu0 %v1491
    %1523 = vmatprep.subr.bf16.mxu0 %v1490
    %1524 = vmatpush1.bf16.msra.mxu0 %v1489
    %1525 = vmatprep.subr.bf16.mxu0 %v1488
    %1526 = vmatpush1.bf16.msra.mxu0 %v1487
    %1527 = vmatprep.subr.bf16.mxu0 0
    %1528 = vmatpush2.bf16.msra.mxu0 0
    %1529 = vmatprep.subr.bf16.mxu0 0
    %1530 = vmatpush2.bf16.msra.mxu0 0
    %1531 = vmatprep.subr.bf16.mxu0 0
    %1532 = vmatpush2.bf16.msra.mxu0 0
    %1533 = vmatprep.subr.bf16.mxu0 0
    %1534 = vmatpush2.bf16.msra.mxu0 0
    %1535 = vmatprep.subr.bf16.mxu0 0
    %1536 = vmatpush2.bf16.msra.mxu0 0
    %1537 = vmatprep.subr.bf16.mxu0 0
    %1538 = vmatpush2.bf16.msra.mxu0 0
    %1539 = vmatprep.subr.bf16.mxu0 0
    %1540 = vmatpush2.bf16.msra.mxu0 0
    %1541 = vmatprep.subr.bf16.mxu0 0
    %1542 = vmatpush2.bf16.msra.mxu0 0
    %1543 = vmatprep.mubr.bf16.mxu0 0
    %1544 = vmatmul.mubr.bf16.gmra.mxu0 %v744
    %v1545 = vpop.f32.mrf.mxu0
    %v1546 = vadd.f32 0.0, %v1545
    %v1547 = vpop.f32.mrf.mxu0
    %v1548 = vadd.f32 0.0, %v1547
    %v1549 = vpop.f32.mrf.mxu0
    %v1550 = vadd.f32 0.0, %v1549
    %v1551 = vpop.f32.mrf.mxu0
    %v1552 = vadd.f32 0.0, %v1551
    %1553 = vmatprep.mubr.bf16.mxu0 0
    %1554 = vmatmul.mubr.bf16.gmra.mxu0 %v747
    %v1555 = vpop.f32.mrf.mxu0
    %v1556 = vadd.f32 0.0, %v1555
    %v1557 = vpop.f32.mrf.mxu0
    %v1558 = vadd.f32 0.0, %v1557
    %v1559 = vpop.f32.mrf.mxu0
    %v1560 = vadd.f32 0.0, %v1559
    %v1561 = vpop.f32.mrf.mxu0
    %v1562 = vadd.f32 0.0, %v1561
    %1563 = vmatprep.mubr.bf16.mxu0 0
    %1564 = vmatmul.mubr.bf16.gmra.mxu0 %v750
    %v1565 = vpop.f32.mrf.mxu0
    %v1566 = vadd.f32 0.0, %v1565
    %v1567 = vpop.f32.mrf.mxu0
    %v1568 = vadd.f32 0.0, %v1567
    %v1569 = vpop.f32.mrf.mxu0
    %v1570 = vadd.f32 0.0, %v1569
    %v1571 = vpop.f32.mrf.mxu0
    %v1572 = vadd.f32 0.0, %v1571
    %1573 = vmatprep.mubr.bf16.mxu0 0
    %1574 = vmatmul.mubr.bf16.gmra.mxu0 %v753
    %v1575 = vpop.f32.mrf.mxu0
    %v1576 = vadd.f32 0.0, %v1575
    %v1577 = vpop.f32.mrf.mxu0
    %v1578 = vadd.f32 0.0, %v1577
    %v1579 = vpop.f32.mrf.mxu0
    %v1580 = vadd.f32 0.0, %v1579
    %v1581 = vpop.f32.mrf.mxu0
    %v1582 = vadd.f32 0.0, %v1581
    %1583 = vmatprep.mubr.bf16.mxu0 0
    %1584 = vmatmul.mubr.bf16.gmra.mxu0 %v756
    %v1585 = vpop.f32.mrf.mxu0
    %v1586 = vadd.f32 0.0, %v1585
    %v1587 = vpop.f32.mrf.mxu0
    %v1588 = vadd.f32 0.0, %v1587
    %v1589 = vpop.f32.mrf.mxu0
    %v1590 = vadd.f32 0.0, %v1589
    %v1591 = vpop.f32.mrf.mxu0
    %v1592 = vadd.f32 0.0, %v1591
    %1593 = vmatprep.mubr.bf16.mxu0 0
    %1594 = vmatmul.mubr.bf16.gmra.mxu0 %v759
    %v1595 = vpop.f32.mrf.mxu0
    %v1596 = vadd.f32 0.0, %v1595
    %v1597 = vpop.f32.mrf.mxu0
    %v1598 = vadd.f32 0.0, %v1597
    %v1599 = vpop.f32.mrf.mxu0
    %v1600 = vadd.f32 0.0, %v1599
    %v1601 = vpop.f32.mrf.mxu0
    %v1602 = vadd.f32 0.0, %v1601
    %1603 = vmatprep.mubr.bf16.mxu0 0
    %1604 = vmatmul.mubr.bf16.gmra.mxu0 %v762
    %v1605 = vpop.f32.mrf.mxu0
    %v1606 = vadd.f32 0.0, %v1605
    %v1607 = vpop.f32.mrf.mxu0
    %v1608 = vadd.f32 0.0, %v1607
    %v1609 = vpop.f32.mrf.mxu0
    %v1610 = vadd.f32 0.0, %v1609
    %v1611 = vpop.f32.mrf.mxu0
    %v1612 = vadd.f32 0.0, %v1611
    %1613 = vmatprep.mubr.bf16.mxu0 0
    %1614 = vmatmul.mubr.bf16.gmra.mxu0 %v765
    %v1615 = vpop.f32.mrf.mxu0
    %v1616 = vadd.f32 0.0, %v1615
    %v1617 = vpop.f32.mrf.mxu0
    %v1618 = vadd.f32 0.0, %v1617
    %v1619 = vpop.f32.mrf.mxu0
    %v1620 = vadd.f32 0.0, %v1619
    %v1621 = vpop.f32.mrf.mxu0
    %v1622 = vadd.f32 0.0, %v1621
    %1623 = vmatprep.mubr.bf16.mxu0 0
    %1624 = vmatmul.mubr.bf16.gmra.mxu0 %v768
    %v1625 = vpop.f32.mrf.mxu0
    %v1626 = vadd.f32 0.0, %v1625
    %v1627 = vpop.f32.mrf.mxu0
    %v1628 = vadd.f32 0.0, %v1627
    %v1629 = vpop.f32.mrf.mxu0
    %v1630 = vadd.f32 0.0, %v1629
    %v1631 = vpop.f32.mrf.mxu0
    %v1632 = vadd.f32 0.0, %v1631
    %1633 = vmatprep.mubr.bf16.mxu0 0
    %1634 = vmatmul.mubr.bf16.gmra.mxu0 %v771
    %v1635 = vpop.f32.mrf.mxu0
    %v1636 = vadd.f32 0.0, %v1635
    %v1637 = vpop.f32.mrf.mxu0
    %v1638 = vadd.f32 0.0, %v1637
    %v1639 = vpop.f32.mrf.mxu0
    %v1640 = vadd.f32 0.0, %v1639
    %v1641 = vpop.f32.mrf.mxu0
    %v1642 = vadd.f32 0.0, %v1641
    %1643 = vmatprep.mubr.bf16.mxu0 0
    %1644 = vmatmul.mubr.bf16.gmra.mxu0 %v774
    %v1645 = vpop.f32.mrf.mxu0
    %v1646 = vadd.f32 0.0, %v1645
    %v1647 = vpop.f32.mrf.mxu0
    %v1648 = vadd.f32 0.0, %v1647
    %v1649 = vpop.f32.mrf.mxu0
    %v1650 = vadd.f32 0.0, %v1649
    %v1651 = vpop.f32.mrf.mxu0
    %v1652 = vadd.f32 0.0, %v1651
    %1653 = vmatprep.mubr.bf16.mxu0 0
    %1654 = vmatmul.mubr.bf16.gmra.mxu0 %v777
    %v1655 = vpop.f32.mrf.mxu0
    %v1656 = vadd.f32 0.0, %v1655
    %v1657 = vpop.f32.mrf.mxu0
    %v1658 = vadd.f32 0.0, %v1657
    %v1659 = vpop.f32.mrf.mxu0
    %v1660 = vadd.f32 0.0, %v1659
    %v1661 = vpop.f32.mrf.mxu0
    %v1662 = vadd.f32 0.0, %v1661
    %1663 = vmatprep.mubr.bf16.mxu0 0
    %1664 = vmatmul.mubr.bf16.gmra.mxu0 %v780
    %v1665 = vpop.f32.mrf.mxu0
    %v1666 = vadd.f32 0.0, %v1665
    %v1667 = vpop.f32.mrf.mxu0
    %v1668 = vadd.f32 0.0, %v1667
    %v1669 = vpop.f32.mrf.mxu0
    %v1670 = vadd.f32 0.0, %v1669
    %v1671 = vpop.f32.mrf.mxu0
    %v1672 = vadd.f32 0.0, %v1671
    %1673 = vmatprep.mubr.bf16.mxu0 0
    %1674 = vmatmul.mubr.bf16.gmra.mxu0 %v1263
    %v1675 = vpop.f32.mrf.mxu0
    %v1676 = vadd.f32 0.0, %v1675
    %v1677 = vpop.f32.mrf.mxu0
    %v1678 = vadd.f32 0.0, %v1677
    %v1679 = vpop.f32.mrf.mxu0
    %v1680 = vadd.f32 0.0, %v1679
    %v1681 = vpop.f32.mrf.mxu0
    %v1682 = vadd.f32 0.0, %v1681
    %1683 = vdwg.mxu0
    %v1684 = vadd.f32 %v817, %v1300
    %v1685 = vadd.f32 %v819, %v1302
    %v1686 = vadd.f32 %v821, %v1304
    %v1687 = vadd.f32 %v823, %v1306
    %v1688 = vadd.f32 %v827, %v1310
    %v1689 = vadd.f32 %v829, %v1312
    %v1690 = vadd.f32 %v831, %v1314
    %v1691 = vadd.f32 %v833, %v1316
    %v1692 = vadd.f32 %v837, %v1320
    %v1693 = vadd.f32 %v839, %v1322
    %v1694 = vadd.f32 %v841, %v1324
    %v1695 = vadd.f32 %v843, %v1326
    %v1696 = vadd.f32 %v847, %v1330
    %v1697 = vadd.f32 %v849, %v1332
    %v1698 = vadd.f32 %v851, %v1334
    %v1699 = vadd.f32 %v853, %v1336
    %v1700 = vadd.f32 %v857, %v1340
    %v1701 = vadd.f32 %v859, %v1342
    %v1702 = vadd.f32 %v861, %v1344
    %v1703 = vadd.f32 %v863, %v1346
    %v1704 = vadd.f32 %v867, %v1350
    %v1705 = vadd.f32 %v869, %v1352
    %v1706 = vadd.f32 %v871, %v1354
    %v1707 = vadd.f32 %v873, %v1356
    %v1708 = vadd.f32 %v877, %v1360
    %v1709 = vadd.f32 %v879, %v1362
    %v1710 = vadd.f32 %v881, %v1364
    %v1711 = vadd.f32 %v883, %v1366
    %v1712 = vadd.f32 %v887, %v1370
    %v1713 = vadd.f32 %v889, %v1372
    %v1714 = vadd.f32 %v891, %v1374
    %v1715 = vadd.f32 %v893, %v1376
    %v1716 = vadd.f32 %v897, %v1380
    %v1717 = vadd.f32 %v899, %v1382
    %v1718 = vadd.f32 %v901, %v1384
    %v1719 = vadd.f32 %v903, %v1386
    %v1720 = vadd.f32 %v907, %v1390
    %v1721 = vadd.f32 %v909, %v1392
    %v1722 = vadd.f32 %v911, %v1394
    %v1723 = vadd.f32 %v913, %v1396
    %v1724 = vadd.f32 %v917, %v1400
    %v1725 = vadd.f32 %v919, %v1402
    %v1726 = vadd.f32 %v921, %v1404
    %v1727 = vadd.f32 %v923, %v1406
    %v1728 = vadd.f32 %v927, %v1410
    %v1729 = vadd.f32 %v929, %v1412
    %v1730 = vadd.f32 %v931, %v1414
    %v1731 = vadd.f32 %v933, %v1416
    %v1732 = vadd.f32 %v937, %v1420
    %v1733 = vadd.f32 %v939, %v1422
    %v1734 = vadd.f32 %v941, %v1424
    %v1735 = vadd.f32 %v943, %v1426
    %v1736 = vadd.f32 %v947, %v1430
    %v1737 = vadd.f32 %v949, %v1432
    %v1738 = vadd.f32 %v951, %v1434
    %v1739 = vadd.f32 %v953, %v1436
    %v1740 = vadd.f32 %v1050, %v1546
    %v1741 = vadd.f32 %v1052, %v1548
    %v1742 = vadd.f32 %v1054, %v1550
    %v1743 = vadd.f32 %v1056, %v1552
    %v1744 = vadd.f32 %v1060, %v1556
    %v1745 = vadd.f32 %v1062, %v1558
    %v1746 = vadd.f32 %v1064, %v1560
    %v1747 = vadd.f32 %v1066, %v1562
    %v1748 = vadd.f32 %v1070, %v1566
    %v1749 = vadd.f32 %v1072, %v1568
    %v1750 = vadd.f32 %v1074, %v1570
    %v1751 = vadd.f32 %v1076, %v1572
    %v1752 = vadd.f32 %v1080, %v1576
    %v1753 = vadd.f32 %v1082, %v1578
    %v1754 = vadd.f32 %v1084, %v1580
    %v1755 = vadd.f32 %v1086, %v1582
    %v1756 = vadd.f32 %v1090, %v1586
    %v1757 = vadd.f32 %v1092, %v1588
    %v1758 = vadd.f32 %v1094, %v1590
    %v1759 = vadd.f32 %v1096, %v1592
    %v1760 = vadd.f32 %v1100, %v1596
    %v1761 = vadd.f32 %v1102, %v1598
    %v1762 = vadd.f32 %v1104, %v1600
    %v1763 = vadd.f32 %v1106, %v1602
    %v1764 = vadd.f32 %v1110, %v1606
    %v1765 = vadd.f32 %v1112, %v1608
    %v1766 = vadd.f32 %v1114, %v1610
    %v1767 = vadd.f32 %v1116, %v1612
    %v1768 = vadd.f32 %v1120, %v1616
    %v1769 = vadd.f32 %v1122, %v1618
    %v1770 = vadd.f32 %v1124, %v1620
    %v1771 = vadd.f32 %v1126, %v1622
    %v1772 = vadd.f32 %v1130, %v1626
    %v1773 = vadd.f32 %v1132, %v1628
    %v1774 = vadd.f32 %v1134, %v1630
    %v1775 = vadd.f32 %v1136, %v1632
    %v1776 = vadd.f32 %v1140, %v1636
    %v1777 = vadd.f32 %v1142, %v1638
    %v1778 = vadd.f32 %v1144, %v1640
    %v1779 = vadd.f32 %v1146, %v1642
    %v1780 = vadd.f32 %v1150, %v1646
    %v1781 = vadd.f32 %v1152, %v1648
    %v1782 = vadd.f32 %v1154, %v1650
    %v1783 = vadd.f32 %v1156, %v1652
    %v1784 = vadd.f32 %v1160, %v1656
    %v1785 = vadd.f32 %v1162, %v1658
    %v1786 = vadd.f32 %v1164, %v1660
    %v1787 = vadd.f32 %v1166, %v1662
    %v1788 = vadd.f32 %v1170, %v1666
    %v1789 = vadd.f32 %v1172, %v1668
    %v1790 = vadd.f32 %v1174, %v1670
    %v1791 = vadd.f32 %v1176, %v1672
    %v1792 = vadd.f32 %v1180, %v1676
    %v1793 = vadd.f32 %v1182, %v1678
    %v1794 = vadd.f32 %v1184, %v1680
    %v1795 = vadd.f32 %v1186, %v1682
    %v1796 = vpack.c.bf16 %v91, %v90
    %s1797 = scalar_lea.vmem %s1, 288
    %v1798 = vld [vmem:[%s1797] sm:$0xff]
    %v1799 = vld [vmem:[%s1797 + $0x8] sm:$0xff]
    %v1800 = vld [vmem:[%s1797 + $0x10] sm:$0xff]
    %v1801 = vld [vmem:[%s1797 + $0x18] sm:$0xff]
    %v1802 = vld [vmem:[%s1797 + $0x20] sm:$0xff]
    %v1803 = vld [vmem:[%s1797 + $0x28] sm:$0xff]
    %v1804 = vld [vmem:[%s1797 + $0x30] sm:$0xff]
    %v1805 = vld [vmem:[%s1797 + $0x38] sm:$0xff]
    %v1806 = vld [vmem:[%s1797 + $0x40] sm:$0xff]
    %v1807 = vld [vmem:[%s1797 + $0x48] sm:$0xff]
    %v1808 = vld [vmem:[%s1797 + $0x50] sm:$0xff]
    %v1809 = vld [vmem:[%s1797 + $0x58] sm:$0xff]
    %v1822 = vunpack.c.l.b16 %v1798
    %v1823 = vunpack.c.h.b16 %v1798
    %v1824 = vunpack.c.l.b16 %v1799
    %v1825 = vunpack.c.h.b16 %v1799
    %v1826 = vunpack.c.l.b16 %v1800
    %v1827 = vunpack.c.h.b16 %v1800
    %v1828 = vunpack.c.l.b16 %v1801
    %v1829 = vunpack.c.h.b16 %v1801
    %v1830 = vunpack.c.l.b16 %v1802
    %v1831 = vunpack.c.h.b16 %v1802
    %v1832 = vunpack.c.l.b16 %v1803
    %v1833 = vunpack.c.h.b16 %v1803
    %v1834 = vunpack.c.l.b16 %v1804
    %v1835 = vunpack.c.h.b16 %v1804
    %v1836 = vunpack.c.l.b16 %v1805
    %v1837 = vunpack.c.h.b16 %v1805
    %v1838 = vunpack.c.l.b16 %v1806
    %v1839 = vunpack.c.h.b16 %v1806
    %v1840 = vunpack.c.l.b16 %v1807
    %v1841 = vunpack.c.h.b16 %v1807
    %v1842 = vunpack.c.l.b16 %v1808
    %v1843 = vunpack.c.h.b16 %v1808
    %v1844 = vunpack.c.l.b16 %v1809
    %v1845 = vunpack.c.h.b16 %v1809
    %v1846 = vpack.c.b16 %v1824, %v1822
    %v1847 = vpack.c.b16 %v1825, %v1823
    %v1848 = vpack.c.b16 %v1828, %v1826
    %v1849 = vpack.c.b16 %v1829, %v1827
    %v1850 = vpack.c.b16 %v1832, %v1830
    %v1851 = vpack.c.b16 %v1833, %v1831
    %v1852 = vpack.c.b16 %v1836, %v1834
    %v1853 = vpack.c.b16 %v1837, %v1835
    %v1854 = vpack.c.b16 %v1840, %v1838
    %v1855 = vpack.c.b16 %v1841, %v1839
    %v1856 = vpack.c.b16 %v1844, %v1842
    %v1857 = vpack.c.b16 %v1845, %v1843
    %v1871 = vsel %vm218, %v1796, 0
    %1873 = vmatprep.subr.bf16.mxu0 0
    %1874 = vmatpush1.bf16.msra.mxu0 0
    %1875 = vmatprep.subr.bf16.mxu0 0
    %1876 = vmatpush1.bf16.msra.mxu0 0
    %1877 = vmatprep.subr.bf16.mxu0 %v1857
    %1878 = vmatpush1.bf16.msra.mxu0 %v1856
    %1879 = vmatprep.subr.bf16.mxu0 %v1855
    %1880 = vmatpush1.bf16.msra.mxu0 %v1854
    %1881 = vmatprep.subr.bf16.mxu0 %v1853
    %1882 = vmatpush1.bf16.msra.mxu0 %v1852
    %1883 = vmatprep.subr.bf16.mxu0 %v1851
    %1884 = vmatpush1.bf16.msra.mxu0 %v1850
    %1885 = vmatprep.subr.bf16.mxu0 %v1849
    %1886 = vmatpush1.bf16.msra.mxu0 %v1848
    %1887 = vmatprep.subr.bf16.mxu0 %v1847
    %1888 = vmatpush1.bf16.msra.mxu0 %v1846
    %1889 = vmatprep.subr.bf16.mxu0 0
    %1890 = vmatpush2.bf16.msra.mxu0 0
    %1891 = vmatprep.subr.bf16.mxu0 0
    %1892 = vmatpush2.bf16.msra.mxu0 0
    %1893 = vmatprep.subr.bf16.mxu0 0
    %1894 = vmatpush2.bf16.msra.mxu0 0
    %1895 = vmatprep.subr.bf16.mxu0 0
    %1896 = vmatpush2.bf16.msra.mxu0 0
    %1897 = vmatprep.subr.bf16.mxu0 0
    %1898 = vmatpush2.bf16.msra.mxu0 0
    %1899 = vmatprep.subr.bf16.mxu0 0
    %1900 = vmatpush2.bf16.msra.mxu0 0
    %1901 = vmatprep.subr.bf16.mxu0 0
    %1902 = vmatpush2.bf16.msra.mxu0 0
    %1903 = vmatprep.subr.bf16.mxu0 0
    %1904 = vmatpush2.bf16.msra.mxu0 0
    %1905 = vmatprep.mubr.bf16.mxu0 0
    %1906 = vmatmul.mubr.bf16.gmra.mxu0 %v223
    %v1907 = vpop.f32.mrf.mxu0
    %v1908 = vadd.f32 0.0, %v1907
    %v1909 = vpop.f32.mrf.mxu0
    %v1910 = vadd.f32 0.0, %v1909
    %v1911 = vpop.f32.mrf.mxu0
    %v1912 = vadd.f32 0.0, %v1911
    %v1913 = vpop.f32.mrf.mxu0
    %v1914 = vadd.f32 0.0, %v1913
    %1915 = vmatprep.mubr.bf16.mxu0 0
    %1916 = vmatmul.mubr.bf16.gmra.mxu0 %v226
    %v1917 = vpop.f32.mrf.mxu0
    %v1918 = vadd.f32 0.0, %v1917
    %v1919 = vpop.f32.mrf.mxu0
    %v1920 = vadd.f32 0.0, %v1919
    %v1921 = vpop.f32.mrf.mxu0
    %v1922 = vadd.f32 0.0, %v1921
    %v1923 = vpop.f32.mrf.mxu0
    %v1924 = vadd.f32 0.0, %v1923
    %1925 = vmatprep.mubr.bf16.mxu0 0
    %1926 = vmatmul.mubr.bf16.gmra.mxu0 %v229
    %v1927 = vpop.f32.mrf.mxu0
    %v1928 = vadd.f32 0.0, %v1927
    %v1929 = vpop.f32.mrf.mxu0
    %v1930 = vadd.f32 0.0, %v1929
    %v1931 = vpop.f32.mrf.mxu0
    %v1932 = vadd.f32 0.0, %v1931
    %v1933 = vpop.f32.mrf.mxu0
    %v1934 = vadd.f32 0.0, %v1933
    %1935 = vmatprep.mubr.bf16.mxu0 0
    %1936 = vmatmul.mubr.bf16.gmra.mxu0 %v232
    %v1937 = vpop.f32.mrf.mxu0
    %v1938 = vadd.f32 0.0, %v1937
    %v1939 = vpop.f32.mrf.mxu0
    %v1940 = vadd.f32 0.0, %v1939
    %v1941 = vpop.f32.mrf.mxu0
    %v1942 = vadd.f32 0.0, %v1941
    %v1943 = vpop.f32.mrf.mxu0
    %v1944 = vadd.f32 0.0, %v1943
    %1945 = vmatprep.mubr.bf16.mxu0 0
    %1946 = vmatmul.mubr.bf16.gmra.mxu0 %v235
    %v1947 = vpop.f32.mrf.mxu0
    %v1948 = vadd.f32 0.0, %v1947
    %v1949 = vpop.f32.mrf.mxu0
    %v1950 = vadd.f32 0.0, %v1949
    %v1951 = vpop.f32.mrf.mxu0
    %v1952 = vadd.f32 0.0, %v1951
    %v1953 = vpop.f32.mrf.mxu0
    %v1954 = vadd.f32 0.0, %v1953
    %1955 = vmatprep.mubr.bf16.mxu0 0
    %1956 = vmatmul.mubr.bf16.gmra.mxu0 %v238
    %v1957 = vpop.f32.mrf.mxu0
    %v1958 = vadd.f32 0.0, %v1957
    %v1959 = vpop.f32.mrf.mxu0
    %v1960 = vadd.f32 0.0, %v1959
    %v1961 = vpop.f32.mrf.mxu0
    %v1962 = vadd.f32 0.0, %v1961
    %v1963 = vpop.f32.mrf.mxu0
    %v1964 = vadd.f32 0.0, %v1963
    %1965 = vmatprep.mubr.bf16.mxu0 0
    %1966 = vmatmul.mubr.bf16.gmra.mxu0 %v241
    %v1967 = vpop.f32.mrf.mxu0
    %v1968 = vadd.f32 0.0, %v1967
    %v1969 = vpop.f32.mrf.mxu0
    %v1970 = vadd.f32 0.0, %v1969
    %v1971 = vpop.f32.mrf.mxu0
    %v1972 = vadd.f32 0.0, %v1971
    %v1973 = vpop.f32.mrf.mxu0
    %v1974 = vadd.f32 0.0, %v1973
    %1975 = vmatprep.mubr.bf16.mxu0 0
    %1976 = vmatmul.mubr.bf16.gmra.mxu0 %v244
    %v1977 = vpop.f32.mrf.mxu0
    %v1978 = vadd.f32 0.0, %v1977
    %v1979 = vpop.f32.mrf.mxu0
    %v1980 = vadd.f32 0.0, %v1979
    %v1981 = vpop.f32.mrf.mxu0
    %v1982 = vadd.f32 0.0, %v1981
    %v1983 = vpop.f32.mrf.mxu0
    %v1984 = vadd.f32 0.0, %v1983
    %1985 = vmatprep.mubr.bf16.mxu0 0
    %1986 = vmatmul.mubr.bf16.gmra.mxu0 %v247
    %v1987 = vpop.f32.mrf.mxu0
    %v1988 = vadd.f32 0.0, %v1987
    %v1989 = vpop.f32.mrf.mxu0
    %v1990 = vadd.f32 0.0, %v1989
    %v1991 = vpop.f32.mrf.mxu0
    %v1992 = vadd.f32 0.0, %v1991
    %v1993 = vpop.f32.mrf.mxu0
    %v1994 = vadd.f32 0.0, %v1993
    %1995 = vmatprep.mubr.bf16.mxu0 0
    %1996 = vmatmul.mubr.bf16.gmra.mxu0 %v250
    %v1997 = vpop.f32.mrf.mxu0
    %v1998 = vadd.f32 0.0, %v1997
    %v1999 = vpop.f32.mrf.mxu0
    %v2000 = vadd.f32 0.0, %v1999
    %v2001 = vpop.f32.mrf.mxu0
    %v2002 = vadd.f32 0.0, %v2001
    %v2003 = vpop.f32.mrf.mxu0
    %v2004 = vadd.f32 0.0, %v2003
    %2005 = vmatprep.mubr.bf16.mxu0 0
    %2006 = vmatmul.mubr.bf16.gmra.mxu0 %v253
    %v2007 = vpop.f32.mrf.mxu0
    %v2008 = vadd.f32 0.0, %v2007
    %v2009 = vpop.f32.mrf.mxu0
    %v2010 = vadd.f32 0.0, %v2009
    %v2011 = vpop.f32.mrf.mxu0
    %v2012 = vadd.f32 0.0, %v2011
    %v2013 = vpop.f32.mrf.mxu0
    %v2014 = vadd.f32 0.0, %v2013
    %2015 = vmatprep.mubr.bf16.mxu0 0
    %2016 = vmatmul.mubr.bf16.gmra.mxu0 %v256
    %v2017 = vpop.f32.mrf.mxu0
    %v2018 = vadd.f32 0.0, %v2017
    %v2019 = vpop.f32.mrf.mxu0
    %v2020 = vadd.f32 0.0, %v2019
    %v2021 = vpop.f32.mrf.mxu0
    %v2022 = vadd.f32 0.0, %v2021
    %v2023 = vpop.f32.mrf.mxu0
    %v2024 = vadd.f32 0.0, %v2023
    %2025 = vmatprep.mubr.bf16.mxu0 0
    %2026 = vmatmul.mubr.bf16.gmra.mxu0 %v259
    %v2027 = vpop.f32.mrf.mxu0
    %v2028 = vadd.f32 0.0, %v2027
    %v2029 = vpop.f32.mrf.mxu0
    %v2030 = vadd.f32 0.0, %v2029
    %v2031 = vpop.f32.mrf.mxu0
    %v2032 = vadd.f32 0.0, %v2031
    %v2033 = vpop.f32.mrf.mxu0
    %v2034 = vadd.f32 0.0, %v2033
    %2035 = vmatprep.mubr.bf16.mxu0 0
    %2036 = vmatmul.mubr.bf16.gmra.mxu0 %v1871
    %v2037 = vpop.f32.mrf.mxu0
    %v2038 = vadd.f32 0.0, %v2037
    %v2039 = vpop.f32.mrf.mxu0
    %v2040 = vadd.f32 0.0, %v2039
    %v2041 = vpop.f32.mrf.mxu0
    %v2042 = vadd.f32 0.0, %v2041
    %v2043 = vpop.f32.mrf.mxu0
    %v2044 = vadd.f32 0.0, %v2043
    %2045 = vdwg.mxu0
    %s2046 = scalar_lea.vmem [#allocation2], 288
    %v2047 = vld [vmem:[%s2046] sm:$0xff]
    %v2048 = vld [vmem:[%s2046 + $0x8] sm:$0xff]
    %v2049 = vld [vmem:[%s2046 + $0x10] sm:$0xff]
    %v2050 = vld [vmem:[%s2046 + $0x18] sm:$0xff]
    %v2051 = vld [vmem:[%s2046 + $0x20] sm:$0xff]
    %v2052 = vld [vmem:[%s2046 + $0x28] sm:$0xff]
    %v2053 = vld [vmem:[%s2046 + $0x30] sm:$0xff]
    %v2054 = vld [vmem:[%s2046 + $0x38] sm:$0xff]
    %v2055 = vld [vmem:[%s2046 + $0x40] sm:$0xff]
    %v2056 = vld [vmem:[%s2046 + $0x48] sm:$0xff]
    %v2057 = vld [vmem:[%s2046 + $0x50] sm:$0xff]
    %v2058 = vld [vmem:[%s2046 + $0x58] sm:$0xff]
    %v2071 = vunpack.c.l.b16 %v2047
    %v2072 = vunpack.c.h.b16 %v2047
    %v2073 = vunpack.c.l.b16 %v2048
    %v2074 = vunpack.c.h.b16 %v2048
    %v2075 = vunpack.c.l.b16 %v2049
    %v2076 = vunpack.c.h.b16 %v2049
    %v2077 = vunpack.c.l.b16 %v2050
    %v2078 = vunpack.c.h.b16 %v2050
    %v2079 = vunpack.c.l.b16 %v2051
    %v2080 = vunpack.c.h.b16 %v2051
    %v2081 = vunpack.c.l.b16 %v2052
    %v2082 = vunpack.c.h.b16 %v2052
    %v2083 = vunpack.c.l.b16 %v2053
    %v2084 = vunpack.c.h.b16 %v2053
    %v2085 = vunpack.c.l.b16 %v2054
    %v2086 = vunpack.c.h.b16 %v2054
    %v2087 = vunpack.c.l.b16 %v2055
    %v2088 = vunpack.c.h.b16 %v2055
    %v2089 = vunpack.c.l.b16 %v2056
    %v2090 = vunpack.c.h.b16 %v2056
    %v2091 = vunpack.c.l.b16 %v2057
    %v2092 = vunpack.c.h.b16 %v2057
    %v2093 = vunpack.c.l.b16 %v2058
    %v2094 = vunpack.c.h.b16 %v2058
    %v2095 = vpack.c.b16 %v2073, %v2071
    %v2096 = vpack.c.b16 %v2074, %v2072
    %v2097 = vpack.c.b16 %v2077, %v2075
    %v2098 = vpack.c.b16 %v2078, %v2076
    %v2099 = vpack.c.b16 %v2081, %v2079
    %v2100 = vpack.c.b16 %v2082, %v2080
    %v2101 = vpack.c.b16 %v2085, %v2083
    %v2102 = vpack.c.b16 %v2086, %v2084
    %v2103 = vpack.c.b16 %v2089, %v2087
    %v2104 = vpack.c.b16 %v2090, %v2088
    %v2105 = vpack.c.b16 %v2093, %v2091
    %v2106 = vpack.c.b16 %v2094, %v2092
    %2119 = vmatprep.subr.bf16.mxu0 0
    %2120 = vmatpush1.bf16.msra.mxu0 0
    %2121 = vmatprep.subr.bf16.mxu0 0
    %2122 = vmatpush1.bf16.msra.mxu0 0
    %2123 = vmatprep.subr.bf16.mxu0 %v2106
    %2124 = vmatpush1.bf16.msra.mxu0 %v2105
    %2125 = vmatprep.subr.bf16.mxu0 %v2104
    %2126 = vmatpush1.bf16.msra.mxu0 %v2103
    %2127 = vmatprep.subr.bf16.mxu0 %v2102
    %2128 = vmatpush1.bf16.msra.mxu0 %v2101
    %2129 = vmatprep.subr.bf16.mxu0 %v2100
    %2130 = vmatpush1.bf16.msra.mxu0 %v2099
    %2131 = vmatprep.subr.bf16.mxu0 %v2098
    %2132 = vmatpush1.bf16.msra.mxu0 %v2097
    %2133 = vmatprep.subr.bf16.mxu0 %v2096
    %2134 = vmatpush1.bf16.msra.mxu0 %v2095
    %2135 = vmatprep.subr.bf16.mxu0 0
    %2136 = vmatpush2.bf16.msra.mxu0 0
    %2137 = vmatprep.subr.bf16.mxu0 0
    %2138 = vmatpush2.bf16.msra.mxu0 0
    %2139 = vmatprep.subr.bf16.mxu0 0
    %2140 = vmatpush2.bf16.msra.mxu0 0
    %2141 = vmatprep.subr.bf16.mxu0 0
    %2142 = vmatpush2.bf16.msra.mxu0 0
    %2143 = vmatprep.subr.bf16.mxu0 0
    %2144 = vmatpush2.bf16.msra.mxu0 0
    %2145 = vmatprep.subr.bf16.mxu0 0
    %2146 = vmatpush2.bf16.msra.mxu0 0
    %2147 = vmatprep.subr.bf16.mxu0 0
    %2148 = vmatpush2.bf16.msra.mxu0 0
    %2149 = vmatprep.subr.bf16.mxu0 0
    %2150 = vmatpush2.bf16.msra.mxu0 0
    %2151 = vmatprep.mubr.bf16.mxu0 0
    %2152 = vmatmul.mubr.bf16.gmra.mxu0 %v223
    %v2153 = vpop.f32.mrf.mxu0
    %v2154 = vadd.f32 0.0, %v2153
    %v2155 = vpop.f32.mrf.mxu0
    %v2156 = vadd.f32 0.0, %v2155
    %v2157 = vpop.f32.mrf.mxu0
    %v2158 = vadd.f32 0.0, %v2157
    %v2159 = vpop.f32.mrf.mxu0
    %v2160 = vadd.f32 0.0, %v2159
    %2161 = vmatprep.mubr.bf16.mxu0 0
    %2162 = vmatmul.mubr.bf16.gmra.mxu0 %v226
    %v2163 = vpop.f32.mrf.mxu0
    %v2164 = vadd.f32 0.0, %v2163
    %v2165 = vpop.f32.mrf.mxu0
    %v2166 = vadd.f32 0.0, %v2165
    %v2167 = vpop.f32.mrf.mxu0
    %v2168 = vadd.f32 0.0, %v2167
    %v2169 = vpop.f32.mrf.mxu0
    %v2170 = vadd.f32 0.0, %v2169
    %2171 = vmatprep.mubr.bf16.mxu0 0
    %2172 = vmatmul.mubr.bf16.gmra.mxu0 %v229
    %v2173 = vpop.f32.mrf.mxu0
    %v2174 = vadd.f32 0.0, %v2173
    %v2175 = vpop.f32.mrf.mxu0
    %v2176 = vadd.f32 0.0, %v2175
    %v2177 = vpop.f32.mrf.mxu0
    %v2178 = vadd.f32 0.0, %v2177
    %v2179 = vpop.f32.mrf.mxu0
    %v2180 = vadd.f32 0.0, %v2179
    %2181 = vmatprep.mubr.bf16.mxu0 0
    %2182 = vmatmul.mubr.bf16.gmra.mxu0 %v232
    %v2183 = vpop.f32.mrf.mxu0
    %v2184 = vadd.f32 0.0, %v2183
    %v2185 = vpop.f32.mrf.mxu0
    %v2186 = vadd.f32 0.0, %v2185
    %v2187 = vpop.f32.mrf.mxu0
    %v2188 = vadd.f32 0.0, %v2187
    %v2189 = vpop.f32.mrf.mxu0
    %v2190 = vadd.f32 0.0, %v2189
    %2191 = vmatprep.mubr.bf16.mxu0 0
    %2192 = vmatmul.mubr.bf16.gmra.mxu0 %v235
    %v2193 = vpop.f32.mrf.mxu0
    %v2194 = vadd.f32 0.0, %v2193
    %v2195 = vpop.f32.mrf.mxu0
    %v2196 = vadd.f32 0.0, %v2195
    %v2197 = vpop.f32.mrf.mxu0
    %v2198 = vadd.f32 0.0, %v2197
    %v2199 = vpop.f32.mrf.mxu0
    %v2200 = vadd.f32 0.0, %v2199
    %2201 = vmatprep.mubr.bf16.mxu0 0
    %2202 = vmatmul.mubr.bf16.gmra.mxu0 %v238
    %v2203 = vpop.f32.mrf.mxu0
    %v2204 = vadd.f32 0.0, %v2203
    %v2205 = vpop.f32.mrf.mxu0
    %v2206 = vadd.f32 0.0, %v2205
    %v2207 = vpop.f32.mrf.mxu0
    %v2208 = vadd.f32 0.0, %v2207
    %v2209 = vpop.f32.mrf.mxu0
    %v2210 = vadd.f32 0.0, %v2209
    %2211 = vmatprep.mubr.bf16.mxu0 0
    %2212 = vmatmul.mubr.bf16.gmra.mxu0 %v241
    %v2213 = vpop.f32.mrf.mxu0
    %v2214 = vadd.f32 0.0, %v2213
    %v2215 = vpop.f32.mrf.mxu0
    %v2216 = vadd.f32 0.0, %v2215
    %v2217 = vpop.f32.mrf.mxu0
    %v2218 = vadd.f32 0.0, %v2217
    %v2219 = vpop.f32.mrf.mxu0
    %v2220 = vadd.f32 0.0, %v2219
    %2221 = vmatprep.mubr.bf16.mxu0 0
    %2222 = vmatmul.mubr.bf16.gmra.mxu0 %v244
    %v2223 = vpop.f32.mrf.mxu0
    %v2224 = vadd.f32 0.0, %v2223
    %v2225 = vpop.f32.mrf.mxu0
    %v2226 = vadd.f32 0.0, %v2225
    %v2227 = vpop.f32.mrf.mxu0
    %v2228 = vadd.f32 0.0, %v2227
    %v2229 = vpop.f32.mrf.mxu0
    %v2230 = vadd.f32 0.0, %v2229
    %2231 = vmatprep.mubr.bf16.mxu0 0
    %2232 = vmatmul.mubr.bf16.gmra.mxu0 %v247
    %v2233 = vpop.f32.mrf.mxu0
    %v2234 = vadd.f32 0.0, %v2233
    %v2235 = vpop.f32.mrf.mxu0
    %v2236 = vadd.f32 0.0, %v2235
    %v2237 = vpop.f32.mrf.mxu0
    %v2238 = vadd.f32 0.0, %v2237
    %v2239 = vpop.f32.mrf.mxu0
    %v2240 = vadd.f32 0.0, %v2239
    %2241 = vmatprep.mubr.bf16.mxu0 0
    %2242 = vmatmul.mubr.bf16.gmra.mxu0 %v250
    %v2243 = vpop.f32.mrf.mxu0
    %v2244 = vadd.f32 0.0, %v2243
    %v2245 = vpop.f32.mrf.mxu0
    %v2246 = vadd.f32 0.0, %v2245
    %v2247 = vpop.f32.mrf.mxu0
    %v2248 = vadd.f32 0.0, %v2247
    %v2249 = vpop.f32.mrf.mxu0
    %v2250 = vadd.f32 0.0, %v2249
    %2251 = vmatprep.mubr.bf16.mxu0 0
    %2252 = vmatmul.mubr.bf16.gmra.mxu0 %v253
    %v2253 = vpop.f32.mrf.mxu0
    %v2254 = vadd.f32 0.0, %v2253
    %v2255 = vpop.f32.mrf.mxu0
    %v2256 = vadd.f32 0.0, %v2255
    %v2257 = vpop.f32.mrf.mxu0
    %v2258 = vadd.f32 0.0, %v2257
    %v2259 = vpop.f32.mrf.mxu0
    %v2260 = vadd.f32 0.0, %v2259
    %2261 = vmatprep.mubr.bf16.mxu0 0
    %2262 = vmatmul.mubr.bf16.gmra.mxu0 %v256
    %v2263 = vpop.f32.mrf.mxu0
    %v2264 = vadd.f32 0.0, %v2263
    %v2265 = vpop.f32.mrf.mxu0
    %v2266 = vadd.f32 0.0, %v2265
    %v2267 = vpop.f32.mrf.mxu0
    %v2268 = vadd.f32 0.0, %v2267
    %v2269 = vpop.f32.mrf.mxu0
    %v2270 = vadd.f32 0.0, %v2269
    %2271 = vmatprep.mubr.bf16.mxu0 0
    %2272 = vmatmul.mubr.bf16.gmra.mxu0 %v259
    %v2273 = vpop.f32.mrf.mxu0
    %v2274 = vadd.f32 0.0, %v2273
    %v2275 = vpop.f32.mrf.mxu0
    %v2276 = vadd.f32 0.0, %v2275
    %v2277 = vpop.f32.mrf.mxu0
    %v2278 = vadd.f32 0.0, %v2277
    %v2279 = vpop.f32.mrf.mxu0
    %v2280 = vadd.f32 0.0, %v2279
    %2281 = vmatprep.mubr.bf16.mxu0 0
    %2282 = vmatmul.mubr.bf16.gmra.mxu0 %v1871
    %v2283 = vpop.f32.mrf.mxu0
    %v2284 = vadd.f32 0.0, %v2283
    %v2285 = vpop.f32.mrf.mxu0
    %v2286 = vadd.f32 0.0, %v2285
    %v2287 = vpop.f32.mrf.mxu0
    %v2288 = vadd.f32 0.0, %v2287
    %v2289 = vpop.f32.mrf.mxu0
    %v2290 = vadd.f32 0.0, %v2289
    %2291 = vdwg.mxu0
    %v2292 = vadd.f32 %v1684, %v1908
    %v2293 = vadd.f32 %v1685, %v1910
    %v2294 = vadd.f32 %v1686, %v1912
    %v2295 = vadd.f32 %v1687, %v1914
    %v2296 = vadd.f32 %v1688, %v1918
    %v2297 = vadd.f32 %v1689, %v1920
    %v2298 = vadd.f32 %v1690, %v1922
    %v2299 = vadd.f32 %v1691, %v1924
    %v2300 = vadd.f32 %v1692, %v1928
    %v2301 = vadd.f32 %v1693, %v1930
    %v2302 = vadd.f32 %v1694, %v1932
    %v2303 = vadd.f32 %v1695, %v1934
    %v2304 = vadd.f32 %v1696, %v1938
    %v2305 = vadd.f32 %v1697, %v1940
    %v2306 = vadd.f32 %v1698, %v1942
    %v2307 = vadd.f32 %v1699, %v1944
    %v2308 = vadd.f32 %v1700, %v1948
    %v2309 = vadd.f32 %v1701, %v1950
    %v2310 = vadd.f32 %v1702, %v1952
    %v2311 = vadd.f32 %v1703, %v1954
    %v2312 = vadd.f32 %v1704, %v1958
    %v2313 = vadd.f32 %v1705, %v1960
    %v2314 = vadd.f32 %v1706, %v1962
    %v2315 = vadd.f32 %v1707, %v1964
    %v2316 = vadd.f32 %v1708, %v1968
    %v2317 = vadd.f32 %v1709, %v1970
    %v2318 = vadd.f32 %v1710, %v1972
    %v2319 = vadd.f32 %v1711, %v1974
    %v2320 = vadd.f32 %v1712, %v1978
    %v2321 = vadd.f32 %v1713, %v1980
    %v2322 = vadd.f32 %v1714, %v1982
    %v2323 = vadd.f32 %v1715, %v1984
    %v2324 = vadd.f32 %v1716, %v1988
    %v2325 = vadd.f32 %v1717, %v1990
    %v2326 = vadd.f32 %v1718, %v1992
    %v2327 = vadd.f32 %v1719, %v1994
    %v2328 = vadd.f32 %v1720, %v1998
    %v2329 = vadd.f32 %v1721, %v2000
    %v2330 = vadd.f32 %v1722, %v2002
    %v2331 = vadd.f32 %v1723, %v2004
    %v2332 = vadd.f32 %v1724, %v2008
    %v2333 = vadd.f32 %v1725, %v2010
    %v2334 = vadd.f32 %v1726, %v2012
    %v2335 = vadd.f32 %v1727, %v2014
    %v2336 = vadd.f32 %v1728, %v2018
    %v2337 = vadd.f32 %v1729, %v2020
    %v2338 = vadd.f32 %v1730, %v2022
    %v2339 = vadd.f32 %v1731, %v2024
    %v2340 = vadd.f32 %v1732, %v2028
    %v2341 = vadd.f32 %v1733, %v2030
    %v2342 = vadd.f32 %v1734, %v2032
    %v2343 = vadd.f32 %v1735, %v2034
    %v2344 = vadd.f32 %v1736, %v2038
    %v2345 = vadd.f32 %v1737, %v2040
    %v2346 = vadd.f32 %v1738, %v2042
    %v2347 = vadd.f32 %v1739, %v2044
    %v2348 = vadd.f32 %v1740, %v2154
    %v2349 = vadd.f32 %v1741, %v2156
    %v2350 = vadd.f32 %v1742, %v2158
    %v2351 = vadd.f32 %v1743, %v2160
    %v2352 = vadd.f32 %v1744, %v2164
    %v2353 = vadd.f32 %v1745, %v2166
    %v2354 = vadd.f32 %v1746, %v2168
    %v2355 = vadd.f32 %v1747, %v2170
    %v2356 = vadd.f32 %v1748, %v2174
    %v2357 = vadd.f32 %v1749, %v2176
    %v2358 = vadd.f32 %v1750, %v2178
    %v2359 = vadd.f32 %v1751, %v2180
    %v2360 = vadd.f32 %v1752, %v2184
    %v2361 = vadd.f32 %v1753, %v2186
    %v2362 = vadd.f32 %v1754, %v2188
    %v2363 = vadd.f32 %v1755, %v2190
    %v2364 = vadd.f32 %v1756, %v2194
    %v2365 = vadd.f32 %v1757, %v2196
    %v2366 = vadd.f32 %v1758, %v2198
    %v2367 = vadd.f32 %v1759, %v2200
    %v2368 = vadd.f32 %v1760, %v2204
    %v2369 = vadd.f32 %v1761, %v2206
    %v2370 = vadd.f32 %v1762, %v2208
    %v2371 = vadd.f32 %v1763, %v2210
    %v2372 = vadd.f32 %v1764, %v2214
    %v2373 = vadd.f32 %v1765, %v2216
    %v2374 = vadd.f32 %v1766, %v2218
    %v2375 = vadd.f32 %v1767, %v2220
    %v2376 = vadd.f32 %v1768, %v2224
    %v2377 = vadd.f32 %v1769, %v2226
    %v2378 = vadd.f32 %v1770, %v2228
    %v2379 = vadd.f32 %v1771, %v2230
    %v2380 = vadd.f32 %v1772, %v2234
    %v2381 = vadd.f32 %v1773, %v2236
    %v2382 = vadd.f32 %v1774, %v2238
    %v2383 = vadd.f32 %v1775, %v2240
    %v2384 = vadd.f32 %v1776, %v2244
    %v2385 = vadd.f32 %v1777, %v2246
    %v2386 = vadd.f32 %v1778, %v2248
    %v2387 = vadd.f32 %v1779, %v2250
    %v2388 = vadd.f32 %v1780, %v2254
    %v2389 = vadd.f32 %v1781, %v2256
    %v2390 = vadd.f32 %v1782, %v2258
    %v2391 = vadd.f32 %v1783, %v2260
    %v2392 = vadd.f32 %v1784, %v2264
    %v2393 = vadd.f32 %v1785, %v2266
    %v2394 = vadd.f32 %v1786, %v2268
    %v2395 = vadd.f32 %v1787, %v2270
    %v2396 = vadd.f32 %v1788, %v2274
    %v2397 = vadd.f32 %v1789, %v2276
    %v2398 = vadd.f32 %v1790, %v2278
    %v2399 = vadd.f32 %v1791, %v2280
    %v2400 = vadd.f32 %v1792, %v2284
    %v2401 = vadd.f32 %v1793, %v2286
    %v2402 = vadd.f32 %v1794, %v2288
    %v2403 = vadd.f32 %v1795, %v2290
    %v2404 = vpack.c.bf16 %v92, %v91
    %s2405 = scalar_lea.vmem %s1, 384
    %v2406 = vld [vmem:[%s2405] sm:$0xff]
    %v2407 = vld [vmem:[%s2405 + $0x8] sm:$0xff]
    %v2408 = vld [vmem:[%s2405 + $0x10] sm:$0xff]
    %v2409 = vld [vmem:[%s2405 + $0x18] sm:$0xff]
    %v2410 = vld [vmem:[%s2405 + $0x20] sm:$0xff]
    %v2411 = vld [vmem:[%s2405 + $0x28] sm:$0xff]
    %v2412 = vld [vmem:[%s2405 + $0x30] sm:$0xff]
    %v2413 = vld [vmem:[%s2405 + $0x38] sm:$0xff]
    %v2414 = vld [vmem:[%s2405 + $0x40] sm:$0xff]
    %v2415 = vld [vmem:[%s2405 + $0x48] sm:$0xff]
    %v2416 = vld [vmem:[%s2405 + $0x50] sm:$0xff]
    %v2417 = vld [vmem:[%s2405 + $0x58] sm:$0xff]
    %v2430 = vunpack.c.l.b16 %v2406
    %v2431 = vunpack.c.h.b16 %v2406
    %v2432 = vunpack.c.l.b16 %v2407
    %v2433 = vunpack.c.h.b16 %v2407
    %v2434 = vunpack.c.l.b16 %v2408
    %v2435 = vunpack.c.h.b16 %v2408
    %v2436 = vunpack.c.l.b16 %v2409
    %v2437 = vunpack.c.h.b16 %v2409
    %v2438 = vunpack.c.l.b16 %v2410
    %v2439 = vunpack.c.h.b16 %v2410
    %v2440 = vunpack.c.l.b16 %v2411
    %v2441 = vunpack.c.h.b16 %v2411
    %v2442 = vunpack.c.l.b16 %v2412
    %v2443 = vunpack.c.h.b16 %v2412
    %v2444 = vunpack.c.l.b16 %v2413
    %v2445 = vunpack.c.h.b16 %v2413
    %v2446 = vunpack.c.l.b16 %v2414
    %v2447 = vunpack.c.h.b16 %v2414
    %v2448 = vunpack.c.l.b16 %v2415
    %v2449 = vunpack.c.h.b16 %v2415
    %v2450 = vunpack.c.l.b16 %v2416
    %v2451 = vunpack.c.h.b16 %v2416
    %v2452 = vunpack.c.l.b16 %v2417
    %v2453 = vunpack.c.h.b16 %v2417
    %v2454 = vpack.c.b16 %v2432, %v2430
    %v2455 = vpack.c.b16 %v2433, %v2431
    %v2456 = vpack.c.b16 %v2436, %v2434
    %v2457 = vpack.c.b16 %v2437, %v2435
    %v2458 = vpack.c.b16 %v2440, %v2438
    %v2459 = vpack.c.b16 %v2441, %v2439
    %v2460 = vpack.c.b16 %v2444, %v2442
    %v2461 = vpack.c.b16 %v2445, %v2443
    %v2462 = vpack.c.b16 %v2448, %v2446
    %v2463 = vpack.c.b16 %v2449, %v2447
    %v2464 = vpack.c.b16 %v2452, %v2450
    %v2465 = vpack.c.b16 %v2453, %v2451
    %v2479 = vsel %vm218, %v2404, 0
    %2481 = vmatprep.subr.bf16.mxu0 0
    %2482 = vmatpush1.bf16.msra.mxu0 0
    %2483 = vmatprep.subr.bf16.mxu0 0
    %2484 = vmatpush1.bf16.msra.mxu0 0
    %2485 = vmatprep.subr.bf16.mxu0 %v2465
    %2486 = vmatpush1.bf16.msra.mxu0 %v2464
    %2487 = vmatprep.subr.bf16.mxu0 %v2463
    %2488 = vmatpush1.bf16.msra.mxu0 %v2462
    %2489 = vmatprep.subr.bf16.mxu0 %v2461
    %2490 = vmatpush1.bf16.msra.mxu0 %v2460
    %2491 = vmatprep.subr.bf16.mxu0 %v2459
    %2492 = vmatpush1.bf16.msra.mxu0 %v2458
    %2493 = vmatprep.subr.bf16.mxu0 %v2457
    %2494 = vmatpush1.bf16.msra.mxu0 %v2456
    %2495 = vmatprep.subr.bf16.mxu0 %v2455
    %2496 = vmatpush1.bf16.msra.mxu0 %v2454
    %2497 = vmatprep.subr.bf16.mxu0 0
    %2498 = vmatpush2.bf16.msra.mxu0 0
    %2499 = vmatprep.subr.bf16.mxu0 0
    %2500 = vmatpush2.bf16.msra.mxu0 0
    %2501 = vmatprep.subr.bf16.mxu0 0
    %2502 = vmatpush2.bf16.msra.mxu0 0
    %2503 = vmatprep.subr.bf16.mxu0 0
    %2504 = vmatpush2.bf16.msra.mxu0 0
    %2505 = vmatprep.subr.bf16.mxu0 0
    %2506 = vmatpush2.bf16.msra.mxu0 0
    %2507 = vmatprep.subr.bf16.mxu0 0
    %2508 = vmatpush2.bf16.msra.mxu0 0
    %2509 = vmatprep.subr.bf16.mxu0 0
    %2510 = vmatpush2.bf16.msra.mxu0 0
    %2511 = vmatprep.subr.bf16.mxu0 0
    %2512 = vmatpush2.bf16.msra.mxu0 0
    %2513 = vmatprep.mubr.bf16.mxu0 0
    %2514 = vmatmul.mubr.bf16.gmra.mxu0 %v747
    %v2515 = vpop.f32.mrf.mxu0
    %v2516 = vadd.f32 0.0, %v2515
    %v2517 = vpop.f32.mrf.mxu0
    %v2518 = vadd.f32 0.0, %v2517
    %v2519 = vpop.f32.mrf.mxu0
    %v2520 = vadd.f32 0.0, %v2519
    %v2521 = vpop.f32.mrf.mxu0
    %v2522 = vadd.f32 0.0, %v2521
    %2523 = vmatprep.mubr.bf16.mxu0 0
    %2524 = vmatmul.mubr.bf16.gmra.mxu0 %v750
    %v2525 = vpop.f32.mrf.mxu0
    %v2526 = vadd.f32 0.0, %v2525
    %v2527 = vpop.f32.mrf.mxu0
    %v2528 = vadd.f32 0.0, %v2527
    %v2529 = vpop.f32.mrf.mxu0
    %v2530 = vadd.f32 0.0, %v2529
    %v2531 = vpop.f32.mrf.mxu0
    %v2532 = vadd.f32 0.0, %v2531
    %2533 = vmatprep.mubr.bf16.mxu0 0
    %2534 = vmatmul.mubr.bf16.gmra.mxu0 %v753
    %v2535 = vpop.f32.mrf.mxu0
    %v2536 = vadd.f32 0.0, %v2535
    %v2537 = vpop.f32.mrf.mxu0
    %v2538 = vadd.f32 0.0, %v2537
    %v2539 = vpop.f32.mrf.mxu0
    %v2540 = vadd.f32 0.0, %v2539
    %v2541 = vpop.f32.mrf.mxu0
    %v2542 = vadd.f32 0.0, %v2541
    %2543 = vmatprep.mubr.bf16.mxu0 0
    %2544 = vmatmul.mubr.bf16.gmra.mxu0 %v756
    %v2545 = vpop.f32.mrf.mxu0
    %v2546 = vadd.f32 0.0, %v2545
    %v2547 = vpop.f32.mrf.mxu0
    %v2548 = vadd.f32 0.0, %v2547
    %v2549 = vpop.f32.mrf.mxu0
    %v2550 = vadd.f32 0.0, %v2549
    %v2551 = vpop.f32.mrf.mxu0
    %v2552 = vadd.f32 0.0, %v2551
    %2553 = vmatprep.mubr.bf16.mxu0 0
    %2554 = vmatmul.mubr.bf16.gmra.mxu0 %v759
    %v2555 = vpop.f32.mrf.mxu0
    %v2556 = vadd.f32 0.0, %v2555
    %v2557 = vpop.f32.mrf.mxu0
    %v2558 = vadd.f32 0.0, %v2557
    %v2559 = vpop.f32.mrf.mxu0
    %v2560 = vadd.f32 0.0, %v2559
    %v2561 = vpop.f32.mrf.mxu0
    %v2562 = vadd.f32 0.0, %v2561
    %2563 = vmatprep.mubr.bf16.mxu0 0
    %2564 = vmatmul.mubr.bf16.gmra.mxu0 %v762
    %v2565 = vpop.f32.mrf.mxu0
    %v2566 = vadd.f32 0.0, %v2565
    %v2567 = vpop.f32.mrf.mxu0
    %v2568 = vadd.f32 0.0, %v2567
    %v2569 = vpop.f32.mrf.mxu0
    %v2570 = vadd.f32 0.0, %v2569
    %v2571 = vpop.f32.mrf.mxu0
    %v2572 = vadd.f32 0.0, %v2571
    %2573 = vmatprep.mubr.bf16.mxu0 0
    %2574 = vmatmul.mubr.bf16.gmra.mxu0 %v765
    %v2575 = vpop.f32.mrf.mxu0
    %v2576 = vadd.f32 0.0, %v2575
    %v2577 = vpop.f32.mrf.mxu0
    %v2578 = vadd.f32 0.0, %v2577
    %v2579 = vpop.f32.mrf.mxu0
    %v2580 = vadd.f32 0.0, %v2579
    %v2581 = vpop.f32.mrf.mxu0
    %v2582 = vadd.f32 0.0, %v2581
    %2583 = vmatprep.mubr.bf16.mxu0 0
    %2584 = vmatmul.mubr.bf16.gmra.mxu0 %v768
    %v2585 = vpop.f32.mrf.mxu0
    %v2586 = vadd.f32 0.0, %v2585
    %v2587 = vpop.f32.mrf.mxu0
    %v2588 = vadd.f32 0.0, %v2587
    %v2589 = vpop.f32.mrf.mxu0
    %v2590 = vadd.f32 0.0, %v2589
    %v2591 = vpop.f32.mrf.mxu0
    %v2592 = vadd.f32 0.0, %v2591
    %2593 = vmatprep.mubr.bf16.mxu0 0
    %2594 = vmatmul.mubr.bf16.gmra.mxu0 %v771
    %v2595 = vpop.f32.mrf.mxu0
    %v2596 = vadd.f32 0.0, %v2595
    %v2597 = vpop.f32.mrf.mxu0
    %v2598 = vadd.f32 0.0, %v2597
    %v2599 = vpop.f32.mrf.mxu0
    %v2600 = vadd.f32 0.0, %v2599
    %v2601 = vpop.f32.mrf.mxu0
    %v2602 = vadd.f32 0.0, %v2601
    %2603 = vmatprep.mubr.bf16.mxu0 0
    %2604 = vmatmul.mubr.bf16.gmra.mxu0 %v774
    %v2605 = vpop.f32.mrf.mxu0
    %v2606 = vadd.f32 0.0, %v2605
    %v2607 = vpop.f32.mrf.mxu0
    %v2608 = vadd.f32 0.0, %v2607
    %v2609 = vpop.f32.mrf.mxu0
    %v2610 = vadd.f32 0.0, %v2609
    %v2611 = vpop.f32.mrf.mxu0
    %v2612 = vadd.f32 0.0, %v2611
    %2613 = vmatprep.mubr.bf16.mxu0 0
    %2614 = vmatmul.mubr.bf16.gmra.mxu0 %v777
    %v2615 = vpop.f32.mrf.mxu0
    %v2616 = vadd.f32 0.0, %v2615
    %v2617 = vpop.f32.mrf.mxu0
    %v2618 = vadd.f32 0.0, %v2617
    %v2619 = vpop.f32.mrf.mxu0
    %v2620 = vadd.f32 0.0, %v2619
    %v2621 = vpop.f32.mrf.mxu0
    %v2622 = vadd.f32 0.0, %v2621
    %2623 = vmatprep.mubr.bf16.mxu0 0
    %2624 = vmatmul.mubr.bf16.gmra.mxu0 %v780
    %v2625 = vpop.f32.mrf.mxu0
    %v2626 = vadd.f32 0.0, %v2625
    %v2627 = vpop.f32.mrf.mxu0
    %v2628 = vadd.f32 0.0, %v2627
    %v2629 = vpop.f32.mrf.mxu0
    %v2630 = vadd.f32 0.0, %v2629
    %v2631 = vpop.f32.mrf.mxu0
    %v2632 = vadd.f32 0.0, %v2631
    %2633 = vmatprep.mubr.bf16.mxu0 0
    %2634 = vmatmul.mubr.bf16.gmra.mxu0 %v1263
    %v2635 = vpop.f32.mrf.mxu0
    %v2636 = vadd.f32 0.0, %v2635
    %v2637 = vpop.f32.mrf.mxu0
    %v2638 = vadd.f32 0.0, %v2637
    %v2639 = vpop.f32.mrf.mxu0
    %v2640 = vadd.f32 0.0, %v2639
    %v2641 = vpop.f32.mrf.mxu0
    %v2642 = vadd.f32 0.0, %v2641
    %2643 = vmatprep.mubr.bf16.mxu0 0
    %2644 = vmatmul.mubr.bf16.gmra.mxu0 %v2479
    %v2645 = vpop.f32.mrf.mxu0
    %v2646 = vadd.f32 0.0, %v2645
    %v2647 = vpop.f32.mrf.mxu0
    %v2648 = vadd.f32 0.0, %v2647
    %v2649 = vpop.f32.mrf.mxu0
    %v2650 = vadd.f32 0.0, %v2649
    %v2651 = vpop.f32.mrf.mxu0
    %v2652 = vadd.f32 0.0, %v2651
    %2653 = vdwg.mxu0
    %s2654 = scalar_lea.vmem [#allocation2], 384
    %v2655 = vld [vmem:[%s2654] sm:$0xff]
    %v2656 = vld [vmem:[%s2654 + $0x8] sm:$0xff]
    %v2657 = vld [vmem:[%s2654 + $0x10] sm:$0xff]
    %v2658 = vld [vmem:[%s2654 + $0x18] sm:$0xff]
    %v2659 = vld [vmem:[%s2654 + $0x20] sm:$0xff]
    %v2660 = vld [vmem:[%s2654 + $0x28] sm:$0xff]
    %v2661 = vld [vmem:[%s2654 + $0x30] sm:$0xff]
    %v2662 = vld [vmem:[%s2654 + $0x38] sm:$0xff]
    %v2663 = vld [vmem:[%s2654 + $0x40] sm:$0xff]
    %v2664 = vld [vmem:[%s2654 + $0x48] sm:$0xff]
    %v2665 = vld [vmem:[%s2654 + $0x50] sm:$0xff]
    %v2666 = vld [vmem:[%s2654 + $0x58] sm:$0xff]
    %v2679 = vunpack.c.l.b16 %v2655
    %v2680 = vunpack.c.h.b16 %v2655
    %v2681 = vunpack.c.l.b16 %v2656
    %v2682 = vunpack.c.h.b16 %v2656
    %v2683 = vunpack.c.l.b16 %v2657
    %v2684 = vunpack.c.h.b16 %v2657
    %v2685 = vunpack.c.l.b16 %v2658
    %v2686 = vunpack.c.h.b16 %v2658
    %v2687 = vunpack.c.l.b16 %v2659
    %v2688 = vunpack.c.h.b16 %v2659
    %v2689 = vunpack.c.l.b16 %v2660
    %v2690 = vunpack.c.h.b16 %v2660
    %v2691 = vunpack.c.l.b16 %v2661
    %v2692 = vunpack.c.h.b16 %v2661
    %v2693 = vunpack.c.l.b16 %v2662
    %v2694 = vunpack.c.h.b16 %v2662
    %v2695 = vunpack.c.l.b16 %v2663
    %v2696 = vunpack.c.h.b16 %v2663
    %v2697 = vunpack.c.l.b16 %v2664
    %v2698 = vunpack.c.h.b16 %v2664
    %v2699 = vunpack.c.l.b16 %v2665
    %v2700 = vunpack.c.h.b16 %v2665
    %v2701 = vunpack.c.l.b16 %v2666
    %v2702 = vunpack.c.h.b16 %v2666
    %v2703 = vpack.c.b16 %v2681, %v2679
    %v2704 = vpack.c.b16 %v2682, %v2680
    %v2705 = vpack.c.b16 %v2685, %v2683
    %v2706 = vpack.c.b16 %v2686, %v2684
    %v2707 = vpack.c.b16 %v2689, %v2687
    %v2708 = vpack.c.b16 %v2690, %v2688
    %v2709 = vpack.c.b16 %v2693, %v2691
    %v2710 = vpack.c.b16 %v2694, %v2692
    %v2711 = vpack.c.b16 %v2697, %v2695
    %v2712 = vpack.c.b16 %v2698, %v2696
    %v2713 = vpack.c.b16 %v2701, %v2699
    %v2714 = vpack.c.b16 %v2702, %v2700
    %2727 = vmatprep.subr.bf16.mxu0 0
    %2728 = vmatpush1.bf16.msra.mxu0 0
    %2729 = vmatprep.subr.bf16.mxu0 0
    %2730 = vmatpush1.bf16.msra.mxu0 0
    %2731 = vmatprep.subr.bf16.mxu0 %v2714
    %2732 = vmatpush1.bf16.msra.mxu0 %v2713
    %2733 = vmatprep.subr.bf16.mxu0 %v2712
    %2734 = vmatpush1.bf16.msra.mxu0 %v2711
    %2735 = vmatprep.subr.bf16.mxu0 %v2710
    %2736 = vmatpush1.bf16.msra.mxu0 %v2709
    %2737 = vmatprep.subr.bf16.mxu0 %v2708
    %2738 = vmatpush1.bf16.msra.mxu0 %v2707
    %2739 = vmatprep.subr.bf16.mxu0 %v2706
    %2740 = vmatpush1.bf16.msra.mxu0 %v2705
    %2741 = vmatprep.subr.bf16.mxu0 %v2704
    %2742 = vmatpush1.bf16.msra.mxu0 %v2703
    %2743 = vmatprep.subr.bf16.mxu0 0
    %2744 = vmatpush2.bf16.msra.mxu0 0
    %2745 = vmatprep.subr.bf16.mxu0 0
    %2746 = vmatpush2.bf16.msra.mxu0 0
    %2747 = vmatprep.subr.bf16.mxu0 0
    %2748 = vmatpush2.bf16.msra.mxu0 0
    %2749 = vmatprep.subr.bf16.mxu0 0
    %2750 = vmatpush2.bf16.msra.mxu0 0
    %2751 = vmatprep.subr.bf16.mxu0 0
    %2752 = vmatpush2.bf16.msra.mxu0 0
    %2753 = vmatprep.subr.bf16.mxu0 0
    %2754 = vmatpush2.bf16.msra.mxu0 0
    %2755 = vmatprep.subr.bf16.mxu0 0
    %2756 = vmatpush2.bf16.msra.mxu0 0
    %2757 = vmatprep.subr.bf16.mxu0 0
    %2758 = vmatpush2.bf16.msra.mxu0 0
    %2759 = vmatprep.mubr.bf16.mxu0 0
    %2760 = vmatmul.mubr.bf16.gmra.mxu0 %v747
    %v2761 = vpop.f32.mrf.mxu0
    %v2762 = vadd.f32 0.0, %v2761
    %v2763 = vpop.f32.mrf.mxu0
    %v2764 = vadd.f32 0.0, %v2763
    %v2765 = vpop.f32.mrf.mxu0
    %v2766 = vadd.f32 0.0, %v2765
    %v2767 = vpop.f32.mrf.mxu0
    %v2768 = vadd.f32 0.0, %v2767
    %2769 = vmatprep.mubr.bf16.mxu0 0
    %2770 = vmatmul.mubr.bf16.gmra.mxu0 %v750
    %v2771 = vpop.f32.mrf.mxu0
    %v2772 = vadd.f32 0.0, %v2771
    %v2773 = vpop.f32.mrf.mxu0
    %v2774 = vadd.f32 0.0, %v2773
    %v2775 = vpop.f32.mrf.mxu0
    %v2776 = vadd.f32 0.0, %v2775
    %v2777 = vpop.f32.mrf.mxu0
    %v2778 = vadd.f32 0.0, %v2777
    %2779 = vmatprep.mubr.bf16.mxu0 0
    %2780 = vmatmul.mubr.bf16.gmra.mxu0 %v753
    %v2781 = vpop.f32.mrf.mxu0
    %v2782 = vadd.f32 0.0, %v2781
    %v2783 = vpop.f32.mrf.mxu0
    %v2784 = vadd.f32 0.0, %v2783
    %v2785 = vpop.f32.mrf.mxu0
    %v2786 = vadd.f32 0.0, %v2785
    %v2787 = vpop.f32.mrf.mxu0
    %v2788 = vadd.f32 0.0, %v2787
    %2789 = vmatprep.mubr.bf16.mxu0 0
    %2790 = vmatmul.mubr.bf16.gmra.mxu0 %v756
    %v2791 = vpop.f32.mrf.mxu0
    %v2792 = vadd.f32 0.0, %v2791
    %v2793 = vpop.f32.mrf.mxu0
    %v2794 = vadd.f32 0.0, %v2793
    %v2795 = vpop.f32.mrf.mxu0
    %v2796 = vadd.f32 0.0, %v2795
    %v2797 = vpop.f32.mrf.mxu0
    %v2798 = vadd.f32 0.0, %v2797
    %2799 = vmatprep.mubr.bf16.mxu0 0
    %2800 = vmatmul.mubr.bf16.gmra.mxu0 %v759
    %v2801 = vpop.f32.mrf.mxu0
    %v2802 = vadd.f32 0.0, %v2801
    %v2803 = vpop.f32.mrf.mxu0
    %v2804 = vadd.f32 0.0, %v2803
    %v2805 = vpop.f32.mrf.mxu0
    %v2806 = vadd.f32 0.0, %v2805
    %v2807 = vpop.f32.mrf.mxu0
    %v2808 = vadd.f32 0.0, %v2807
    %2809 = vmatprep.mubr.bf16.mxu0 0
    %2810 = vmatmul.mubr.bf16.gmra.mxu0 %v762
    %v2811 = vpop.f32.mrf.mxu0
    %v2812 = vadd.f32 0.0, %v2811
    %v2813 = vpop.f32.mrf.mxu0
    %v2814 = vadd.f32 0.0, %v2813
    %v2815 = vpop.f32.mrf.mxu0
    %v2816 = vadd.f32 0.0, %v2815
    %v2817 = vpop.f32.mrf.mxu0
    %v2818 = vadd.f32 0.0, %v2817
    %2819 = vmatprep.mubr.bf16.mxu0 0
    %2820 = vmatmul.mubr.bf16.gmra.mxu0 %v765
    %v2821 = vpop.f32.mrf.mxu0
    %v2822 = vadd.f32 0.0, %v2821
    %v2823 = vpop.f32.mrf.mxu0
    %v2824 = vadd.f32 0.0, %v2823
    %v2825 = vpop.f32.mrf.mxu0
    %v2826 = vadd.f32 0.0, %v2825
    %v2827 = vpop.f32.mrf.mxu0
    %v2828 = vadd.f32 0.0, %v2827
    %2829 = vmatprep.mubr.bf16.mxu0 0
    %2830 = vmatmul.mubr.bf16.gmra.mxu0 %v768
    %v2831 = vpop.f32.mrf.mxu0
    %v2832 = vadd.f32 0.0, %v2831
    %v2833 = vpop.f32.mrf.mxu0
    %v2834 = vadd.f32 0.0, %v2833
    %v2835 = vpop.f32.mrf.mxu0
    %v2836 = vadd.f32 0.0, %v2835
    %v2837 = vpop.f32.mrf.mxu0
    %v2838 = vadd.f32 0.0, %v2837
    %2839 = vmatprep.mubr.bf16.mxu0 0
    %2840 = vmatmul.mubr.bf16.gmra.mxu0 %v771
    %v2841 = vpop.f32.mrf.mxu0
    %v2842 = vadd.f32 0.0, %v2841
    %v2843 = vpop.f32.mrf.mxu0
    %v2844 = vadd.f32 0.0, %v2843
    %v2845 = vpop.f32.mrf.mxu0
    %v2846 = vadd.f32 0.0, %v2845
    %v2847 = vpop.f32.mrf.mxu0
    %v2848 = vadd.f32 0.0, %v2847
    %2849 = vmatprep.mubr.bf16.mxu0 0
    %2850 = vmatmul.mubr.bf16.gmra.mxu0 %v774
    %v2851 = vpop.f32.mrf.mxu0
    %v2852 = vadd.f32 0.0, %v2851
    %v2853 = vpop.f32.mrf.mxu0
    %v2854 = vadd.f32 0.0, %v2853
    %v2855 = vpop.f32.mrf.mxu0
    %v2856 = vadd.f32 0.0, %v2855
    %v2857 = vpop.f32.mrf.mxu0
    %v2858 = vadd.f32 0.0, %v2857
    %2859 = vmatprep.mubr.bf16.mxu0 0
    %2860 = vmatmul.mubr.bf16.gmra.mxu0 %v777
    %v2861 = vpop.f32.mrf.mxu0
    %v2862 = vadd.f32 0.0, %v2861
    %v2863 = vpop.f32.mrf.mxu0
    %v2864 = vadd.f32 0.0, %v2863
    %v2865 = vpop.f32.mrf.mxu0
    %v2866 = vadd.f32 0.0, %v2865
    %v2867 = vpop.f32.mrf.mxu0
    %v2868 = vadd.f32 0.0, %v2867
    %2869 = vmatprep.mubr.bf16.mxu0 0
    %2870 = vmatmul.mubr.bf16.gmra.mxu0 %v780
    %v2871 = vpop.f32.mrf.mxu0
    %v2872 = vadd.f32 0.0, %v2871
    %v2873 = vpop.f32.mrf.mxu0
    %v2874 = vadd.f32 0.0, %v2873
    %v2875 = vpop.f32.mrf.mxu0
    %v2876 = vadd.f32 0.0, %v2875
    %v2877 = vpop.f32.mrf.mxu0
    %v2878 = vadd.f32 0.0, %v2877
    %2879 = vmatprep.mubr.bf16.mxu0 0
    %2880 = vmatmul.mubr.bf16.gmra.mxu0 %v1263
    %v2881 = vpop.f32.mrf.mxu0
    %v2882 = vadd.f32 0.0, %v2881
    %v2883 = vpop.f32.mrf.mxu0
    %v2884 = vadd.f32 0.0, %v2883
    %v2885 = vpop.f32.mrf.mxu0
    %v2886 = vadd.f32 0.0, %v2885
    %v2887 = vpop.f32.mrf.mxu0
    %v2888 = vadd.f32 0.0, %v2887
    %2889 = vmatprep.mubr.bf16.mxu0 0
    %2890 = vmatmul.mubr.bf16.gmra.mxu0 %v2479
    %v2891 = vpop.f32.mrf.mxu0
    %v2892 = vadd.f32 0.0, %v2891
    %v2893 = vpop.f32.mrf.mxu0
    %v2894 = vadd.f32 0.0, %v2893
    %v2895 = vpop.f32.mrf.mxu0
    %v2896 = vadd.f32 0.0, %v2895
    %v2897 = vpop.f32.mrf.mxu0
    %v2898 = vadd.f32 0.0, %v2897
    %2899 = vdwg.mxu0
    %v2900 = vadd.f32 %v2292, %v2516
    %v2901 = vadd.f32 %v2293, %v2518
    %v2902 = vadd.f32 %v2294, %v2520
    %v2903 = vadd.f32 %v2295, %v2522
    %v2904 = vadd.f32 %v2296, %v2526
    %v2905 = vadd.f32 %v2297, %v2528
    %v2906 = vadd.f32 %v2298, %v2530
    %v2907 = vadd.f32 %v2299, %v2532
    %v2908 = vadd.f32 %v2300, %v2536
    %v2909 = vadd.f32 %v2301, %v2538
    %v2910 = vadd.f32 %v2302, %v2540
    %v2911 = vadd.f32 %v2303, %v2542
    %v2912 = vadd.f32 %v2304, %v2546
    %v2913 = vadd.f32 %v2305, %v2548
    %v2914 = vadd.f32 %v2306, %v2550
    %v2915 = vadd.f32 %v2307, %v2552
    %v2916 = vadd.f32 %v2308, %v2556
    %v2917 = vadd.f32 %v2309, %v2558
    %v2918 = vadd.f32 %v2310, %v2560
    %v2919 = vadd.f32 %v2311, %v2562
    %v2920 = vadd.f32 %v2312, %v2566
    %v2921 = vadd.f32 %v2313, %v2568
    %v2922 = vadd.f32 %v2314, %v2570
    %v2923 = vadd.f32 %v2315, %v2572
    %v2924 = vadd.f32 %v2316, %v2576
    %v2925 = vadd.f32 %v2317, %v2578
    %v2926 = vadd.f32 %v2318, %v2580
    %v2927 = vadd.f32 %v2319, %v2582
    %v2928 = vadd.f32 %v2320, %v2586
    %v2929 = vadd.f32 %v2321, %v2588
    %v2930 = vadd.f32 %v2322, %v2590
    %v2931 = vadd.f32 %v2323, %v2592
    %v2932 = vadd.f32 %v2324, %v2596
    %v2933 = vadd.f32 %v2325, %v2598
    %v2934 = vadd.f32 %v2326, %v2600
    %v2935 = vadd.f32 %v2327, %v2602
    %v2936 = vadd.f32 %v2328, %v2606
    %v2937 = vadd.f32 %v2329, %v2608
    %v2938 = vadd.f32 %v2330, %v2610
    %v2939 = vadd.f32 %v2331, %v2612
    %v2940 = vadd.f32 %v2332, %v2616
    %v2941 = vadd.f32 %v2333, %v2618
    %v2942 = vadd.f32 %v2334, %v2620
    %v2943 = vadd.f32 %v2335, %v2622
    %v2944 = vadd.f32 %v2336, %v2626
    %v2945 = vadd.f32 %v2337, %v2628
    %v2946 = vadd.f32 %v2338, %v2630
    %v2947 = vadd.f32 %v2339, %v2632
    %v2948 = vadd.f32 %v2340, %v2636
    %v2949 = vadd.f32 %v2341, %v2638
    %v2950 = vadd.f32 %v2342, %v2640
    %v2951 = vadd.f32 %v2343, %v2642
    %v2952 = vadd.f32 %v2344, %v2646
    %v2953 = vadd.f32 %v2345, %v2648
    %v2954 = vadd.f32 %v2346, %v2650
    %v2955 = vadd.f32 %v2347, %v2652
    %v2956 = vadd.f32 %v2348, %v2762
    %v2957 = vadd.f32 %v2349, %v2764
    %v2958 = vadd.f32 %v2350, %v2766
    %v2959 = vadd.f32 %v2351, %v2768
    %v2960 = vadd.f32 %v2352, %v2772
    %v2961 = vadd.f32 %v2353, %v2774
    %v2962 = vadd.f32 %v2354, %v2776
    %v2963 = vadd.f32 %v2355, %v2778
    %v2964 = vadd.f32 %v2356, %v2782
    %v2965 = vadd.f32 %v2357, %v2784
    %v2966 = vadd.f32 %v2358, %v2786
    %v2967 = vadd.f32 %v2359, %v2788
    %v2968 = vadd.f32 %v2360, %v2792
    %v2969 = vadd.f32 %v2361, %v2794
    %v2970 = vadd.f32 %v2362, %v2796
    %v2971 = vadd.f32 %v2363, %v2798
    %v2972 = vadd.f32 %v2364, %v2802
    %v2973 = vadd.f32 %v2365, %v2804
    %v2974 = vadd.f32 %v2366, %v2806
    %v2975 = vadd.f32 %v2367, %v2808
    %v2976 = vadd.f32 %v2368, %v2812
    %v2977 = vadd.f32 %v2369, %v2814
    %v2978 = vadd.f32 %v2370, %v2816
    %v2979 = vadd.f32 %v2371, %v2818
    %v2980 = vadd.f32 %v2372, %v2822
    %v2981 = vadd.f32 %v2373, %v2824
    %v2982 = vadd.f32 %v2374, %v2826
    %v2983 = vadd.f32 %v2375, %v2828
    %v2984 = vadd.f32 %v2376, %v2832
    %v2985 = vadd.f32 %v2377, %v2834
    %v2986 = vadd.f32 %v2378, %v2836
    %v2987 = vadd.f32 %v2379, %v2838
    %v2988 = vadd.f32 %v2380, %v2842
    %v2989 = vadd.f32 %v2381, %v2844
    %v2990 = vadd.f32 %v2382, %v2846
    %v2991 = vadd.f32 %v2383, %v2848
    %v2992 = vadd.f32 %v2384, %v2852
    %v2993 = vadd.f32 %v2385, %v2854
    %v2994 = vadd.f32 %v2386, %v2856
    %v2995 = vadd.f32 %v2387, %v2858
    %v2996 = vadd.f32 %v2388, %v2862
    %v2997 = vadd.f32 %v2389, %v2864
    %v2998 = vadd.f32 %v2390, %v2866
    %v2999 = vadd.f32 %v2391, %v2868
    %v3000 = vadd.f32 %v2392, %v2872
    %v3001 = vadd.f32 %v2393, %v2874
    %v3002 = vadd.f32 %v2394, %v2876
    %v3003 = vadd.f32 %v2395, %v2878
    %v3004 = vadd.f32 %v2396, %v2882
    %v3005 = vadd.f32 %v2397, %v2884
    %v3006 = vadd.f32 %v2398, %v2886
    %v3007 = vadd.f32 %v2399, %v2888
    %v3008 = vadd.f32 %v2400, %v2892
    %v3009 = vadd.f32 %v2401, %v2894
    %v3010 = vadd.f32 %v2402, %v2896
    %v3011 = vadd.f32 %v2403, %v2898
    %v3012 = vmax.f32 %v2900, %v2956
    %v3013 = vmax.f32 %v2901, %v2957
    %v3014 = vmax.f32 %v2902, %v2958
    %v3015 = vmax.f32 %v2903, %v2959
    %v3016 = vmax.f32 %v2904, %v2960
    %v3017 = vmax.f32 %v2905, %v2961
    %v3018 = vmax.f32 %v2906, %v2962
    %v3019 = vmax.f32 %v2907, %v2963
    %v3020 = vmax.f32 %v2908, %v2964
    %v3021 = vmax.f32 %v2909, %v2965
    %v3022 = vmax.f32 %v2910, %v2966
    %v3023 = vmax.f32 %v2911, %v2967
    %v3024 = vmax.f32 %v2912, %v2968
    %v3025 = vmax.f32 %v2913, %v2969
    %v3026 = vmax.f32 %v2914, %v2970
    %v3027 = vmax.f32 %v2915, %v2971
    %v3028 = vmax.f32 %v2916, %v2972
    %v3029 = vmax.f32 %v2917, %v2973
    %v3030 = vmax.f32 %v2918, %v2974
    %v3031 = vmax.f32 %v2919, %v2975
    %v3032 = vmax.f32 %v2920, %v2976
    %v3033 = vmax.f32 %v2921, %v2977
    %v3034 = vmax.f32 %v2922, %v2978
    %v3035 = vmax.f32 %v2923, %v2979
    %v3036 = vmax.f32 %v2924, %v2980
    %v3037 = vmax.f32 %v2925, %v2981
    %v3038 = vmax.f32 %v2926, %v2982
    %v3039 = vmax.f32 %v2927, %v2983
    %v3040 = vmax.f32 %v2928, %v2984
    %v3041 = vmax.f32 %v2929, %v2985
    %v3042 = vmax.f32 %v2930, %v2986
    %v3043 = vmax.f32 %v2931, %v2987
    %v3044 = vmax.f32 %v2932, %v2988
    %v3045 = vmax.f32 %v2933, %v2989
    %v3046 = vmax.f32 %v2934, %v2990
    %v3047 = vmax.f32 %v2935, %v2991
    %v3048 = vmax.f32 %v2936, %v2992
    %v3049 = vmax.f32 %v2937, %v2993
    %v3050 = vmax.f32 %v2938, %v2994
    %v3051 = vmax.f32 %v2939, %v2995
    %v3052 = vmax.f32 %v2940, %v2996
    %v3053 = vmax.f32 %v2941, %v2997
    %v3054 = vmax.f32 %v2942, %v2998
    %v3055 = vmax.f32 %v2943, %v2999
    %v3056 = vmax.f32 %v2944, %v3000
    %v3057 = vmax.f32 %v2945, %v3001
    %v3058 = vmax.f32 %v2946, %v3002
    %v3059 = vmax.f32 %v2947, %v3003
    %v3060 = vmax.f32 %v2948, %v3004
    %v3061 = vmax.f32 %v2949, %v3005
    %v3062 = vmax.f32 %v2950, %v3006
    %v3063 = vmax.f32 %v2951, %v3007
    %v3064 = vmax.f32 %v2952, %v3008
    %v3065 = vmax.f32 %v2953, %v3009
    %v3066 = vmax.f32 %v2954, %v3010
    %v3067 = vmax.f32 %v2955, %v3011
    %v3068 = vmax.f32 %v3012, %v3014
    %v3069 = vmax.f32 %v3013, %v3015
    %v3070 = vmax.f32 %v3016, %v3018
    %v3071 = vmax.f32 %v3017, %v3019
    %v3072 = vmax.f32 %v3020, %v3022
    %v3073 = vmax.f32 %v3021, %v3023
    %v3074 = vmax.f32 %v3024, %v3026
    %v3075 = vmax.f32 %v3025, %v3027
    %v3076 = vmax.f32 %v3028, %v3030
    %v3077 = vmax.f32 %v3029, %v3031
    %v3078 = vmax.f32 %v3032, %v3034
    %v3079 = vmax.f32 %v3033, %v3035
    %v3080 = vmax.f32 %v3036, %v3038
    %v3081 = vmax.f32 %v3037, %v3039
    %v3082 = vmax.f32 %v3040, %v3042
    %v3083 = vmax.f32 %v3041, %v3043
    %v3084 = vmax.f32 %v3044, %v3046
    %v3085 = vmax.f32 %v3045, %v3047
    %v3086 = vmax.f32 %v3048, %v3050
    %v3087 = vmax.f32 %v3049, %v3051
    %v3088 = vmax.f32 %v3052, %v3054
    %v3089 = vmax.f32 %v3053, %v3055
    %v3090 = vmax.f32 %v3056, %v3058
    %v3091 = vmax.f32 %v3057, %v3059
    %v3092 = vmax.f32 %v3060, %v3062
    %v3093 = vmax.f32 %v3061, %v3063
    %v3094 = vmax.f32 %v3064, %v3066
    %v3095 = vmax.f32 %v3065, %v3067
    %v3096 = vld [vmem:[%s3] sm:$0x3]
    %v3098 = vlaneseq
    %v3099 = vshrl.u32 %v3098, 7
    %v3100 = vsub.s32 0, %v3099
    %v3101 = vrot.slane %v3096, %v3100
    %v3102 = vlaneseq
    %v3103 = vshrl.u32 %v3102, 7
    %v3104 = vsub.s32 1, %v3103
    %v3105 = vrot.slane %v3096, %v3104
    %v3108 = vadd.f32 %v3068, %v3101
    %v3109 = vadd.f32 %v3069, %v3105
    %v3110 = vadd.f32 %v3070, %v3101
    %v3111 = vadd.f32 %v3071, %v3105
    %v3112 = vadd.f32 %v3072, %v3101
    %v3113 = vadd.f32 %v3073, %v3105
    %v3114 = vadd.f32 %v3074, %v3101
    %v3115 = vadd.f32 %v3075, %v3105
    %v3116 = vadd.f32 %v3076, %v3101
    %v3117 = vadd.f32 %v3077, %v3105
    %v3118 = vadd.f32 %v3078, %v3101
    %v3119 = vadd.f32 %v3079, %v3105
    %v3120 = vadd.f32 %v3080, %v3101
    %v3121 = vadd.f32 %v3081, %v3105
    %v3122 = vadd.f32 %v3082, %v3101
    %v3123 = vadd.f32 %v3083, %v3105
    %v3124 = vadd.f32 %v3084, %v3101
    %v3125 = vadd.f32 %v3085, %v3105
    %v3126 = vadd.f32 %v3086, %v3101
    %v3127 = vadd.f32 %v3087, %v3105
    %v3128 = vadd.f32 %v3088, %v3101
    %v3129 = vadd.f32 %v3089, %v3105
    %v3130 = vadd.f32 %v3090, %v3101
    %v3131 = vadd.f32 %v3091, %v3105
    %v3132 = vadd.f32 %v3092, %v3101
    %v3133 = vadd.f32 %v3093, %v3105
    %v3134 = vadd.f32 %v3094, %v3101
    %v3135 = vadd.f32 %v3095, %v3105
    %v3136 = vmax.f32 %v3108, 0.0
    %v3137 = vmax.f32 %v3109, 0.0
    %v3138 = vmax.f32 %v3110, 0.0
    %v3139 = vmax.f32 %v3111, 0.0
    %v3140 = vmax.f32 %v3112, 0.0
    %v3141 = vmax.f32 %v3113, 0.0
    %v3142 = vmax.f32 %v3114, 0.0
    %v3143 = vmax.f32 %v3115, 0.0
    %v3144 = vmax.f32 %v3116, 0.0
    %v3145 = vmax.f32 %v3117, 0.0
    %v3146 = vmax.f32 %v3118, 0.0
    %v3147 = vmax.f32 %v3119, 0.0
    %v3148 = vmax.f32 %v3120, 0.0
    %v3149 = vmax.f32 %v3121, 0.0
    %v3150 = vmax.f32 %v3122, 0.0
    %v3151 = vmax.f32 %v3123, 0.0
    %v3152 = vmax.f32 %v3124, 0.0
    %v3153 = vmax.f32 %v3125, 0.0
    %v3154 = vmax.f32 %v3126, 0.0
    %v3155 = vmax.f32 %v3127, 0.0
    %v3156 = vmax.f32 %v3128, 0.0
    %v3157 = vmax.f32 %v3129, 0.0
    %v3158 = vmax.f32 %v3130, 0.0
    %v3159 = vmax.f32 %v3131, 0.0
    %v3160 = vmax.f32 %v3132, 0.0
    %v3161 = vmax.f32 %v3133, 0.0
    %v3162 = vmax.f32 %v3134, 0.0
    %v3163 = vmax.f32 %v3135, 0.0
    %v3164 = vpack.c.bf16 %v3138, %v3136
    %v3165 = vpack.c.bf16 %v3139, %v3137
    %v3166 = vpack.c.bf16 %v3142, %v3140
    %v3167 = vpack.c.bf16 %v3143, %v3141
    %v3168 = vpack.c.bf16 %v3146, %v3144
    %v3169 = vpack.c.bf16 %v3147, %v3145
    %v3170 = vpack.c.bf16 %v3150, %v3148
    %v3171 = vpack.c.bf16 %v3151, %v3149
    %v3172 = vpack.c.bf16 %v3154, %v3152
    %v3173 = vpack.c.bf16 %v3155, %v3153
    %v3174 = vld [vmem:[%s4] sm:$0xff]
    %v3175 = vld [vmem:[%s4 + $0x8] sm:$0xff]
    %v3176 = vld [vmem:[%s4 + $0x10] sm:$0xff]
    %v3177 = vld [vmem:[%s4 + $0x18] sm:$0xff]
    %v3178 = vld [vmem:[%s4 + $0x20] sm:$0xff]
    %v3179 = vld [vmem:[%s4 + $0x28] sm:$0xff]
    %v3180 = vld [vmem:[%s4 + $0x30] sm:$0xff]
    %v3181 = vld [vmem:[%s4 + $0x38] sm:$0xff]
    %v3182 = vld [vmem:[%s4 + $0x40] sm:$0xff]
    %v3183 = vld [vmem:[%s4 + $0x48] sm:$0xff]
    %v3184 = vld [vmem:[%s4 + $0x50] sm:$0xff]
    %v3185 = vld [vmem:[%s4 + $0x58] sm:$0xff]
    %v3186 = vld [vmem:[%s4 + $0x60] sm:$0xff]
    %v3187 = vld [vmem:[%s4 + $0x68] sm:$0xff]
    %v3188 = vld [vmem:[%s4 + $0x70] sm:$0xff]
    %v3189 = vld [vmem:[%s4 + $0x78] sm:$0xff]
    %v3190 = vld [vmem:[%s4 + $0x80] sm:$0xff]
    %v3191 = vld [vmem:[%s4 + $0x88] sm:$0xff]
    %v3192 = vld [vmem:[%s4 + $0x90] sm:$0xff]
    %v3193 = vld [vmem:[%s4 + $0x98] sm:$0xff]
    %v3194 = vld [vmem:[%s4 + $0xa0] sm:$0xff]
    %v3195 = vld [vmem:[%s4 + $0xa8] sm:$0xff]
    %v3196 = vld [vmem:[%s4 + $0xb0] sm:$0xff]
    %v3197 = vld [vmem:[%s4 + $0xb8] sm:$0xff]
    %v3198 = vld [vmem:[%s4 + $0xc0] sm:$0xff]
    %v3199 = vld [vmem:[%s4 + $0xc8] sm:$0xff]
    %v3200 = vld [vmem:[%s4 + $0xd0] sm:$0xff]
    %v3201 = vld [vmem:[%s4 + $0xd8] sm:$0xff]
    %v3202 = vld [vmem:[%s5] sm:$0xff]
    %v3203 = vld [vmem:[%s5 + $0x8] sm:$0xff]
    %v3204 = vld [vmem:[%s5 + $0x10] sm:$0xff]
    %v3205 = vld [vmem:[%s5 + $0x18] sm:$0xff]
    %v3206 = vld [vmem:[%s5 + $0x20] sm:$0xff]
    %v3207 = vld [vmem:[%s5 + $0x28] sm:$0xff]
    %v3208 = vld [vmem:[%s5 + $0x30] sm:$0xff]
    %v3209 = vld [vmem:[%s5 + $0x38] sm:$0xff]
    %v3210 = vld [vmem:[%s5 + $0x40] sm:$0xff]
    %v3211 = vld [vmem:[%s5 + $0x48] sm:$0xff]
    %v3212 = vld [vmem:[%s5 + $0x50] sm:$0xff]
    %v3213 = vld [vmem:[%s5 + $0x58] sm:$0xff]
    %v3214 = vld [vmem:[%s5 + $0x60] sm:$0xff]
    %v3215 = vld [vmem:[%s5 + $0x68] sm:$0xff]
    %v3216 = vld [vmem:[%s5 + $0x70] sm:$0xff]
    %v3217 = vld [vmem:[%s5 + $0x78] sm:$0xff]
    %v3218 = vld [vmem:[%s5 + $0x80] sm:$0xff]
    %v3219 = vld [vmem:[%s5 + $0x88] sm:$0xff]
    %v3220 = vld [vmem:[%s5 + $0x90] sm:$0xff]
    %v3221 = vld [vmem:[%s5 + $0x98] sm:$0xff]
    %v3222 = vld [vmem:[%s5 + $0xa0] sm:$0xff]
    %v3223 = vld [vmem:[%s5 + $0xa8] sm:$0xff]
    %v3224 = vld [vmem:[%s5 + $0xb0] sm:$0xff]
    %v3225 = vld [vmem:[%s5 + $0xb8] sm:$0xff]
    %v3226 = vld [vmem:[%s5 + $0xc0] sm:$0xff]
    %v3227 = vld [vmem:[%s5 + $0xc8] sm:$0xff]
    %v3228 = vld [vmem:[%s5 + $0xd0] sm:$0xff]
    %v3229 = vld [vmem:[%s5 + $0xd8] sm:$0xff]
    %v3230 = vpack.c.bf16 %v3140, %v3138
    %v3231 = vpack.c.bf16 %v3141, %v3139
    %v3232 = vpack.c.bf16 %v3144, %v3142
    %v3233 = vpack.c.bf16 %v3145, %v3143
    %v3234 = vpack.c.bf16 %v3148, %v3146
    %v3235 = vpack.c.bf16 %v3149, %v3147
    %v3236 = vpack.c.bf16 %v3152, %v3150
    %v3237 = vpack.c.bf16 %v3153, %v3151
    %v3238 = vpack.c.bf16 %v3156, %v3154
    %v3239 = vpack.c.bf16 %v3157, %v3155
    %s3240 = scalar_lea.vmem %s4, 224
    %v3241 = vld [vmem:[%s3240] sm:$0xff]
    %v3242 = vld [vmem:[%s3240 + $0x8] sm:$0xff]
    %v3243 = vld [vmem:[%s3240 + $0x10] sm:$0xff]
    %v3244 = vld [vmem:[%s3240 + $0x18] sm:$0xff]
    %v3245 = vld [vmem:[%s3240 + $0x20] sm:$0xff]
    %v3246 = vld [vmem:[%s3240 + $0x28] sm:$0xff]
    %v3247 = vld [vmem:[%s3240 + $0x30] sm:$0xff]
    %v3248 = vld [vmem:[%s3240 + $0x38] sm:$0xff]
    %v3249 = vld [vmem:[%s3240 + $0x40] sm:$0xff]
    %v3250 = vld [vmem:[%s3240 + $0x48] sm:$0xff]
    %v3251 = vld [vmem:[%s3240 + $0x50] sm:$0xff]
    %v3252 = vld [vmem:[%s3240 + $0x58] sm:$0xff]
    %v3253 = vld [vmem:[%s3240 + $0x60] sm:$0xff]
    %v3254 = vld [vmem:[%s3240 + $0x68] sm:$0xff]
    %v3255 = vld [vmem:[%s3240 + $0x70] sm:$0xff]
    %v3256 = vld [vmem:[%s3240 + $0x78] sm:$0xff]
    %v3257 = vld [vmem:[%s3240 + $0x80] sm:$0xff]
    %v3258 = vld [vmem:[%s3240 + $0x88] sm:$0xff]
    %v3259 = vld [vmem:[%s3240 + $0x90] sm:$0xff]
    %v3260 = vld [vmem:[%s3240 + $0x98] sm:$0xff]
    %v3261 = vld [vmem:[%s3240 + $0xa0] sm:$0xff]
    %v3262 = vld [vmem:[%s3240 + $0xa8] sm:$0xff]
    %v3263 = vld [vmem:[%s3240 + $0xb0] sm:$0xff]
    %v3264 = vld [vmem:[%s3240 + $0xb8] sm:$0xff]
    %v3265 = vld [vmem:[%s3240 + $0xc0] sm:$0xff]
    %v3266 = vld [vmem:[%s3240 + $0xc8] sm:$0xff]
    %v3267 = vld [vmem:[%s3240 + $0xd0] sm:$0xff]
    %v3268 = vld [vmem:[%s3240 + $0xd8] sm:$0xff]
    %v3297 = vunpack.c.l.b16 %v3241
    %v3298 = vunpack.c.h.b16 %v3241
    %v3299 = vunpack.c.l.b16 %v3242
    %v3300 = vunpack.c.h.b16 %v3242
    %v3301 = vunpack.c.l.b16 %v3243
    %v3302 = vunpack.c.h.b16 %v3243
    %v3303 = vunpack.c.l.b16 %v3244
    %v3304 = vunpack.c.h.b16 %v3244
    %v3305 = vunpack.c.l.b16 %v3245
    %v3306 = vunpack.c.h.b16 %v3245
    %v3307 = vunpack.c.l.b16 %v3246
    %v3308 = vunpack.c.h.b16 %v3246
    %v3309 = vunpack.c.l.b16 %v3247
    %v3310 = vunpack.c.h.b16 %v3247
    %v3311 = vunpack.c.l.b16 %v3248
    %v3312 = vunpack.c.h.b16 %v3248
    %v3313 = vunpack.c.l.b16 %v3249
    %v3314 = vunpack.c.h.b16 %v3249
    %v3315 = vunpack.c.l.b16 %v3250
    %v3316 = vunpack.c.h.b16 %v3250
    %v3317 = vunpack.c.l.b16 %v3251
    %v3318 = vunpack.c.h.b16 %v3251
    %v3319 = vunpack.c.l.b16 %v3252
    %v3320 = vunpack.c.h.b16 %v3252
    %v3321 = vunpack.c.l.b16 %v3253
    %v3322 = vunpack.c.h.b16 %v3253
    %v3323 = vunpack.c.l.b16 %v3254
    %v3324 = vunpack.c.h.b16 %v3254
    %v3325 = vunpack.c.l.b16 %v3255
    %v3326 = vunpack.c.h.b16 %v3255
    %v3327 = vunpack.c.l.b16 %v3256
    %v3328 = vunpack.c.h.b16 %v3256
    %v3329 = vunpack.c.l.b16 %v3257
    %v3330 = vunpack.c.h.b16 %v3257
    %v3331 = vunpack.c.l.b16 %v3258
    %v3332 = vunpack.c.h.b16 %v3258
    %v3333 = vunpack.c.l.b16 %v3259
    %v3334 = vunpack.c.h.b16 %v3259
    %v3335 = vunpack.c.l.b16 %v3260
    %v3336 = vunpack.c.h.b16 %v3260
    %v3337 = vunpack.c.l.b16 %v3261
    %v3338 = vunpack.c.h.b16 %v3261
    %v3339 = vunpack.c.l.b16 %v3262
    %v3340 = vunpack.c.h.b16 %v3262
    %v3341 = vunpack.c.l.b16 %v3263
    %v3342 = vunpack.c.h.b16 %v3263
    %v3343 = vunpack.c.l.b16 %v3264
    %v3344 = vunpack.c.h.b16 %v3264
    %v3345 = vunpack.c.l.b16 %v3265
    %v3346 = vunpack.c.h.b16 %v3265
    %v3347 = vunpack.c.l.b16 %v3266
    %v3348 = vunpack.c.h.b16 %v3266
    %v3349 = vunpack.c.l.b16 %v3267
    %v3350 = vunpack.c.h.b16 %v3267
    %v3351 = vunpack.c.l.b16 %v3268
    %v3352 = vunpack.c.h.b16 %v3268
    %v3353 = vpack.c.b16 %v3299, %v3297
    %v3354 = vpack.c.b16 %v3300, %v3298
    %v3355 = vpack.c.b16 %v3303, %v3301
    %v3356 = vpack.c.b16 %v3304, %v3302
    %v3357 = vpack.c.b16 %v3307, %v3305
    %v3358 = vpack.c.b16 %v3308, %v3306
    %v3359 = vpack.c.b16 %v3311, %v3309
    %v3360 = vpack.c.b16 %v3312, %v3310
    %v3361 = vpack.c.b16 %v3315, %v3313
    %v3362 = vpack.c.b16 %v3316, %v3314
    %v3363 = vpack.c.b16 %v3319, %v3317
    %v3364 = vpack.c.b16 %v3320, %v3318
    %v3365 = vpack.c.b16 %v3323, %v3321
    %v3366 = vpack.c.b16 %v3324, %v3322
    %v3367 = vpack.c.b16 %v3327, %v3325
    %v3368 = vpack.c.b16 %v3328, %v3326
    %v3369 = vpack.c.b16 %v3331, %v3329
    %v3370 = vpack.c.b16 %v3332, %v3330
    %v3371 = vpack.c.b16 %v3335, %v3333
    %v3372 = vpack.c.b16 %v3336, %v3334
    %v3373 = vpack.c.b16 %v3339, %v3337
    %v3374 = vpack.c.b16 %v3340, %v3338
    %v3375 = vpack.c.b16 %v3343, %v3341
    %v3376 = vpack.c.b16 %v3344, %v3342
    %v3377 = vpack.c.b16 %v3347, %v3345
    %v3378 = vpack.c.b16 %v3348, %v3346
    %v3379 = vpack.c.b16 %v3351, %v3349
    %v3380 = vpack.c.b16 %v3352, %v3350
    %v3410 = vsel %vm218, %v3231, 0
    %v3413 = vsel %vm218, %v3233, 0
    %v3416 = vsel %vm218, %v3235, 0
    %v3419 = vsel %vm218, %v3237, 0
    %v3422 = vsel %vm218, %v3239, 0
    %3424 = vmatprep.subr.bf16.mxu0 %v3368
    %3425 = vmatpush1.bf16.msra.mxu0 %v3367
    %3426 = vmatprep.subr.bf16.mxu0 %v3366
    %3427 = vmatpush1.bf16.msra.mxu0 %v3365
    %3428 = vmatprep.subr.bf16.mxu0 %v3364
    %3429 = vmatpush1.bf16.msra.mxu0 %v3363
    %3430 = vmatprep.subr.bf16.mxu0 %v3362
    %3431 = vmatpush1.bf16.msra.mxu0 %v3361
    %3432 = vmatprep.subr.bf16.mxu0 %v3360
    %3433 = vmatpush1.bf16.msra.mxu0 %v3359
    %3434 = vmatprep.subr.bf16.mxu0 %v3358
    %3435 = vmatpush1.bf16.msra.mxu0 %v3357
    %3436 = vmatprep.subr.bf16.mxu0 %v3356
    %3437 = vmatpush1.bf16.msra.mxu0 %v3355
    %3438 = vmatprep.subr.bf16.mxu0 %v3354
    %3439 = vmatpush1.bf16.msra.mxu0 %v3353
    %3440 = vmatprep.subr.bf16.mxu0 0
    %3441 = vmatpush2.bf16.msra.mxu0 0
    %3442 = vmatprep.subr.bf16.mxu0 0
    %3443 = vmatpush2.bf16.msra.mxu0 0
    %3444 = vmatprep.subr.bf16.mxu0 %v3380
    %3445 = vmatpush2.bf16.msra.mxu0 %v3379
    %3446 = vmatprep.subr.bf16.mxu0 %v3378
    %3447 = vmatpush2.bf16.msra.mxu0 %v3377
    %3448 = vmatprep.subr.bf16.mxu0 %v3376
    %3449 = vmatpush2.bf16.msra.mxu0 %v3375
    %3450 = vmatprep.subr.bf16.mxu0 %v3374
    %3451 = vmatpush2.bf16.msra.mxu0 %v3373
    %3452 = vmatprep.subr.bf16.mxu0 %v3372
    %3453 = vmatpush2.bf16.msra.mxu0 %v3371
    %3454 = vmatprep.subr.bf16.mxu0 %v3370
    %3455 = vmatpush2.bf16.msra.mxu0 %v3369
    %3456 = vmatprep.mubr.bf16.mxu0 %v3410
    %3457 = vmatmul.mubr.bf16.gmra.mxu0 %v3230
    %v3458 = vpop.f32.mrf.mxu0
    %v3459 = vadd.f32 0.0, %v3458
    %v3460 = vpop.f32.mrf.mxu0
    %v3461 = vadd.f32 0.0, %v3460
    %v3462 = vpop.f32.mrf.mxu0
    %v3463 = vadd.f32 0.0, %v3462
    %v3464 = vpop.f32.mrf.mxu0
    %v3465 = vadd.f32 0.0, %v3464
    %3466 = vmatprep.mubr.bf16.mxu0 %v3413
    %3467 = vmatmul.mubr.bf16.gmra.mxu0 %v3232
    %v3468 = vpop.f32.mrf.mxu0
    %v3469 = vadd.f32 0.0, %v3468
    %v3470 = vpop.f32.mrf.mxu0
    %v3471 = vadd.f32 0.0, %v3470
    %v3472 = vpop.f32.mrf.mxu0
    %v3473 = vadd.f32 0.0, %v3472
    %v3474 = vpop.f32.mrf.mxu0
    %v3475 = vadd.f32 0.0, %v3474
    %3476 = vmatprep.mubr.bf16.mxu0 %v3416
    %3477 = vmatmul.mubr.bf16.gmra.mxu0 %v3234
    %v3478 = vpop.f32.mrf.mxu0
    %v3479 = vadd.f32 0.0, %v3478
    %v3480 = vpop.f32.mrf.mxu0
    %v3481 = vadd.f32 0.0, %v3480
    %v3482 = vpop.f32.mrf.mxu0
    %v3483 = vadd.f32 0.0, %v3482
    %v3484 = vpop.f32.mrf.mxu0
    %v3485 = vadd.f32 0.0, %v3484
    %3486 = vmatprep.mubr.bf16.mxu0 %v3419
    %3487 = vmatmul.mubr.bf16.gmra.mxu0 %v3236
    %v3488 = vpop.f32.mrf.mxu0
    %v3489 = vadd.f32 0.0, %v3488
    %v3490 = vpop.f32.mrf.mxu0
    %v3491 = vadd.f32 0.0, %v3490
    %v3492 = vpop.f32.mrf.mxu0
    %v3493 = vadd.f32 0.0, %v3492
    %v3494 = vpop.f32.mrf.mxu0
    %v3495 = vadd.f32 0.0, %v3494
    %3496 = vmatprep.mubr.bf16.mxu0 %v3422
    %3497 = vmatmul.mubr.bf16.gmra.mxu0 %v3238
    %v3498 = vpop.f32.mrf.mxu0
    %v3499 = vadd.f32 0.0, %v3498
    %v3500 = vpop.f32.mrf.mxu0
    %v3501 = vadd.f32 0.0, %v3500
    %v3502 = vpop.f32.mrf.mxu0
    %v3503 = vadd.f32 0.0, %v3502
    %v3504 = vpop.f32.mrf.mxu0
    %v3505 = vadd.f32 0.0, %v3504
    %3506 = vdwg.mxu0
    %s3507 = scalar_lea.vmem %s5, 224
    %v3508 = vld [vmem:[%s3507] sm:$0xff]
    %v3509 = vld [vmem:[%s3507 + $0x8] sm:$0xff]
    %v3510 = vld [vmem:[%s3507 + $0x10] sm:$0xff]
    %v3511 = vld [vmem:[%s3507 + $0x18] sm:$0xff]
    %v3512 = vld [vmem:[%s3507 + $0x20] sm:$0xff]
    %v3513 = vld [vmem:[%s3507 + $0x28] sm:$0xff]
    %v3514 = vld [vmem:[%s3507 + $0x30] sm:$0xff]
    %v3515 = vld [vmem:[%s3507 + $0x38] sm:$0xff]
    %v3516 = vld [vmem:[%s3507 + $0x40] sm:$0xff]
    %v3517 = vld [vmem:[%s3507 + $0x48] sm:$0xff]
    %v3518 = vld [vmem:[%s3507 + $0x50] sm:$0xff]
    %v3519 = vld [vmem:[%s3507 + $0x58] sm:$0xff]
    %v3520 = vld [vmem:[%s3507 + $0x60] sm:$0xff]
    %v3521 = vld [vmem:[%s3507 + $0x68] sm:$0xff]
    %v3522 = vld [vmem:[%s3507 + $0x70] sm:$0xff]
    %v3523 = vld [vmem:[%s3507 + $0x78] sm:$0xff]
    %v3524 = vld [vmem:[%s3507 + $0x80] sm:$0xff]
    %v3525 = vld [vmem:[%s3507 + $0x88] sm:$0xff]
    %v3526 = vld [vmem:[%s3507 + $0x90] sm:$0xff]
    %v3527 = vld [vmem:[%s3507 + $0x98] sm:$0xff]
    %v3528 = vld [vmem:[%s3507 + $0xa0] sm:$0xff]
    %v3529 = vld [vmem:[%s3507 + $0xa8] sm:$0xff]
    %v3530 = vld [vmem:[%s3507 + $0xb0] sm:$0xff]
    %v3531 = vld [vmem:[%s3507 + $0xb8] sm:$0xff]
    %v3532 = vld [vmem:[%s3507 + $0xc0] sm:$0xff]
    %v3533 = vld [vmem:[%s3507 + $0xc8] sm:$0xff]
    %v3534 = vld [vmem:[%s3507 + $0xd0] sm:$0xff]
    %v3535 = vld [vmem:[%s3507 + $0xd8] sm:$0xff]
    %v3564 = vunpack.c.l.b16 %v3508
    %v3565 = vunpack.c.h.b16 %v3508
    %v3566 = vunpack.c.l.b16 %v3509
    %v3567 = vunpack.c.h.b16 %v3509
    %v3568 = vunpack.c.l.b16 %v3510
    %v3569 = vunpack.c.h.b16 %v3510
    %v3570 = vunpack.c.l.b16 %v3511
    %v3571 = vunpack.c.h.b16 %v3511
    %v3572 = vunpack.c.l.b16 %v3512
    %v3573 = vunpack.c.h.b16 %v3512
    %v3574 = vunpack.c.l.b16 %v3513
    %v3575 = vunpack.c.h.b16 %v3513
    %v3576 = vunpack.c.l.b16 %v3514
    %v3577 = vunpack.c.h.b16 %v3514
    %v3578 = vunpack.c.l.b16 %v3515
    %v3579 = vunpack.c.h.b16 %v3515
    %v3580 = vunpack.c.l.b16 %v3516
    %v3581 = vunpack.c.h.b16 %v3516
    %v3582 = vunpack.c.l.b16 %v3517
    %v3583 = vunpack.c.h.b16 %v3517
    %v3584 = vunpack.c.l.b16 %v3518
    %v3585 = vunpack.c.h.b16 %v3518
    %v3586 = vunpack.c.l.b16 %v3519
    %v3587 = vunpack.c.h.b16 %v3519
    %v3588 = vunpack.c.l.b16 %v3520
    %v3589 = vunpack.c.h.b16 %v3520
    %v3590 = vunpack.c.l.b16 %v3521
    %v3591 = vunpack.c.h.b16 %v3521
    %v3592 = vunpack.c.l.b16 %v3522
    %v3593 = vunpack.c.h.b16 %v3522
    %v3594 = vunpack.c.l.b16 %v3523
    %v3595 = vunpack.c.h.b16 %v3523
    %v3596 = vunpack.c.l.b16 %v3524
    %v3597 = vunpack.c.h.b16 %v3524
    %v3598 = vunpack.c.l.b16 %v3525
    %v3599 = vunpack.c.h.b16 %v3525
    %v3600 = vunpack.c.l.b16 %v3526
    %v3601 = vunpack.c.h.b16 %v3526
    %v3602 = vunpack.c.l.b16 %v3527
    %v3603 = vunpack.c.h.b16 %v3527
    %v3604 = vunpack.c.l.b16 %v3528
    %v3605 = vunpack.c.h.b16 %v3528
    %v3606 = vunpack.c.l.b16 %v3529
    %v3607 = vunpack.c.h.b16 %v3529
    %v3608 = vunpack.c.l.b16 %v3530
    %v3609 = vunpack.c.h.b16 %v3530
    %v3610 = vunpack.c.l.b16 %v3531
    %v3611 = vunpack.c.h.b16 %v3531
    %v3612 = vunpack.c.l.b16 %v3532
    %v3613 = vunpack.c.h.b16 %v3532
    %v3614 = vunpack.c.l.b16 %v3533
    %v3615 = vunpack.c.h.b16 %v3533
    %v3616 = vunpack.c.l.b16 %v3534
    %v3617 = vunpack.c.h.b16 %v3534
    %v3618 = vunpack.c.l.b16 %v3535
    %v3619 = vunpack.c.h.b16 %v3535
    %v3620 = vpack.c.b16 %v3566, %v3564
    %v3621 = vpack.c.b16 %v3567, %v3565
    %v3622 = vpack.c.b16 %v3570, %v3568
    %v3623 = vpack.c.b16 %v3571, %v3569
    %v3624 = vpack.c.b16 %v3574, %v3572
    %v3625 = vpack.c.b16 %v3575, %v3573
    %v3626 = vpack.c.b16 %v3578, %v3576
    %v3627 = vpack.c.b16 %v3579, %v3577
    %v3628 = vpack.c.b16 %v3582, %v3580
    %v3629 = vpack.c.b16 %v3583, %v3581
    %v3630 = vpack.c.b16 %v3586, %v3584
    %v3631 = vpack.c.b16 %v3587, %v3585
    %v3632 = vpack.c.b16 %v3590, %v3588
    %v3633 = vpack.c.b16 %v3591, %v3589
    %v3634 = vpack.c.b16 %v3594, %v3592
    %v3635 = vpack.c.b16 %v3595, %v3593
    %v3636 = vpack.c.b16 %v3598, %v3596
    %v3637 = vpack.c.b16 %v3599, %v3597
    %v3638 = vpack.c.b16 %v3602, %v3600
    %v3639 = vpack.c.b16 %v3603, %v3601
    %v3640 = vpack.c.b16 %v3606, %v3604
    %v3641 = vpack.c.b16 %v3607, %v3605
    %v3642 = vpack.c.b16 %v3610, %v3608
    %v3643 = vpack.c.b16 %v3611, %v3609
    %v3644 = vpack.c.b16 %v3614, %v3612
    %v3645 = vpack.c.b16 %v3615, %v3613
    %v3646 = vpack.c.b16 %v3618, %v3616
    %v3647 = vpack.c.b16 %v3619, %v3617
    %3676 = vmatprep.subr.bf16.mxu0 %v3635
    %3677 = vmatpush1.bf16.msra.mxu0 %v3634
    %3678 = vmatprep.subr.bf16.mxu0 %v3633
    %3679 = vmatpush1.bf16.msra.mxu0 %v3632
    %3680 = vmatprep.subr.bf16.mxu0 %v3631
    %3681 = vmatpush1.bf16.msra.mxu0 %v3630
    %3682 = vmatprep.subr.bf16.mxu0 %v3629
    %3683 = vmatpush1.bf16.msra.mxu0 %v3628
    %3684 = vmatprep.subr.bf16.mxu0 %v3627
    %3685 = vmatpush1.bf16.msra.mxu0 %v3626
    %3686 = vmatprep.subr.bf16.mxu0 %v3625
    %3687 = vmatpush1.bf16.msra.mxu0 %v3624
    %3688 = vmatprep.subr.bf16.mxu0 %v3623
    %3689 = vmatpush1.bf16.msra.mxu0 %v3622
    %3690 = vmatprep.subr.bf16.mxu0 %v3621
    %3691 = vmatpush1.bf16.msra.mxu0 %v3620
    %3692 = vmatprep.subr.bf16.mxu0 0
    %3693 = vmatpush2.bf16.msra.mxu0 0
    %3694 = vmatprep.subr.bf16.mxu0 0
    %3695 = vmatpush2.bf16.msra.mxu0 0
    %3696 = vmatprep.subr.bf16.mxu0 %v3647
    %3697 = vmatpush2.bf16.msra.mxu0 %v3646
    %3698 = vmatprep.subr.bf16.mxu0 %v3645
    %3699 = vmatpush2.bf16.msra.mxu0 %v3644
    %3700 = vmatprep.subr.bf16.mxu0 %v3643
    %3701 = vmatpush2.bf16.msra.mxu0 %v3642
    %3702 = vmatprep.subr.bf16.mxu0 %v3641
    %3703 = vmatpush2.bf16.msra.mxu0 %v3640
    %3704 = vmatprep.subr.bf16.mxu0 %v3639
    %3705 = vmatpush2.bf16.msra.mxu0 %v3638
    %3706 = vmatprep.subr.bf16.mxu0 %v3637
    %3707 = vmatpush2.bf16.msra.mxu0 %v3636
    %3708 = vmatprep.mubr.bf16.mxu0 %v3410
    %3709 = vmatmul.mubr.bf16.gmra.mxu0 %v3230
    %v3710 = vpop.f32.mrf.mxu0
    %v3711 = vadd.f32 0.0, %v3710
    %v3712 = vpop.f32.mrf.mxu0
    %v3713 = vadd.f32 0.0, %v3712
    %v3714 = vpop.f32.mrf.mxu0
    %v3715 = vadd.f32 0.0, %v3714
    %v3716 = vpop.f32.mrf.mxu0
    %v3717 = vadd.f32 0.0, %v3716
    %3718 = vmatprep.mubr.bf16.mxu0 %v3413
    %3719 = vmatmul.mubr.bf16.gmra.mxu0 %v3232
    %v3720 = vpop.f32.mrf.mxu0
    %v3721 = vadd.f32 0.0, %v3720
    %v3722 = vpop.f32.mrf.mxu0
    %v3723 = vadd.f32 0.0, %v3722
    %v3724 = vpop.f32.mrf.mxu0
    %v3725 = vadd.f32 0.0, %v3724
    %v3726 = vpop.f32.mrf.mxu0
    %v3727 = vadd.f32 0.0, %v3726
    %3728 = vmatprep.mubr.bf16.mxu0 %v3416
    %3729 = vmatmul.mubr.bf16.gmra.mxu0 %v3234
    %v3730 = vpop.f32.mrf.mxu0
    %v3731 = vadd.f32 0.0, %v3730
    %v3732 = vpop.f32.mrf.mxu0
    %v3733 = vadd.f32 0.0, %v3732
    %v3734 = vpop.f32.mrf.mxu0
    %v3735 = vadd.f32 0.0, %v3734
    %v3736 = vpop.f32.mrf.mxu0
    %v3737 = vadd.f32 0.0, %v3736
    %3738 = vmatprep.mubr.bf16.mxu0 %v3419
    %3739 = vmatmul.mubr.bf16.gmra.mxu0 %v3236
    %v3740 = vpop.f32.mrf.mxu0
    %v3741 = vadd.f32 0.0, %v3740
    %v3742 = vpop.f32.mrf.mxu0
    %v3743 = vadd.f32 0.0, %v3742
    %v3744 = vpop.f32.mrf.mxu0
    %v3745 = vadd.f32 0.0, %v3744
    %v3746 = vpop.f32.mrf.mxu0
    %v3747 = vadd.f32 0.0, %v3746
    %3748 = vmatprep.mubr.bf16.mxu0 %v3422
    %3749 = vmatmul.mubr.bf16.gmra.mxu0 %v3238
    %v3750 = vpop.f32.mrf.mxu0
    %v3751 = vadd.f32 0.0, %v3750
    %v3752 = vpop.f32.mrf.mxu0
    %v3753 = vadd.f32 0.0, %v3752
    %v3754 = vpop.f32.mrf.mxu0
    %v3755 = vadd.f32 0.0, %v3754
    %v3756 = vpop.f32.mrf.mxu0
    %v3757 = vadd.f32 0.0, %v3756
    %3758 = vdwg.mxu0
    %v3787 = vunpack.c.l.b16 %v3174
    %v3788 = vunpack.c.h.b16 %v3174
    %v3789 = vunpack.c.l.b16 %v3175
    %v3790 = vunpack.c.h.b16 %v3175
    %v3791 = vunpack.c.l.b16 %v3176
    %v3792 = vunpack.c.h.b16 %v3176
    %v3793 = vunpack.c.l.b16 %v3177
    %v3794 = vunpack.c.h.b16 %v3177
    %v3795 = vunpack.c.l.b16 %v3178
    %v3796 = vunpack.c.h.b16 %v3178
    %v3797 = vunpack.c.l.b16 %v3179
    %v3798 = vunpack.c.h.b16 %v3179
    %v3799 = vunpack.c.l.b16 %v3180
    %v3800 = vunpack.c.h.b16 %v3180
    %v3801 = vunpack.c.l.b16 %v3181
    %v3802 = vunpack.c.h.b16 %v3181
    %v3803 = vunpack.c.l.b16 %v3182
    %v3804 = vunpack.c.h.b16 %v3182
    %v3805 = vunpack.c.l.b16 %v3183
    %v3806 = vunpack.c.h.b16 %v3183
    %v3807 = vunpack.c.l.b16 %v3184
    %v3808 = vunpack.c.h.b16 %v3184
    %v3809 = vunpack.c.l.b16 %v3185
    %v3810 = vunpack.c.h.b16 %v3185
    %v3811 = vunpack.c.l.b16 %v3186
    %v3812 = vunpack.c.h.b16 %v3186
    %v3813 = vunpack.c.l.b16 %v3187
    %v3814 = vunpack.c.h.b16 %v3187
    %v3815 = vunpack.c.l.b16 %v3188
    %v3816 = vunpack.c.h.b16 %v3188
    %v3817 = vunpack.c.l.b16 %v3189
    %v3818 = vunpack.c.h.b16 %v3189
    %v3819 = vunpack.c.l.b16 %v3190
    %v3820 = vunpack.c.h.b16 %v3190
    %v3821 = vunpack.c.l.b16 %v3191
    %v3822 = vunpack.c.h.b16 %v3191
    %v3823 = vunpack.c.l.b16 %v3192
    %v3824 = vunpack.c.h.b16 %v3192
    %v3825 = vunpack.c.l.b16 %v3193
    %v3826 = vunpack.c.h.b16 %v3193
    %v3827 = vunpack.c.l.b16 %v3194
    %v3828 = vunpack.c.h.b16 %v3194
    %v3829 = vunpack.c.l.b16 %v3195
    %v3830 = vunpack.c.h.b16 %v3195
    %v3831 = vunpack.c.l.b16 %v3196
    %v3832 = vunpack.c.h.b16 %v3196
    %v3833 = vunpack.c.l.b16 %v3197
    %v3834 = vunpack.c.h.b16 %v3197
    %v3835 = vunpack.c.l.b16 %v3198
    %v3836 = vunpack.c.h.b16 %v3198
    %v3837 = vunpack.c.l.b16 %v3199
    %v3838 = vunpack.c.h.b16 %v3199
    %v3839 = vunpack.c.l.b16 %v3200
    %v3840 = vunpack.c.h.b16 %v3200
    %v3841 = vunpack.c.l.b16 %v3201
    %v3842 = vunpack.c.h.b16 %v3201
    %v3843 = vpack.c.b16 %v3789, %v3787
    %v3844 = vpack.c.b16 %v3790, %v3788
    %v3845 = vpack.c.b16 %v3793, %v3791
    %v3846 = vpack.c.b16 %v3794, %v3792
    %v3847 = vpack.c.b16 %v3797, %v3795
    %v3848 = vpack.c.b16 %v3798, %v3796
    %v3849 = vpack.c.b16 %v3801, %v3799
    %v3850 = vpack.c.b16 %v3802, %v3800
    %v3851 = vpack.c.b16 %v3805, %v3803
    %v3852 = vpack.c.b16 %v3806, %v3804
    %v3853 = vpack.c.b16 %v3809, %v3807
    %v3854 = vpack.c.b16 %v3810, %v3808
    %v3855 = vpack.c.b16 %v3813, %v3811
    %v3856 = vpack.c.b16 %v3814, %v3812
    %v3857 = vpack.c.b16 %v3817, %v3815
    %v3858 = vpack.c.b16 %v3818, %v3816
    %v3859 = vpack.c.b16 %v3821, %v3819
    %v3860 = vpack.c.b16 %v3822, %v3820
    %v3861 = vpack.c.b16 %v3825, %v3823
    %v3862 = vpack.c.b16 %v3826, %v3824
    %v3863 = vpack.c.b16 %v3829, %v3827
    %v3864 = vpack.c.b16 %v3830, %v3828
    %v3865 = vpack.c.b16 %v3833, %v3831
    %v3866 = vpack.c.b16 %v3834, %v3832
    %v3867 = vpack.c.b16 %v3837, %v3835
    %v3868 = vpack.c.b16 %v3838, %v3836
    %v3869 = vpack.c.b16 %v3841, %v3839
    %v3870 = vpack.c.b16 %v3842, %v3840
    %v3900 = vsel %vm218, %v3165, 0
    %v3903 = vsel %vm218, %v3167, 0
    %v3906 = vsel %vm218, %v3169, 0
    %v3909 = vsel %vm218, %v3171, 0
    %v3912 = vsel %vm218, %v3173, 0
    %3914 = vmatprep.subr.bf16.mxu0 %v3858
    %3915 = vmatpush1.bf16.msra.mxu0 %v3857
    %3916 = vmatprep.subr.bf16.mxu0 %v3856
    %3917 = vmatpush1.bf16.msra.mxu0 %v3855
    %3918 = vmatprep.subr.bf16.mxu0 %v3854
    %3919 = vmatpush1.bf16.msra.mxu0 %v3853
    %3920 = vmatprep.subr.bf16.mxu0 %v3852
    %3921 = vmatpush1.bf16.msra.mxu0 %v3851
    %3922 = vmatprep.subr.bf16.mxu0 %v3850
    %3923 = vmatpush1.bf16.msra.mxu0 %v3849
    %3924 = vmatprep.subr.bf16.mxu0 %v3848
    %3925 = vmatpush1.bf16.msra.mxu0 %v3847
    %3926 = vmatprep.subr.bf16.mxu0 %v3846
    %3927 = vmatpush1.bf16.msra.mxu0 %v3845
    %3928 = vmatprep.subr.bf16.mxu0 %v3844
    %3929 = vmatpush1.bf16.msra.mxu0 %v3843
    %3930 = vmatprep.subr.bf16.mxu0 0
    %3931 = vmatpush2.bf16.msra.mxu0 0
    %3932 = vmatprep.subr.bf16.mxu0 0
    %3933 = vmatpush2.bf16.msra.mxu0 0
    %3934 = vmatprep.subr.bf16.mxu0 %v3870
    %3935 = vmatpush2.bf16.msra.mxu0 %v3869
    %3936 = vmatprep.subr.bf16.mxu0 %v3868
    %3937 = vmatpush2.bf16.msra.mxu0 %v3867
    %3938 = vmatprep.subr.bf16.mxu0 %v3866
    %3939 = vmatpush2.bf16.msra.mxu0 %v3865
    %3940 = vmatprep.subr.bf16.mxu0 %v3864
    %3941 = vmatpush2.bf16.msra.mxu0 %v3863
    %3942 = vmatprep.subr.bf16.mxu0 %v3862
    %3943 = vmatpush2.bf16.msra.mxu0 %v3861
    %3944 = vmatprep.subr.bf16.mxu0 %v3860
    %3945 = vmatpush2.bf16.msra.mxu0 %v3859
    %3946 = vmatprep.mubr.bf16.mxu0 %v3900
    %3947 = vmatmul.mubr.bf16.gmra.mxu0 %v3164
    %v3948 = vpop.f32.mrf.mxu0
    %v3949 = vadd.f32 %v3459, %v3948
    %v3950 = vpop.f32.mrf.mxu0
    %v3951 = vadd.f32 %v3461, %v3950
    %v3952 = vpop.f32.mrf.mxu0
    %v3953 = vadd.f32 %v3463, %v3952
    %v3954 = vpop.f32.mrf.mxu0
    %v3955 = vadd.f32 %v3465, %v3954
    %3956 = vmatprep.mubr.bf16.mxu0 %v3903
    %3957 = vmatmul.mubr.bf16.gmra.mxu0 %v3166
    %v3958 = vpop.f32.mrf.mxu0
    %v3959 = vadd.f32 %v3469, %v3958
    %v3960 = vpop.f32.mrf.mxu0
    %v3961 = vadd.f32 %v3471, %v3960
    %v3962 = vpop.f32.mrf.mxu0
    %v3963 = vadd.f32 %v3473, %v3962
    %v3964 = vpop.f32.mrf.mxu0
    %v3965 = vadd.f32 %v3475, %v3964
    %3966 = vmatprep.mubr.bf16.mxu0 %v3906
    %3967 = vmatmul.mubr.bf16.gmra.mxu0 %v3168
    %v3968 = vpop.f32.mrf.mxu0
    %v3969 = vadd.f32 %v3479, %v3968
    %v3970 = vpop.f32.mrf.mxu0
    %v3971 = vadd.f32 %v3481, %v3970
    %v3972 = vpop.f32.mrf.mxu0
    %v3973 = vadd.f32 %v3483, %v3972
    %v3974 = vpop.f32.mrf.mxu0
    %v3975 = vadd.f32 %v3485, %v3974
    %3976 = vmatprep.mubr.bf16.mxu0 %v3909
    %3977 = vmatmul.mubr.bf16.gmra.mxu0 %v3170
    %v3978 = vpop.f32.mrf.mxu0
    %v3979 = vadd.f32 %v3489, %v3978
    %v3980 = vpop.f32.mrf.mxu0
    %v3981 = vadd.f32 %v3491, %v3980
    %v3982 = vpop.f32.mrf.mxu0
    %v3983 = vadd.f32 %v3493, %v3982
    %v3984 = vpop.f32.mrf.mxu0
    %v3985 = vadd.f32 %v3495, %v3984
    %3986 = vmatprep.mubr.bf16.mxu0 %v3912
    %3987 = vmatmul.mubr.bf16.gmra.mxu0 %v3172
    %v3988 = vpop.f32.mrf.mxu0
    %v3989 = vadd.f32 %v3499, %v3988
    %v3990 = vpop.f32.mrf.mxu0
    %v3991 = vadd.f32 %v3501, %v3990
    %v3992 = vpop.f32.mrf.mxu0
    %v3993 = vadd.f32 %v3503, %v3992
    %v3994 = vpop.f32.mrf.mxu0
    %v3995 = vadd.f32 %v3505, %v3994
    %3996 = vdwg.mxu0
    %v4025 = vunpack.c.l.b16 %v3202
    %v4026 = vunpack.c.h.b16 %v3202
    %v4027 = vunpack.c.l.b16 %v3203
    %v4028 = vunpack.c.h.b16 %v3203
    %v4029 = vunpack.c.l.b16 %v3204
    %v4030 = vunpack.c.h.b16 %v3204
    %v4031 = vunpack.c.l.b16 %v3205
    %v4032 = vunpack.c.h.b16 %v3205
    %v4033 = vunpack.c.l.b16 %v3206
    %v4034 = vunpack.c.h.b16 %v3206
    %v4035 = vunpack.c.l.b16 %v3207
    %v4036 = vunpack.c.h.b16 %v3207
    %v4037 = vunpack.c.l.b16 %v3208
    %v4038 = vunpack.c.h.b16 %v3208
    %v4039 = vunpack.c.l.b16 %v3209
    %v4040 = vunpack.c.h.b16 %v3209
    %v4041 = vunpack.c.l.b16 %v3210
    %v4042 = vunpack.c.h.b16 %v3210
    %v4043 = vunpack.c.l.b16 %v3211
    %v4044 = vunpack.c.h.b16 %v3211
    %v4045 = vunpack.c.l.b16 %v3212
    %v4046 = vunpack.c.h.b16 %v3212
    %v4047 = vunpack.c.l.b16 %v3213
    %v4048 = vunpack.c.h.b16 %v3213
    %v4049 = vunpack.c.l.b16 %v3214
    %v4050 = vunpack.c.h.b16 %v3214
    %v4051 = vunpack.c.l.b16 %v3215
    %v4052 = vunpack.c.h.b16 %v3215
    %v4053 = vunpack.c.l.b16 %v3216
    %v4054 = vunpack.c.h.b16 %v3216
    %v4055 = vunpack.c.l.b16 %v3217
    %v4056 = vunpack.c.h.b16 %v3217
    %v4057 = vunpack.c.l.b16 %v3218
    %v4058 = vunpack.c.h.b16 %v3218
    %v4059 = vunpack.c.l.b16 %v3219
    %v4060 = vunpack.c.h.b16 %v3219
    %v4061 = vunpack.c.l.b16 %v3220
    %v4062 = vunpack.c.h.b16 %v3220
    %v4063 = vunpack.c.l.b16 %v3221
    %v4064 = vunpack.c.h.b16 %v3221
    %v4065 = vunpack.c.l.b16 %v3222
    %v4066 = vunpack.c.h.b16 %v3222
    %v4067 = vunpack.c.l.b16 %v3223
    %v4068 = vunpack.c.h.b16 %v3223
    %v4069 = vunpack.c.l.b16 %v3224
    %v4070 = vunpack.c.h.b16 %v3224
    %v4071 = vunpack.c.l.b16 %v3225
    %v4072 = vunpack.c.h.b16 %v3225
    %v4073 = vunpack.c.l.b16 %v3226
    %v4074 = vunpack.c.h.b16 %v3226
    %v4075 = vunpack.c.l.b16 %v3227
    %v4076 = vunpack.c.h.b16 %v3227
    %v4077 = vunpack.c.l.b16 %v3228
    %v4078 = vunpack.c.h.b16 %v3228
    %v4079 = vunpack.c.l.b16 %v3229
    %v4080 = vunpack.c.h.b16 %v3229
    %v4081 = vpack.c.b16 %v4027, %v4025
    %v4082 = vpack.c.b16 %v4028, %v4026
    %v4083 = vpack.c.b16 %v4031, %v4029
    %v4084 = vpack.c.b16 %v4032, %v4030
    %v4085 = vpack.c.b16 %v4035, %v4033
    %v4086 = vpack.c.b16 %v4036, %v4034
    %v4087 = vpack.c.b16 %v4039, %v4037
    %v4088 = vpack.c.b16 %v4040, %v4038
    %v4089 = vpack.c.b16 %v4043, %v4041
    %v4090 = vpack.c.b16 %v4044, %v4042
    %v4091 = vpack.c.b16 %v4047, %v4045
    %v4092 = vpack.c.b16 %v4048, %v4046
    %v4093 = vpack.c.b16 %v4051, %v4049
    %v4094 = vpack.c.b16 %v4052, %v4050
    %v4095 = vpack.c.b16 %v4055, %v4053
    %v4096 = vpack.c.b16 %v4056, %v4054
    %v4097 = vpack.c.b16 %v4059, %v4057
    %v4098 = vpack.c.b16 %v4060, %v4058
    %v4099 = vpack.c.b16 %v4063, %v4061
    %v4100 = vpack.c.b16 %v4064, %v4062
    %v4101 = vpack.c.b16 %v4067, %v4065
    %v4102 = vpack.c.b16 %v4068, %v4066
    %v4103 = vpack.c.b16 %v4071, %v4069
    %v4104 = vpack.c.b16 %v4072, %v4070
    %v4105 = vpack.c.b16 %v4075, %v4073
    %v4106 = vpack.c.b16 %v4076, %v4074
    %v4107 = vpack.c.b16 %v4079, %v4077
    %v4108 = vpack.c.b16 %v4080, %v4078
    %4137 = vmatprep.subr.bf16.mxu0 %v4096
    %4138 = vmatpush1.bf16.msra.mxu0 %v4095
    %4139 = vmatprep.subr.bf16.mxu0 %v4094
    %4140 = vmatpush1.bf16.msra.mxu0 %v4093
    %4141 = vmatprep.subr.bf16.mxu0 %v4092
    %4142 = vmatpush1.bf16.msra.mxu0 %v4091
    %4143 = vmatprep.subr.bf16.mxu0 %v4090
    %4144 = vmatpush1.bf16.msra.mxu0 %v4089
    %4145 = vmatprep.subr.bf16.mxu0 %v4088
    %4146 = vmatpush1.bf16.msra.mxu0 %v4087
    %4147 = vmatprep.subr.bf16.mxu0 %v4086
    %4148 = vmatpush1.bf16.msra.mxu0 %v4085
    %4149 = vmatprep.subr.bf16.mxu0 %v4084
    %4150 = vmatpush1.bf16.msra.mxu0 %v4083
    %4151 = vmatprep.subr.bf16.mxu0 %v4082
    %4152 = vmatpush1.bf16.msra.mxu0 %v4081
    %4153 = vmatprep.subr.bf16.mxu0 0
    %4154 = vmatpush2.bf16.msra.mxu0 0
    %4155 = vmatprep.subr.bf16.mxu0 0
    %4156 = vmatpush2.bf16.msra.mxu0 0
    %4157 = vmatprep.subr.bf16.mxu0 %v4108
    %4158 = vmatpush2.bf16.msra.mxu0 %v4107
    %4159 = vmatprep.subr.bf16.mxu0 %v4106
    %4160 = vmatpush2.bf16.msra.mxu0 %v4105
    %4161 = vmatprep.subr.bf16.mxu0 %v4104
    %4162 = vmatpush2.bf16.msra.mxu0 %v4103
    %4163 = vmatprep.subr.bf16.mxu0 %v4102
    %4164 = vmatpush2.bf16.msra.mxu0 %v4101
    %4165 = vmatprep.subr.bf16.mxu0 %v4100
    %4166 = vmatpush2.bf16.msra.mxu0 %v4099
    %4167 = vmatprep.subr.bf16.mxu0 %v4098
    %4168 = vmatpush2.bf16.msra.mxu0 %v4097
    %4169 = vmatprep.mubr.bf16.mxu0 %v3900
    %4170 = vmatmul.mubr.bf16.gmra.mxu0 %v3164
    %v4171 = vpop.f32.mrf.mxu0
    %v4172 = vadd.f32 %v3711, %v4171
    %v4173 = vpop.f32.mrf.mxu0
    %v4174 = vadd.f32 %v3713, %v4173
    %v4175 = vpop.f32.mrf.mxu0
    %v4176 = vadd.f32 %v3715, %v4175
    %v4177 = vpop.f32.mrf.mxu0
    %v4178 = vadd.f32 %v3717, %v4177
    %4179 = vmatprep.mubr.bf16.mxu0 %v3903
    %4180 = vmatmul.mubr.bf16.gmra.mxu0 %v3166
    %v4181 = vpop.f32.mrf.mxu0
    %v4182 = vadd.f32 %v3721, %v4181
    %v4183 = vpop.f32.mrf.mxu0
    %v4184 = vadd.f32 %v3723, %v4183
    %v4185 = vpop.f32.mrf.mxu0
    %v4186 = vadd.f32 %v3725, %v4185
    %v4187 = vpop.f32.mrf.mxu0
    %v4188 = vadd.f32 %v3727, %v4187
    %4189 = vmatprep.mubr.bf16.mxu0 %v3906
    %4190 = vmatmul.mubr.bf16.gmra.mxu0 %v3168
    %v4191 = vpop.f32.mrf.mxu0
    %v4192 = vadd.f32 %v3731, %v4191
    %v4193 = vpop.f32.mrf.mxu0
    %v4194 = vadd.f32 %v3733, %v4193
    %v4195 = vpop.f32.mrf.mxu0
    %v4196 = vadd.f32 %v3735, %v4195
    %v4197 = vpop.f32.mrf.mxu0
    %v4198 = vadd.f32 %v3737, %v4197
    %4199 = vmatprep.mubr.bf16.mxu0 %v3909
    %4200 = vmatmul.mubr.bf16.gmra.mxu0 %v3170
    %v4201 = vpop.f32.mrf.mxu0
    %v4202 = vadd.f32 %v3741, %v4201
    %v4203 = vpop.f32.mrf.mxu0
    %v4204 = vadd.f32 %v3743, %v4203
    %v4205 = vpop.f32.mrf.mxu0
    %v4206 = vadd.f32 %v3745, %v4205
    %v4207 = vpop.f32.mrf.mxu0
    %v4208 = vadd.f32 %v3747, %v4207
    %4209 = vmatprep.mubr.bf16.mxu0 %v3912
    %4210 = vmatmul.mubr.bf16.gmra.mxu0 %v3172
    %v4211 = vpop.f32.mrf.mxu0
    %v4212 = vadd.f32 %v3751, %v4211
    %v4213 = vpop.f32.mrf.mxu0
    %v4214 = vadd.f32 %v3753, %v4213
    %v4215 = vpop.f32.mrf.mxu0
    %v4216 = vadd.f32 %v3755, %v4215
    %v4217 = vpop.f32.mrf.mxu0
    %v4218 = vadd.f32 %v3757, %v4217
    %4219 = vdwg.mxu0
    %v4220 = vpack.c.bf16 %v3158, %v3156
    %v4221 = vpack.c.bf16 %v3159, %v3157
    %s4222 = scalar_lea.vmem %s4, 448
    %v4223 = vld [vmem:[%s4222] sm:$0xff]
    %v4224 = vld [vmem:[%s4222 + $0x8] sm:$0xff]
    %v4225 = vld [vmem:[%s4222 + $0x10] sm:$0xff]
    %v4226 = vld [vmem:[%s4222 + $0x18] sm:$0xff]
    %v4227 = vld [vmem:[%s4222 + $0x20] sm:$0xff]
    %v4228 = vld [vmem:[%s4222 + $0x28] sm:$0xff]
    %v4229 = vld [vmem:[%s4222 + $0x30] sm:$0xff]
    %v4230 = vld [vmem:[%s4222 + $0x38] sm:$0xff]
    %v4231 = vld [vmem:[%s4222 + $0x40] sm:$0xff]
    %v4232 = vld [vmem:[%s4222 + $0x48] sm:$0xff]
    %v4233 = vld [vmem:[%s4222 + $0x50] sm:$0xff]
    %v4234 = vld [vmem:[%s4222 + $0x58] sm:$0xff]
    %v4235 = vld [vmem:[%s4222 + $0x60] sm:$0xff]
    %v4236 = vld [vmem:[%s4222 + $0x68] sm:$0xff]
    %v4237 = vld [vmem:[%s4222 + $0x70] sm:$0xff]
    %v4238 = vld [vmem:[%s4222 + $0x78] sm:$0xff]
    %v4239 = vld [vmem:[%s4222 + $0x80] sm:$0xff]
    %v4240 = vld [vmem:[%s4222 + $0x88] sm:$0xff]
    %v4241 = vld [vmem:[%s4222 + $0x90] sm:$0xff]
    %v4242 = vld [vmem:[%s4222 + $0x98] sm:$0xff]
    %v4243 = vld [vmem:[%s4222 + $0xa0] sm:$0xff]
    %v4244 = vld [vmem:[%s4222 + $0xa8] sm:$0xff]
    %v4245 = vld [vmem:[%s4222 + $0xb0] sm:$0xff]
    %v4246 = vld [vmem:[%s4222 + $0xb8] sm:$0xff]
    %v4247 = vld [vmem:[%s4222 + $0xc0] sm:$0xff]
    %v4248 = vld [vmem:[%s4222 + $0xc8] sm:$0xff]
    %v4249 = vld [vmem:[%s4222 + $0xd0] sm:$0xff]
    %v4250 = vld [vmem:[%s4222 + $0xd8] sm:$0xff]
    %v4279 = vunpack.c.l.b16 %v4223
    %v4280 = vunpack.c.h.b16 %v4223
    %v4281 = vunpack.c.l.b16 %v4224
    %v4282 = vunpack.c.h.b16 %v4224
    %v4283 = vunpack.c.l.b16 %v4225
    %v4284 = vunpack.c.h.b16 %v4225
    %v4285 = vunpack.c.l.b16 %v4226
    %v4286 = vunpack.c.h.b16 %v4226
    %v4287 = vunpack.c.l.b16 %v4227
    %v4288 = vunpack.c.h.b16 %v4227
    %v4289 = vunpack.c.l.b16 %v4228
    %v4290 = vunpack.c.h.b16 %v4228
    %v4291 = vunpack.c.l.b16 %v4229
    %v4292 = vunpack.c.h.b16 %v4229
    %v4293 = vunpack.c.l.b16 %v4230
    %v4294 = vunpack.c.h.b16 %v4230
    %v4295 = vunpack.c.l.b16 %v4231
    %v4296 = vunpack.c.h.b16 %v4231
    %v4297 = vunpack.c.l.b16 %v4232
    %v4298 = vunpack.c.h.b16 %v4232
    %v4299 = vunpack.c.l.b16 %v4233
    %v4300 = vunpack.c.h.b16 %v4233
    %v4301 = vunpack.c.l.b16 %v4234
    %v4302 = vunpack.c.h.b16 %v4234
    %v4303 = vunpack.c.l.b16 %v4235
    %v4304 = vunpack.c.h.b16 %v4235
    %v4305 = vunpack.c.l.b16 %v4236
    %v4306 = vunpack.c.h.b16 %v4236
    %v4307 = vunpack.c.l.b16 %v4237
    %v4308 = vunpack.c.h.b16 %v4237
    %v4309 = vunpack.c.l.b16 %v4238
    %v4310 = vunpack.c.h.b16 %v4238
    %v4311 = vunpack.c.l.b16 %v4239
    %v4312 = vunpack.c.h.b16 %v4239
    %v4313 = vunpack.c.l.b16 %v4240
    %v4314 = vunpack.c.h.b16 %v4240
    %v4315 = vunpack.c.l.b16 %v4241
    %v4316 = vunpack.c.h.b16 %v4241
    %v4317 = vunpack.c.l.b16 %v4242
    %v4318 = vunpack.c.h.b16 %v4242
    %v4319 = vunpack.c.l.b16 %v4243
    %v4320 = vunpack.c.h.b16 %v4243
    %v4321 = vunpack.c.l.b16 %v4244
    %v4322 = vunpack.c.h.b16 %v4244
    %v4323 = vunpack.c.l.b16 %v4245
    %v4324 = vunpack.c.h.b16 %v4245
    %v4325 = vunpack.c.l.b16 %v4246
    %v4326 = vunpack.c.h.b16 %v4246
    %v4327 = vunpack.c.l.b16 %v4247
    %v4328 = vunpack.c.h.b16 %v4247
    %v4329 = vunpack.c.l.b16 %v4248
    %v4330 = vunpack.c.h.b16 %v4248
    %v4331 = vunpack.c.l.b16 %v4249
    %v4332 = vunpack.c.h.b16 %v4249
    %v4333 = vunpack.c.l.b16 %v4250
    %v4334 = vunpack.c.h.b16 %v4250
    %v4335 = vpack.c.b16 %v4281, %v4279
    %v4336 = vpack.c.b16 %v4282, %v4280
    %v4337 = vpack.c.b16 %v4285, %v4283
    %v4338 = vpack.c.b16 %v4286, %v4284
    %v4339 = vpack.c.b16 %v4289, %v4287
    %v4340 = vpack.c.b16 %v4290, %v4288
    %v4341 = vpack.c.b16 %v4293, %v4291
    %v4342 = vpack.c.b16 %v4294, %v4292
    %v4343 = vpack.c.b16 %v4297, %v4295
    %v4344 = vpack.c.b16 %v4298, %v4296
    %v4345 = vpack.c.b16 %v4301, %v4299
    %v4346 = vpack.c.b16 %v4302, %v4300
    %v4347 = vpack.c.b16 %v4305, %v4303
    %v4348 = vpack.c.b16 %v4306, %v4304
    %v4349 = vpack.c.b16 %v4309, %v4307
    %v4350 = vpack.c.b16 %v4310, %v4308
    %v4351 = vpack.c.b16 %v4313, %v4311
    %v4352 = vpack.c.b16 %v4314, %v4312
    %v4353 = vpack.c.b16 %v4317, %v4315
    %v4354 = vpack.c.b16 %v4318, %v4316
    %v4355 = vpack.c.b16 %v4321, %v4319
    %v4356 = vpack.c.b16 %v4322, %v4320
    %v4357 = vpack.c.b16 %v4325, %v4323
    %v4358 = vpack.c.b16 %v4326, %v4324
    %v4359 = vpack.c.b16 %v4329, %v4327
    %v4360 = vpack.c.b16 %v4330, %v4328
    %v4361 = vpack.c.b16 %v4333, %v4331
    %v4362 = vpack.c.b16 %v4334, %v4332
    %v4392 = vsel %vm218, %v4221, 0
    %4394 = vmatprep.subr.bf16.mxu0 %v4350
    %4395 = vmatpush1.bf16.msra.mxu0 %v4349
    %4396 = vmatprep.subr.bf16.mxu0 %v4348
    %4397 = vmatpush1.bf16.msra.mxu0 %v4347
    %4398 = vmatprep.subr.bf16.mxu0 %v4346
    %4399 = vmatpush1.bf16.msra.mxu0 %v4345
    %4400 = vmatprep.subr.bf16.mxu0 %v4344
    %4401 = vmatpush1.bf16.msra.mxu0 %v4343
    %4402 = vmatprep.subr.bf16.mxu0 %v4342
    %4403 = vmatpush1.bf16.msra.mxu0 %v4341
    %4404 = vmatprep.subr.bf16.mxu0 %v4340
    %4405 = vmatpush1.bf16.msra.mxu0 %v4339
    %4406 = vmatprep.subr.bf16.mxu0 %v4338
    %4407 = vmatpush1.bf16.msra.mxu0 %v4337
    %4408 = vmatprep.subr.bf16.mxu0 %v4336
    %4409 = vmatpush1.bf16.msra.mxu0 %v4335
    %4410 = vmatprep.subr.bf16.mxu0 0
    %4411 = vmatpush2.bf16.msra.mxu0 0
    %4412 = vmatprep.subr.bf16.mxu0 0
    %4413 = vmatpush2.bf16.msra.mxu0 0
    %4414 = vmatprep.subr.bf16.mxu0 %v4362
    %4415 = vmatpush2.bf16.msra.mxu0 %v4361
    %4416 = vmatprep.subr.bf16.mxu0 %v4360
    %4417 = vmatpush2.bf16.msra.mxu0 %v4359
    %4418 = vmatprep.subr.bf16.mxu0 %v4358
    %4419 = vmatpush2.bf16.msra.mxu0 %v4357
    %4420 = vmatprep.subr.bf16.mxu0 %v4356
    %4421 = vmatpush2.bf16.msra.mxu0 %v4355
    %4422 = vmatprep.subr.bf16.mxu0 %v4354
    %4423 = vmatpush2.bf16.msra.mxu0 %v4353
    %4424 = vmatprep.subr.bf16.mxu0 %v4352
    %4425 = vmatpush2.bf16.msra.mxu0 %v4351
    %4426 = vmatprep.mubr.bf16.mxu0 %v3903
    %4427 = vmatmul.mubr.bf16.gmra.mxu0 %v3166
    %v4428 = vpop.f32.mrf.mxu0
    %v4429 = vadd.f32 0.0, %v4428
    %v4430 = vpop.f32.mrf.mxu0
    %v4431 = vadd.f32 0.0, %v4430
    %v4432 = vpop.f32.mrf.mxu0
    %v4433 = vadd.f32 0.0, %v4432
    %v4434 = vpop.f32.mrf.mxu0
    %v4435 = vadd.f32 0.0, %v4434
    %4436 = vmatprep.mubr.bf16.mxu0 %v3906
    %4437 = vmatmul.mubr.bf16.gmra.mxu0 %v3168
    %v4438 = vpop.f32.mrf.mxu0
    %v4439 = vadd.f32 0.0, %v4438
    %v4440 = vpop.f32.mrf.mxu0
    %v4441 = vadd.f32 0.0, %v4440
    %v4442 = vpop.f32.mrf.mxu0
    %v4443 = vadd.f32 0.0, %v4442
    %v4444 = vpop.f32.mrf.mxu0
    %v4445 = vadd.f32 0.0, %v4444
    %4446 = vmatprep.mubr.bf16.mxu0 %v3909
    %4447 = vmatmul.mubr.bf16.gmra.mxu0 %v3170
    %v4448 = vpop.f32.mrf.mxu0
    %v4449 = vadd.f32 0.0, %v4448
    %v4450 = vpop.f32.mrf.mxu0
    %v4451 = vadd.f32 0.0, %v4450
    %v4452 = vpop.f32.mrf.mxu0
    %v4453 = vadd.f32 0.0, %v4452
    %v4454 = vpop.f32.mrf.mxu0
    %v4455 = vadd.f32 0.0, %v4454
    %4456 = vmatprep.mubr.bf16.mxu0 %v3912
    %4457 = vmatmul.mubr.bf16.gmra.mxu0 %v3172
    %v4458 = vpop.f32.mrf.mxu0
    %v4459 = vadd.f32 0.0, %v4458
    %v4460 = vpop.f32.mrf.mxu0
    %v4461 = vadd.f32 0.0, %v4460
    %v4462 = vpop.f32.mrf.mxu0
    %v4463 = vadd.f32 0.0, %v4462
    %v4464 = vpop.f32.mrf.mxu0
    %v4465 = vadd.f32 0.0, %v4464
    %4466 = vmatprep.mubr.bf16.mxu0 %v4392
    %4467 = vmatmul.mubr.bf16.gmra.mxu0 %v4220
    %v4468 = vpop.f32.mrf.mxu0
    %v4469 = vadd.f32 0.0, %v4468
    %v4470 = vpop.f32.mrf.mxu0
    %v4471 = vadd.f32 0.0, %v4470
    %v4472 = vpop.f32.mrf.mxu0
    %v4473 = vadd.f32 0.0, %v4472
    %v4474 = vpop.f32.mrf.mxu0
    %v4475 = vadd.f32 0.0, %v4474
    %4476 = vdwg.mxu0
    %s4477 = scalar_lea.vmem %s5, 448
    %v4478 = vld [vmem:[%s4477] sm:$0xff]
    %v4479 = vld [vmem:[%s4477 + $0x8] sm:$0xff]
    %v4480 = vld [vmem:[%s4477 + $0x10] sm:$0xff]
    %v4481 = vld [vmem:[%s4477 + $0x18] sm:$0xff]
    %v4482 = vld [vmem:[%s4477 + $0x20] sm:$0xff]
    %v4483 = vld [vmem:[%s4477 + $0x28] sm:$0xff]
    %v4484 = vld [vmem:[%s4477 + $0x30] sm:$0xff]
    %v4485 = vld [vmem:[%s4477 + $0x38] sm:$0xff]
    %v4486 = vld [vmem:[%s4477 + $0x40] sm:$0xff]
    %v4487 = vld [vmem:[%s4477 + $0x48] sm:$0xff]
    %v4488 = vld [vmem:[%s4477 + $0x50] sm:$0xff]
    %v4489 = vld [vmem:[%s4477 + $0x58] sm:$0xff]
    %v4490 = vld [vmem:[%s4477 + $0x60] sm:$0xff]
    %v4491 = vld [vmem:[%s4477 + $0x68] sm:$0xff]
    %v4492 = vld [vmem:[%s4477 + $0x70] sm:$0xff]
    %v4493 = vld [vmem:[%s4477 + $0x78] sm:$0xff]
    %v4494 = vld [vmem:[%s4477 + $0x80] sm:$0xff]
    %v4495 = vld [vmem:[%s4477 + $0x88] sm:$0xff]
    %v4496 = vld [vmem:[%s4477 + $0x90] sm:$0xff]
    %v4497 = vld [vmem:[%s4477 + $0x98] sm:$0xff]
    %v4498 = vld [vmem:[%s4477 + $0xa0] sm:$0xff]
    %v4499 = vld [vmem:[%s4477 + $0xa8] sm:$0xff]
    %v4500 = vld [vmem:[%s4477 + $0xb0] sm:$0xff]
    %v4501 = vld [vmem:[%s4477 + $0xb8] sm:$0xff]
    %v4502 = vld [vmem:[%s4477 + $0xc0] sm:$0xff]
    %v4503 = vld [vmem:[%s4477 + $0xc8] sm:$0xff]
    %v4504 = vld [vmem:[%s4477 + $0xd0] sm:$0xff]
    %v4505 = vld [vmem:[%s4477 + $0xd8] sm:$0xff]
    %v4534 = vunpack.c.l.b16 %v4478
    %v4535 = vunpack.c.h.b16 %v4478
    %v4536 = vunpack.c.l.b16 %v4479
    %v4537 = vunpack.c.h.b16 %v4479
    %v4538 = vunpack.c.l.b16 %v4480
    %v4539 = vunpack.c.h.b16 %v4480
    %v4540 = vunpack.c.l.b16 %v4481
    %v4541 = vunpack.c.h.b16 %v4481
    %v4542 = vunpack.c.l.b16 %v4482
    %v4543 = vunpack.c.h.b16 %v4482
    %v4544 = vunpack.c.l.b16 %v4483
    %v4545 = vunpack.c.h.b16 %v4483
    %v4546 = vunpack.c.l.b16 %v4484
    %v4547 = vunpack.c.h.b16 %v4484
    %v4548 = vunpack.c.l.b16 %v4485
    %v4549 = vunpack.c.h.b16 %v4485
    %v4550 = vunpack.c.l.b16 %v4486
    %v4551 = vunpack.c.h.b16 %v4486
    %v4552 = vunpack.c.l.b16 %v4487
    %v4553 = vunpack.c.h.b16 %v4487
    %v4554 = vunpack.c.l.b16 %v4488
    %v4555 = vunpack.c.h.b16 %v4488
    %v4556 = vunpack.c.l.b16 %v4489
    %v4557 = vunpack.c.h.b16 %v4489
    %v4558 = vunpack.c.l.b16 %v4490
    %v4559 = vunpack.c.h.b16 %v4490
    %v4560 = vunpack.c.l.b16 %v4491
    %v4561 = vunpack.c.h.b16 %v4491
    %v4562 = vunpack.c.l.b16 %v4492
    %v4563 = vunpack.c.h.b16 %v4492
    %v4564 = vunpack.c.l.b16 %v4493
    %v4565 = vunpack.c.h.b16 %v4493
    %v4566 = vunpack.c.l.b16 %v4494
    %v4567 = vunpack.c.h.b16 %v4494
    %v4568 = vunpack.c.l.b16 %v4495
    %v4569 = vunpack.c.h.b16 %v4495
    %v4570 = vunpack.c.l.b16 %v4496
    %v4571 = vunpack.c.h.b16 %v4496
    %v4572 = vunpack.c.l.b16 %v4497
    %v4573 = vunpack.c.h.b16 %v4497
    %v4574 = vunpack.c.l.b16 %v4498
    %v4575 = vunpack.c.h.b16 %v4498
    %v4576 = vunpack.c.l.b16 %v4499
    %v4577 = vunpack.c.h.b16 %v4499
    %v4578 = vunpack.c.l.b16 %v4500
    %v4579 = vunpack.c.h.b16 %v4500
    %v4580 = vunpack.c.l.b16 %v4501
    %v4581 = vunpack.c.h.b16 %v4501
    %v4582 = vunpack.c.l.b16 %v4502
    %v4583 = vunpack.c.h.b16 %v4502
    %v4584 = vunpack.c.l.b16 %v4503
    %v4585 = vunpack.c.h.b16 %v4503
    %v4586 = vunpack.c.l.b16 %v4504
    %v4587 = vunpack.c.h.b16 %v4504
    %v4588 = vunpack.c.l.b16 %v4505
    %v4589 = vunpack.c.h.b16 %v4505
    %v4590 = vpack.c.b16 %v4536, %v4534
    %v4591 = vpack.c.b16 %v4537, %v4535
    %v4592 = vpack.c.b16 %v4540, %v4538
    %v4593 = vpack.c.b16 %v4541, %v4539
    %v4594 = vpack.c.b16 %v4544, %v4542
    %v4595 = vpack.c.b16 %v4545, %v4543
    %v4596 = vpack.c.b16 %v4548, %v4546
    %v4597 = vpack.c.b16 %v4549, %v4547
    %v4598 = vpack.c.b16 %v4552, %v4550
    %v4599 = vpack.c.b16 %v4553, %v4551
    %v4600 = vpack.c.b16 %v4556, %v4554
    %v4601 = vpack.c.b16 %v4557, %v4555
    %v4602 = vpack.c.b16 %v4560, %v4558
    %v4603 = vpack.c.b16 %v4561, %v4559
    %v4604 = vpack.c.b16 %v4564, %v4562
    %v4605 = vpack.c.b16 %v4565, %v4563
    %v4606 = vpack.c.b16 %v4568, %v4566
    %v4607 = vpack.c.b16 %v4569, %v4567
    %v4608 = vpack.c.b16 %v4572, %v4570
    %v4609 = vpack.c.b16 %v4573, %v4571
    %v4610 = vpack.c.b16 %v4576, %v4574
    %v4611 = vpack.c.b16 %v4577, %v4575
    %v4612 = vpack.c.b16 %v4580, %v4578
    %v4613 = vpack.c.b16 %v4581, %v4579
    %v4614 = vpack.c.b16 %v4584, %v4582
    %v4615 = vpack.c.b16 %v4585, %v4583
    %v4616 = vpack.c.b16 %v4588, %v4586
    %v4617 = vpack.c.b16 %v4589, %v4587
    %4646 = vmatprep.subr.bf16.mxu0 %v4605
    %4647 = vmatpush1.bf16.msra.mxu0 %v4604
    %4648 = vmatprep.subr.bf16.mxu0 %v4603
    %4649 = vmatpush1.bf16.msra.mxu0 %v4602
    %4650 = vmatprep.subr.bf16.mxu0 %v4601
    %4651 = vmatpush1.bf16.msra.mxu0 %v4600
    %4652 = vmatprep.subr.bf16.mxu0 %v4599
    %4653 = vmatpush1.bf16.msra.mxu0 %v4598
    %4654 = vmatprep.subr.bf16.mxu0 %v4597
    %4655 = vmatpush1.bf16.msra.mxu0 %v4596
    %4656 = vmatprep.subr.bf16.mxu0 %v4595
    %4657 = vmatpush1.bf16.msra.mxu0 %v4594
    %4658 = vmatprep.subr.bf16.mxu0 %v4593
    %4659 = vmatpush1.bf16.msra.mxu0 %v4592
    %4660 = vmatprep.subr.bf16.mxu0 %v4591
    %4661 = vmatpush1.bf16.msra.mxu0 %v4590
    %4662 = vmatprep.subr.bf16.mxu0 0
    %4663 = vmatpush2.bf16.msra.mxu0 0
    %4664 = vmatprep.subr.bf16.mxu0 0
    %4665 = vmatpush2.bf16.msra.mxu0 0
    %4666 = vmatprep.subr.bf16.mxu0 %v4617
    %4667 = vmatpush2.bf16.msra.mxu0 %v4616
    %4668 = vmatprep.subr.bf16.mxu0 %v4615
    %4669 = vmatpush2.bf16.msra.mxu0 %v4614
    %4670 = vmatprep.subr.bf16.mxu0 %v4613
    %4671 = vmatpush2.bf16.msra.mxu0 %v4612
    %4672 = vmatprep.subr.bf16.mxu0 %v4611
    %4673 = vmatpush2.bf16.msra.mxu0 %v4610
    %4674 = vmatprep.subr.bf16.mxu0 %v4609
    %4675 = vmatpush2.bf16.msra.mxu0 %v4608
    %4676 = vmatprep.subr.bf16.mxu0 %v4607
    %4677 = vmatpush2.bf16.msra.mxu0 %v4606
    %4678 = vmatprep.mubr.bf16.mxu0 %v3903
    %4679 = vmatmul.mubr.bf16.gmra.mxu0 %v3166
    %v4680 = vpop.f32.mrf.mxu0
    %v4681 = vadd.f32 0.0, %v4680
    %v4682 = vpop.f32.mrf.mxu0
    %v4683 = vadd.f32 0.0, %v4682
    %v4684 = vpop.f32.mrf.mxu0
    %v4685 = vadd.f32 0.0, %v4684
    %v4686 = vpop.f32.mrf.mxu0
    %v4687 = vadd.f32 0.0, %v4686
    %4688 = vmatprep.mubr.bf16.mxu0 %v3906
    %4689 = vmatmul.mubr.bf16.gmra.mxu0 %v3168
    %v4690 = vpop.f32.mrf.mxu0
    %v4691 = vadd.f32 0.0, %v4690
    %v4692 = vpop.f32.mrf.mxu0
    %v4693 = vadd.f32 0.0, %v4692
    %v4694 = vpop.f32.mrf.mxu0
    %v4695 = vadd.f32 0.0, %v4694
    %v4696 = vpop.f32.mrf.mxu0
    %v4697 = vadd.f32 0.0, %v4696
    %4698 = vmatprep.mubr.bf16.mxu0 %v3909
    %4699 = vmatmul.mubr.bf16.gmra.mxu0 %v3170
    %v4700 = vpop.f32.mrf.mxu0
    %v4701 = vadd.f32 0.0, %v4700
    %v4702 = vpop.f32.mrf.mxu0
    %v4703 = vadd.f32 0.0, %v4702
    %v4704 = vpop.f32.mrf.mxu0
    %v4705 = vadd.f32 0.0, %v4704
    %v4706 = vpop.f32.mrf.mxu0
    %v4707 = vadd.f32 0.0, %v4706
    %4708 = vmatprep.mubr.bf16.mxu0 %v3912
    %4709 = vmatmul.mubr.bf16.gmra.mxu0 %v3172
    %v4710 = vpop.f32.mrf.mxu0
    %v4711 = vadd.f32 0.0, %v4710
    %v4712 = vpop.f32.mrf.mxu0
    %v4713 = vadd.f32 0.0, %v4712
    %v4714 = vpop.f32.mrf.mxu0
    %v4715 = vadd.f32 0.0, %v4714
    %v4716 = vpop.f32.mrf.mxu0
    %v4717 = vadd.f32 0.0, %v4716
    %4718 = vmatprep.mubr.bf16.mxu0 %v4392
    %4719 = vmatmul.mubr.bf16.gmra.mxu0 %v4220
    %v4720 = vpop.f32.mrf.mxu0
    %v4721 = vadd.f32 0.0, %v4720
    %v4722 = vpop.f32.mrf.mxu0
    %v4723 = vadd.f32 0.0, %v4722
    %v4724 = vpop.f32.mrf.mxu0
    %v4725 = vadd.f32 0.0, %v4724
    %v4726 = vpop.f32.mrf.mxu0
    %v4727 = vadd.f32 0.0, %v4726
    %4728 = vdwg.mxu0
    %v4729 = vadd.f32 %v3949, %v4429
    %v4730 = vadd.f32 %v3951, %v4431
    %v4731 = vadd.f32 %v3953, %v4433
    %v4732 = vadd.f32 %v3955, %v4435
    %v4733 = vadd.f32 %v3959, %v4439
    %v4734 = vadd.f32 %v3961, %v4441
    %v4735 = vadd.f32 %v3963, %v4443
    %v4736 = vadd.f32 %v3965, %v4445
    %v4737 = vadd.f32 %v3969, %v4449
    %v4738 = vadd.f32 %v3971, %v4451
    %v4739 = vadd.f32 %v3973, %v4453
    %v4740 = vadd.f32 %v3975, %v4455
    %v4741 = vadd.f32 %v3979, %v4459
    %v4742 = vadd.f32 %v3981, %v4461
    %v4743 = vadd.f32 %v3983, %v4463
    %v4744 = vadd.f32 %v3985, %v4465
    %v4745 = vadd.f32 %v3989, %v4469
    %v4746 = vadd.f32 %v3991, %v4471
    %v4747 = vadd.f32 %v3993, %v4473
    %v4748 = vadd.f32 %v3995, %v4475
    %v4749 = vadd.f32 %v4172, %v4681
    %v4750 = vadd.f32 %v4174, %v4683
    %v4751 = vadd.f32 %v4176, %v4685
    %v4752 = vadd.f32 %v4178, %v4687
    %v4753 = vadd.f32 %v4182, %v4691
    %v4754 = vadd.f32 %v4184, %v4693
    %v4755 = vadd.f32 %v4186, %v4695
    %v4756 = vadd.f32 %v4188, %v4697
    %v4757 = vadd.f32 %v4192, %v4701
    %v4758 = vadd.f32 %v4194, %v4703
    %v4759 = vadd.f32 %v4196, %v4705
    %v4760 = vadd.f32 %v4198, %v4707
    %v4761 = vadd.f32 %v4202, %v4711
    %v4762 = vadd.f32 %v4204, %v4713
    %v4763 = vadd.f32 %v4206, %v4715
    %v4764 = vadd.f32 %v4208, %v4717
    %v4765 = vadd.f32 %v4212, %v4721
    %v4766 = vadd.f32 %v4214, %v4723
    %v4767 = vadd.f32 %v4216, %v4725
    %v4768 = vadd.f32 %v4218, %v4727
    %v4769 = vpack.c.bf16 %v3160, %v3158
    %v4770 = vpack.c.bf16 %v3161, %v3159
    %s4771 = scalar_lea.vmem %s4, 672
    %v4772 = vld [vmem:[%s4771] sm:$0xff]
    %v4773 = vld [vmem:[%s4771 + $0x8] sm:$0xff]
    %v4774 = vld [vmem:[%s4771 + $0x10] sm:$0xff]
    %v4775 = vld [vmem:[%s4771 + $0x18] sm:$0xff]
    %v4776 = vld [vmem:[%s4771 + $0x20] sm:$0xff]
    %v4777 = vld [vmem:[%s4771 + $0x28] sm:$0xff]
    %v4778 = vld [vmem:[%s4771 + $0x30] sm:$0xff]
    %v4779 = vld [vmem:[%s4771 + $0x38] sm:$0xff]
    %v4780 = vld [vmem:[%s4771 + $0x40] sm:$0xff]
    %v4781 = vld [vmem:[%s4771 + $0x48] sm:$0xff]
    %v4782 = vld [vmem:[%s4771 + $0x50] sm:$0xff]
    %v4783 = vld [vmem:[%s4771 + $0x58] sm:$0xff]
    %v4784 = vld [vmem:[%s4771 + $0x60] sm:$0xff]
    %v4785 = vld [vmem:[%s4771 + $0x68] sm:$0xff]
    %v4786 = vld [vmem:[%s4771 + $0x70] sm:$0xff]
    %v4787 = vld [vmem:[%s4771 + $0x78] sm:$0xff]
    %v4788 = vld [vmem:[%s4771 + $0x80] sm:$0xff]
    %v4789 = vld [vmem:[%s4771 + $0x88] sm:$0xff]
    %v4790 = vld [vmem:[%s4771 + $0x90] sm:$0xff]
    %v4791 = vld [vmem:[%s4771 + $0x98] sm:$0xff]
    %v4792 = vld [vmem:[%s4771 + $0xa0] sm:$0xff]
    %v4793 = vld [vmem:[%s4771 + $0xa8] sm:$0xff]
    %v4794 = vld [vmem:[%s4771 + $0xb0] sm:$0xff]
    %v4795 = vld [vmem:[%s4771 + $0xb8] sm:$0xff]
    %v4796 = vld [vmem:[%s4771 + $0xc0] sm:$0xff]
    %v4797 = vld [vmem:[%s4771 + $0xc8] sm:$0xff]
    %v4798 = vld [vmem:[%s4771 + $0xd0] sm:$0xff]
    %v4799 = vld [vmem:[%s4771 + $0xd8] sm:$0xff]
    %v4828 = vunpack.c.l.b16 %v4772
    %v4829 = vunpack.c.h.b16 %v4772
    %v4830 = vunpack.c.l.b16 %v4773
    %v4831 = vunpack.c.h.b16 %v4773
    %v4832 = vunpack.c.l.b16 %v4774
    %v4833 = vunpack.c.h.b16 %v4774
    %v4834 = vunpack.c.l.b16 %v4775
    %v4835 = vunpack.c.h.b16 %v4775
    %v4836 = vunpack.c.l.b16 %v4776
    %v4837 = vunpack.c.h.b16 %v4776
    %v4838 = vunpack.c.l.b16 %v4777
    %v4839 = vunpack.c.h.b16 %v4777
    %v4840 = vunpack.c.l.b16 %v4778
    %v4841 = vunpack.c.h.b16 %v4778
    %v4842 = vunpack.c.l.b16 %v4779
    %v4843 = vunpack.c.h.b16 %v4779
    %v4844 = vunpack.c.l.b16 %v4780
    %v4845 = vunpack.c.h.b16 %v4780
    %v4846 = vunpack.c.l.b16 %v4781
    %v4847 = vunpack.c.h.b16 %v4781
    %v4848 = vunpack.c.l.b16 %v4782
    %v4849 = vunpack.c.h.b16 %v4782
    %v4850 = vunpack.c.l.b16 %v4783
    %v4851 = vunpack.c.h.b16 %v4783
    %v4852 = vunpack.c.l.b16 %v4784
    %v4853 = vunpack.c.h.b16 %v4784
    %v4854 = vunpack.c.l.b16 %v4785
    %v4855 = vunpack.c.h.b16 %v4785
    %v4856 = vunpack.c.l.b16 %v4786
    %v4857 = vunpack.c.h.b16 %v4786
    %v4858 = vunpack.c.l.b16 %v4787
    %v4859 = vunpack.c.h.b16 %v4787
    %v4860 = vunpack.c.l.b16 %v4788
    %v4861 = vunpack.c.h.b16 %v4788
    %v4862 = vunpack.c.l.b16 %v4789
    %v4863 = vunpack.c.h.b16 %v4789
    %v4864 = vunpack.c.l.b16 %v4790
    %v4865 = vunpack.c.h.b16 %v4790
    %v4866 = vunpack.c.l.b16 %v4791
    %v4867 = vunpack.c.h.b16 %v4791
    %v4868 = vunpack.c.l.b16 %v4792
    %v4869 = vunpack.c.h.b16 %v4792
    %v4870 = vunpack.c.l.b16 %v4793
    %v4871 = vunpack.c.h.b16 %v4793
    %v4872 = vunpack.c.l.b16 %v4794
    %v4873 = vunpack.c.h.b16 %v4794
    %v4874 = vunpack.c.l.b16 %v4795
    %v4875 = vunpack.c.h.b16 %v4795
    %v4876 = vunpack.c.l.b16 %v4796
    %v4877 = vunpack.c.h.b16 %v4796
    %v4878 = vunpack.c.l.b16 %v4797
    %v4879 = vunpack.c.h.b16 %v4797
    %v4880 = vunpack.c.l.b16 %v4798
    %v4881 = vunpack.c.h.b16 %v4798
    %v4882 = vunpack.c.l.b16 %v4799
    %v4883 = vunpack.c.h.b16 %v4799
    %v4884 = vpack.c.b16 %v4830, %v4828
    %v4885 = vpack.c.b16 %v4831, %v4829
    %v4886 = vpack.c.b16 %v4834, %v4832
    %v4887 = vpack.c.b16 %v4835, %v4833
    %v4888 = vpack.c.b16 %v4838, %v4836
    %v4889 = vpack.c.b16 %v4839, %v4837
    %v4890 = vpack.c.b16 %v4842, %v4840
    %v4891 = vpack.c.b16 %v4843, %v4841
    %v4892 = vpack.c.b16 %v4846, %v4844
    %v4893 = vpack.c.b16 %v4847, %v4845
    %v4894 = vpack.c.b16 %v4850, %v4848
    %v4895 = vpack.c.b16 %v4851, %v4849
    %v4896 = vpack.c.b16 %v4854, %v4852
    %v4897 = vpack.c.b16 %v4855, %v4853
    %v4898 = vpack.c.b16 %v4858, %v4856
    %v4899 = vpack.c.b16 %v4859, %v4857
    %v4900 = vpack.c.b16 %v4862, %v4860
    %v4901 = vpack.c.b16 %v4863, %v4861
    %v4902 = vpack.c.b16 %v4866, %v4864
    %v4903 = vpack.c.b16 %v4867, %v4865
    %v4904 = vpack.c.b16 %v4870, %v4868
    %v4905 = vpack.c.b16 %v4871, %v4869
    %v4906 = vpack.c.b16 %v4874, %v4872
    %v4907 = vpack.c.b16 %v4875, %v4873
    %v4908 = vpack.c.b16 %v4878, %v4876
    %v4909 = vpack.c.b16 %v4879, %v4877
    %v4910 = vpack.c.b16 %v4882, %v4880
    %v4911 = vpack.c.b16 %v4883, %v4881
    %v4941 = vsel %vm218, %v4770, 0
    %4943 = vmatprep.subr.bf16.mxu0 %v4899
    %4944 = vmatpush1.bf16.msra.mxu0 %v4898
    %4945 = vmatprep.subr.bf16.mxu0 %v4897
    %4946 = vmatpush1.bf16.msra.mxu0 %v4896
    %4947 = vmatprep.subr.bf16.mxu0 %v4895
    %4948 = vmatpush1.bf16.msra.mxu0 %v4894
    %4949 = vmatprep.subr.bf16.mxu0 %v4893
    %4950 = vmatpush1.bf16.msra.mxu0 %v4892
    %4951 = vmatprep.subr.bf16.mxu0 %v4891
    %4952 = vmatpush1.bf16.msra.mxu0 %v4890
    %4953 = vmatprep.subr.bf16.mxu0 %v4889
    %4954 = vmatpush1.bf16.msra.mxu0 %v4888
    %4955 = vmatprep.subr.bf16.mxu0 %v4887
    %4956 = vmatpush1.bf16.msra.mxu0 %v4886
    %4957 = vmatprep.subr.bf16.mxu0 %v4885
    %4958 = vmatpush1.bf16.msra.mxu0 %v4884
    %4959 = vmatprep.subr.bf16.mxu0 0
    %4960 = vmatpush2.bf16.msra.mxu0 0
    %4961 = vmatprep.subr.bf16.mxu0 0
    %4962 = vmatpush2.bf16.msra.mxu0 0
    %4963 = vmatprep.subr.bf16.mxu0 %v4911
    %4964 = vmatpush2.bf16.msra.mxu0 %v4910
    %4965 = vmatprep.subr.bf16.mxu0 %v4909
    %4966 = vmatpush2.bf16.msra.mxu0 %v4908
    %4967 = vmatprep.subr.bf16.mxu0 %v4907
    %4968 = vmatpush2.bf16.msra.mxu0 %v4906
    %4969 = vmatprep.subr.bf16.mxu0 %v4905
    %4970 = vmatpush2.bf16.msra.mxu0 %v4904
    %4971 = vmatprep.subr.bf16.mxu0 %v4903
    %4972 = vmatpush2.bf16.msra.mxu0 %v4902
    %4973 = vmatprep.subr.bf16.mxu0 %v4901
    %4974 = vmatpush2.bf16.msra.mxu0 %v4900
    %4975 = vmatprep.mubr.bf16.mxu0 %v3413
    %4976 = vmatmul.mubr.bf16.gmra.mxu0 %v3232
    %v4977 = vpop.f32.mrf.mxu0
    %v4978 = vadd.f32 0.0, %v4977
    %v4979 = vpop.f32.mrf.mxu0
    %v4980 = vadd.f32 0.0, %v4979
    %v4981 = vpop.f32.mrf.mxu0
    %v4982 = vadd.f32 0.0, %v4981
    %v4983 = vpop.f32.mrf.mxu0
    %v4984 = vadd.f32 0.0, %v4983
    %4985 = vmatprep.mubr.bf16.mxu0 %v3416
    %4986 = vmatmul.mubr.bf16.gmra.mxu0 %v3234
    %v4987 = vpop.f32.mrf.mxu0
    %v4988 = vadd.f32 0.0, %v4987
    %v4989 = vpop.f32.mrf.mxu0
    %v4990 = vadd.f32 0.0, %v4989
    %v4991 = vpop.f32.mrf.mxu0
    %v4992 = vadd.f32 0.0, %v4991
    %v4993 = vpop.f32.mrf.mxu0
    %v4994 = vadd.f32 0.0, %v4993
    %4995 = vmatprep.mubr.bf16.mxu0 %v3419
    %4996 = vmatmul.mubr.bf16.gmra.mxu0 %v3236
    %v4997 = vpop.f32.mrf.mxu0
    %v4998 = vadd.f32 0.0, %v4997
    %v4999 = vpop.f32.mrf.mxu0
    %v5000 = vadd.f32 0.0, %v4999
    %v5001 = vpop.f32.mrf.mxu0
    %v5002 = vadd.f32 0.0, %v5001
    %v5003 = vpop.f32.mrf.mxu0
    %v5004 = vadd.f32 0.0, %v5003
    %5005 = vmatprep.mubr.bf16.mxu0 %v3422
    %5006 = vmatmul.mubr.bf16.gmra.mxu0 %v3238
    %v5007 = vpop.f32.mrf.mxu0
    %v5008 = vadd.f32 0.0, %v5007
    %v5009 = vpop.f32.mrf.mxu0
    %v5010 = vadd.f32 0.0, %v5009
    %v5011 = vpop.f32.mrf.mxu0
    %v5012 = vadd.f32 0.0, %v5011
    %v5013 = vpop.f32.mrf.mxu0
    %v5014 = vadd.f32 0.0, %v5013
    %5015 = vmatprep.mubr.bf16.mxu0 %v4941
    %5016 = vmatmul.mubr.bf16.gmra.mxu0 %v4769
    %v5017 = vpop.f32.mrf.mxu0
    %v5018 = vadd.f32 0.0, %v5017
    %v5019 = vpop.f32.mrf.mxu0
    %v5020 = vadd.f32 0.0, %v5019
    %v5021 = vpop.f32.mrf.mxu0
    %v5022 = vadd.f32 0.0, %v5021
    %v5023 = vpop.f32.mrf.mxu0
    %v5024 = vadd.f32 0.0, %v5023
    %5025 = vdwg.mxu0
    %s5026 = scalar_lea.vmem %s5, 672
    %v5027 = vld [vmem:[%s5026] sm:$0xff]
    %v5028 = vld [vmem:[%s5026 + $0x8] sm:$0xff]
    %v5029 = vld [vmem:[%s5026 + $0x10] sm:$0xff]
    %v5030 = vld [vmem:[%s5026 + $0x18] sm:$0xff]
    %v5031 = vld [vmem:[%s5026 + $0x20] sm:$0xff]
    %v5032 = vld [vmem:[%s5026 + $0x28] sm:$0xff]
    %v5033 = vld [vmem:[%s5026 + $0x30] sm:$0xff]
    %v5034 = vld [vmem:[%s5026 + $0x38] sm:$0xff]
    %v5035 = vld [vmem:[%s5026 + $0x40] sm:$0xff]
    %v5036 = vld [vmem:[%s5026 + $0x48] sm:$0xff]
    %v5037 = vld [vmem:[%s5026 + $0x50] sm:$0xff]
    %v5038 = vld [vmem:[%s5026 + $0x58] sm:$0xff]
    %v5039 = vld [vmem:[%s5026 + $0x60] sm:$0xff]
    %v5040 = vld [vmem:[%s5026 + $0x68] sm:$0xff]
    %v5041 = vld [vmem:[%s5026 + $0x70] sm:$0xff]
    %v5042 = vld [vmem:[%s5026 + $0x78] sm:$0xff]
    %v5043 = vld [vmem:[%s5026 + $0x80] sm:$0xff]
    %v5044 = vld [vmem:[%s5026 + $0x88] sm:$0xff]
    %v5045 = vld [vmem:[%s5026 + $0x90] sm:$0xff]
    %v5046 = vld [vmem:[%s5026 + $0x98] sm:$0xff]
    %v5047 = vld [vmem:[%s5026 + $0xa0] sm:$0xff]
    %v5048 = vld [vmem:[%s5026 + $0xa8] sm:$0xff]
    %v5049 = vld [vmem:[%s5026 + $0xb0] sm:$0xff]
    %v5050 = vld [vmem:[%s5026 + $0xb8] sm:$0xff]
    %v5051 = vld [vmem:[%s5026 + $0xc0] sm:$0xff]
    %v5052 = vld [vmem:[%s5026 + $0xc8] sm:$0xff]
    %v5053 = vld [vmem:[%s5026 + $0xd0] sm:$0xff]
    %v5054 = vld [vmem:[%s5026 + $0xd8] sm:$0xff]
    %v5083 = vunpack.c.l.b16 %v5027
    %v5084 = vunpack.c.h.b16 %v5027
    %v5085 = vunpack.c.l.b16 %v5028
    %v5086 = vunpack.c.h.b16 %v5028
    %v5087 = vunpack.c.l.b16 %v5029
    %v5088 = vunpack.c.h.b16 %v5029
    %v5089 = vunpack.c.l.b16 %v5030
    %v5090 = vunpack.c.h.b16 %v5030
    %v5091 = vunpack.c.l.b16 %v5031
    %v5092 = vunpack.c.h.b16 %v5031
    %v5093 = vunpack.c.l.b16 %v5032
    %v5094 = vunpack.c.h.b16 %v5032
    %v5095 = vunpack.c.l.b16 %v5033
    %v5096 = vunpack.c.h.b16 %v5033
    %v5097 = vunpack.c.l.b16 %v5034
    %v5098 = vunpack.c.h.b16 %v5034
    %v5099 = vunpack.c.l.b16 %v5035
    %v5100 = vunpack.c.h.b16 %v5035
    %v5101 = vunpack.c.l.b16 %v5036
    %v5102 = vunpack.c.h.b16 %v5036
    %v5103 = vunpack.c.l.b16 %v5037
    %v5104 = vunpack.c.h.b16 %v5037
    %v5105 = vunpack.c.l.b16 %v5038
    %v5106 = vunpack.c.h.b16 %v5038
    %v5107 = vunpack.c.l.b16 %v5039
    %v5108 = vunpack.c.h.b16 %v5039
    %v5109 = vunpack.c.l.b16 %v5040
    %v5110 = vunpack.c.h.b16 %v5040
    %v5111 = vunpack.c.l.b16 %v5041
    %v5112 = vunpack.c.h.b16 %v5041
    %v5113 = vunpack.c.l.b16 %v5042
    %v5114 = vunpack.c.h.b16 %v5042
    %v5115 = vunpack.c.l.b16 %v5043
    %v5116 = vunpack.c.h.b16 %v5043
    %v5117 = vunpack.c.l.b16 %v5044
    %v5118 = vunpack.c.h.b16 %v5044
    %v5119 = vunpack.c.l.b16 %v5045
    %v5120 = vunpack.c.h.b16 %v5045
    %v5121 = vunpack.c.l.b16 %v5046
    %v5122 = vunpack.c.h.b16 %v5046
    %v5123 = vunpack.c.l.b16 %v5047
    %v5124 = vunpack.c.h.b16 %v5047
    %v5125 = vunpack.c.l.b16 %v5048
    %v5126 = vunpack.c.h.b16 %v5048
    %v5127 = vunpack.c.l.b16 %v5049
    %v5128 = vunpack.c.h.b16 %v5049
    %v5129 = vunpack.c.l.b16 %v5050
    %v5130 = vunpack.c.h.b16 %v5050
    %v5131 = vunpack.c.l.b16 %v5051
    %v5132 = vunpack.c.h.b16 %v5051
    %v5133 = vunpack.c.l.b16 %v5052
    %v5134 = vunpack.c.h.b16 %v5052
    %v5135 = vunpack.c.l.b16 %v5053
    %v5136 = vunpack.c.h.b16 %v5053
    %v5137 = vunpack.c.l.b16 %v5054
    %v5138 = vunpack.c.h.b16 %v5054
    %v5139 = vpack.c.b16 %v5085, %v5083
    %v5140 = vpack.c.b16 %v5086, %v5084
    %v5141 = vpack.c.b16 %v5089, %v5087
    %v5142 = vpack.c.b16 %v5090, %v5088
    %v5143 = vpack.c.b16 %v5093, %v5091
    %v5144 = vpack.c.b16 %v5094, %v5092
    %v5145 = vpack.c.b16 %v5097, %v5095
    %v5146 = vpack.c.b16 %v5098, %v5096
    %v5147 = vpack.c.b16 %v5101, %v5099
    %v5148 = vpack.c.b16 %v5102, %v5100
    %v5149 = vpack.c.b16 %v5105, %v5103
    %v5150 = vpack.c.b16 %v5106, %v5104
    %v5151 = vpack.c.b16 %v5109, %v5107
    %v5152 = vpack.c.b16 %v5110, %v5108
    %v5153 = vpack.c.b16 %v5113, %v5111
    %v5154 = vpack.c.b16 %v5114, %v5112
    %v5155 = vpack.c.b16 %v5117, %v5115
    %v5156 = vpack.c.b16 %v5118, %v5116
    %v5157 = vpack.c.b16 %v5121, %v5119
    %v5158 = vpack.c.b16 %v5122, %v5120
    %v5159 = vpack.c.b16 %v5125, %v5123
    %v5160 = vpack.c.b16 %v5126, %v5124
    %v5161 = vpack.c.b16 %v5129, %v5127
    %v5162 = vpack.c.b16 %v5130, %v5128
    %v5163 = vpack.c.b16 %v5133, %v5131
    %v5164 = vpack.c.b16 %v5134, %v5132
    %v5165 = vpack.c.b16 %v5137, %v5135
    %v5166 = vpack.c.b16 %v5138, %v5136
    %5195 = vmatprep.subr.bf16.mxu0 %v5154
    %5196 = vmatpush1.bf16.msra.mxu0 %v5153
    %5197 = vmatprep.subr.bf16.mxu0 %v5152
    %5198 = vmatpush1.bf16.msra.mxu0 %v5151
    %5199 = vmatprep.subr.bf16.mxu0 %v5150
    %5200 = vmatpush1.bf16.msra.mxu0 %v5149
    %5201 = vmatprep.subr.bf16.mxu0 %v5148
    %5202 = vmatpush1.bf16.msra.mxu0 %v5147
    %5203 = vmatprep.subr.bf16.mxu0 %v5146
    %5204 = vmatpush1.bf16.msra.mxu0 %v5145
    %5205 = vmatprep.subr.bf16.mxu0 %v5144
    %5206 = vmatpush1.bf16.msra.mxu0 %v5143
    %5207 = vmatprep.subr.bf16.mxu0 %v5142
    %5208 = vmatpush1.bf16.msra.mxu0 %v5141
    %5209 = vmatprep.subr.bf16.mxu0 %v5140
    %5210 = vmatpush1.bf16.msra.mxu0 %v5139
    %5211 = vmatprep.subr.bf16.mxu0 0
    %5212 = vmatpush2.bf16.msra.mxu0 0
    %5213 = vmatprep.subr.bf16.mxu0 0
    %5214 = vmatpush2.bf16.msra.mxu0 0
    %5215 = vmatprep.subr.bf16.mxu0 %v5166
    %5216 = vmatpush2.bf16.msra.mxu0 %v5165
    %5217 = vmatprep.subr.bf16.mxu0 %v5164
    %5218 = vmatpush2.bf16.msra.mxu0 %v5163
    %5219 = vmatprep.subr.bf16.mxu0 %v5162
    %5220 = vmatpush2.bf16.msra.mxu0 %v5161
    %5221 = vmatprep.subr.bf16.mxu0 %v5160
    %5222 = vmatpush2.bf16.msra.mxu0 %v5159
    %5223 = vmatprep.subr.bf16.mxu0 %v5158
    %5224 = vmatpush2.bf16.msra.mxu0 %v5157
    %5225 = vmatprep.subr.bf16.mxu0 %v5156
    %5226 = vmatpush2.bf16.msra.mxu0 %v5155
    %5227 = vmatprep.mubr.bf16.mxu0 %v3413
    %5228 = vmatmul.mubr.bf16.gmra.mxu0 %v3232
    %v5229 = vpop.f32.mrf.mxu0
    %v5230 = vadd.f32 0.0, %v5229
    %v5231 = vpop.f32.mrf.mxu0
    %v5232 = vadd.f32 0.0, %v5231
    %v5233 = vpop.f32.mrf.mxu0
    %v5234 = vadd.f32 0.0, %v5233
    %v5235 = vpop.f32.mrf.mxu0
    %v5236 = vadd.f32 0.0, %v5235
    %5237 = vmatprep.mubr.bf16.mxu0 %v3416
    %5238 = vmatmul.mubr.bf16.gmra.mxu0 %v3234
    %v5239 = vpop.f32.mrf.mxu0
    %v5240 = vadd.f32 0.0, %v5239
    %v5241 = vpop.f32.mrf.mxu0
    %v5242 = vadd.f32 0.0, %v5241
    %v5243 = vpop.f32.mrf.mxu0
    %v5244 = vadd.f32 0.0, %v5243
    %v5245 = vpop.f32.mrf.mxu0
    %v5246 = vadd.f32 0.0, %v5245
    %5247 = vmatprep.mubr.bf16.mxu0 %v3419
    %5248 = vmatmul.mubr.bf16.gmra.mxu0 %v3236
    %v5249 = vpop.f32.mrf.mxu0
    %v5250 = vadd.f32 0.0, %v5249
    %v5251 = vpop.f32.mrf.mxu0
    %v5252 = vadd.f32 0.0, %v5251
    %v5253 = vpop.f32.mrf.mxu0
    %v5254 = vadd.f32 0.0, %v5253
    %v5255 = vpop.f32.mrf.mxu0
    %v5256 = vadd.f32 0.0, %v5255
    %5257 = vmatprep.mubr.bf16.mxu0 %v3422
    %5258 = vmatmul.mubr.bf16.gmra.mxu0 %v3238
    %v5259 = vpop.f32.mrf.mxu0
    %v5260 = vadd.f32 0.0, %v5259
    %v5261 = vpop.f32.mrf.mxu0
    %v5262 = vadd.f32 0.0, %v5261
    %v5263 = vpop.f32.mrf.mxu0
    %v5264 = vadd.f32 0.0, %v5263
    %v5265 = vpop.f32.mrf.mxu0
    %v5266 = vadd.f32 0.0, %v5265
    %5267 = vmatprep.mubr.bf16.mxu0 %v4941
    %5268 = vmatmul.mubr.bf16.gmra.mxu0 %v4769
    %v5269 = vpop.f32.mrf.mxu0
    %v5270 = vadd.f32 0.0, %v5269
    %v5271 = vpop.f32.mrf.mxu0
    %v5272 = vadd.f32 0.0, %v5271
    %v5273 = vpop.f32.mrf.mxu0
    %v5274 = vadd.f32 0.0, %v5273
    %v5275 = vpop.f32.mrf.mxu0
    %v5276 = vadd.f32 0.0, %v5275
    %5277 = vdwg.mxu0
    %v5278 = vadd.f32 %v4729, %v4978
    %v5279 = vadd.f32 %v4730, %v4980
    %v5280 = vadd.f32 %v4731, %v4982
    %v5281 = vadd.f32 %v4732, %v4984
    %v5282 = vadd.f32 %v4733, %v4988
    %v5283 = vadd.f32 %v4734, %v4990
    %v5284 = vadd.f32 %v4735, %v4992
    %v5285 = vadd.f32 %v4736, %v4994
    %v5286 = vadd.f32 %v4737, %v4998
    %v5287 = vadd.f32 %v4738, %v5000
    %v5288 = vadd.f32 %v4739, %v5002
    %v5289 = vadd.f32 %v4740, %v5004
    %v5290 = vadd.f32 %v4741, %v5008
    %v5291 = vadd.f32 %v4742, %v5010
    %v5292 = vadd.f32 %v4743, %v5012
    %v5293 = vadd.f32 %v4744, %v5014
    %v5294 = vadd.f32 %v4745, %v5018
    %v5295 = vadd.f32 %v4746, %v5020
    %v5296 = vadd.f32 %v4747, %v5022
    %v5297 = vadd.f32 %v4748, %v5024
    %v5298 = vadd.f32 %v4749, %v5230
    %v5299 = vadd.f32 %v4750, %v5232
    %v5300 = vadd.f32 %v4751, %v5234
    %v5301 = vadd.f32 %v4752, %v5236
    %v5302 = vadd.f32 %v4753, %v5240
    %v5303 = vadd.f32 %v4754, %v5242
    %v5304 = vadd.f32 %v4755, %v5244
    %v5305 = vadd.f32 %v4756, %v5246
    %v5306 = vadd.f32 %v4757, %v5250
    %v5307 = vadd.f32 %v4758, %v5252
    %v5308 = vadd.f32 %v4759, %v5254
    %v5309 = vadd.f32 %v4760, %v5256
    %v5310 = vadd.f32 %v4761, %v5260
    %v5311 = vadd.f32 %v4762, %v5262
    %v5312 = vadd.f32 %v4763, %v5264
    %v5313 = vadd.f32 %v4764, %v5266
    %v5314 = vadd.f32 %v4765, %v5270
    %v5315 = vadd.f32 %v4766, %v5272
    %v5316 = vadd.f32 %v4767, %v5274
    %v5317 = vadd.f32 %v4768, %v5276
    %v5318 = vpack.c.bf16 %v3162, %v3160
    %v5319 = vpack.c.bf16 %v3163, %v3161
    %s5320 = scalar_lea.vmem %s4, 896
    %v5321 = vld [vmem:[%s5320] sm:$0xff]
    %v5322 = vld [vmem:[%s5320 + $0x8] sm:$0xff]
    %v5323 = vld [vmem:[%s5320 + $0x10] sm:$0xff]
    %v5324 = vld [vmem:[%s5320 + $0x18] sm:$0xff]
    %v5325 = vld [vmem:[%s5320 + $0x20] sm:$0xff]
    %v5326 = vld [vmem:[%s5320 + $0x28] sm:$0xff]
    %v5327 = vld [vmem:[%s5320 + $0x30] sm:$0xff]
    %v5328 = vld [vmem:[%s5320 + $0x38] sm:$0xff]
    %v5329 = vld [vmem:[%s5320 + $0x40] sm:$0xff]
    %v5330 = vld [vmem:[%s5320 + $0x48] sm:$0xff]
    %v5331 = vld [vmem:[%s5320 + $0x50] sm:$0xff]
    %v5332 = vld [vmem:[%s5320 + $0x58] sm:$0xff]
    %v5333 = vld [vmem:[%s5320 + $0x60] sm:$0xff]
    %v5334 = vld [vmem:[%s5320 + $0x68] sm:$0xff]
    %v5335 = vld [vmem:[%s5320 + $0x70] sm:$0xff]
    %v5336 = vld [vmem:[%s5320 + $0x78] sm:$0xff]
    %v5337 = vld [vmem:[%s5320 + $0x80] sm:$0xff]
    %v5338 = vld [vmem:[%s5320 + $0x88] sm:$0xff]
    %v5339 = vld [vmem:[%s5320 + $0x90] sm:$0xff]
    %v5340 = vld [vmem:[%s5320 + $0x98] sm:$0xff]
    %v5341 = vld [vmem:[%s5320 + $0xa0] sm:$0xff]
    %v5342 = vld [vmem:[%s5320 + $0xa8] sm:$0xff]
    %v5343 = vld [vmem:[%s5320 + $0xb0] sm:$0xff]
    %v5344 = vld [vmem:[%s5320 + $0xb8] sm:$0xff]
    %v5345 = vld [vmem:[%s5320 + $0xc0] sm:$0xff]
    %v5346 = vld [vmem:[%s5320 + $0xc8] sm:$0xff]
    %v5347 = vld [vmem:[%s5320 + $0xd0] sm:$0xff]
    %v5348 = vld [vmem:[%s5320 + $0xd8] sm:$0xff]
    %v5377 = vunpack.c.l.b16 %v5321
    %v5378 = vunpack.c.h.b16 %v5321
    %v5379 = vunpack.c.l.b16 %v5322
    %v5380 = vunpack.c.h.b16 %v5322
    %v5381 = vunpack.c.l.b16 %v5323
    %v5382 = vunpack.c.h.b16 %v5323
    %v5383 = vunpack.c.l.b16 %v5324
    %v5384 = vunpack.c.h.b16 %v5324
    %v5385 = vunpack.c.l.b16 %v5325
    %v5386 = vunpack.c.h.b16 %v5325
    %v5387 = vunpack.c.l.b16 %v5326
    %v5388 = vunpack.c.h.b16 %v5326
    %v5389 = vunpack.c.l.b16 %v5327
    %v5390 = vunpack.c.h.b16 %v5327
    %v5391 = vunpack.c.l.b16 %v5328
    %v5392 = vunpack.c.h.b16 %v5328
    %v5393 = vunpack.c.l.b16 %v5329
    %v5394 = vunpack.c.h.b16 %v5329
    %v5395 = vunpack.c.l.b16 %v5330
    %v5396 = vunpack.c.h.b16 %v5330
    %v5397 = vunpack.c.l.b16 %v5331
    %v5398 = vunpack.c.h.b16 %v5331
    %v5399 = vunpack.c.l.b16 %v5332
    %v5400 = vunpack.c.h.b16 %v5332
    %v5401 = vunpack.c.l.b16 %v5333
    %v5402 = vunpack.c.h.b16 %v5333
    %v5403 = vunpack.c.l.b16 %v5334
    %v5404 = vunpack.c.h.b16 %v5334
    %v5405 = vunpack.c.l.b16 %v5335
    %v5406 = vunpack.c.h.b16 %v5335
    %v5407 = vunpack.c.l.b16 %v5336
    %v5408 = vunpack.c.h.b16 %v5336
    %v5409 = vunpack.c.l.b16 %v5337
    %v5410 = vunpack.c.h.b16 %v5337
    %v5411 = vunpack.c.l.b16 %v5338
    %v5412 = vunpack.c.h.b16 %v5338
    %v5413 = vunpack.c.l.b16 %v5339
    %v5414 = vunpack.c.h.b16 %v5339
    %v5415 = vunpack.c.l.b16 %v5340
    %v5416 = vunpack.c.h.b16 %v5340
    %v5417 = vunpack.c.l.b16 %v5341
    %v5418 = vunpack.c.h.b16 %v5341
    %v5419 = vunpack.c.l.b16 %v5342
    %v5420 = vunpack.c.h.b16 %v5342
    %v5421 = vunpack.c.l.b16 %v5343
    %v5422 = vunpack.c.h.b16 %v5343
    %v5423 = vunpack.c.l.b16 %v5344
    %v5424 = vunpack.c.h.b16 %v5344
    %v5425 = vunpack.c.l.b16 %v5345
    %v5426 = vunpack.c.h.b16 %v5345
    %v5427 = vunpack.c.l.b16 %v5346
    %v5428 = vunpack.c.h.b16 %v5346
    %v5429 = vunpack.c.l.b16 %v5347
    %v5430 = vunpack.c.h.b16 %v5347
    %v5431 = vunpack.c.l.b16 %v5348
    %v5432 = vunpack.c.h.b16 %v5348
    %v5433 = vpack.c.b16 %v5379, %v5377
    %v5434 = vpack.c.b16 %v5380, %v5378
    %v5435 = vpack.c.b16 %v5383, %v5381
    %v5436 = vpack.c.b16 %v5384, %v5382
    %v5437 = vpack.c.b16 %v5387, %v5385
    %v5438 = vpack.c.b16 %v5388, %v5386
    %v5439 = vpack.c.b16 %v5391, %v5389
    %v5440 = vpack.c.b16 %v5392, %v5390
    %v5441 = vpack.c.b16 %v5395, %v5393
    %v5442 = vpack.c.b16 %v5396, %v5394
    %v5443 = vpack.c.b16 %v5399, %v5397
    %v5444 = vpack.c.b16 %v5400, %v5398
    %v5445 = vpack.c.b16 %v5403, %v5401
    %v5446 = vpack.c.b16 %v5404, %v5402
    %v5447 = vpack.c.b16 %v5407, %v5405
    %v5448 = vpack.c.b16 %v5408, %v5406
    %v5449 = vpack.c.b16 %v5411, %v5409
    %v5450 = vpack.c.b16 %v5412, %v5410
    %v5451 = vpack.c.b16 %v5415, %v5413
    %v5452 = vpack.c.b16 %v5416, %v5414
    %v5453 = vpack.c.b16 %v5419, %v5417
    %v5454 = vpack.c.b16 %v5420, %v5418
    %v5455 = vpack.c.b16 %v5423, %v5421
    %v5456 = vpack.c.b16 %v5424, %v5422
    %v5457 = vpack.c.b16 %v5427, %v5425
    %v5458 = vpack.c.b16 %v5428, %v5426
    %v5459 = vpack.c.b16 %v5431, %v5429
    %v5460 = vpack.c.b16 %v5432, %v5430
    %v5490 = vsel %vm218, %v5319, 0
    %5492 = vmatprep.subr.bf16.mxu0 %v5448
    %5493 = vmatpush1.bf16.msra.mxu0 %v5447
    %5494 = vmatprep.subr.bf16.mxu0 %v5446
    %5495 = vmatpush1.bf16.msra.mxu0 %v5445
    %5496 = vmatprep.subr.bf16.mxu0 %v5444
    %5497 = vmatpush1.bf16.msra.mxu0 %v5443
    %5498 = vmatprep.subr.bf16.mxu0 %v5442
    %5499 = vmatpush1.bf16.msra.mxu0 %v5441
    %5500 = vmatprep.subr.bf16.mxu0 %v5440
    %5501 = vmatpush1.bf16.msra.mxu0 %v5439
    %5502 = vmatprep.subr.bf16.mxu0 %v5438
    %5503 = vmatpush1.bf16.msra.mxu0 %v5437
    %5504 = vmatprep.subr.bf16.mxu0 %v5436
    %5505 = vmatpush1.bf16.msra.mxu0 %v5435
    %5506 = vmatprep.subr.bf16.mxu0 %v5434
    %5507 = vmatpush1.bf16.msra.mxu0 %v5433
    %5508 = vmatprep.subr.bf16.mxu0 0
    %5509 = vmatpush2.bf16.msra.mxu0 0
    %5510 = vmatprep.subr.bf16.mxu0 0
    %5511 = vmatpush2.bf16.msra.mxu0 0
    %5512 = vmatprep.subr.bf16.mxu0 %v5460
    %5513 = vmatpush2.bf16.msra.mxu0 %v5459
    %5514 = vmatprep.subr.bf16.mxu0 %v5458
    %5515 = vmatpush2.bf16.msra.mxu0 %v5457
    %5516 = vmatprep.subr.bf16.mxu0 %v5456
    %5517 = vmatpush2.bf16.msra.mxu0 %v5455
    %5518 = vmatprep.subr.bf16.mxu0 %v5454
    %5519 = vmatpush2.bf16.msra.mxu0 %v5453
    %5520 = vmatprep.subr.bf16.mxu0 %v5452
    %5521 = vmatpush2.bf16.msra.mxu0 %v5451
    %5522 = vmatprep.subr.bf16.mxu0 %v5450
    %5523 = vmatpush2.bf16.msra.mxu0 %v5449
    %5524 = vmatprep.mubr.bf16.mxu0 %v3906
    %5525 = vmatmul.mubr.bf16.gmra.mxu0 %v3168
    %v5526 = vpop.f32.mrf.mxu0
    %v5527 = vadd.f32 0.0, %v5526
    %v5528 = vpop.f32.mrf.mxu0
    %v5529 = vadd.f32 0.0, %v5528
    %v5530 = vpop.f32.mrf.mxu0
    %v5531 = vadd.f32 0.0, %v5530
    %v5532 = vpop.f32.mrf.mxu0
    %v5533 = vadd.f32 0.0, %v5532
    %5534 = vmatprep.mubr.bf16.mxu0 %v3909
    %5535 = vmatmul.mubr.bf16.gmra.mxu0 %v3170
    %v5536 = vpop.f32.mrf.mxu0
    %v5537 = vadd.f32 0.0, %v5536
    %v5538 = vpop.f32.mrf.mxu0
    %v5539 = vadd.f32 0.0, %v5538
    %v5540 = vpop.f32.mrf.mxu0
    %v5541 = vadd.f32 0.0, %v5540
    %v5542 = vpop.f32.mrf.mxu0
    %v5543 = vadd.f32 0.0, %v5542
    %5544 = vmatprep.mubr.bf16.mxu0 %v3912
    %5545 = vmatmul.mubr.bf16.gmra.mxu0 %v3172
    %v5546 = vpop.f32.mrf.mxu0
    %v5547 = vadd.f32 0.0, %v5546
    %v5548 = vpop.f32.mrf.mxu0
    %v5549 = vadd.f32 0.0, %v5548
    %v5550 = vpop.f32.mrf.mxu0
    %v5551 = vadd.f32 0.0, %v5550
    %v5552 = vpop.f32.mrf.mxu0
    %v5553 = vadd.f32 0.0, %v5552
    %5554 = vmatprep.mubr.bf16.mxu0 %v4392
    %5555 = vmatmul.mubr.bf16.gmra.mxu0 %v4220
    %v5556 = vpop.f32.mrf.mxu0
    %v5557 = vadd.f32 0.0, %v5556
    %v5558 = vpop.f32.mrf.mxu0
    %v5559 = vadd.f32 0.0, %v5558
    %v5560 = vpop.f32.mrf.mxu0
    %v5561 = vadd.f32 0.0, %v5560
    %v5562 = vpop.f32.mrf.mxu0
    %v5563 = vadd.f32 0.0, %v5562
    %5564 = vmatprep.mubr.bf16.mxu0 %v5490
    %5565 = vmatmul.mubr.bf16.gmra.mxu0 %v5318
    %v5566 = vpop.f32.mrf.mxu0
    %v5567 = vadd.f32 0.0, %v5566
    %v5568 = vpop.f32.mrf.mxu0
    %v5569 = vadd.f32 0.0, %v5568
    %v5570 = vpop.f32.mrf.mxu0
    %v5571 = vadd.f32 0.0, %v5570
    %v5572 = vpop.f32.mrf.mxu0
    %v5573 = vadd.f32 0.0, %v5572
    %5574 = vdwg.mxu0
    %s5575 = scalar_lea.vmem %s5, 896
    %v5576 = vld [vmem:[%s5575] sm:$0xff]
    %v5577 = vld [vmem:[%s5575 + $0x8] sm:$0xff]
    %v5578 = vld [vmem:[%s5575 + $0x10] sm:$0xff]
    %v5579 = vld [vmem:[%s5575 + $0x18] sm:$0xff]
    %v5580 = vld [vmem:[%s5575 + $0x20] sm:$0xff]
    %v5581 = vld [vmem:[%s5575 + $0x28] sm:$0xff]
    %v5582 = vld [vmem:[%s5575 + $0x30] sm:$0xff]
    %v5583 = vld [vmem:[%s5575 + $0x38] sm:$0xff]
    %v5584 = vld [vmem:[%s5575 + $0x40] sm:$0xff]
    %v5585 = vld [vmem:[%s5575 + $0x48] sm:$0xff]
    %v5586 = vld [vmem:[%s5575 + $0x50] sm:$0xff]
    %v5587 = vld [vmem:[%s5575 + $0x58] sm:$0xff]
    %v5588 = vld [vmem:[%s5575 + $0x60] sm:$0xff]
    %v5589 = vld [vmem:[%s5575 + $0x68] sm:$0xff]
    %v5590 = vld [vmem:[%s5575 + $0x70] sm:$0xff]
    %v5591 = vld [vmem:[%s5575 + $0x78] sm:$0xff]
    %v5592 = vld [vmem:[%s5575 + $0x80] sm:$0xff]
    %v5593 = vld [vmem:[%s5575 + $0x88] sm:$0xff]
    %v5594 = vld [vmem:[%s5575 + $0x90] sm:$0xff]
    %v5595 = vld [vmem:[%s5575 + $0x98] sm:$0xff]
    %v5596 = vld [vmem:[%s5575 + $0xa0] sm:$0xff]
    %v5597 = vld [vmem:[%s5575 + $0xa8] sm:$0xff]
    %v5598 = vld [vmem:[%s5575 + $0xb0] sm:$0xff]
    %v5599 = vld [vmem:[%s5575 + $0xb8] sm:$0xff]
    %v5600 = vld [vmem:[%s5575 + $0xc0] sm:$0xff]
    %v5601 = vld [vmem:[%s5575 + $0xc8] sm:$0xff]
    %v5602 = vld [vmem:[%s5575 + $0xd0] sm:$0xff]
    %v5603 = vld [vmem:[%s5575 + $0xd8] sm:$0xff]
    %v5632 = vunpack.c.l.b16 %v5576
    %v5633 = vunpack.c.h.b16 %v5576
    %v5634 = vunpack.c.l.b16 %v5577
    %v5635 = vunpack.c.h.b16 %v5577
    %v5636 = vunpack.c.l.b16 %v5578
    %v5637 = vunpack.c.h.b16 %v5578
    %v5638 = vunpack.c.l.b16 %v5579
    %v5639 = vunpack.c.h.b16 %v5579
    %v5640 = vunpack.c.l.b16 %v5580
    %v5641 = vunpack.c.h.b16 %v5580
    %v5642 = vunpack.c.l.b16 %v5581
    %v5643 = vunpack.c.h.b16 %v5581
    %v5644 = vunpack.c.l.b16 %v5582
    %v5645 = vunpack.c.h.b16 %v5582
    %v5646 = vunpack.c.l.b16 %v5583
    %v5647 = vunpack.c.h.b16 %v5583
    %v5648 = vunpack.c.l.b16 %v5584
    %v5649 = vunpack.c.h.b16 %v5584
    %v5650 = vunpack.c.l.b16 %v5585
    %v5651 = vunpack.c.h.b16 %v5585
    %v5652 = vunpack.c.l.b16 %v5586
    %v5653 = vunpack.c.h.b16 %v5586
    %v5654 = vunpack.c.l.b16 %v5587
    %v5655 = vunpack.c.h.b16 %v5587
    %v5656 = vunpack.c.l.b16 %v5588
    %v5657 = vunpack.c.h.b16 %v5588
    %v5658 = vunpack.c.l.b16 %v5589
    %v5659 = vunpack.c.h.b16 %v5589
    %v5660 = vunpack.c.l.b16 %v5590
    %v5661 = vunpack.c.h.b16 %v5590
    %v5662 = vunpack.c.l.b16 %v5591
    %v5663 = vunpack.c.h.b16 %v5591
    %v5664 = vunpack.c.l.b16 %v5592
    %v5665 = vunpack.c.h.b16 %v5592
    %v5666 = vunpack.c.l.b16 %v5593
    %v5667 = vunpack.c.h.b16 %v5593
    %v5668 = vunpack.c.l.b16 %v5594
    %v5669 = vunpack.c.h.b16 %v5594
    %v5670 = vunpack.c.l.b16 %v5595
    %v5671 = vunpack.c.h.b16 %v5595
    %v5672 = vunpack.c.l.b16 %v5596
    %v5673 = vunpack.c.h.b16 %v5596
    %v5674 = vunpack.c.l.b16 %v5597
    %v5675 = vunpack.c.h.b16 %v5597
    %v5676 = vunpack.c.l.b16 %v5598
    %v5677 = vunpack.c.h.b16 %v5598
    %v5678 = vunpack.c.l.b16 %v5599
    %v5679 = vunpack.c.h.b16 %v5599
    %v5680 = vunpack.c.l.b16 %v5600
    %v5681 = vunpack.c.h.b16 %v5600
    %v5682 = vunpack.c.l.b16 %v5601
    %v5683 = vunpack.c.h.b16 %v5601
    %v5684 = vunpack.c.l.b16 %v5602
    %v5685 = vunpack.c.h.b16 %v5602
    %v5686 = vunpack.c.l.b16 %v5603
    %v5687 = vunpack.c.h.b16 %v5603
    %v5688 = vpack.c.b16 %v5634, %v5632
    %v5689 = vpack.c.b16 %v5635, %v5633
    %v5690 = vpack.c.b16 %v5638, %v5636
    %v5691 = vpack.c.b16 %v5639, %v5637
    %v5692 = vpack.c.b16 %v5642, %v5640
    %v5693 = vpack.c.b16 %v5643, %v5641
    %v5694 = vpack.c.b16 %v5646, %v5644
    %v5695 = vpack.c.b16 %v5647, %v5645
    %v5696 = vpack.c.b16 %v5650, %v5648
    %v5697 = vpack.c.b16 %v5651, %v5649
    %v5698 = vpack.c.b16 %v5654, %v5652
    %v5699 = vpack.c.b16 %v5655, %v5653
    %v5700 = vpack.c.b16 %v5658, %v5656
    %v5701 = vpack.c.b16 %v5659, %v5657
    %v5702 = vpack.c.b16 %v5662, %v5660
    %v5703 = vpack.c.b16 %v5663, %v5661
    %v5704 = vpack.c.b16 %v5666, %v5664
    %v5705 = vpack.c.b16 %v5667, %v5665
    %v5706 = vpack.c.b16 %v5670, %v5668
    %v5707 = vpack.c.b16 %v5671, %v5669
    %v5708 = vpack.c.b16 %v5674, %v5672
    %v5709 = vpack.c.b16 %v5675, %v5673
    %v5710 = vpack.c.b16 %v5678, %v5676
    %v5711 = vpack.c.b16 %v5679, %v5677
    %v5712 = vpack.c.b16 %v5682, %v5680
    %v5713 = vpack.c.b16 %v5683, %v5681
    %v5714 = vpack.c.b16 %v5686, %v5684
    %v5715 = vpack.c.b16 %v5687, %v5685
    %5744 = vmatprep.subr.bf16.mxu0 %v5703
    %5745 = vmatpush1.bf16.msra.mxu0 %v5702
    %5746 = vmatprep.subr.bf16.mxu0 %v5701
    %5747 = vmatpush1.bf16.msra.mxu0 %v5700
    %5748 = vmatprep.subr.bf16.mxu0 %v5699
    %5749 = vmatpush1.bf16.msra.mxu0 %v5698
    %5750 = vmatprep.subr.bf16.mxu0 %v5697
    %5751 = vmatpush1.bf16.msra.mxu0 %v5696
    %5752 = vmatprep.subr.bf16.mxu0 %v5695
    %5753 = vmatpush1.bf16.msra.mxu0 %v5694
    %5754 = vmatprep.subr.bf16.mxu0 %v5693
    %5755 = vmatpush1.bf16.msra.mxu0 %v5692
    %5756 = vmatprep.subr.bf16.mxu0 %v5691
    %5757 = vmatpush1.bf16.msra.mxu0 %v5690
    %5758 = vmatprep.subr.bf16.mxu0 %v5689
    %5759 = vmatpush1.bf16.msra.mxu0 %v5688
    %5760 = vmatprep.subr.bf16.mxu0 0
    %5761 = vmatpush2.bf16.msra.mxu0 0
    %5762 = vmatprep.subr.bf16.mxu0 0
    %5763 = vmatpush2.bf16.msra.mxu0 0
    %5764 = vmatprep.subr.bf16.mxu0 %v5715
    %5765 = vmatpush2.bf16.msra.mxu0 %v5714
    %5766 = vmatprep.subr.bf16.mxu0 %v5713
    %5767 = vmatpush2.bf16.msra.mxu0 %v5712
    %5768 = vmatprep.subr.bf16.mxu0 %v5711
    %5769 = vmatpush2.bf16.msra.mxu0 %v5710
    %5770 = vmatprep.subr.bf16.mxu0 %v5709
    %5771 = vmatpush2.bf16.msra.mxu0 %v5708
    %5772 = vmatprep.subr.bf16.mxu0 %v5707
    %5773 = vmatpush2.bf16.msra.mxu0 %v5706
    %5774 = vmatprep.subr.bf16.mxu0 %v5705
    %5775 = vmatpush2.bf16.msra.mxu0 %v5704
    %5776 = vmatprep.mubr.bf16.mxu0 %v3906
    %5777 = vmatmul.mubr.bf16.gmra.mxu0 %v3168
    %v5778 = vpop.f32.mrf.mxu0
    %v5779 = vadd.f32 0.0, %v5778
    %v5780 = vpop.f32.mrf.mxu0
    %v5781 = vadd.f32 0.0, %v5780
    %v5782 = vpop.f32.mrf.mxu0
    %v5783 = vadd.f32 0.0, %v5782
    %v5784 = vpop.f32.mrf.mxu0
    %v5785 = vadd.f32 0.0, %v5784
    %5786 = vmatprep.mubr.bf16.mxu0 %v3909
    %5787 = vmatmul.mubr.bf16.gmra.mxu0 %v3170
    %v5788 = vpop.f32.mrf.mxu0
    %v5789 = vadd.f32 0.0, %v5788
    %v5790 = vpop.f32.mrf.mxu0
    %v5791 = vadd.f32 0.0, %v5790
    %v5792 = vpop.f32.mrf.mxu0
    %v5793 = vadd.f32 0.0, %v5792
    %v5794 = vpop.f32.mrf.mxu0
    %v5795 = vadd.f32 0.0, %v5794
    %5796 = vmatprep.mubr.bf16.mxu0 %v3912
    %5797 = vmatmul.mubr.bf16.gmra.mxu0 %v3172
    %v5798 = vpop.f32.mrf.mxu0
    %v5799 = vadd.f32 0.0, %v5798
    %v5800 = vpop.f32.mrf.mxu0
    %v5801 = vadd.f32 0.0, %v5800
    %v5802 = vpop.f32.mrf.mxu0
    %v5803 = vadd.f32 0.0, %v5802
    %v5804 = vpop.f32.mrf.mxu0
    %v5805 = vadd.f32 0.0, %v5804
    %5806 = vmatprep.mubr.bf16.mxu0 %v4392
    %5807 = vmatmul.mubr.bf16.gmra.mxu0 %v4220
    %v5808 = vpop.f32.mrf.mxu0
    %v5809 = vadd.f32 0.0, %v5808
    %v5810 = vpop.f32.mrf.mxu0
    %v5811 = vadd.f32 0.0, %v5810
    %v5812 = vpop.f32.mrf.mxu0
    %v5813 = vadd.f32 0.0, %v5812
    %v5814 = vpop.f32.mrf.mxu0
    %v5815 = vadd.f32 0.0, %v5814
    %5816 = vmatprep.mubr.bf16.mxu0 %v5490
    %5817 = vmatmul.mubr.bf16.gmra.mxu0 %v5318
    %v5818 = vpop.f32.mrf.mxu0
    %v5819 = vadd.f32 0.0, %v5818
    %v5820 = vpop.f32.mrf.mxu0
    %v5821 = vadd.f32 0.0, %v5820
    %v5822 = vpop.f32.mrf.mxu0
    %v5823 = vadd.f32 0.0, %v5822
    %v5824 = vpop.f32.mrf.mxu0
    %v5825 = vadd.f32 0.0, %v5824
    %5826 = vdwg.mxu0
    %v5827 = vadd.f32 %v5278, %v5527
    %v5828 = vadd.f32 %v5279, %v5529
    %v5829 = vadd.f32 %v5280, %v5531
    %v5830 = vadd.f32 %v5281, %v5533
    %v5831 = vadd.f32 %v5282, %v5537
    %v5832 = vadd.f32 %v5283, %v5539
    %v5833 = vadd.f32 %v5284, %v5541
    %v5834 = vadd.f32 %v5285, %v5543
    %v5835 = vadd.f32 %v5286, %v5547
    %v5836 = vadd.f32 %v5287, %v5549
    %v5837 = vadd.f32 %v5288, %v5551
    %v5838 = vadd.f32 %v5289, %v5553
    %v5839 = vadd.f32 %v5290, %v5557
    %v5840 = vadd.f32 %v5291, %v5559
    %v5841 = vadd.f32 %v5292, %v5561
    %v5842 = vadd.f32 %v5293, %v5563
    %v5843 = vadd.f32 %v5294, %v5567
    %v5844 = vadd.f32 %v5295, %v5569
    %v5845 = vadd.f32 %v5296, %v5571
    %v5846 = vadd.f32 %v5297, %v5573
    %v5847 = vadd.f32 %v5298, %v5779
    %v5848 = vadd.f32 %v5299, %v5781
    %v5849 = vadd.f32 %v5300, %v5783
    %v5850 = vadd.f32 %v5301, %v5785
    %v5851 = vadd.f32 %v5302, %v5789
    %v5852 = vadd.f32 %v5303, %v5791
    %v5853 = vadd.f32 %v5304, %v5793
    %v5854 = vadd.f32 %v5305, %v5795
    %v5855 = vadd.f32 %v5306, %v5799
    %v5856 = vadd.f32 %v5307, %v5801
    %v5857 = vadd.f32 %v5308, %v5803
    %v5858 = vadd.f32 %v5309, %v5805
    %v5859 = vadd.f32 %v5310, %v5809
    %v5860 = vadd.f32 %v5311, %v5811
    %v5861 = vadd.f32 %v5312, %v5813
    %v5862 = vadd.f32 %v5313, %v5815
    %v5863 = vadd.f32 %v5314, %v5819
    %v5864 = vadd.f32 %v5315, %v5821
    %v5865 = vadd.f32 %v5316, %v5823
    %v5866 = vadd.f32 %v5317, %v5825
    %v5867 = vmax.f32 %v5827, %v5847
    %v5868 = vmax.f32 %v5828, %v5848
    %v5869 = vmax.f32 %v5829, %v5849
    %v5870 = vmax.f32 %v5830, %v5850
    %v5871 = vmax.f32 %v5831, %v5851
    %v5872 = vmax.f32 %v5832, %v5852
    %v5873 = vmax.f32 %v5833, %v5853
    %v5874 = vmax.f32 %v5834, %v5854
    %v5875 = vmax.f32 %v5835, %v5855
    %v5876 = vmax.f32 %v5836, %v5856
    %v5877 = vmax.f32 %v5837, %v5857
    %v5878 = vmax.f32 %v5838, %v5858
    %v5879 = vmax.f32 %v5839, %v5859
    %v5880 = vmax.f32 %v5840, %v5860
    %v5881 = vmax.f32 %v5841, %v5861
    %v5882 = vmax.f32 %v5842, %v5862
    %v5883 = vmax.f32 %v5843, %v5863
    %v5884 = vmax.f32 %v5844, %v5864
    %v5885 = vmax.f32 %v5845, %v5865
    %v5886 = vmax.f32 %v5846, %v5866
    %v5887 = vmax.f32 %v5867, %v5869
    %v5888 = vmax.f32 %v5868, %v5870
    %v5889 = vmax.f32 %v5871, %v5873
    %v5890 = vmax.f32 %v5872, %v5874
    %v5891 = vmax.f32 %v5875, %v5877
    %v5892 = vmax.f32 %v5876, %v5878
    %v5893 = vmax.f32 %v5879, %v5881
    %v5894 = vmax.f32 %v5880, %v5882
    %v5895 = vmax.f32 %v5883, %v5885
    %v5896 = vmax.f32 %v5884, %v5886
    %v5897 = vld [vmem:[%s6] sm:$0x3]
    %v5899 = vlaneseq
    %v5900 = vshrl.u32 %v5899, 7
    %v5901 = vsub.s32 0, %v5900
    %v5902 = vrot.slane %v5897, %v5901
    %v5903 = vlaneseq
    %v5904 = vshrl.u32 %v5903, 7
    %v5905 = vsub.s32 1, %v5904
    %v5906 = vrot.slane %v5897, %v5905
    %v5909 = vadd.f32 %v5887, %v5902
    %v5910 = vadd.f32 %v5888, %v5906
    %v5911 = vadd.f32 %v5889, %v5902
    %v5912 = vadd.f32 %v5890, %v5906
    %v5913 = vadd.f32 %v5891, %v5902
    %v5914 = vadd.f32 %v5892, %v5906
    %v5915 = vadd.f32 %v5893, %v5902
    %v5916 = vadd.f32 %v5894, %v5906
    %v5917 = vadd.f32 %v5895, %v5902
    %v5918 = vadd.f32 %v5896, %v5906
    %v5919 = vmax.f32 %v5909, 0.0
    %v5920 = vmax.f32 %v5910, 0.0
    %v5921 = vmax.f32 %v5911, 0.0
    %v5922 = vmax.f32 %v5912, 0.0
    %v5923 = vmax.f32 %v5913, 0.0
    %v5924 = vmax.f32 %v5914, 0.0
    %v5925 = vmax.f32 %v5915, 0.0
    %v5926 = vmax.f32 %v5916, 0.0
    %v5927 = vmax.f32 %v5917, 0.0
    %v5928 = vmax.f32 %v5918, 0.0
    %v5929 = vpack.c.bf16 %v5919, %v5919
    %v5930 = vpack.c.bf16 %v5920, %v5920
    %v5931 = vld [vmem:[%s7] sm:$0xff]
    %v5932 = vld [vmem:[%s7 + $0x8] sm:$0xff]
    %v5933 = vld [vmem:[%s7 + $0x10] sm:$0xff]
    %v5934 = vld [vmem:[%s7 + $0x18] sm:$0xff]
    %v5935 = vld [vmem:[%s7 + $0x20] sm:$0xff]
    %v5936 = vld [vmem:[%s7 + $0x28] sm:$0xff]
    %v5937 = vld [vmem:[%s7 + $0x30] sm:$0xff]
    %v5938 = vld [vmem:[%s7 + $0x38] sm:$0xff]
    %v5939 = vld [vmem:[%s7 + $0x40] sm:$0xff]
    %v5940 = vld [vmem:[%s7 + $0x48] sm:$0xff]
    %v5941 = vld [vmem:[%s7 + $0x50] sm:$0xff]
    %v5942 = vld [vmem:[%s7 + $0x58] sm:$0xff]
    %v5943 = vld [vmem:[%s7 + $0x60] sm:$0xff]
    %v5944 = vld [vmem:[%s7 + $0x68] sm:$0xff]
    %v5945 = vld [vmem:[%s7 + $0x70] sm:$0xff]
    %v5946 = vld [vmem:[%s7 + $0x78] sm:$0xff]
    %v5947 = vld [vmem:[%s7 + $0x80] sm:$0xff]
    %v5948 = vld [vmem:[%s7 + $0x88] sm:$0xff]
    %v5949 = vld [vmem:[%s7 + $0x90] sm:$0xff]
    %v5950 = vld [vmem:[%s7 + $0x98] sm:$0xff]
    %v5951 = vld [vmem:[%s7 + $0xa0] sm:$0xff]
    %v5952 = vld [vmem:[%s7 + $0xa8] sm:$0xff]
    %v5953 = vld [vmem:[%s7 + $0xb0] sm:$0xff]
    %v5954 = vld [vmem:[%s7 + $0xb8] sm:$0xff]
    %v5955 = vld [vmem:[%s7 + $0xc0] sm:$0xff]
    %v5956 = vld [vmem:[%s7 + $0xc8] sm:$0xff]
    %v5957 = vld [vmem:[%s7 + $0xd0] sm:$0xff]
    %v5958 = vld [vmem:[%s7 + $0xd8] sm:$0xff]
    %v5959 = vld [vmem:[%s7 + $0xe0] sm:$0xff]
    %v5960 = vld [vmem:[%s7 + $0xe8] sm:$0xff]
    %v5961 = vld [vmem:[%s7 + $0xf0] sm:$0xff]
    %v5962 = vld [vmem:[%s7 + $0xf8] sm:$0xff]
    %v5963 = vld [vmem:[%s7 + $0x100] sm:$0xff]
    %v5964 = vld [vmem:[%s7 + $0x108] sm:$0xff]
    %v5965 = vld [vmem:[%s7 + $0x110] sm:$0xff]
    %v5966 = vld [vmem:[%s7 + $0x118] sm:$0xff]
    %v5967 = vld [vmem:[%s7 + $0x120] sm:$0xff]
    %v5968 = vld [vmem:[%s7 + $0x128] sm:$0xff]
    %v5969 = vld [vmem:[%s7 + $0x130] sm:$0xff]
    %v5970 = vld [vmem:[%s7 + $0x138] sm:$0xff]
    %v5971 = vpack.c.bf16 %v5921, %v5921
    %v5972 = vpack.c.bf16 %v5922, %v5922
    %s5973 = scalar_lea.vmem %s7, 320
    %v5974 = vld [vmem:[%s5973] sm:$0xff]
    %v5975 = vld [vmem:[%s5973 + $0x8] sm:$0xff]
    %v5976 = vld [vmem:[%s5973 + $0x10] sm:$0xff]
    %v5977 = vld [vmem:[%s5973 + $0x18] sm:$0xff]
    %v5978 = vld [vmem:[%s5973 + $0x20] sm:$0xff]
    %v5979 = vld [vmem:[%s5973 + $0x28] sm:$0xff]
    %v5980 = vld [vmem:[%s5973 + $0x30] sm:$0xff]
    %v5981 = vld [vmem:[%s5973 + $0x38] sm:$0xff]
    %v5982 = vld [vmem:[%s5973 + $0x40] sm:$0xff]
    %v5983 = vld [vmem:[%s5973 + $0x48] sm:$0xff]
    %v5984 = vld [vmem:[%s5973 + $0x50] sm:$0xff]
    %v5985 = vld [vmem:[%s5973 + $0x58] sm:$0xff]
    %v5986 = vld [vmem:[%s5973 + $0x60] sm:$0xff]
    %v5987 = vld [vmem:[%s5973 + $0x68] sm:$0xff]
    %v5988 = vld [vmem:[%s5973 + $0x70] sm:$0xff]
    %v5989 = vld [vmem:[%s5973 + $0x78] sm:$0xff]
    %v5990 = vld [vmem:[%s5973 + $0x80] sm:$0xff]
    %v5991 = vld [vmem:[%s5973 + $0x88] sm:$0xff]
    %v5992 = vld [vmem:[%s5973 + $0x90] sm:$0xff]
    %v5993 = vld [vmem:[%s5973 + $0x98] sm:$0xff]
    %v5994 = vld [vmem:[%s5973 + $0xa0] sm:$0xff]
    %v5995 = vld [vmem:[%s5973 + $0xa8] sm:$0xff]
    %v5996 = vld [vmem:[%s5973 + $0xb0] sm:$0xff]
    %v5997 = vld [vmem:[%s5973 + $0xb8] sm:$0xff]
    %v5998 = vld [vmem:[%s5973 + $0xc0] sm:$0xff]
    %v5999 = vld [vmem:[%s5973 + $0xc8] sm:$0xff]
    %v6000 = vld [vmem:[%s5973 + $0xd0] sm:$0xff]
    %v6001 = vld [vmem:[%s5973 + $0xd8] sm:$0xff]
    %v6002 = vld [vmem:[%s5973 + $0xe0] sm:$0xff]
    %v6003 = vld [vmem:[%s5973 + $0xe8] sm:$0xff]
    %v6004 = vld [vmem:[%s5973 + $0xf0] sm:$0xff]
    %v6005 = vld [vmem:[%s5973 + $0xf8] sm:$0xff]
    %v6006 = vld [vmem:[%s5973 + $0x100] sm:$0xff]
    %v6007 = vld [vmem:[%s5973 + $0x108] sm:$0xff]
    %v6008 = vld [vmem:[%s5973 + $0x110] sm:$0xff]
    %v6009 = vld [vmem:[%s5973 + $0x118] sm:$0xff]
    %v6010 = vld [vmem:[%s5973 + $0x120] sm:$0xff]
    %v6011 = vld [vmem:[%s5973 + $0x128] sm:$0xff]
    %v6012 = vld [vmem:[%s5973 + $0x130] sm:$0xff]
    %v6013 = vld [vmem:[%s5973 + $0x138] sm:$0xff]
    %v6054 = vunpack.c.l.b16 %v5974
    %v6055 = vunpack.c.h.b16 %v5974
    %v6056 = vunpack.c.l.b16 %v5975
    %v6057 = vunpack.c.h.b16 %v5975
    %v6058 = vunpack.c.l.b16 %v5976
    %v6059 = vunpack.c.h.b16 %v5976
    %v6060 = vunpack.c.l.b16 %v5977
    %v6061 = vunpack.c.h.b16 %v5977
    %v6062 = vunpack.c.l.b16 %v5978
    %v6063 = vunpack.c.h.b16 %v5978
    %v6064 = vunpack.c.l.b16 %v5979
    %v6065 = vunpack.c.h.b16 %v5979
    %v6066 = vunpack.c.l.b16 %v5980
    %v6067 = vunpack.c.h.b16 %v5980
    %v6068 = vunpack.c.l.b16 %v5981
    %v6069 = vunpack.c.h.b16 %v5981
    %v6070 = vunpack.c.l.b16 %v5982
    %v6071 = vunpack.c.h.b16 %v5982
    %v6072 = vunpack.c.l.b16 %v5983
    %v6073 = vunpack.c.h.b16 %v5983
    %v6074 = vunpack.c.l.b16 %v5984
    %v6075 = vunpack.c.h.b16 %v5984
    %v6076 = vunpack.c.l.b16 %v5985
    %v6077 = vunpack.c.h.b16 %v5985
    %v6078 = vunpack.c.l.b16 %v5986
    %v6079 = vunpack.c.h.b16 %v5986
    %v6080 = vunpack.c.l.b16 %v5987
    %v6081 = vunpack.c.h.b16 %v5987
    %v6082 = vunpack.c.l.b16 %v5988
    %v6083 = vunpack.c.h.b16 %v5988
    %v6084 = vunpack.c.l.b16 %v5989
    %v6085 = vunpack.c.h.b16 %v5989
    %v6086 = vunpack.c.l.b16 %v5990
    %v6087 = vunpack.c.h.b16 %v5990
    %v6088 = vunpack.c.l.b16 %v5991
    %v6089 = vunpack.c.h.b16 %v5991
    %v6090 = vunpack.c.l.b16 %v5992
    %v6091 = vunpack.c.h.b16 %v5992
    %v6092 = vunpack.c.l.b16 %v5993
    %v6093 = vunpack.c.h.b16 %v5993
    %v6094 = vunpack.c.l.b16 %v5994
    %v6095 = vunpack.c.h.b16 %v5994
    %v6096 = vunpack.c.l.b16 %v5995
    %v6097 = vunpack.c.h.b16 %v5995
    %v6098 = vunpack.c.l.b16 %v5996
    %v6099 = vunpack.c.h.b16 %v5996
    %v6100 = vunpack.c.l.b16 %v5997
    %v6101 = vunpack.c.h.b16 %v5997
    %v6102 = vunpack.c.l.b16 %v5998
    %v6103 = vunpack.c.h.b16 %v5998
    %v6104 = vunpack.c.l.b16 %v5999
    %v6105 = vunpack.c.h.b16 %v5999
    %v6106 = vunpack.c.l.b16 %v6000
    %v6107 = vunpack.c.h.b16 %v6000
    %v6108 = vunpack.c.l.b16 %v6001
    %v6109 = vunpack.c.h.b16 %v6001
    %v6110 = vunpack.c.l.b16 %v6002
    %v6111 = vunpack.c.h.b16 %v6002
    %v6112 = vunpack.c.l.b16 %v6003
    %v6113 = vunpack.c.h.b16 %v6003
    %v6114 = vunpack.c.l.b16 %v6004
    %v6115 = vunpack.c.h.b16 %v6004
    %v6116 = vunpack.c.l.b16 %v6005
    %v6117 = vunpack.c.h.b16 %v6005
    %v6118 = vunpack.c.l.b16 %v6006
    %v6119 = vunpack.c.h.b16 %v6006
    %v6120 = vunpack.c.l.b16 %v6007
    %v6121 = vunpack.c.h.b16 %v6007
    %v6122 = vunpack.c.l.b16 %v6008
    %v6123 = vunpack.c.h.b16 %v6008
    %v6124 = vunpack.c.l.b16 %v6009
    %v6125 = vunpack.c.h.b16 %v6009
    %v6126 = vunpack.c.l.b16 %v6010
    %v6127 = vunpack.c.h.b16 %v6010
    %v6128 = vunpack.c.l.b16 %v6011
    %v6129 = vunpack.c.h.b16 %v6011
    %v6130 = vunpack.c.l.b16 %v6012
    %v6131 = vunpack.c.h.b16 %v6012
    %v6132 = vunpack.c.l.b16 %v6013
    %v6133 = vunpack.c.h.b16 %v6013
    %v6134 = vpack.c.b16 %v6058, %v6054
    %v6135 = vpack.c.b16 %v6059, %v6055
    %v6136 = vpack.c.b16 %v6060, %v6056
    %v6137 = vpack.c.b16 %v6061, %v6057
    %v6138 = vpack.c.b16 %v6066, %v6062
    %v6139 = vpack.c.b16 %v6067, %v6063
    %v6140 = vpack.c.b16 %v6068, %v6064
    %v6141 = vpack.c.b16 %v6069, %v6065
    %v6142 = vpack.c.b16 %v6074, %v6070
    %v6143 = vpack.c.b16 %v6075, %v6071
    %v6144 = vpack.c.b16 %v6076, %v6072
    %v6145 = vpack.c.b16 %v6077, %v6073
    %v6146 = vpack.c.b16 %v6082, %v6078
    %v6147 = vpack.c.b16 %v6083, %v6079
    %v6148 = vpack.c.b16 %v6084, %v6080
    %v6149 = vpack.c.b16 %v6085, %v6081
    %v6150 = vpack.c.b16 %v6090, %v6086
    %v6151 = vpack.c.b16 %v6091, %v6087
    %v6152 = vpack.c.b16 %v6092, %v6088
    %v6153 = vpack.c.b16 %v6093, %v6089
    %v6154 = vpack.c.b16 %v6098, %v6094
    %v6155 = vpack.c.b16 %v6099, %v6095
    %v6156 = vpack.c.b16 %v6100, %v6096
    %v6157 = vpack.c.b16 %v6101, %v6097
    %v6158 = vpack.c.b16 %v6106, %v6102
    %v6159 = vpack.c.b16 %v6107, %v6103
    %v6160 = vpack.c.b16 %v6108, %v6104
    %v6161 = vpack.c.b16 %v6109, %v6105
    %v6162 = vpack.c.b16 %v6114, %v6110
    %v6163 = vpack.c.b16 %v6115, %v6111
    %v6164 = vpack.c.b16 %v6116, %v6112
    %v6165 = vpack.c.b16 %v6117, %v6113
    %v6166 = vpack.c.b16 %v6122, %v6118
    %v6167 = vpack.c.b16 %v6123, %v6119
    %v6168 = vpack.c.b16 %v6124, %v6120
    %v6169 = vpack.c.b16 %v6125, %v6121
    %v6170 = vpack.c.b16 %v6130, %v6126
    %v6171 = vpack.c.b16 %v6131, %v6127
    %v6172 = vpack.c.b16 %v6132, %v6128
    %v6173 = vpack.c.b16 %v6133, %v6129
    %vm6214 = vcmask 261120
    %v6216 = vsel %vm6214, %v5972, 0
    %6218 = vmatprep.subr.bf16.mxu0 %v6163
    %6219 = vmatpush1.bf16.msra.mxu0 %v6162
    %6220 = vmatprep.subr.bf16.mxu0 %v6159
    %6221 = vmatpush1.bf16.msra.mxu0 %v6158
    %6222 = vmatprep.subr.bf16.mxu0 %v6155
    %6223 = vmatpush1.bf16.msra.mxu0 %v6154
    %6224 = vmatprep.subr.bf16.mxu0 %v6151
    %6225 = vmatpush1.bf16.msra.mxu0 %v6150
    %6226 = vmatprep.subr.bf16.mxu0 %v6147
    %6227 = vmatpush1.bf16.msra.mxu0 %v6146
    %6228 = vmatprep.subr.bf16.mxu0 %v6143
    %6229 = vmatpush1.bf16.msra.mxu0 %v6142
    %6230 = vmatprep.subr.bf16.mxu0 %v6139
    %6231 = vmatpush1.bf16.msra.mxu0 %v6138
    %6232 = vmatprep.subr.bf16.mxu0 %v6135
    %6233 = vmatpush1.bf16.msra.mxu0 %v6134
    %6234 = vmatprep.subr.bf16.mxu0 0
    %6235 = vmatpush2.bf16.msra.mxu0 0
    %6236 = vmatprep.subr.bf16.mxu0 0
    %6237 = vmatpush2.bf16.msra.mxu0 0
    %6238 = vmatprep.subr.bf16.mxu0 0
    %6239 = vmatpush2.bf16.msra.mxu0 0
    %6240 = vmatprep.subr.bf16.mxu0 0
    %6241 = vmatpush2.bf16.msra.mxu0 0
    %6242 = vmatprep.subr.bf16.mxu0 0
    %6243 = vmatpush2.bf16.msra.mxu0 0
    %6244 = vmatprep.subr.bf16.mxu0 0
    %6245 = vmatpush2.bf16.msra.mxu0 0
    %6246 = vmatprep.subr.bf16.mxu0 %v6171
    %6247 = vmatpush2.bf16.msra.mxu0 %v6170
    %6248 = vmatprep.subr.bf16.mxu0 %v6167
    %6249 = vmatpush2.bf16.msra.mxu0 %v6166
    %6250 = vmatprep.mubr.bf16.mxu0 %v6216
    %6251 = vmatmul.mubr.bf16.gmra.mxu0 %v5971
    %v6252 = vpop.f32.mrf.mxu0
    %v6253 = vadd.f32 0.0, %v6252
    %v6254 = vpop.f32.mrf.mxu0
    %v6255 = vadd.f32 0.0, %v6254
    %v6256 = vpop.f32.mrf.mxu0
    %v6257 = vpop.f32.mrf.mxu0
    %6258 = vdwg.mxu0
    %6259 = vmatprep.subr.bf16.mxu0 %v6165
    %6260 = vmatpush1.bf16.msra.mxu0 %v6164
    %6261 = vmatprep.subr.bf16.mxu0 %v6161
    %6262 = vmatpush1.bf16.msra.mxu0 %v6160
    %6263 = vmatprep.subr.bf16.mxu0 %v6157
    %6264 = vmatpush1.bf16.msra.mxu0 %v6156
    %6265 = vmatprep.subr.bf16.mxu0 %v6153
    %6266 = vmatpush1.bf16.msra.mxu0 %v6152
    %6267 = vmatprep.subr.bf16.mxu0 %v6149
    %6268 = vmatpush1.bf16.msra.mxu0 %v6148
    %6269 = vmatprep.subr.bf16.mxu0 %v6145
    %6270 = vmatpush1.bf16.msra.mxu0 %v6144
    %6271 = vmatprep.subr.bf16.mxu0 %v6141
    %6272 = vmatpush1.bf16.msra.mxu0 %v6140
    %6273 = vmatprep.subr.bf16.mxu0 %v6137
    %6274 = vmatpush1.bf16.msra.mxu0 %v6136
    %6275 = vmatprep.subr.bf16.mxu0 0
    %6276 = vmatpush2.bf16.msra.mxu0 0
    %6277 = vmatprep.subr.bf16.mxu0 0
    %6278 = vmatpush2.bf16.msra.mxu0 0
    %6279 = vmatprep.subr.bf16.mxu0 0
    %6280 = vmatpush2.bf16.msra.mxu0 0
    %6281 = vmatprep.subr.bf16.mxu0 0
    %6282 = vmatpush2.bf16.msra.mxu0 0
    %6283 = vmatprep.subr.bf16.mxu0 0
    %6284 = vmatpush2.bf16.msra.mxu0 0
    %6285 = vmatprep.subr.bf16.mxu0 0
    %6286 = vmatpush2.bf16.msra.mxu0 0
    %6287 = vmatprep.subr.bf16.mxu0 %v6173
    %6288 = vmatpush2.bf16.msra.mxu0 %v6172
    %6289 = vmatprep.subr.bf16.mxu0 %v6169
    %6290 = vmatpush2.bf16.msra.mxu0 %v6168
    %6291 = vmatprep.mubr.bf16.mxu0 %v6216
    %6292 = vmatmul.mubr.bf16.gmra.mxu0 %v5971
    %v6293 = vpop.f32.mrf.mxu0
    %v6294 = vadd.f32 0.0, %v6293
    %v6295 = vpop.f32.mrf.mxu0
    %v6296 = vadd.f32 0.0, %v6295
    %v6297 = vpop.f32.mrf.mxu0
    %v6298 = vpop.f32.mrf.mxu0
    %6299 = vdwg.mxu0
    %v6340 = vunpack.c.l.b16 %v5931
    %v6341 = vunpack.c.h.b16 %v5931
    %v6342 = vunpack.c.l.b16 %v5932
    %v6343 = vunpack.c.h.b16 %v5932
    %v6344 = vunpack.c.l.b16 %v5933
    %v6345 = vunpack.c.h.b16 %v5933
    %v6346 = vunpack.c.l.b16 %v5934
    %v6347 = vunpack.c.h.b16 %v5934
    %v6348 = vunpack.c.l.b16 %v5935
    %v6349 = vunpack.c.h.b16 %v5935
    %v6350 = vunpack.c.l.b16 %v5936
    %v6351 = vunpack.c.h.b16 %v5936
    %v6352 = vunpack.c.l.b16 %v5937
    %v6353 = vunpack.c.h.b16 %v5937
    %v6354 = vunpack.c.l.b16 %v5938
    %v6355 = vunpack.c.h.b16 %v5938
    %v6356 = vunpack.c.l.b16 %v5939
    %v6357 = vunpack.c.h.b16 %v5939
    %v6358 = vunpack.c.l.b16 %v5940
    %v6359 = vunpack.c.h.b16 %v5940
    %v6360 = vunpack.c.l.b16 %v5941
    %v6361 = vunpack.c.h.b16 %v5941
    %v6362 = vunpack.c.l.b16 %v5942
    %v6363 = vunpack.c.h.b16 %v5942
    %v6364 = vunpack.c.l.b16 %v5943
    %v6365 = vunpack.c.h.b16 %v5943
    %v6366 = vunpack.c.l.b16 %v5944
    %v6367 = vunpack.c.h.b16 %v5944
    %v6368 = vunpack.c.l.b16 %v5945
    %v6369 = vunpack.c.h.b16 %v5945
    %v6370 = vunpack.c.l.b16 %v5946
    %v6371 = vunpack.c.h.b16 %v5946
    %v6372 = vunpack.c.l.b16 %v5947
    %v6373 = vunpack.c.h.b16 %v5947
    %v6374 = vunpack.c.l.b16 %v5948
    %v6375 = vunpack.c.h.b16 %v5948
    %v6376 = vunpack.c.l.b16 %v5949
    %v6377 = vunpack.c.h.b16 %v5949
    %v6378 = vunpack.c.l.b16 %v5950
    %v6379 = vunpack.c.h.b16 %v5950
    %v6380 = vunpack.c.l.b16 %v5951
    %v6381 = vunpack.c.h.b16 %v5951
    %v6382 = vunpack.c.l.b16 %v5952
    %v6383 = vunpack.c.h.b16 %v5952
    %v6384 = vunpack.c.l.b16 %v5953
    %v6385 = vunpack.c.h.b16 %v5953
    %v6386 = vunpack.c.l.b16 %v5954
    %v6387 = vunpack.c.h.b16 %v5954
    %v6388 = vunpack.c.l.b16 %v5955
    %v6389 = vunpack.c.h.b16 %v5955
    %v6390 = vunpack.c.l.b16 %v5956
    %v6391 = vunpack.c.h.b16 %v5956
    %v6392 = vunpack.c.l.b16 %v5957
    %v6393 = vunpack.c.h.b16 %v5957
    %v6394 = vunpack.c.l.b16 %v5958
    %v6395 = vunpack.c.h.b16 %v5958
    %v6396 = vunpack.c.l.b16 %v5959
    %v6397 = vunpack.c.h.b16 %v5959
    %v6398 = vunpack.c.l.b16 %v5960
    %v6399 = vunpack.c.h.b16 %v5960
    %v6400 = vunpack.c.l.b16 %v5961
    %v6401 = vunpack.c.h.b16 %v5961
    %v6402 = vunpack.c.l.b16 %v5962
    %v6403 = vunpack.c.h.b16 %v5962
    %v6404 = vunpack.c.l.b16 %v5963
    %v6405 = vunpack.c.h.b16 %v5963
    %v6406 = vunpack.c.l.b16 %v5964
    %v6407 = vunpack.c.h.b16 %v5964
    %v6408 = vunpack.c.l.b16 %v5965
    %v6409 = vunpack.c.h.b16 %v5965
    %v6410 = vunpack.c.l.b16 %v5966
    %v6411 = vunpack.c.h.b16 %v5966
    %v6412 = vunpack.c.l.b16 %v5967
    %v6413 = vunpack.c.h.b16 %v5967
    %v6414 = vunpack.c.l.b16 %v5968
    %v6415 = vunpack.c.h.b16 %v5968
    %v6416 = vunpack.c.l.b16 %v5969
    %v6417 = vunpack.c.h.b16 %v5969
    %v6418 = vunpack.c.l.b16 %v5970
    %v6419 = vunpack.c.h.b16 %v5970
    %v6420 = vpack.c.b16 %v6344, %v6340
    %v6421 = vpack.c.b16 %v6345, %v6341
    %v6422 = vpack.c.b16 %v6346, %v6342
    %v6423 = vpack.c.b16 %v6347, %v6343
    %v6424 = vpack.c.b16 %v6352, %v6348
    %v6425 = vpack.c.b16 %v6353, %v6349
    %v6426 = vpack.c.b16 %v6354, %v6350
    %v6427 = vpack.c.b16 %v6355, %v6351
    %v6428 = vpack.c.b16 %v6360, %v6356
    %v6429 = vpack.c.b16 %v6361, %v6357
    %v6430 = vpack.c.b16 %v6362, %v6358
    %v6431 = vpack.c.b16 %v6363, %v6359
    %v6432 = vpack.c.b16 %v6368, %v6364
    %v6433 = vpack.c.b16 %v6369, %v6365
    %v6434 = vpack.c.b16 %v6370, %v6366
    %v6435 = vpack.c.b16 %v6371, %v6367
    %v6436 = vpack.c.b16 %v6376, %v6372
    %v6437 = vpack.c.b16 %v6377, %v6373
    %v6438 = vpack.c.b16 %v6378, %v6374
    %v6439 = vpack.c.b16 %v6379, %v6375
    %v6440 = vpack.c.b16 %v6384, %v6380
    %v6441 = vpack.c.b16 %v6385, %v6381
    %v6442 = vpack.c.b16 %v6386, %v6382
    %v6443 = vpack.c.b16 %v6387, %v6383
    %v6444 = vpack.c.b16 %v6392, %v6388
    %v6445 = vpack.c.b16 %v6393, %v6389
    %v6446 = vpack.c.b16 %v6394, %v6390
    %v6447 = vpack.c.b16 %v6395, %v6391
    %v6448 = vpack.c.b16 %v6400, %v6396
    %v6449 = vpack.c.b16 %v6401, %v6397
    %v6450 = vpack.c.b16 %v6402, %v6398
    %v6451 = vpack.c.b16 %v6403, %v6399
    %v6452 = vpack.c.b16 %v6408, %v6404
    %v6453 = vpack.c.b16 %v6409, %v6405
    %v6454 = vpack.c.b16 %v6410, %v6406
    %v6455 = vpack.c.b16 %v6411, %v6407
    %v6456 = vpack.c.b16 %v6416, %v6412
    %v6457 = vpack.c.b16 %v6417, %v6413
    %v6458 = vpack.c.b16 %v6418, %v6414
    %v6459 = vpack.c.b16 %v6419, %v6415
    %v6501 = vsel %vm6214, %v5930, 0
    %6503 = vmatprep.subr.bf16.mxu0 %v6449
    %6504 = vmatpush1.bf16.msra.mxu0 %v6448
    %6505 = vmatprep.subr.bf16.mxu0 %v6445
    %6506 = vmatpush1.bf16.msra.mxu0 %v6444
    %6507 = vmatprep.subr.bf16.mxu0 %v6441
    %6508 = vmatpush1.bf16.msra.mxu0 %v6440
    %6509 = vmatprep.subr.bf16.mxu0 %v6437
    %6510 = vmatpush1.bf16.msra.mxu0 %v6436
    %6511 = vmatprep.subr.bf16.mxu0 %v6433
    %6512 = vmatpush1.bf16.msra.mxu0 %v6432
    %6513 = vmatprep.subr.bf16.mxu0 %v6429
    %6514 = vmatpush1.bf16.msra.mxu0 %v6428
    %6515 = vmatprep.subr.bf16.mxu0 %v6425
    %6516 = vmatpush1.bf16.msra.mxu0 %v6424
    %6517 = vmatprep.subr.bf16.mxu0 %v6421
    %6518 = vmatpush1.bf16.msra.mxu0 %v6420
    %6519 = vmatprep.subr.bf16.mxu0 0
    %6520 = vmatpush2.bf16.msra.mxu0 0
    %6521 = vmatprep.subr.bf16.mxu0 0
    %6522 = vmatpush2.bf16.msra.mxu0 0
    %6523 = vmatprep.subr.bf16.mxu0 0
    %6524 = vmatpush2.bf16.msra.mxu0 0
    %6525 = vmatprep.subr.bf16.mxu0 0
    %6526 = vmatpush2.bf16.msra.mxu0 0
    %6527 = vmatprep.subr.bf16.mxu0 0
    %6528 = vmatpush2.bf16.msra.mxu0 0
    %6529 = vmatprep.subr.bf16.mxu0 0
    %6530 = vmatpush2.bf16.msra.mxu0 0
    %6531 = vmatprep.subr.bf16.mxu0 %v6457
    %6532 = vmatpush2.bf16.msra.mxu0 %v6456
    %6533 = vmatprep.subr.bf16.mxu0 %v6453
    %6534 = vmatpush2.bf16.msra.mxu0 %v6452
    %6535 = vmatprep.mubr.bf16.mxu0 %v6501
    %6536 = vmatmul.mubr.bf16.gmra.mxu0 %v5929
    %v6537 = vpop.f32.mrf.mxu0
    %v6538 = vadd.f32 %v6253, %v6537
    %v6539 = vpop.f32.mrf.mxu0
    %v6540 = vadd.f32 %v6255, %v6539
    %v6541 = vpop.f32.mrf.mxu0
    %v6542 = vpop.f32.mrf.mxu0
    %6543 = vdwg.mxu0
    %6544 = vmatprep.subr.bf16.mxu0 %v6451
    %6545 = vmatpush1.bf16.msra.mxu0 %v6450
    %6546 = vmatprep.subr.bf16.mxu0 %v6447
    %6547 = vmatpush1.bf16.msra.mxu0 %v6446
    %6548 = vmatprep.subr.bf16.mxu0 %v6443
    %6549 = vmatpush1.bf16.msra.mxu0 %v6442
    %6550 = vmatprep.subr.bf16.mxu0 %v6439
    %6551 = vmatpush1.bf16.msra.mxu0 %v6438
    %6552 = vmatprep.subr.bf16.mxu0 %v6435
    %6553 = vmatpush1.bf16.msra.mxu0 %v6434
    %6554 = vmatprep.subr.bf16.mxu0 %v6431
    %6555 = vmatpush1.bf16.msra.mxu0 %v6430
    %6556 = vmatprep.subr.bf16.mxu0 %v6427
    %6557 = vmatpush1.bf16.msra.mxu0 %v6426
    %6558 = vmatprep.subr.bf16.mxu0 %v6423
    %6559 = vmatpush1.bf16.msra.mxu0 %v6422
    %6560 = vmatprep.subr.bf16.mxu0 0
    %6561 = vmatpush2.bf16.msra.mxu0 0
    %6562 = vmatprep.subr.bf16.mxu0 0
    %6563 = vmatpush2.bf16.msra.mxu0 0
    %6564 = vmatprep.subr.bf16.mxu0 0
    %6565 = vmatpush2.bf16.msra.mxu0 0
    %6566 = vmatprep.subr.bf16.mxu0 0
    %6567 = vmatpush2.bf16.msra.mxu0 0
    %6568 = vmatprep.subr.bf16.mxu0 0
    %6569 = vmatpush2.bf16.msra.mxu0 0
    %6570 = vmatprep.subr.bf16.mxu0 0
    %6571 = vmatpush2.bf16.msra.mxu0 0
    %6572 = vmatprep.subr.bf16.mxu0 %v6459
    %6573 = vmatpush2.bf16.msra.mxu0 %v6458
    %6574 = vmatprep.subr.bf16.mxu0 %v6455
    %6575 = vmatpush2.bf16.msra.mxu0 %v6454
    %6576 = vmatprep.mubr.bf16.mxu0 %v6501
    %6577 = vmatmul.mubr.bf16.gmra.mxu0 %v5929
    %v6578 = vpop.f32.mrf.mxu0
    %v6579 = vadd.f32 %v6294, %v6578
    %v6580 = vpop.f32.mrf.mxu0
    %v6581 = vadd.f32 %v6296, %v6580
    %v6582 = vpop.f32.mrf.mxu0
    %v6583 = vpop.f32.mrf.mxu0
    %6584 = vdwg.mxu0
    %v6585 = vpack.c.bf16 %v5923, %v5923
    %v6586 = vpack.c.bf16 %v5924, %v5924
    %s6587 = scalar_lea.vmem %s7, 640
    %v6588 = vld [vmem:[%s6587] sm:$0xff]
    %v6589 = vld [vmem:[%s6587 + $0x8] sm:$0xff]
    %v6590 = vld [vmem:[%s6587 + $0x10] sm:$0xff]
    %v6591 = vld [vmem:[%s6587 + $0x18] sm:$0xff]
    %v6592 = vld [vmem:[%s6587 + $0x20] sm:$0xff]
    %v6593 = vld [vmem:[%s6587 + $0x28] sm:$0xff]
    %v6594 = vld [vmem:[%s6587 + $0x30] sm:$0xff]
    %v6595 = vld [vmem:[%s6587 + $0x38] sm:$0xff]
    %v6596 = vld [vmem:[%s6587 + $0x40] sm:$0xff]
    %v6597 = vld [vmem:[%s6587 + $0x48] sm:$0xff]
    %v6598 = vld [vmem:[%s6587 + $0x50] sm:$0xff]
    %v6599 = vld [vmem:[%s6587 + $0x58] sm:$0xff]
    %v6600 = vld [vmem:[%s6587 + $0x60] sm:$0xff]
    %v6601 = vld [vmem:[%s6587 + $0x68] sm:$0xff]
    %v6602 = vld [vmem:[%s6587 + $0x70] sm:$0xff]
    %v6603 = vld [vmem:[%s6587 + $0x78] sm:$0xff]
    %v6604 = vld [vmem:[%s6587 + $0x80] sm:$0xff]
    %v6605 = vld [vmem:[%s6587 + $0x88] sm:$0xff]
    %v6606 = vld [vmem:[%s6587 + $0x90] sm:$0xff]
    %v6607 = vld [vmem:[%s6587 + $0x98] sm:$0xff]
    %v6608 = vld [vmem:[%s6587 + $0xa0] sm:$0xff]
    %v6609 = vld [vmem:[%s6587 + $0xa8] sm:$0xff]
    %v6610 = vld [vmem:[%s6587 + $0xb0] sm:$0xff]
    %v6611 = vld [vmem:[%s6587 + $0xb8] sm:$0xff]
    %v6612 = vld [vmem:[%s6587 + $0xc0] sm:$0xff]
    %v6613 = vld [vmem:[%s6587 + $0xc8] sm:$0xff]
    %v6614 = vld [vmem:[%s6587 + $0xd0] sm:$0xff]
    %v6615 = vld [vmem:[%s6587 + $0xd8] sm:$0xff]
    %v6616 = vld [vmem:[%s6587 + $0xe0] sm:$0xff]
    %v6617 = vld [vmem:[%s6587 + $0xe8] sm:$0xff]
    %v6618 = vld [vmem:[%s6587 + $0xf0] sm:$0xff]
    %v6619 = vld [vmem:[%s6587 + $0xf8] sm:$0xff]
    %v6620 = vld [vmem:[%s6587 + $0x100] sm:$0xff]
    %v6621 = vld [vmem:[%s6587 + $0x108] sm:$0xff]
    %v6622 = vld [vmem:[%s6587 + $0x110] sm:$0xff]
    %v6623 = vld [vmem:[%s6587 + $0x118] sm:$0xff]
    %v6624 = vld [vmem:[%s6587 + $0x120] sm:$0xff]
    %v6625 = vld [vmem:[%s6587 + $0x128] sm:$0xff]
    %v6626 = vld [vmem:[%s6587 + $0x130] sm:$0xff]
    %v6627 = vld [vmem:[%s6587 + $0x138] sm:$0xff]
    %v6668 = vunpack.c.l.b16 %v6588
    %v6669 = vunpack.c.h.b16 %v6588
    %v6670 = vunpack.c.l.b16 %v6589
    %v6671 = vunpack.c.h.b16 %v6589
    %v6672 = vunpack.c.l.b16 %v6590
    %v6673 = vunpack.c.h.b16 %v6590
    %v6674 = vunpack.c.l.b16 %v6591
    %v6675 = vunpack.c.h.b16 %v6591
    %v6676 = vunpack.c.l.b16 %v6592
    %v6677 = vunpack.c.h.b16 %v6592
    %v6678 = vunpack.c.l.b16 %v6593
    %v6679 = vunpack.c.h.b16 %v6593
    %v6680 = vunpack.c.l.b16 %v6594
    %v6681 = vunpack.c.h.b16 %v6594
    %v6682 = vunpack.c.l.b16 %v6595
    %v6683 = vunpack.c.h.b16 %v6595
    %v6684 = vunpack.c.l.b16 %v6596
    %v6685 = vunpack.c.h.b16 %v6596
    %v6686 = vunpack.c.l.b16 %v6597
    %v6687 = vunpack.c.h.b16 %v6597
    %v6688 = vunpack.c.l.b16 %v6598
    %v6689 = vunpack.c.h.b16 %v6598
    %v6690 = vunpack.c.l.b16 %v6599
    %v6691 = vunpack.c.h.b16 %v6599
    %v6692 = vunpack.c.l.b16 %v6600
    %v6693 = vunpack.c.h.b16 %v6600
    %v6694 = vunpack.c.l.b16 %v6601
    %v6695 = vunpack.c.h.b16 %v6601
    %v6696 = vunpack.c.l.b16 %v6602
    %v6697 = vunpack.c.h.b16 %v6602
    %v6698 = vunpack.c.l.b16 %v6603
    %v6699 = vunpack.c.h.b16 %v6603
    %v6700 = vunpack.c.l.b16 %v6604
    %v6701 = vunpack.c.h.b16 %v6604
    %v6702 = vunpack.c.l.b16 %v6605
    %v6703 = vunpack.c.h.b16 %v6605
    %v6704 = vunpack.c.l.b16 %v6606
    %v6705 = vunpack.c.h.b16 %v6606
    %v6706 = vunpack.c.l.b16 %v6607
    %v6707 = vunpack.c.h.b16 %v6607
    %v6708 = vunpack.c.l.b16 %v6608
    %v6709 = vunpack.c.h.b16 %v6608
    %v6710 = vunpack.c.l.b16 %v6609
    %v6711 = vunpack.c.h.b16 %v6609
    %v6712 = vunpack.c.l.b16 %v6610
    %v6713 = vunpack.c.h.b16 %v6610
    %v6714 = vunpack.c.l.b16 %v6611
    %v6715 = vunpack.c.h.b16 %v6611
    %v6716 = vunpack.c.l.b16 %v6612
    %v6717 = vunpack.c.h.b16 %v6612
    %v6718 = vunpack.c.l.b16 %v6613
    %v6719 = vunpack.c.h.b16 %v6613
    %v6720 = vunpack.c.l.b16 %v6614
    %v6721 = vunpack.c.h.b16 %v6614
    %v6722 = vunpack.c.l.b16 %v6615
    %v6723 = vunpack.c.h.b16 %v6615
    %v6724 = vunpack.c.l.b16 %v6616
    %v6725 = vunpack.c.h.b16 %v6616
    %v6726 = vunpack.c.l.b16 %v6617
    %v6727 = vunpack.c.h.b16 %v6617
    %v6728 = vunpack.c.l.b16 %v6618
    %v6729 = vunpack.c.h.b16 %v6618
    %v6730 = vunpack.c.l.b16 %v6619
    %v6731 = vunpack.c.h.b16 %v6619
    %v6732 = vunpack.c.l.b16 %v6620
    %v6733 = vunpack.c.h.b16 %v6620
    %v6734 = vunpack.c.l.b16 %v6621
    %v6735 = vunpack.c.h.b16 %v6621
    %v6736 = vunpack.c.l.b16 %v6622
    %v6737 = vunpack.c.h.b16 %v6622
    %v6738 = vunpack.c.l.b16 %v6623
    %v6739 = vunpack.c.h.b16 %v6623
    %v6740 = vunpack.c.l.b16 %v6624
    %v6741 = vunpack.c.h.b16 %v6624
    %v6742 = vunpack.c.l.b16 %v6625
    %v6743 = vunpack.c.h.b16 %v6625
    %v6744 = vunpack.c.l.b16 %v6626
    %v6745 = vunpack.c.h.b16 %v6626
    %v6746 = vunpack.c.l.b16 %v6627
    %v6747 = vunpack.c.h.b16 %v6627
    %v6748 = vpack.c.b16 %v6672, %v6668
    %v6749 = vpack.c.b16 %v6673, %v6669
    %v6750 = vpack.c.b16 %v6674, %v6670
    %v6751 = vpack.c.b16 %v6675, %v6671
    %v6752 = vpack.c.b16 %v6680, %v6676
    %v6753 = vpack.c.b16 %v6681, %v6677
    %v6754 = vpack.c.b16 %v6682, %v6678
    %v6755 = vpack.c.b16 %v6683, %v6679
    %v6756 = vpack.c.b16 %v6688, %v6684
    %v6757 = vpack.c.b16 %v6689, %v6685
    %v6758 = vpack.c.b16 %v6690, %v6686
    %v6759 = vpack.c.b16 %v6691, %v6687
    %v6760 = vpack.c.b16 %v6696, %v6692
    %v6761 = vpack.c.b16 %v6697, %v6693
    %v6762 = vpack.c.b16 %v6698, %v6694
    %v6763 = vpack.c.b16 %v6699, %v6695
    %v6764 = vpack.c.b16 %v6704, %v6700
    %v6765 = vpack.c.b16 %v6705, %v6701
    %v6766 = vpack.c.b16 %v6706, %v6702
    %v6767 = vpack.c.b16 %v6707, %v6703
    %v6768 = vpack.c.b16 %v6712, %v6708
    %v6769 = vpack.c.b16 %v6713, %v6709
    %v6770 = vpack.c.b16 %v6714, %v6710
    %v6771 = vpack.c.b16 %v6715, %v6711
    %v6772 = vpack.c.b16 %v6720, %v6716
    %v6773 = vpack.c.b16 %v6721, %v6717
    %v6774 = vpack.c.b16 %v6722, %v6718
    %v6775 = vpack.c.b16 %v6723, %v6719
    %v6776 = vpack.c.b16 %v6728, %v6724
    %v6777 = vpack.c.b16 %v6729, %v6725
    %v6778 = vpack.c.b16 %v6730, %v6726
    %v6779 = vpack.c.b16 %v6731, %v6727
    %v6780 = vpack.c.b16 %v6736, %v6732
    %v6781 = vpack.c.b16 %v6737, %v6733
    %v6782 = vpack.c.b16 %v6738, %v6734
    %v6783 = vpack.c.b16 %v6739, %v6735
    %v6784 = vpack.c.b16 %v6744, %v6740
    %v6785 = vpack.c.b16 %v6745, %v6741
    %v6786 = vpack.c.b16 %v6746, %v6742
    %v6787 = vpack.c.b16 %v6747, %v6743
    %v6829 = vsel %vm6214, %v6586, 0
    %6831 = vmatprep.subr.bf16.mxu0 %v6777
    %6832 = vmatpush1.bf16.msra.mxu0 %v6776
    %6833 = vmatprep.subr.bf16.mxu0 %v6773
    %6834 = vmatpush1.bf16.msra.mxu0 %v6772
    %6835 = vmatprep.subr.bf16.mxu0 %v6769
    %6836 = vmatpush1.bf16.msra.mxu0 %v6768
    %6837 = vmatprep.subr.bf16.mxu0 %v6765
    %6838 = vmatpush1.bf16.msra.mxu0 %v6764
    %6839 = vmatprep.subr.bf16.mxu0 %v6761
    %6840 = vmatpush1.bf16.msra.mxu0 %v6760
    %6841 = vmatprep.subr.bf16.mxu0 %v6757
    %6842 = vmatpush1.bf16.msra.mxu0 %v6756
    %6843 = vmatprep.subr.bf16.mxu0 %v6753
    %6844 = vmatpush1.bf16.msra.mxu0 %v6752
    %6845 = vmatprep.subr.bf16.mxu0 %v6749
    %6846 = vmatpush1.bf16.msra.mxu0 %v6748
    %6847 = vmatprep.subr.bf16.mxu0 0
    %6848 = vmatpush2.bf16.msra.mxu0 0
    %6849 = vmatprep.subr.bf16.mxu0 0
    %6850 = vmatpush2.bf16.msra.mxu0 0
    %6851 = vmatprep.subr.bf16.mxu0 0
    %6852 = vmatpush2.bf16.msra.mxu0 0
    %6853 = vmatprep.subr.bf16.mxu0 0
    %6854 = vmatpush2.bf16.msra.mxu0 0
    %6855 = vmatprep.subr.bf16.mxu0 0
    %6856 = vmatpush2.bf16.msra.mxu0 0
    %6857 = vmatprep.subr.bf16.mxu0 0
    %6858 = vmatpush2.bf16.msra.mxu0 0
    %6859 = vmatprep.subr.bf16.mxu0 %v6785
    %6860 = vmatpush2.bf16.msra.mxu0 %v6784
    %6861 = vmatprep.subr.bf16.mxu0 %v6781
    %6862 = vmatpush2.bf16.msra.mxu0 %v6780
    %6863 = vmatprep.mubr.bf16.mxu0 %v6829
    %6864 = vmatmul.mubr.bf16.gmra.mxu0 %v6585
    %v6865 = vpop.f32.mrf.mxu0
    %v6866 = vadd.f32 0.0, %v6865
    %v6867 = vpop.f32.mrf.mxu0
    %v6868 = vadd.f32 0.0, %v6867
    %v6869 = vpop.f32.mrf.mxu0
    %v6870 = vpop.f32.mrf.mxu0
    %6871 = vdwg.mxu0
    %6872 = vmatprep.subr.bf16.mxu0 %v6779
    %6873 = vmatpush1.bf16.msra.mxu0 %v6778
    %6874 = vmatprep.subr.bf16.mxu0 %v6775
    %6875 = vmatpush1.bf16.msra.mxu0 %v6774
    %6876 = vmatprep.subr.bf16.mxu0 %v6771
    %6877 = vmatpush1.bf16.msra.mxu0 %v6770
    %6878 = vmatprep.subr.bf16.mxu0 %v6767
    %6879 = vmatpush1.bf16.msra.mxu0 %v6766
    %6880 = vmatprep.subr.bf16.mxu0 %v6763
    %6881 = vmatpush1.bf16.msra.mxu0 %v6762
    %6882 = vmatprep.subr.bf16.mxu0 %v6759
    %6883 = vmatpush1.bf16.msra.mxu0 %v6758
    %6884 = vmatprep.subr.bf16.mxu0 %v6755
    %6885 = vmatpush1.bf16.msra.mxu0 %v6754
    %6886 = vmatprep.subr.bf16.mxu0 %v6751
    %6887 = vmatpush1.bf16.msra.mxu0 %v6750
    %6888 = vmatprep.subr.bf16.mxu0 0
    %6889 = vmatpush2.bf16.msra.mxu0 0
    %6890 = vmatprep.subr.bf16.mxu0 0
    %6891 = vmatpush2.bf16.msra.mxu0 0
    %6892 = vmatprep.subr.bf16.mxu0 0
    %6893 = vmatpush2.bf16.msra.mxu0 0
    %6894 = vmatprep.subr.bf16.mxu0 0
    %6895 = vmatpush2.bf16.msra.mxu0 0
    %6896 = vmatprep.subr.bf16.mxu0 0
    %6897 = vmatpush2.bf16.msra.mxu0 0
    %6898 = vmatprep.subr.bf16.mxu0 0
    %6899 = vmatpush2.bf16.msra.mxu0 0
    %6900 = vmatprep.subr.bf16.mxu0 %v6787
    %6901 = vmatpush2.bf16.msra.mxu0 %v6786
    %6902 = vmatprep.subr.bf16.mxu0 %v6783
    %6903 = vmatpush2.bf16.msra.mxu0 %v6782
    %6904 = vmatprep.mubr.bf16.mxu0 %v6829
    %6905 = vmatmul.mubr.bf16.gmra.mxu0 %v6585
    %v6906 = vpop.f32.mrf.mxu0
    %v6907 = vadd.f32 0.0, %v6906
    %v6908 = vpop.f32.mrf.mxu0
    %v6909 = vadd.f32 0.0, %v6908
    %v6910 = vpop.f32.mrf.mxu0
    %v6911 = vpop.f32.mrf.mxu0
    %6912 = vdwg.mxu0
    %v6913 = vadd.f32 %v6538, %v6866
    %v6914 = vadd.f32 %v6540, %v6868
    %v6915 = vadd.f32 %v6579, %v6907
    %v6916 = vadd.f32 %v6581, %v6909
    %v6917 = vpack.c.bf16 %v5925, %v5925
    %v6918 = vpack.c.bf16 %v5926, %v5926
    %s6919 = scalar_lea.vmem %s7, 960
    %v6920 = vld [vmem:[%s6919] sm:$0xff]
    %v6921 = vld [vmem:[%s6919 + $0x8] sm:$0xff]
    %v6922 = vld [vmem:[%s6919 + $0x10] sm:$0xff]
    %v6923 = vld [vmem:[%s6919 + $0x18] sm:$0xff]
    %v6924 = vld [vmem:[%s6919 + $0x20] sm:$0xff]
    %v6925 = vld [vmem:[%s6919 + $0x28] sm:$0xff]
    %v6926 = vld [vmem:[%s6919 + $0x30] sm:$0xff]
    %v6927 = vld [vmem:[%s6919 + $0x38] sm:$0xff]
    %v6928 = vld [vmem:[%s6919 + $0x40] sm:$0xff]
    %v6929 = vld [vmem:[%s6919 + $0x48] sm:$0xff]
    %v6930 = vld [vmem:[%s6919 + $0x50] sm:$0xff]
    %v6931 = vld [vmem:[%s6919 + $0x58] sm:$0xff]
    %v6932 = vld [vmem:[%s6919 + $0x60] sm:$0xff]
    %v6933 = vld [vmem:[%s6919 + $0x68] sm:$0xff]
    %v6934 = vld [vmem:[%s6919 + $0x70] sm:$0xff]
    %v6935 = vld [vmem:[%s6919 + $0x78] sm:$0xff]
    %v6936 = vld [vmem:[%s6919 + $0x80] sm:$0xff]
    %v6937 = vld [vmem:[%s6919 + $0x88] sm:$0xff]
    %v6938 = vld [vmem:[%s6919 + $0x90] sm:$0xff]
    %v6939 = vld [vmem:[%s6919 + $0x98] sm:$0xff]
    %v6940 = vld [vmem:[%s6919 + $0xa0] sm:$0xff]
    %v6941 = vld [vmem:[%s6919 + $0xa8] sm:$0xff]
    %v6942 = vld [vmem:[%s6919 + $0xb0] sm:$0xff]
    %v6943 = vld [vmem:[%s6919 + $0xb8] sm:$0xff]
    %v6944 = vld [vmem:[%s6919 + $0xc0] sm:$0xff]
    %v6945 = vld [vmem:[%s6919 + $0xc8] sm:$0xff]
    %v6946 = vld [vmem:[%s6919 + $0xd0] sm:$0xff]
    %v6947 = vld [vmem:[%s6919 + $0xd8] sm:$0xff]
    %v6948 = vld [vmem:[%s6919 + $0xe0] sm:$0xff]
    %v6949 = vld [vmem:[%s6919 + $0xe8] sm:$0xff]
    %v6950 = vld [vmem:[%s6919 + $0xf0] sm:$0xff]
    %v6951 = vld [vmem:[%s6919 + $0xf8] sm:$0xff]
    %v6952 = vld [vmem:[%s6919 + $0x100] sm:$0xff]
    %v6953 = vld [vmem:[%s6919 + $0x108] sm:$0xff]
    %v6954 = vld [vmem:[%s6919 + $0x110] sm:$0xff]
    %v6955 = vld [vmem:[%s6919 + $0x118] sm:$0xff]
    %v6956 = vld [vmem:[%s6919 + $0x120] sm:$0xff]
    %v6957 = vld [vmem:[%s6919 + $0x128] sm:$0xff]
    %v6958 = vld [vmem:[%s6919 + $0x130] sm:$0xff]
    %v6959 = vld [vmem:[%s6919 + $0x138] sm:$0xff]
    %v7000 = vunpack.c.l.b16 %v6920
    %v7001 = vunpack.c.h.b16 %v6920
    %v7002 = vunpack.c.l.b16 %v6921
    %v7003 = vunpack.c.h.b16 %v6921
    %v7004 = vunpack.c.l.b16 %v6922
    %v7005 = vunpack.c.h.b16 %v6922
    %v7006 = vunpack.c.l.b16 %v6923
    %v7007 = vunpack.c.h.b16 %v6923
    %v7008 = vunpack.c.l.b16 %v6924
    %v7009 = vunpack.c.h.b16 %v6924
    %v7010 = vunpack.c.l.b16 %v6925
    %v7011 = vunpack.c.h.b16 %v6925
    %v7012 = vunpack.c.l.b16 %v6926
    %v7013 = vunpack.c.h.b16 %v6926
    %v7014 = vunpack.c.l.b16 %v6927
    %v7015 = vunpack.c.h.b16 %v6927
    %v7016 = vunpack.c.l.b16 %v6928
    %v7017 = vunpack.c.h.b16 %v6928
    %v7018 = vunpack.c.l.b16 %v6929
    %v7019 = vunpack.c.h.b16 %v6929
    %v7020 = vunpack.c.l.b16 %v6930
    %v7021 = vunpack.c.h.b16 %v6930
    %v7022 = vunpack.c.l.b16 %v6931
    %v7023 = vunpack.c.h.b16 %v6931
    %v7024 = vunpack.c.l.b16 %v6932
    %v7025 = vunpack.c.h.b16 %v6932
    %v7026 = vunpack.c.l.b16 %v6933
    %v7027 = vunpack.c.h.b16 %v6933
    %v7028 = vunpack.c.l.b16 %v6934
    %v7029 = vunpack.c.h.b16 %v6934
    %v7030 = vunpack.c.l.b16 %v6935
    %v7031 = vunpack.c.h.b16 %v6935
    %v7032 = vunpack.c.l.b16 %v6936
    %v7033 = vunpack.c.h.b16 %v6936
    %v7034 = vunpack.c.l.b16 %v6937
    %v7035 = vunpack.c.h.b16 %v6937
    %v7036 = vunpack.c.l.b16 %v6938
    %v7037 = vunpack.c.h.b16 %v6938
    %v7038 = vunpack.c.l.b16 %v6939
    %v7039 = vunpack.c.h.b16 %v6939
    %v7040 = vunpack.c.l.b16 %v6940
    %v7041 = vunpack.c.h.b16 %v6940
    %v7042 = vunpack.c.l.b16 %v6941
    %v7043 = vunpack.c.h.b16 %v6941
    %v7044 = vunpack.c.l.b16 %v6942
    %v7045 = vunpack.c.h.b16 %v6942
    %v7046 = vunpack.c.l.b16 %v6943
    %v7047 = vunpack.c.h.b16 %v6943
    %v7048 = vunpack.c.l.b16 %v6944
    %v7049 = vunpack.c.h.b16 %v6944
    %v7050 = vunpack.c.l.b16 %v6945
    %v7051 = vunpack.c.h.b16 %v6945
    %v7052 = vunpack.c.l.b16 %v6946
    %v7053 = vunpack.c.h.b16 %v6946
    %v7054 = vunpack.c.l.b16 %v6947
    %v7055 = vunpack.c.h.b16 %v6947
    %v7056 = vunpack.c.l.b16 %v6948
    %v7057 = vunpack.c.h.b16 %v6948
    %v7058 = vunpack.c.l.b16 %v6949
    %v7059 = vunpack.c.h.b16 %v6949
    %v7060 = vunpack.c.l.b16 %v6950
    %v7061 = vunpack.c.h.b16 %v6950
    %v7062 = vunpack.c.l.b16 %v6951
    %v7063 = vunpack.c.h.b16 %v6951
    %v7064 = vunpack.c.l.b16 %v6952
    %v7065 = vunpack.c.h.b16 %v6952
    %v7066 = vunpack.c.l.b16 %v6953
    %v7067 = vunpack.c.h.b16 %v6953
    %v7068 = vunpack.c.l.b16 %v6954
    %v7069 = vunpack.c.h.b16 %v6954
    %v7070 = vunpack.c.l.b16 %v6955
    %v7071 = vunpack.c.h.b16 %v6955
    %v7072 = vunpack.c.l.b16 %v6956
    %v7073 = vunpack.c.h.b16 %v6956
    %v7074 = vunpack.c.l.b16 %v6957
    %v7075 = vunpack.c.h.b16 %v6957
    %v7076 = vunpack.c.l.b16 %v6958
    %v7077 = vunpack.c.h.b16 %v6958
    %v7078 = vunpack.c.l.b16 %v6959
    %v7079 = vunpack.c.h.b16 %v6959
    %v7080 = vpack.c.b16 %v7004, %v7000
    %v7081 = vpack.c.b16 %v7005, %v7001
    %v7082 = vpack.c.b16 %v7006, %v7002
    %v7083 = vpack.c.b16 %v7007, %v7003
    %v7084 = vpack.c.b16 %v7012, %v7008
    %v7085 = vpack.c.b16 %v7013, %v7009
    %v7086 = vpack.c.b16 %v7014, %v7010
    %v7087 = vpack.c.b16 %v7015, %v7011
    %v7088 = vpack.c.b16 %v7020, %v7016
    %v7089 = vpack.c.b16 %v7021, %v7017
    %v7090 = vpack.c.b16 %v7022, %v7018
    %v7091 = vpack.c.b16 %v7023, %v7019
    %v7092 = vpack.c.b16 %v7028, %v7024
    %v7093 = vpack.c.b16 %v7029, %v7025
    %v7094 = vpack.c.b16 %v7030, %v7026
    %v7095 = vpack.c.b16 %v7031, %v7027
    %v7096 = vpack.c.b16 %v7036, %v7032
    %v7097 = vpack.c.b16 %v7037, %v7033
    %v7098 = vpack.c.b16 %v7038, %v7034
    %v7099 = vpack.c.b16 %v7039, %v7035
    %v7100 = vpack.c.b16 %v7044, %v7040
    %v7101 = vpack.c.b16 %v7045, %v7041
    %v7102 = vpack.c.b16 %v7046, %v7042
    %v7103 = vpack.c.b16 %v7047, %v7043
    %v7104 = vpack.c.b16 %v7052, %v7048
    %v7105 = vpack.c.b16 %v7053, %v7049
    %v7106 = vpack.c.b16 %v7054, %v7050
    %v7107 = vpack.c.b16 %v7055, %v7051
    %v7108 = vpack.c.b16 %v7060, %v7056
    %v7109 = vpack.c.b16 %v7061, %v7057
    %v7110 = vpack.c.b16 %v7062, %v7058
    %v7111 = vpack.c.b16 %v7063, %v7059
    %v7112 = vpack.c.b16 %v7068, %v7064
    %v7113 = vpack.c.b16 %v7069, %v7065
    %v7114 = vpack.c.b16 %v7070, %v7066
    %v7115 = vpack.c.b16 %v7071, %v7067
    %v7116 = vpack.c.b16 %v7076, %v7072
    %v7117 = vpack.c.b16 %v7077, %v7073
    %v7118 = vpack.c.b16 %v7078, %v7074
    %v7119 = vpack.c.b16 %v7079, %v7075
    %v7161 = vsel %vm6214, %v6918, 0
    %7163 = vmatprep.subr.bf16.mxu0 %v7109
    %7164 = vmatpush1.bf16.msra.mxu0 %v7108
    %7165 = vmatprep.subr.bf16.mxu0 %v7105
    %7166 = vmatpush1.bf16.msra.mxu0 %v7104
    %7167 = vmatprep.subr.bf16.mxu0 %v7101
    %7168 = vmatpush1.bf16.msra.mxu0 %v7100
    %7169 = vmatprep.subr.bf16.mxu0 %v7097
    %7170 = vmatpush1.bf16.msra.mxu0 %v7096
    %7171 = vmatprep.subr.bf16.mxu0 %v7093
    %7172 = vmatpush1.bf16.msra.mxu0 %v7092
    %7173 = vmatprep.subr.bf16.mxu0 %v7089
    %7174 = vmatpush1.bf16.msra.mxu0 %v7088
    %7175 = vmatprep.subr.bf16.mxu0 %v7085
    %7176 = vmatpush1.bf16.msra.mxu0 %v7084
    %7177 = vmatprep.subr.bf16.mxu0 %v7081
    %7178 = vmatpush1.bf16.msra.mxu0 %v7080
    %7179 = vmatprep.subr.bf16.mxu0 0
    %7180 = vmatpush2.bf16.msra.mxu0 0
    %7181 = vmatprep.subr.bf16.mxu0 0
    %7182 = vmatpush2.bf16.msra.mxu0 0
    %7183 = vmatprep.subr.bf16.mxu0 0
    %7184 = vmatpush2.bf16.msra.mxu0 0
    %7185 = vmatprep.subr.bf16.mxu0 0
    %7186 = vmatpush2.bf16.msra.mxu0 0
    %7187 = vmatprep.subr.bf16.mxu0 0
    %7188 = vmatpush2.bf16.msra.mxu0 0
    %7189 = vmatprep.subr.bf16.mxu0 0
    %7190 = vmatpush2.bf16.msra.mxu0 0
    %7191 = vmatprep.subr.bf16.mxu0 %v7117
    %7192 = vmatpush2.bf16.msra.mxu0 %v7116
    %7193 = vmatprep.subr.bf16.mxu0 %v7113
    %7194 = vmatpush2.bf16.msra.mxu0 %v7112
    %7195 = vmatprep.mubr.bf16.mxu0 %v7161
    %7196 = vmatmul.mubr.bf16.gmra.mxu0 %v6917
    %v7197 = vpop.f32.mrf.mxu0
    %v7198 = vadd.f32 0.0, %v7197
    %v7199 = vpop.f32.mrf.mxu0
    %v7200 = vadd.f32 0.0, %v7199
    %v7201 = vpop.f32.mrf.mxu0
    %v7202 = vpop.f32.mrf.mxu0
    %7203 = vdwg.mxu0
    %7204 = vmatprep.subr.bf16.mxu0 %v7111
    %7205 = vmatpush1.bf16.msra.mxu0 %v7110
    %7206 = vmatprep.subr.bf16.mxu0 %v7107
    %7207 = vmatpush1.bf16.msra.mxu0 %v7106
    %7208 = vmatprep.subr.bf16.mxu0 %v7103
    %7209 = vmatpush1.bf16.msra.mxu0 %v7102
    %7210 = vmatprep.subr.bf16.mxu0 %v7099
    %7211 = vmatpush1.bf16.msra.mxu0 %v7098
    %7212 = vmatprep.subr.bf16.mxu0 %v7095
    %7213 = vmatpush1.bf16.msra.mxu0 %v7094
    %7214 = vmatprep.subr.bf16.mxu0 %v7091
    %7215 = vmatpush1.bf16.msra.mxu0 %v7090
    %7216 = vmatprep.subr.bf16.mxu0 %v7087
    %7217 = vmatpush1.bf16.msra.mxu0 %v7086
    %7218 = vmatprep.subr.bf16.mxu0 %v7083
    %7219 = vmatpush1.bf16.msra.mxu0 %v7082
    %7220 = vmatprep.subr.bf16.mxu0 0
    %7221 = vmatpush2.bf16.msra.mxu0 0
    %7222 = vmatprep.subr.bf16.mxu0 0
    %7223 = vmatpush2.bf16.msra.mxu0 0
    %7224 = vmatprep.subr.bf16.mxu0 0
    %7225 = vmatpush2.bf16.msra.mxu0 0
    %7226 = vmatprep.subr.bf16.mxu0 0
    %7227 = vmatpush2.bf16.msra.mxu0 0
    %7228 = vmatprep.subr.bf16.mxu0 0
    %7229 = vmatpush2.bf16.msra.mxu0 0
    %7230 = vmatprep.subr.bf16.mxu0 0
    %7231 = vmatpush2.bf16.msra.mxu0 0
    %7232 = vmatprep.subr.bf16.mxu0 %v7119
    %7233 = vmatpush2.bf16.msra.mxu0 %v7118
    %7234 = vmatprep.subr.bf16.mxu0 %v7115
    %7235 = vmatpush2.bf16.msra.mxu0 %v7114
    %7236 = vmatprep.mubr.bf16.mxu0 %v7161
    %7237 = vmatmul.mubr.bf16.gmra.mxu0 %v6917
    %v7238 = vpop.f32.mrf.mxu0
    %v7239 = vadd.f32 0.0, %v7238
    %v7240 = vpop.f32.mrf.mxu0
    %v7241 = vadd.f32 0.0, %v7240
    %v7242 = vpop.f32.mrf.mxu0
    %v7243 = vpop.f32.mrf.mxu0
    %7244 = vdwg.mxu0
    %v7245 = vadd.f32 %v6913, %v7198
    %v7246 = vadd.f32 %v6914, %v7200
    %v7247 = vadd.f32 %v6915, %v7239
    %v7248 = vadd.f32 %v6916, %v7241
    %v7249 = vpack.c.bf16 %v5927, %v5927
    %v7250 = vpack.c.bf16 %v5928, %v5928
    %s7251 = scalar_lea.vmem %s7, 1280
    %v7252 = vld [vmem:[%s7251] sm:$0xff]
    %v7253 = vld [vmem:[%s7251 + $0x8] sm:$0xff]
    %v7254 = vld [vmem:[%s7251 + $0x10] sm:$0xff]
    %v7255 = vld [vmem:[%s7251 + $0x18] sm:$0xff]
    %v7256 = vld [vmem:[%s7251 + $0x20] sm:$0xff]
    %v7257 = vld [vmem:[%s7251 + $0x28] sm:$0xff]
    %v7258 = vld [vmem:[%s7251 + $0x30] sm:$0xff]
    %v7259 = vld [vmem:[%s7251 + $0x38] sm:$0xff]
    %v7260 = vld [vmem:[%s7251 + $0x40] sm:$0xff]
    %v7261 = vld [vmem:[%s7251 + $0x48] sm:$0xff]
    %v7262 = vld [vmem:[%s7251 + $0x50] sm:$0xff]
    %v7263 = vld [vmem:[%s7251 + $0x58] sm:$0xff]
    %v7264 = vld [vmem:[%s7251 + $0x60] sm:$0xff]
    %v7265 = vld [vmem:[%s7251 + $0x68] sm:$0xff]
    %v7266 = vld [vmem:[%s7251 + $0x70] sm:$0xff]
    %v7267 = vld [vmem:[%s7251 + $0x78] sm:$0xff]
    %v7268 = vld [vmem:[%s7251 + $0x80] sm:$0xff]
    %v7269 = vld [vmem:[%s7251 + $0x88] sm:$0xff]
    %v7270 = vld [vmem:[%s7251 + $0x90] sm:$0xff]
    %v7271 = vld [vmem:[%s7251 + $0x98] sm:$0xff]
    %v7272 = vld [vmem:[%s7251 + $0xa0] sm:$0xff]
    %v7273 = vld [vmem:[%s7251 + $0xa8] sm:$0xff]
    %v7274 = vld [vmem:[%s7251 + $0xb0] sm:$0xff]
    %v7275 = vld [vmem:[%s7251 + $0xb8] sm:$0xff]
    %v7276 = vld [vmem:[%s7251 + $0xc0] sm:$0xff]
    %v7277 = vld [vmem:[%s7251 + $0xc8] sm:$0xff]
    %v7278 = vld [vmem:[%s7251 + $0xd0] sm:$0xff]
    %v7279 = vld [vmem:[%s7251 + $0xd8] sm:$0xff]
    %v7280 = vld [vmem:[%s7251 + $0xe0] sm:$0xff]
    %v7281 = vld [vmem:[%s7251 + $0xe8] sm:$0xff]
    %v7282 = vld [vmem:[%s7251 + $0xf0] sm:$0xff]
    %v7283 = vld [vmem:[%s7251 + $0xf8] sm:$0xff]
    %v7284 = vld [vmem:[%s7251 + $0x100] sm:$0xff]
    %v7285 = vld [vmem:[%s7251 + $0x108] sm:$0xff]
    %v7286 = vld [vmem:[%s7251 + $0x110] sm:$0xff]
    %v7287 = vld [vmem:[%s7251 + $0x118] sm:$0xff]
    %v7288 = vld [vmem:[%s7251 + $0x120] sm:$0xff]
    %v7289 = vld [vmem:[%s7251 + $0x128] sm:$0xff]
    %v7290 = vld [vmem:[%s7251 + $0x130] sm:$0xff]
    %v7291 = vld [vmem:[%s7251 + $0x138] sm:$0xff]
    %v7332 = vunpack.c.l.b16 %v7252
    %v7333 = vunpack.c.h.b16 %v7252
    %v7334 = vunpack.c.l.b16 %v7253
    %v7335 = vunpack.c.h.b16 %v7253
    %v7336 = vunpack.c.l.b16 %v7254
    %v7337 = vunpack.c.h.b16 %v7254
    %v7338 = vunpack.c.l.b16 %v7255
    %v7339 = vunpack.c.h.b16 %v7255
    %v7340 = vunpack.c.l.b16 %v7256
    %v7341 = vunpack.c.h.b16 %v7256
    %v7342 = vunpack.c.l.b16 %v7257
    %v7343 = vunpack.c.h.b16 %v7257
    %v7344 = vunpack.c.l.b16 %v7258
    %v7345 = vunpack.c.h.b16 %v7258
    %v7346 = vunpack.c.l.b16 %v7259
    %v7347 = vunpack.c.h.b16 %v7259
    %v7348 = vunpack.c.l.b16 %v7260
    %v7349 = vunpack.c.h.b16 %v7260
    %v7350 = vunpack.c.l.b16 %v7261
    %v7351 = vunpack.c.h.b16 %v7261
    %v7352 = vunpack.c.l.b16 %v7262
    %v7353 = vunpack.c.h.b16 %v7262
    %v7354 = vunpack.c.l.b16 %v7263
    %v7355 = vunpack.c.h.b16 %v7263
    %v7356 = vunpack.c.l.b16 %v7264
    %v7357 = vunpack.c.h.b16 %v7264
    %v7358 = vunpack.c.l.b16 %v7265
    %v7359 = vunpack.c.h.b16 %v7265
    %v7360 = vunpack.c.l.b16 %v7266
    %v7361 = vunpack.c.h.b16 %v7266
    %v7362 = vunpack.c.l.b16 %v7267
    %v7363 = vunpack.c.h.b16 %v7267
    %v7364 = vunpack.c.l.b16 %v7268
    %v7365 = vunpack.c.h.b16 %v7268
    %v7366 = vunpack.c.l.b16 %v7269
    %v7367 = vunpack.c.h.b16 %v7269
    %v7368 = vunpack.c.l.b16 %v7270
    %v7369 = vunpack.c.h.b16 %v7270
    %v7370 = vunpack.c.l.b16 %v7271
    %v7371 = vunpack.c.h.b16 %v7271
    %v7372 = vunpack.c.l.b16 %v7272
    %v7373 = vunpack.c.h.b16 %v7272
    %v7374 = vunpack.c.l.b16 %v7273
    %v7375 = vunpack.c.h.b16 %v7273
    %v7376 = vunpack.c.l.b16 %v7274
    %v7377 = vunpack.c.h.b16 %v7274
    %v7378 = vunpack.c.l.b16 %v7275
    %v7379 = vunpack.c.h.b16 %v7275
    %v7380 = vunpack.c.l.b16 %v7276
    %v7381 = vunpack.c.h.b16 %v7276
    %v7382 = vunpack.c.l.b16 %v7277
    %v7383 = vunpack.c.h.b16 %v7277
    %v7384 = vunpack.c.l.b16 %v7278
    %v7385 = vunpack.c.h.b16 %v7278
    %v7386 = vunpack.c.l.b16 %v7279
    %v7387 = vunpack.c.h.b16 %v7279
    %v7388 = vunpack.c.l.b16 %v7280
    %v7389 = vunpack.c.h.b16 %v7280
    %v7390 = vunpack.c.l.b16 %v7281
    %v7391 = vunpack.c.h.b16 %v7281
    %v7392 = vunpack.c.l.b16 %v7282
    %v7393 = vunpack.c.h.b16 %v7282
    %v7394 = vunpack.c.l.b16 %v7283
    %v7395 = vunpack.c.h.b16 %v7283
    %v7396 = vunpack.c.l.b16 %v7284
    %v7397 = vunpack.c.h.b16 %v7284
    %v7398 = vunpack.c.l.b16 %v7285
    %v7399 = vunpack.c.h.b16 %v7285
    %v7400 = vunpack.c.l.b16 %v7286
    %v7401 = vunpack.c.h.b16 %v7286
    %v7402 = vunpack.c.l.b16 %v7287
    %v7403 = vunpack.c.h.b16 %v7287
    %v7404 = vunpack.c.l.b16 %v7288
    %v7405 = vunpack.c.h.b16 %v7288
    %v7406 = vunpack.c.l.b16 %v7289
    %v7407 = vunpack.c.h.b16 %v7289
    %v7408 = vunpack.c.l.b16 %v7290
    %v7409 = vunpack.c.h.b16 %v7290
    %v7410 = vunpack.c.l.b16 %v7291
    %v7411 = vunpack.c.h.b16 %v7291
    %v7412 = vpack.c.b16 %v7336, %v7332
    %v7413 = vpack.c.b16 %v7337, %v7333
    %v7414 = vpack.c.b16 %v7338, %v7334
    %v7415 = vpack.c.b16 %v7339, %v7335
    %v7416 = vpack.c.b16 %v7344, %v7340
    %v7417 = vpack.c.b16 %v7345, %v7341
    %v7418 = vpack.c.b16 %v7346, %v7342
    %v7419 = vpack.c.b16 %v7347, %v7343
    %v7420 = vpack.c.b16 %v7352, %v7348
    %v7421 = vpack.c.b16 %v7353, %v7349
    %v7422 = vpack.c.b16 %v7354, %v7350
    %v7423 = vpack.c.b16 %v7355, %v7351
    %v7424 = vpack.c.b16 %v7360, %v7356
    %v7425 = vpack.c.b16 %v7361, %v7357
    %v7426 = vpack.c.b16 %v7362, %v7358
    %v7427 = vpack.c.b16 %v7363, %v7359
    %v7428 = vpack.c.b16 %v7368, %v7364
    %v7429 = vpack.c.b16 %v7369, %v7365
    %v7430 = vpack.c.b16 %v7370, %v7366
    %v7431 = vpack.c.b16 %v7371, %v7367
    %v7432 = vpack.c.b16 %v7376, %v7372
    %v7433 = vpack.c.b16 %v7377, %v7373
    %v7434 = vpack.c.b16 %v7378, %v7374
    %v7435 = vpack.c.b16 %v7379, %v7375
    %v7436 = vpack.c.b16 %v7384, %v7380
    %v7437 = vpack.c.b16 %v7385, %v7381
    %v7438 = vpack.c.b16 %v7386, %v7382
    %v7439 = vpack.c.b16 %v7387, %v7383
    %v7440 = vpack.c.b16 %v7392, %v7388
    %v7441 = vpack.c.b16 %v7393, %v7389
    %v7442 = vpack.c.b16 %v7394, %v7390
    %v7443 = vpack.c.b16 %v7395, %v7391
    %v7444 = vpack.c.b16 %v7400, %v7396
    %v7445 = vpack.c.b16 %v7401, %v7397
    %v7446 = vpack.c.b16 %v7402, %v7398
    %v7447 = vpack.c.b16 %v7403, %v7399
    %v7448 = vpack.c.b16 %v7408, %v7404
    %v7449 = vpack.c.b16 %v7409, %v7405
    %v7450 = vpack.c.b16 %v7410, %v7406
    %v7451 = vpack.c.b16 %v7411, %v7407
    %v7493 = vsel %vm6214, %v7250, 0
    %7495 = vmatprep.subr.bf16.mxu0 %v7441
    %7496 = vmatpush1.bf16.msra.mxu0 %v7440
    %7497 = vmatprep.subr.bf16.mxu0 %v7437
    %7498 = vmatpush1.bf16.msra.mxu0 %v7436
    %7499 = vmatprep.subr.bf16.mxu0 %v7433
    %7500 = vmatpush1.bf16.msra.mxu0 %v7432
    %7501 = vmatprep.subr.bf16.mxu0 %v7429
    %7502 = vmatpush1.bf16.msra.mxu0 %v7428
    %7503 = vmatprep.subr.bf16.mxu0 %v7425
    %7504 = vmatpush1.bf16.msra.mxu0 %v7424
    %7505 = vmatprep.subr.bf16.mxu0 %v7421
    %7506 = vmatpush1.bf16.msra.mxu0 %v7420
    %7507 = vmatprep.subr.bf16.mxu0 %v7417
    %7508 = vmatpush1.bf16.msra.mxu0 %v7416
    %7509 = vmatprep.subr.bf16.mxu0 %v7413
    %7510 = vmatpush1.bf16.msra.mxu0 %v7412
    %7511 = vmatprep.subr.bf16.mxu0 0
    %7512 = vmatpush2.bf16.msra.mxu0 0
    %7513 = vmatprep.subr.bf16.mxu0 0
    %7514 = vmatpush2.bf16.msra.mxu0 0
    %7515 = vmatprep.subr.bf16.mxu0 0
    %7516 = vmatpush2.bf16.msra.mxu0 0
    %7517 = vmatprep.subr.bf16.mxu0 0
    %7518 = vmatpush2.bf16.msra.mxu0 0
    %7519 = vmatprep.subr.bf16.mxu0 0
    %7520 = vmatpush2.bf16.msra.mxu0 0
    %7521 = vmatprep.subr.bf16.mxu0 0
    %7522 = vmatpush2.bf16.msra.mxu0 0
    %7523 = vmatprep.subr.bf16.mxu0 %v7449
    %7524 = vmatpush2.bf16.msra.mxu0 %v7448
    %7525 = vmatprep.subr.bf16.mxu0 %v7445
    %7526 = vmatpush2.bf16.msra.mxu0 %v7444
    %7527 = vmatprep.mubr.bf16.mxu0 %v7493
    %7528 = vmatmul.mubr.bf16.gmra.mxu0 %v7249
    %v7529 = vpop.f32.mrf.mxu0
    %v7530 = vadd.f32 0.0, %v7529
    %v7531 = vpop.f32.mrf.mxu0
    %v7532 = vadd.f32 0.0, %v7531
    %v7533 = vpop.f32.mrf.mxu0
    %v7534 = vpop.f32.mrf.mxu0
    %7535 = vdwg.mxu0
    %7536 = vmatprep.subr.bf16.mxu0 %v7443
    %7537 = vmatpush1.bf16.msra.mxu0 %v7442
    %7538 = vmatprep.subr.bf16.mxu0 %v7439
    %7539 = vmatpush1.bf16.msra.mxu0 %v7438
    %7540 = vmatprep.subr.bf16.mxu0 %v7435
    %7541 = vmatpush1.bf16.msra.mxu0 %v7434
    %7542 = vmatprep.subr.bf16.mxu0 %v7431
    %7543 = vmatpush1.bf16.msra.mxu0 %v7430
    %7544 = vmatprep.subr.bf16.mxu0 %v7427
    %7545 = vmatpush1.bf16.msra.mxu0 %v7426
    %7546 = vmatprep.subr.bf16.mxu0 %v7423
    %7547 = vmatpush1.bf16.msra.mxu0 %v7422
    %7548 = vmatprep.subr.bf16.mxu0 %v7419
    %7549 = vmatpush1.bf16.msra.mxu0 %v7418
    %7550 = vmatprep.subr.bf16.mxu0 %v7415
    %7551 = vmatpush1.bf16.msra.mxu0 %v7414
    %7552 = vmatprep.subr.bf16.mxu0 0
    %7553 = vmatpush2.bf16.msra.mxu0 0
    %7554 = vmatprep.subr.bf16.mxu0 0
    %7555 = vmatpush2.bf16.msra.mxu0 0
    %7556 = vmatprep.subr.bf16.mxu0 0
    %7557 = vmatpush2.bf16.msra.mxu0 0
    %7558 = vmatprep.subr.bf16.mxu0 0
    %7559 = vmatpush2.bf16.msra.mxu0 0
    %7560 = vmatprep.subr.bf16.mxu0 0
    %7561 = vmatpush2.bf16.msra.mxu0 0
    %7562 = vmatprep.subr.bf16.mxu0 0
    %7563 = vmatpush2.bf16.msra.mxu0 0
    %7564 = vmatprep.subr.bf16.mxu0 %v7451
    %7565 = vmatpush2.bf16.msra.mxu0 %v7450
    %7566 = vmatprep.subr.bf16.mxu0 %v7447
    %7567 = vmatpush2.bf16.msra.mxu0 %v7446
    %7568 = vmatprep.mubr.bf16.mxu0 %v7493
    %7569 = vmatmul.mubr.bf16.gmra.mxu0 %v7249
    %v7570 = vpop.f32.mrf.mxu0
    %v7571 = vadd.f32 0.0, %v7570
    %v7572 = vpop.f32.mrf.mxu0
    %v7573 = vadd.f32 0.0, %v7572
    %v7574 = vpop.f32.mrf.mxu0
    %v7575 = vpop.f32.mrf.mxu0
    %7576 = vdwg.mxu0
    %v7577 = vadd.f32 %v7245, %v7530
    %v7578 = vadd.f32 %v7246, %v7532
    %v7579 = vadd.f32 %v7247, %v7571
    %v7580 = vadd.f32 %v7248, %v7573
    %v7581 = vld [vmem:[%s8] sm:$0xf]
    %v7583 = vlaneseq
    %v7584 = vshrl.u32 %v7583, 7
    %v7585 = vsub.s32 0, %v7584
    %v7586 = vrot.slane %v7581, %v7585
    %v7587 = vlaneseq
    %v7588 = vshrl.u32 %v7587, 7
    %v7589 = vsub.s32 1, %v7588
    %v7590 = vrot.slane %v7581, %v7589
    %v7591 = vlaneseq
    %v7592 = vshrl.u32 %v7591, 7
    %v7593 = vsub.s32 2, %v7592
    %v7594 = vrot.slane %v7581, %v7593
    %v7595 = vlaneseq
    %v7596 = vshrl.u32 %v7595, 7
    %v7597 = vsub.s32 3, %v7596
    %v7598 = vrot.slane %v7581, %v7597
    %v7603 = vadd.f32 %v7577, %v7586
    %v7604 = vadd.f32 %v7578, %v7590
    %v7605 = vadd.f32 %v7579, %v7594
    %v7606 = vadd.f32 %v7580, %v7598
    %v7607 = vmax.f32 %v7603, 0.0
    %v7608 = vmax.f32 %v7604, 0.0
    %v7609 = vmax.f32 %v7605, 0.0
    %v7610 = vmax.f32 %v7606, 0.0
    %v7611 = vpack.c.bf16 %v7607, %v7607
    %v7612 = vpack.c.bf16 %v7608, %v7608
    %v7613 = vpack.c.bf16 %v7609, %v7609
    %v7614 = vpack.c.bf16 %v7610, %v7610
    %v7615 = vld [vmem:[%s9] sm:$0xff]
    %v7616 = vld [vmem:[%s9 + $0x8] sm:$0xff]
    %v7617 = vld [vmem:[%s9 + $0x10] sm:$0xff]
    %v7618 = vld [vmem:[%s9 + $0x18] sm:$0xff]
    %v7619 = vld [vmem:[%s9 + $0x20] sm:$0xff]
    %v7620 = vld [vmem:[%s9 + $0x28] sm:$0xff]
    %v7621 = vld [vmem:[%s9 + $0x30] sm:$0xff]
    %v7622 = vld [vmem:[%s9 + $0x38] sm:$0xff]
    %v7623 = vld [vmem:[%s9 + $0x40] sm:$0xff]
    %v7624 = vld [vmem:[%s9 + $0x48] sm:$0xff]
    %v7625 = vld [vmem:[%s9 + $0x50] sm:$0xff]
    %v7626 = vld [vmem:[%s9 + $0x58] sm:$0xff]
    %v7627 = vld [vmem:[%s9 + $0x60] sm:$0xff]
    %v7628 = vld [vmem:[%s9 + $0x68] sm:$0xff]
    %v7629 = vld [vmem:[%s9 + $0x70] sm:$0xff]
    %v7630 = vld [vmem:[%s9 + $0x78] sm:$0xff]
    %v7631 = vld [vmem:[%s9 + $0x80] sm:$0xff]
    %v7632 = vld [vmem:[%s9 + $0x88] sm:$0xff]
    %v7633 = vld [vmem:[%s9 + $0x90] sm:$0xff]
    %v7634 = vld [vmem:[%s9 + $0x98] sm:$0xff]
    %v7635 = vld [vmem:[%s9 + $0xa0] sm:$0xff]
    %v7636 = vld [vmem:[%s9 + $0xa8] sm:$0xff]
    %v7637 = vld [vmem:[%s9 + $0xb0] sm:$0xff]
    %v7638 = vld [vmem:[%s9 + $0xb8] sm:$0xff]
    %v7639 = vld [vmem:[%s9 + $0xc0] sm:$0xff]
    %v7640 = vld [vmem:[%s9 + $0xc8] sm:$0xff]
    %v7641 = vld [vmem:[%s9 + $0xd0] sm:$0xff]
    %v7642 = vld [vmem:[%s9 + $0xd8] sm:$0xff]
    %v7643 = vld [vmem:[%s9 + $0xe0] sm:$0xff]
    %v7644 = vld [vmem:[%s9 + $0xe8] sm:$0xff]
    %v7645 = vld [vmem:[%s9 + $0xf0] sm:$0xff]
    %v7646 = vld [vmem:[%s9 + $0xf8] sm:$0xff]
    %v7647 = vld [vmem:[%s9 + $0x100] sm:$0xff]
    %v7648 = vld [vmem:[%s9 + $0x108] sm:$0xff]
    %v7649 = vld [vmem:[%s9 + $0x110] sm:$0xff]
    %v7650 = vld [vmem:[%s9 + $0x118] sm:$0xff]
    %v7651 = vld [vmem:[%s9 + $0x120] sm:$0xff]
    %v7652 = vld [vmem:[%s9 + $0x128] sm:$0xff]
    %v7653 = vld [vmem:[%s9 + $0x130] sm:$0xff]
    %v7654 = vld [vmem:[%s9 + $0x138] sm:$0xff]
    %v7655 = vld [vmem:[%s9 + $0x140] sm:$0xff]
    %v7656 = vld [vmem:[%s9 + $0x148] sm:$0xff]
    %v7657 = vld [vmem:[%s9 + $0x150] sm:$0xff]
    %v7658 = vld [vmem:[%s9 + $0x158] sm:$0xff]
    %v7659 = vld [vmem:[%s9 + $0x160] sm:$0xff]
    %v7660 = vld [vmem:[%s9 + $0x168] sm:$0xff]
    %v7661 = vld [vmem:[%s9 + $0x170] sm:$0xff]
    %v7662 = vld [vmem:[%s9 + $0x178] sm:$0xff]
    %v7663 = vld [vmem:[%s9 + $0x180] sm:$0xff]
    %v7664 = vld [vmem:[%s9 + $0x188] sm:$0xff]
    %v7665 = vld [vmem:[%s9 + $0x190] sm:$0xff]
    %v7666 = vld [vmem:[%s9 + $0x198] sm:$0xff]
    %v7667 = vld [vmem:[%s9 + $0x1a0] sm:$0xff]
    %v7668 = vld [vmem:[%s9 + $0x1a8] sm:$0xff]
    %v7669 = vld [vmem:[%s9 + $0x1b0] sm:$0xff]
    %v7670 = vld [vmem:[%s9 + $0x1b8] sm:$0xff]
    %v7671 = vld [vmem:[%s9 + $0x1c0] sm:$0xff]
    %v7672 = vld [vmem:[%s9 + $0x1c8] sm:$0xff]
    %v7673 = vld [vmem:[%s9 + $0x1d0] sm:$0xff]
    %v7674 = vld [vmem:[%s9 + $0x1d8] sm:$0xff]
    %v7675 = vld [vmem:[%s9 + $0x1e0] sm:$0xff]
    %v7676 = vld [vmem:[%s9 + $0x1e8] sm:$0xff]
    %v7677 = vld [vmem:[%s9 + $0x1f0] sm:$0xff]
    %v7678 = vld [vmem:[%s9 + $0x1f8] sm:$0xff]
    %v7679 = vld [vmem:[%s9 + $0x200] sm:$0xff]
    %v7680 = vld [vmem:[%s9 + $0x208] sm:$0xff]
    %v7681 = vld [vmem:[%s9 + $0x210] sm:$0xff]
    %v7682 = vld [vmem:[%s9 + $0x218] sm:$0xff]
    %v7683 = vld [vmem:[%s9 + $0x220] sm:$0xff]
    %v7684 = vld [vmem:[%s9 + $0x228] sm:$0xff]
    %v7685 = vld [vmem:[%s9 + $0x230] sm:$0xff]
    %v7686 = vld [vmem:[%s9 + $0x238] sm:$0xff]
    %v7687 = vld [vmem:[%s9 + $0x240] sm:$0xff]
    %v7688 = vld [vmem:[%s9 + $0x248] sm:$0xff]
    %v7689 = vld [vmem:[%s9 + $0x250] sm:$0xff]
    %v7690 = vld [vmem:[%s9 + $0x258] sm:$0xff]
    %v7691 = vld [vmem:[%s9 + $0x260] sm:$0xff]
    %v7692 = vld [vmem:[%s9 + $0x268] sm:$0xff]
    %v7693 = vld [vmem:[%s9 + $0x270] sm:$0xff]
    %v7694 = vld [vmem:[%s9 + $0x278] sm:$0xff]
    %v7695 = vld [vmem:[%s9 + $0x280] sm:$0xff]
    %v7696 = vld [vmem:[%s9 + $0x288] sm:$0xff]
    %v7697 = vld [vmem:[%s9 + $0x290] sm:$0xff]
    %v7698 = vld [vmem:[%s9 + $0x298] sm:$0xff]
    %v7699 = vld [vmem:[%s9 + $0x2a0] sm:$0xff]
    %v7700 = vld [vmem:[%s9 + $0x2a8] sm:$0xff]
    %v7701 = vld [vmem:[%s9 + $0x2b0] sm:$0xff]
    %v7702 = vld [vmem:[%s9 + $0x2b8] sm:$0xff]
    %v7703 = vld [vmem:[%s9 + $0x2c0] sm:$0xff]
    %v7704 = vld [vmem:[%s9 + $0x2c8] sm:$0xff]
    %v7705 = vld [vmem:[%s9 + $0x2d0] sm:$0xff]
    %v7706 = vld [vmem:[%s9 + $0x2d8] sm:$0xff]
    %v7707 = vld [vmem:[%s9 + $0x2e0] sm:$0xff]
    %v7708 = vld [vmem:[%s9 + $0x2e8] sm:$0xff]
    %v7709 = vld [vmem:[%s9 + $0x2f0] sm:$0xff]
    %v7710 = vld [vmem:[%s9 + $0x2f8] sm:$0xff]
    %v7711 = vld [vmem:[%s9 + $0x300] sm:$0xff]
    %v7712 = vld [vmem:[%s9 + $0x308] sm:$0xff]
    %v7713 = vld [vmem:[%s9 + $0x310] sm:$0xff]
    %v7714 = vld [vmem:[%s9 + $0x318] sm:$0xff]
    %v7715 = vld [vmem:[%s9 + $0x320] sm:$0xff]
    %v7716 = vld [vmem:[%s9 + $0x328] sm:$0xff]
    %v7717 = vld [vmem:[%s9 + $0x330] sm:$0xff]
    %v7718 = vld [vmem:[%s9 + $0x338] sm:$0xff]
    %v7719 = vld [vmem:[%s9 + $0x340] sm:$0xff]
    %v7720 = vld [vmem:[%s9 + $0x348] sm:$0xff]
    %v7721 = vld [vmem:[%s9 + $0x350] sm:$0xff]
    %v7722 = vld [vmem:[%s9 + $0x358] sm:$0xff]
    %v7723 = vld [vmem:[%s9 + $0x360] sm:$0xff]
    %v7724 = vld [vmem:[%s9 + $0x368] sm:$0xff]
    %v7725 = vld [vmem:[%s9 + $0x370] sm:$0xff]
    %v7726 = vld [vmem:[%s9 + $0x378] sm:$0xff]
    %v7727 = vld [vmem:[%s9 + $0x380] sm:$0xff]
    %v7728 = vld [vmem:[%s9 + $0x388] sm:$0xff]
    %v7729 = vld [vmem:[%s9 + $0x390] sm:$0xff]
    %v7730 = vld [vmem:[%s9 + $0x398] sm:$0xff]
    %v7731 = vld [vmem:[%s9 + $0x3a0] sm:$0xff]
    %v7732 = vld [vmem:[%s9 + $0x3a8] sm:$0xff]
    %v7733 = vld [vmem:[%s9 + $0x3b0] sm:$0xff]
    %v7734 = vld [vmem:[%s9 + $0x3b8] sm:$0xff]
    %v7735 = vld [vmem:[%s9 + $0x3c0] sm:$0xff]
    %v7736 = vld [vmem:[%s9 + $0x3c8] sm:$0xff]
    %v7737 = vld [vmem:[%s9 + $0x3d0] sm:$0xff]
    %v7738 = vld [vmem:[%s9 + $0x3d8] sm:$0xff]
    %v7739 = vld [vmem:[%s9 + $0x3e0] sm:$0x33]
    %v7740 = vld [vmem:[%s9 + $0x3e8] sm:$0x33]
    %v7741 = vld [vmem:[%s10] sm:$0xf]
    %v7743 = vlaneseq
    %v7744 = vshrl.u32 %v7743, 7
    %v7745 = vsub.s32 0, %v7744
    %v7746 = vrot.slane %v7741, %v7745
    %v7747 = vlaneseq
    %v7748 = vshrl.u32 %v7747, 7
    %v7749 = vsub.s32 1, %v7748
    %v7750 = vrot.slane %v7741, %v7749
    %v7751 = vlaneseq
    %v7752 = vshrl.u32 %v7751, 7
    %v7753 = vsub.s32 2, %v7752
    %v7754 = vrot.slane %v7741, %v7753
    %v7755 = vlaneseq
    %v7756 = vshrl.u32 %v7755, 7
    %v7757 = vsub.s32 3, %v7756
    %v7758 = vrot.slane %v7741, %v7757
    %v7889 = vunpack.c.l.b16 %v7615
    %v7890 = vunpack.c.h.b16 %v7615
    %v7891 = vunpack.c.l.b16 %v7616
    %v7892 = vunpack.c.h.b16 %v7616
    %v7893 = vunpack.c.l.b16 %v7617
    %v7894 = vunpack.c.h.b16 %v7617
    %v7895 = vunpack.c.l.b16 %v7618
    %v7896 = vunpack.c.h.b16 %v7618
    %v7897 = vunpack.c.l.b16 %v7619
    %v7898 = vunpack.c.h.b16 %v7619
    %v7899 = vunpack.c.l.b16 %v7620
    %v7900 = vunpack.c.h.b16 %v7620
    %v7901 = vunpack.c.l.b16 %v7621
    %v7902 = vunpack.c.h.b16 %v7621
    %v7903 = vunpack.c.l.b16 %v7622
    %v7904 = vunpack.c.h.b16 %v7622
    %v7905 = vunpack.c.l.b16 %v7623
    %v7906 = vunpack.c.h.b16 %v7623
    %v7907 = vunpack.c.l.b16 %v7624
    %v7908 = vunpack.c.h.b16 %v7624
    %v7909 = vunpack.c.l.b16 %v7625
    %v7910 = vunpack.c.h.b16 %v7625
    %v7911 = vunpack.c.l.b16 %v7626
    %v7912 = vunpack.c.h.b16 %v7626
    %v7913 = vunpack.c.l.b16 %v7627
    %v7914 = vunpack.c.h.b16 %v7627
    %v7915 = vunpack.c.l.b16 %v7628
    %v7916 = vunpack.c.h.b16 %v7628
    %v7917 = vunpack.c.l.b16 %v7629
    %v7918 = vunpack.c.h.b16 %v7629
    %v7919 = vunpack.c.l.b16 %v7630
    %v7920 = vunpack.c.h.b16 %v7630
    %v7921 = vunpack.c.l.b16 %v7631
    %v7922 = vunpack.c.h.b16 %v7631
    %v7923 = vunpack.c.l.b16 %v7632
    %v7924 = vunpack.c.h.b16 %v7632
    %v7925 = vunpack.c.l.b16 %v7633
    %v7926 = vunpack.c.h.b16 %v7633
    %v7927 = vunpack.c.l.b16 %v7634
    %v7928 = vunpack.c.h.b16 %v7634
    %v7929 = vunpack.c.l.b16 %v7635
    %v7930 = vunpack.c.h.b16 %v7635
    %v7931 = vunpack.c.l.b16 %v7636
    %v7932 = vunpack.c.h.b16 %v7636
    %v7933 = vunpack.c.l.b16 %v7637
    %v7934 = vunpack.c.h.b16 %v7637
    %v7935 = vunpack.c.l.b16 %v7638
    %v7936 = vunpack.c.h.b16 %v7638
    %v7937 = vunpack.c.l.b16 %v7639
    %v7938 = vunpack.c.h.b16 %v7639
    %v7939 = vunpack.c.l.b16 %v7640
    %v7940 = vunpack.c.h.b16 %v7640
    %v7941 = vunpack.c.l.b16 %v7641
    %v7942 = vunpack.c.h.b16 %v7641
    %v7943 = vunpack.c.l.b16 %v7642
    %v7944 = vunpack.c.h.b16 %v7642
    %v7945 = vunpack.c.l.b16 %v7643
    %v7946 = vunpack.c.h.b16 %v7643
    %v7947 = vunpack.c.l.b16 %v7644
    %v7948 = vunpack.c.h.b16 %v7644
    %v7949 = vunpack.c.l.b16 %v7645
    %v7950 = vunpack.c.h.b16 %v7645
    %v7951 = vunpack.c.l.b16 %v7646
    %v7952 = vunpack.c.h.b16 %v7646
    %v7953 = vunpack.c.l.b16 %v7647
    %v7954 = vunpack.c.h.b16 %v7647
    %v7955 = vunpack.c.l.b16 %v7648
    %v7956 = vunpack.c.h.b16 %v7648
    %v7957 = vunpack.c.l.b16 %v7649
    %v7958 = vunpack.c.h.b16 %v7649
    %v7959 = vunpack.c.l.b16 %v7650
    %v7960 = vunpack.c.h.b16 %v7650
    %v7961 = vunpack.c.l.b16 %v7651
    %v7962 = vunpack.c.h.b16 %v7651
    %v7963 = vunpack.c.l.b16 %v7652
    %v7964 = vunpack.c.h.b16 %v7652
    %v7965 = vunpack.c.l.b16 %v7653
    %v7966 = vunpack.c.h.b16 %v7653
    %v7967 = vunpack.c.l.b16 %v7654
    %v7968 = vunpack.c.h.b16 %v7654
    %v7969 = vunpack.c.l.b16 %v7655
    %v7970 = vunpack.c.h.b16 %v7655
    %v7971 = vunpack.c.l.b16 %v7656
    %v7972 = vunpack.c.h.b16 %v7656
    %v7973 = vunpack.c.l.b16 %v7657
    %v7974 = vunpack.c.h.b16 %v7657
    %v7975 = vunpack.c.l.b16 %v7658
    %v7976 = vunpack.c.h.b16 %v7658
    %v7977 = vunpack.c.l.b16 %v7659
    %v7978 = vunpack.c.h.b16 %v7659
    %v7979 = vunpack.c.l.b16 %v7660
    %v7980 = vunpack.c.h.b16 %v7660
    %v7981 = vunpack.c.l.b16 %v7661
    %v7982 = vunpack.c.h.b16 %v7661
    %v7983 = vunpack.c.l.b16 %v7662
    %v7984 = vunpack.c.h.b16 %v7662
    %v7985 = vunpack.c.l.b16 %v7663
    %v7986 = vunpack.c.h.b16 %v7663
    %v7987 = vunpack.c.l.b16 %v7664
    %v7988 = vunpack.c.h.b16 %v7664
    %v7989 = vunpack.c.l.b16 %v7665
    %v7990 = vunpack.c.h.b16 %v7665
    %v7991 = vunpack.c.l.b16 %v7666
    %v7992 = vunpack.c.h.b16 %v7666
    %v7993 = vunpack.c.l.b16 %v7667
    %v7994 = vunpack.c.h.b16 %v7667
    %v7995 = vunpack.c.l.b16 %v7668
    %v7996 = vunpack.c.h.b16 %v7668
    %v7997 = vunpack.c.l.b16 %v7669
    %v7998 = vunpack.c.h.b16 %v7669
    %v7999 = vunpack.c.l.b16 %v7670
    %v8000 = vunpack.c.h.b16 %v7670
    %v8001 = vunpack.c.l.b16 %v7671
    %v8002 = vunpack.c.h.b16 %v7671
    %v8003 = vunpack.c.l.b16 %v7672
    %v8004 = vunpack.c.h.b16 %v7672
    %v8005 = vunpack.c.l.b16 %v7673
    %v8006 = vunpack.c.h.b16 %v7673
    %v8007 = vunpack.c.l.b16 %v7674
    %v8008 = vunpack.c.h.b16 %v7674
    %v8009 = vunpack.c.l.b16 %v7675
    %v8010 = vunpack.c.h.b16 %v7675
    %v8011 = vunpack.c.l.b16 %v7676
    %v8012 = vunpack.c.h.b16 %v7676
    %v8013 = vunpack.c.l.b16 %v7677
    %v8014 = vunpack.c.h.b16 %v7677
    %v8015 = vunpack.c.l.b16 %v7678
    %v8016 = vunpack.c.h.b16 %v7678
    %v8017 = vunpack.c.l.b16 %v7679
    %v8018 = vunpack.c.h.b16 %v7679
    %v8019 = vunpack.c.l.b16 %v7680
    %v8020 = vunpack.c.h.b16 %v7680
    %v8021 = vunpack.c.l.b16 %v7681
    %v8022 = vunpack.c.h.b16 %v7681
    %v8023 = vunpack.c.l.b16 %v7682
    %v8024 = vunpack.c.h.b16 %v7682
    %v8025 = vunpack.c.l.b16 %v7683
    %v8026 = vunpack.c.h.b16 %v7683
    %v8027 = vunpack.c.l.b16 %v7684
    %v8028 = vunpack.c.h.b16 %v7684
    %v8029 = vunpack.c.l.b16 %v7685
    %v8030 = vunpack.c.h.b16 %v7685
    %v8031 = vunpack.c.l.b16 %v7686
    %v8032 = vunpack.c.h.b16 %v7686
    %v8033 = vunpack.c.l.b16 %v7687
    %v8034 = vunpack.c.h.b16 %v7687
    %v8035 = vunpack.c.l.b16 %v7688
    %v8036 = vunpack.c.h.b16 %v7688
    %v8037 = vunpack.c.l.b16 %v7689
    %v8038 = vunpack.c.h.b16 %v7689
    %v8039 = vunpack.c.l.b16 %v7690
    %v8040 = vunpack.c.h.b16 %v7690
    %v8041 = vunpack.c.l.b16 %v7691
    %v8042 = vunpack.c.h.b16 %v7691
    %v8043 = vunpack.c.l.b16 %v7692
    %v8044 = vunpack.c.h.b16 %v7692
    %v8045 = vunpack.c.l.b16 %v7693
    %v8046 = vunpack.c.h.b16 %v7693
    %v8047 = vunpack.c.l.b16 %v7694
    %v8048 = vunpack.c.h.b16 %v7694
    %v8049 = vunpack.c.l.b16 %v7695
    %v8050 = vunpack.c.h.b16 %v7695
    %v8051 = vunpack.c.l.b16 %v7696
    %v8052 = vunpack.c.h.b16 %v7696
    %v8053 = vunpack.c.l.b16 %v7697
    %v8054 = vunpack.c.h.b16 %v7697
    %v8055 = vunpack.c.l.b16 %v7698
    %v8056 = vunpack.c.h.b16 %v7698
    %v8057 = vunpack.c.l.b16 %v7699
    %v8058 = vunpack.c.h.b16 %v7699
    %v8059 = vunpack.c.l.b16 %v7700
    %v8060 = vunpack.c.h.b16 %v7700
    %v8061 = vunpack.c.l.b16 %v7701
    %v8062 = vunpack.c.h.b16 %v7701
    %v8063 = vunpack.c.l.b16 %v7702
    %v8064 = vunpack.c.h.b16 %v7702
    %v8065 = vunpack.c.l.b16 %v7703
    %v8066 = vunpack.c.h.b16 %v7703
    %v8067 = vunpack.c.l.b16 %v7704
    %v8068 = vunpack.c.h.b16 %v7704
    %v8069 = vunpack.c.l.b16 %v7705
    %v8070 = vunpack.c.h.b16 %v7705
    %v8071 = vunpack.c.l.b16 %v7706
    %v8072 = vunpack.c.h.b16 %v7706
    %v8073 = vunpack.c.l.b16 %v7707
    %v8074 = vunpack.c.h.b16 %v7707
    %v8075 = vunpack.c.l.b16 %v7708
    %v8076 = vunpack.c.h.b16 %v7708
    %v8077 = vunpack.c.l.b16 %v7709
    %v8078 = vunpack.c.h.b16 %v7709
    %v8079 = vunpack.c.l.b16 %v7710
    %v8080 = vunpack.c.h.b16 %v7710
    %v8081 = vunpack.c.l.b16 %v7711
    %v8082 = vunpack.c.h.b16 %v7711
    %v8083 = vunpack.c.l.b16 %v7712
    %v8084 = vunpack.c.h.b16 %v7712
    %v8085 = vunpack.c.l.b16 %v7713
    %v8086 = vunpack.c.h.b16 %v7713
    %v8087 = vunpack.c.l.b16 %v7714
    %v8088 = vunpack.c.h.b16 %v7714
    %v8089 = vunpack.c.l.b16 %v7715
    %v8090 = vunpack.c.h.b16 %v7715
    %v8091 = vunpack.c.l.b16 %v7716
    %v8092 = vunpack.c.h.b16 %v7716
    %v8093 = vunpack.c.l.b16 %v7717
    %v8094 = vunpack.c.h.b16 %v7717
    %v8095 = vunpack.c.l.b16 %v7718
    %v8096 = vunpack.c.h.b16 %v7718
    %v8097 = vunpack.c.l.b16 %v7719
    %v8098 = vunpack.c.h.b16 %v7719
    %v8099 = vunpack.c.l.b16 %v7720
    %v8100 = vunpack.c.h.b16 %v7720
    %v8101 = vunpack.c.l.b16 %v7721
    %v8102 = vunpack.c.h.b16 %v7721
    %v8103 = vunpack.c.l.b16 %v7722
    %v8104 = vunpack.c.h.b16 %v7722
    %v8105 = vunpack.c.l.b16 %v7723
    %v8106 = vunpack.c.h.b16 %v7723
    %v8107 = vunpack.c.l.b16 %v7724
    %v8108 = vunpack.c.h.b16 %v7724
    %v8109 = vunpack.c.l.b16 %v7725
    %v8110 = vunpack.c.h.b16 %v7725
    %v8111 = vunpack.c.l.b16 %v7726
    %v8112 = vunpack.c.h.b16 %v7726
    %v8113 = vunpack.c.l.b16 %v7727
    %v8114 = vunpack.c.h.b16 %v7727
    %v8115 = vunpack.c.l.b16 %v7728
    %v8116 = vunpack.c.h.b16 %v7728
    %v8117 = vunpack.c.l.b16 %v7729
    %v8118 = vunpack.c.h.b16 %v7729
    %v8119 = vunpack.c.l.b16 %v7730
    %v8120 = vunpack.c.h.b16 %v7730
    %v8121 = vunpack.c.l.b16 %v7731
    %v8122 = vunpack.c.h.b16 %v7731
    %v8123 = vunpack.c.l.b16 %v7732
    %v8124 = vunpack.c.h.b16 %v7732
    %v8125 = vunpack.c.l.b16 %v7733
    %v8126 = vunpack.c.h.b16 %v7733
    %v8127 = vunpack.c.l.b16 %v7734
    %v8128 = vunpack.c.h.b16 %v7734
    %v8129 = vunpack.c.l.b16 %v7735
    %v8130 = vunpack.c.h.b16 %v7735
    %v8131 = vunpack.c.l.b16 %v7736
    %v8132 = vunpack.c.h.b16 %v7736
    %v8133 = vunpack.c.l.b16 %v7737
    %v8134 = vunpack.c.h.b16 %v7737
    %v8135 = vunpack.c.l.b16 %v7738
    %v8136 = vunpack.c.h.b16 %v7738
    %v8137 = vunpack.c.l.b16 %v7739
    %v8138 = vunpack.c.h.b16 %v7739
    %v8139 = vunpack.c.l.b16 %v7740
    %v8140 = vunpack.c.h.b16 %v7740
    %v8141 = vpack.c.b16 %v7893, %v7889
    %v8142 = vpack.c.b16 %v7894, %v7890
    %v8143 = vpack.c.b16 %v7895, %v7891
    %v8144 = vpack.c.b16 %v7896, %v7892
    %v8145 = vpack.c.b16 %v7901, %v7897
    %v8146 = vpack.c.b16 %v7902, %v7898
    %v8147 = vpack.c.b16 %v7903, %v7899
    %v8148 = vpack.c.b16 %v7904, %v7900
    %v8149 = vpack.c.b16 %v7909, %v7905
    %v8150 = vpack.c.b16 %v7910, %v7906
    %v8151 = vpack.c.b16 %v7911, %v7907
    %v8152 = vpack.c.b16 %v7912, %v7908
    %v8153 = vpack.c.b16 %v7917, %v7913
    %v8154 = vpack.c.b16 %v7918, %v7914
    %v8155 = vpack.c.b16 %v7919, %v7915
    %v8156 = vpack.c.b16 %v7920, %v7916
    %v8157 = vpack.c.b16 %v7925, %v7921
    %v8158 = vpack.c.b16 %v7926, %v7922
    %v8159 = vpack.c.b16 %v7927, %v7923
    %v8160 = vpack.c.b16 %v7928, %v7924
    %v8161 = vpack.c.b16 %v7933, %v7929
    %v8162 = vpack.c.b16 %v7934, %v7930
    %v8163 = vpack.c.b16 %v7935, %v7931
    %v8164 = vpack.c.b16 %v7936, %v7932
    %v8165 = vpack.c.b16 %v7941, %v7937
    %v8166 = vpack.c.b16 %v7942, %v7938
    %v8167 = vpack.c.b16 %v7943, %v7939
    %v8168 = vpack.c.b16 %v7944, %v7940
    %v8169 = vpack.c.b16 %v7949, %v7945
    %v8170 = vpack.c.b16 %v7950, %v7946
    %v8171 = vpack.c.b16 %v7951, %v7947
    %v8172 = vpack.c.b16 %v7952, %v7948
    %v8173 = vpack.c.b16 %v7957, %v7953
    %v8174 = vpack.c.b16 %v7958, %v7954
    %v8175 = vpack.c.b16 %v7959, %v7955
    %v8176 = vpack.c.b16 %v7960, %v7956
    %v8177 = vpack.c.b16 %v7965, %v7961
    %v8178 = vpack.c.b16 %v7966, %v7962
    %v8179 = vpack.c.b16 %v7967, %v7963
    %v8180 = vpack.c.b16 %v7968, %v7964
    %v8181 = vpack.c.b16 %v7973, %v7969
    %v8182 = vpack.c.b16 %v7974, %v7970
    %v8183 = vpack.c.b16 %v7975, %v7971
    %v8184 = vpack.c.b16 %v7976, %v7972
    %v8185 = vpack.c.b16 %v7981, %v7977
    %v8186 = vpack.c.b16 %v7982, %v7978
    %v8187 = vpack.c.b16 %v7983, %v7979
    %v8188 = vpack.c.b16 %v7984, %v7980
    %v8189 = vpack.c.b16 %v7989, %v7985
    %v8190 = vpack.c.b16 %v7990, %v7986
    %v8191 = vpack.c.b16 %v7991, %v7987
    %v8192 = vpack.c.b16 %v7992, %v7988
    %v8193 = vpack.c.b16 %v7997, %v7993
    %v8194 = vpack.c.b16 %v7998, %v7994
    %v8195 = vpack.c.b16 %v7999, %v7995
    %v8196 = vpack.c.b16 %v8000, %v7996
    %v8197 = vpack.c.b16 %v8005, %v8001
    %v8198 = vpack.c.b16 %v8006, %v8002
    %v8199 = vpack.c.b16 %v8007, %v8003
    %v8200 = vpack.c.b16 %v8008, %v8004
    %v8201 = vpack.c.b16 %v8013, %v8009
    %v8202 = vpack.c.b16 %v8014, %v8010
    %v8203 = vpack.c.b16 %v8015, %v8011
    %v8204 = vpack.c.b16 %v8016, %v8012
    %v8205 = vpack.c.b16 %v8021, %v8017
    %v8206 = vpack.c.b16 %v8022, %v8018
    %v8207 = vpack.c.b16 %v8023, %v8019
    %v8208 = vpack.c.b16 %v8024, %v8020
    %v8209 = vpack.c.b16 %v8029, %v8025
    %v8210 = vpack.c.b16 %v8030, %v8026
    %v8211 = vpack.c.b16 %v8031, %v8027
    %v8212 = vpack.c.b16 %v8032, %v8028
    %v8213 = vpack.c.b16 %v8037, %v8033
    %v8214 = vpack.c.b16 %v8038, %v8034
    %v8215 = vpack.c.b16 %v8039, %v8035
    %v8216 = vpack.c.b16 %v8040, %v8036
    %v8217 = vpack.c.b16 %v8045, %v8041
    %v8218 = vpack.c.b16 %v8046, %v8042
    %v8219 = vpack.c.b16 %v8047, %v8043
    %v8220 = vpack.c.b16 %v8048, %v8044
    %v8221 = vpack.c.b16 %v8053, %v8049
    %v8222 = vpack.c.b16 %v8054, %v8050
    %v8223 = vpack.c.b16 %v8055, %v8051
    %v8224 = vpack.c.b16 %v8056, %v8052
    %v8225 = vpack.c.b16 %v8061, %v8057
    %v8226 = vpack.c.b16 %v8062, %v8058
    %v8227 = vpack.c.b16 %v8063, %v8059
    %v8228 = vpack.c.b16 %v8064, %v8060
    %v8229 = vpack.c.b16 %v8069, %v8065
    %v8230 = vpack.c.b16 %v8070, %v8066
    %v8231 = vpack.c.b16 %v8071, %v8067
    %v8232 = vpack.c.b16 %v8072, %v8068
    %v8233 = vpack.c.b16 %v8077, %v8073
    %v8234 = vpack.c.b16 %v8078, %v8074
    %v8235 = vpack.c.b16 %v8079, %v8075
    %v8236 = vpack.c.b16 %v8080, %v8076
    %v8237 = vpack.c.b16 %v8085, %v8081
    %v8238 = vpack.c.b16 %v8086, %v8082
    %v8239 = vpack.c.b16 %v8087, %v8083
    %v8240 = vpack.c.b16 %v8088, %v8084
    %v8241 = vpack.c.b16 %v8093, %v8089
    %v8242 = vpack.c.b16 %v8094, %v8090
    %v8243 = vpack.c.b16 %v8095, %v8091
    %v8244 = vpack.c.b16 %v8096, %v8092
    %v8245 = vpack.c.b16 %v8101, %v8097
    %v8246 = vpack.c.b16 %v8102, %v8098
    %v8247 = vpack.c.b16 %v8103, %v8099
    %v8248 = vpack.c.b16 %v8104, %v8100
    %v8249 = vpack.c.b16 %v8109, %v8105
    %v8250 = vpack.c.b16 %v8110, %v8106
    %v8251 = vpack.c.b16 %v8111, %v8107
    %v8252 = vpack.c.b16 %v8112, %v8108
    %v8253 = vpack.c.b16 %v8117, %v8113
    %v8254 = vpack.c.b16 %v8118, %v8114
    %v8255 = vpack.c.b16 %v8119, %v8115
    %v8256 = vpack.c.b16 %v8120, %v8116
    %v8257 = vpack.c.b16 %v8125, %v8121
    %v8258 = vpack.c.b16 %v8126, %v8122
    %v8259 = vpack.c.b16 %v8127, %v8123
    %v8260 = vpack.c.b16 %v8128, %v8124
    %v8261 = vpack.c.b16 %v8133, %v8129
    %v8262 = vpack.c.b16 %v8134, %v8130
    %v8263 = vpack.c.b16 %v8135, %v8131
    %v8264 = vpack.c.b16 %v8136, %v8132
    %v8265 = vpack.c.b16 %v8137, %v8137
    %v8266 = vpack.c.b16 %v8138, %v8138
    %v8267 = vpack.c.b16 %v8139, %v8139
    %v8268 = vpack.c.b16 %v8140, %v8140
    %vm8393 = vcmask 949248
    %v8395 = vsel %vm8393, %v7614, 0
    %vm8397 = vcmask 1041408
    %v8399 = vsel %vm8397, %v8265, 0
    %v8402 = vsel %vm8397, %v8266, 0
    %v8405 = vsel %vm8397, %v8267, 0
    %v8408 = vsel %vm8397, %v8268, 0
    %8410 = vmatprep.subr.bf16.mxu0 %v8170
    %8411 = vmatpush1.bf16.msra.mxu0 %v8169
    %8412 = vmatprep.subr.bf16.mxu0 %v8166
    %8413 = vmatpush1.bf16.msra.mxu0 %v8165
    %8414 = vmatprep.subr.bf16.mxu0 %v8162
    %8415 = vmatpush1.bf16.msra.mxu0 %v8161
    %8416 = vmatprep.subr.bf16.mxu0 %v8158
    %8417 = vmatpush1.bf16.msra.mxu0 %v8157
    %8418 = vmatprep.subr.bf16.mxu0 %v8154
    %8419 = vmatpush1.bf16.msra.mxu0 %v8153
    %8420 = vmatprep.subr.bf16.mxu0 %v8150
    %8421 = vmatpush1.bf16.msra.mxu0 %v8149
    %8422 = vmatprep.subr.bf16.mxu0 %v8146
    %8423 = vmatpush1.bf16.msra.mxu0 %v8145
    %8424 = vmatprep.subr.bf16.mxu0 %v8142
    %8425 = vmatpush1.bf16.msra.mxu0 %v8141
    %8426 = vmatprep.subr.bf16.mxu0 %v8202
    %8427 = vmatpush2.bf16.msra.mxu0 %v8201
    %8428 = vmatprep.subr.bf16.mxu0 %v8198
    %8429 = vmatpush2.bf16.msra.mxu0 %v8197
    %8430 = vmatprep.subr.bf16.mxu0 %v8194
    %8431 = vmatpush2.bf16.msra.mxu0 %v8193
    %8432 = vmatprep.subr.bf16.mxu0 %v8190
    %8433 = vmatpush2.bf16.msra.mxu0 %v8189
    %8434 = vmatprep.subr.bf16.mxu0 %v8186
    %8435 = vmatpush2.bf16.msra.mxu0 %v8185
    %8436 = vmatprep.subr.bf16.mxu0 %v8182
    %8437 = vmatpush2.bf16.msra.mxu0 %v8181
    %8438 = vmatprep.subr.bf16.mxu0 %v8178
    %8439 = vmatpush2.bf16.msra.mxu0 %v8177
    %8440 = vmatprep.subr.bf16.mxu0 %v8174
    %8441 = vmatpush2.bf16.msra.mxu0 %v8173
    %8442 = vmatprep.mubr.bf16.mxu0 %v7612
    %8443 = vmatmul.mubr.bf16.gmra.mxu0 %v7611
    %v8444 = vpop.f32.mrf.mxu0
    %v8445 = vadd.f32 %v7746, %v8444
    %v8446 = vpop.f32.mrf.mxu0
    %v8447 = vadd.f32 %v7750, %v8446
    %v8448 = vpop.f32.mrf.mxu0
    %v8449 = vpop.f32.mrf.mxu0
    %8450 = vdwg.mxu0
    %8451 = vmatprep.subr.bf16.mxu0 %v8234
    %8452 = vmatpush1.bf16.msra.mxu0 %v8233
    %8453 = vmatprep.subr.bf16.mxu0 %v8230
    %8454 = vmatpush1.bf16.msra.mxu0 %v8229
    %8455 = vmatprep.subr.bf16.mxu0 %v8226
    %8456 = vmatpush1.bf16.msra.mxu0 %v8225
    %8457 = vmatprep.subr.bf16.mxu0 %v8222
    %8458 = vmatpush1.bf16.msra.mxu0 %v8221
    %8459 = vmatprep.subr.bf16.mxu0 %v8218
    %8460 = vmatpush1.bf16.msra.mxu0 %v8217
    %8461 = vmatprep.subr.bf16.mxu0 %v8214
    %8462 = vmatpush1.bf16.msra.mxu0 %v8213
    %8463 = vmatprep.subr.bf16.mxu0 %v8210
    %8464 = vmatpush1.bf16.msra.mxu0 %v8209
    %8465 = vmatprep.subr.bf16.mxu0 %v8206
    %8466 = vmatpush1.bf16.msra.mxu0 %v8205
    %8467 = vmatprep.subr.bf16.mxu0 %v8402
    %8468 = vmatpush2.bf16.msra.mxu0 %v8399
    %8469 = vmatprep.subr.bf16.mxu0 %v8262
    %8470 = vmatpush2.bf16.msra.mxu0 %v8261
    %8471 = vmatprep.subr.bf16.mxu0 %v8258
    %8472 = vmatpush2.bf16.msra.mxu0 %v8257
    %8473 = vmatprep.subr.bf16.mxu0 %v8254
    %8474 = vmatpush2.bf16.msra.mxu0 %v8253
    %8475 = vmatprep.subr.bf16.mxu0 %v8250
    %8476 = vmatpush2.bf16.msra.mxu0 %v8249
    %8477 = vmatprep.subr.bf16.mxu0 %v8246
    %8478 = vmatpush2.bf16.msra.mxu0 %v8245
    %8479 = vmatprep.subr.bf16.mxu0 %v8242
    %8480 = vmatpush2.bf16.msra.mxu0 %v8241
    %8481 = vmatprep.subr.bf16.mxu0 %v8238
    %8482 = vmatpush2.bf16.msra.mxu0 %v8237
    %8483 = vmatprep.mubr.bf16.mxu0 %v8395
    %8484 = vmatmul.mubr.bf16.gmra.mxu0 %v7613
    %v8485 = vpop.f32.mrf.mxu0
    %v8486 = vadd.f32 %v8445, %v8485
    %v8487 = vpop.f32.mrf.mxu0
    %v8488 = vadd.f32 %v8447, %v8487
    %v8489 = vpop.f32.mrf.mxu0
    %v8490 = vpop.f32.mrf.mxu0
    %8491 = vdwg.mxu0
    %8492 = vmatprep.subr.bf16.mxu0 %v8172
    %8493 = vmatpush1.bf16.msra.mxu0 %v8171
    %8494 = vmatprep.subr.bf16.mxu0 %v8168
    %8495 = vmatpush1.bf16.msra.mxu0 %v8167
    %8496 = vmatprep.subr.bf16.mxu0 %v8164
    %8497 = vmatpush1.bf16.msra.mxu0 %v8163
    %8498 = vmatprep.subr.bf16.mxu0 %v8160
    %8499 = vmatpush1.bf16.msra.mxu0 %v8159
    %8500 = vmatprep.subr.bf16.mxu0 %v8156
    %8501 = vmatpush1.bf16.msra.mxu0 %v8155
    %8502 = vmatprep.subr.bf16.mxu0 %v8152
    %8503 = vmatpush1.bf16.msra.mxu0 %v8151
    %8504 = vmatprep.subr.bf16.mxu0 %v8148
    %8505 = vmatpush1.bf16.msra.mxu0 %v8147
    %8506 = vmatprep.subr.bf16.mxu0 %v8144
    %8507 = vmatpush1.bf16.msra.mxu0 %v8143
    %8508 = vmatprep.subr.bf16.mxu0 %v8204
    %8509 = vmatpush2.bf16.msra.mxu0 %v8203
    %8510 = vmatprep.subr.bf16.mxu0 %v8200
    %8511 = vmatpush2.bf16.msra.mxu0 %v8199
    %8512 = vmatprep.subr.bf16.mxu0 %v8196
    %8513 = vmatpush2.bf16.msra.mxu0 %v8195
    %8514 = vmatprep.subr.bf16.mxu0 %v8192
    %8515 = vmatpush2.bf16.msra.mxu0 %v8191
    %8516 = vmatprep.subr.bf16.mxu0 %v8188
    %8517 = vmatpush2.bf16.msra.mxu0 %v8187
    %8518 = vmatprep.subr.bf16.mxu0 %v8184
    %8519 = vmatpush2.bf16.msra.mxu0 %v8183
    %8520 = vmatprep.subr.bf16.mxu0 %v8180
    %8521 = vmatpush2.bf16.msra.mxu0 %v8179
    %8522 = vmatprep.subr.bf16.mxu0 %v8176
    %8523 = vmatpush2.bf16.msra.mxu0 %v8175
    %8524 = vmatprep.mubr.bf16.mxu0 %v7612
    %8525 = vmatmul.mubr.bf16.gmra.mxu0 %v7611
    %v8526 = vpop.f32.mrf.mxu0
    %v8527 = vadd.f32 %v7754, %v8526
    %v8528 = vpop.f32.mrf.mxu0
    %v8529 = vadd.f32 %v7758, %v8528
    %v8530 = vpop.f32.mrf.mxu0
    %v8531 = vpop.f32.mrf.mxu0
    %8532 = vdwg.mxu0
    %8533 = vmatprep.subr.bf16.mxu0 %v8236
    %8534 = vmatpush1.bf16.msra.mxu0 %v8235
    %8535 = vmatprep.subr.bf16.mxu0 %v8232
    %8536 = vmatpush1.bf16.msra.mxu0 %v8231
    %8537 = vmatprep.subr.bf16.mxu0 %v8228
    %8538 = vmatpush1.bf16.msra.mxu0 %v8227
    %8539 = vmatprep.subr.bf16.mxu0 %v8224
    %8540 = vmatpush1.bf16.msra.mxu0 %v8223
    %8541 = vmatprep.subr.bf16.mxu0 %v8220
    %8542 = vmatpush1.bf16.msra.mxu0 %v8219
    %8543 = vmatprep.subr.bf16.mxu0 %v8216
    %8544 = vmatpush1.bf16.msra.mxu0 %v8215
    %8545 = vmatprep.subr.bf16.mxu0 %v8212
    %8546 = vmatpush1.bf16.msra.mxu0 %v8211
    %8547 = vmatprep.subr.bf16.mxu0 %v8208
    %8548 = vmatpush1.bf16.msra.mxu0 %v8207
    %8549 = vmatprep.subr.bf16.mxu0 %v8408
    %8550 = vmatpush2.bf16.msra.mxu0 %v8405
    %8551 = vmatprep.subr.bf16.mxu0 %v8264
    %8552 = vmatpush2.bf16.msra.mxu0 %v8263
    %8553 = vmatprep.subr.bf16.mxu0 %v8260
    %8554 = vmatpush2.bf16.msra.mxu0 %v8259
    %8555 = vmatprep.subr.bf16.mxu0 %v8256
    %8556 = vmatpush2.bf16.msra.mxu0 %v8255
    %8557 = vmatprep.subr.bf16.mxu0 %v8252
    %8558 = vmatpush2.bf16.msra.mxu0 %v8251
    %8559 = vmatprep.subr.bf16.mxu0 %v8248
    %8560 = vmatpush2.bf16.msra.mxu0 %v8247
    %8561 = vmatprep.subr.bf16.mxu0 %v8244
    %8562 = vmatpush2.bf16.msra.mxu0 %v8243
    %8563 = vmatprep.subr.bf16.mxu0 %v8240
    %8564 = vmatpush2.bf16.msra.mxu0 %v8239
    %8565 = vmatprep.mubr.bf16.mxu0 %v8395
    %8566 = vmatmul.mubr.bf16.gmra.mxu0 %v7613
    %v8567 = vpop.f32.mrf.mxu0
    %v8568 = vadd.f32 %v8527, %v8567
    %v8569 = vpop.f32.mrf.mxu0
    %v8570 = vadd.f32 %v8529, %v8569
    %v8571 = vpop.f32.mrf.mxu0
    %v8572 = vpop.f32.mrf.mxu0
    %8573 = vdwg.mxu0
    %v8574 = vmax.f32 %v8486, 0.0
    %v8575 = vmax.f32 %v8488, 0.0
    %v8576 = vmax.f32 %v8568, 0.0
    %v8577 = vmax.f32 %v8570, 0.0
    %8578 = vst [vmem:[%s14] sm:$0xff] %v8574
    %8579 = vst [vmem:[%s14 + $0x8] sm:$0xff] %v8575
    %8580 = vst [vmem:[%s14 + $0x10] sm:$0xff] %v8576
    %8581 = vst.msk [vmem:[%s14 + $0x18] sm:$0xff] %vm8393, %v8577
    %v8582 = vpack.c.bf16 %v8574, %v8574
    %v8583 = vpack.c.bf16 %v8575, %v8575
    %v8584 = vpack.c.bf16 %v8576, %v8576
    %v8585 = vpack.c.bf16 %v8577, %v8577
    %v8586 = vld [vmem:[%s11] sm:$0xf]
    %v8587 = vld [vmem:[%s11 + $0x4] sm:$0xf]
    %v8588 = vld [vmem:[%s11 + $0x8] sm:$0xf]
    %v8589 = vld [vmem:[%s11 + $0xc] sm:$0xf]
    %v8590 = vld [vmem:[%s11 + $0x10] sm:$0xf]
    %v8591 = vld [vmem:[%s11 + $0x14] sm:$0xf]
    %v8592 = vld [vmem:[%s11 + $0x18] sm:$0xf]
    %v8593 = vld [vmem:[%s11 + $0x1c] sm:$0xf]
    %v8594 = vld [vmem:[%s11 + $0x20] sm:$0xf]
    %v8595 = vld [vmem:[%s11 + $0x24] sm:$0xf]
    %v8596 = vld [vmem:[%s11 + $0x28] sm:$0xf]
    %v8597 = vld [vmem:[%s11 + $0x2c] sm:$0xf]
    %v8598 = vld [vmem:[%s11 + $0x30] sm:$0xf]
    %v8599 = vld [vmem:[%s11 + $0x34] sm:$0xf]
    %v8600 = vld [vmem:[%s11 + $0x38] sm:$0xf]
    %v8601 = vld [vmem:[%s11 + $0x3c] sm:$0xf]
    %v8602 = vld [vmem:[%s11 + $0x40] sm:$0xf]
    %v8603 = vld [vmem:[%s11 + $0x44] sm:$0xf]
    %v8604 = vld [vmem:[%s11 + $0x48] sm:$0xf]
    %v8605 = vld [vmem:[%s11 + $0x4c] sm:$0xf]
    %v8606 = vld [vmem:[%s11 + $0x50] sm:$0xf]
    %v8607 = vld [vmem:[%s11 + $0x54] sm:$0xf]
    %v8608 = vld [vmem:[%s11 + $0x58] sm:$0xf]
    %v8609 = vld [vmem:[%s11 + $0x5c] sm:$0xf]
    %v8610 = vld [vmem:[%s11 + $0x60] sm:$0xf]
    %v8611 = vld [vmem:[%s11 + $0x64] sm:$0xf]
    %v8612 = vld [vmem:[%s11 + $0x68] sm:$0xf]
    %v8613 = vld [vmem:[%s11 + $0x6c] sm:$0xf]
    %v8614 = vld [vmem:[%s11 + $0x70] sm:$0xf]
    %v8615 = vld [vmem:[%s11 + $0x74] sm:$0xf]
    %v8616 = vld [vmem:[%s11 + $0x78] sm:$0xf]
    %v8617 = vld [vmem:[%s11 + $0x7c] sm:$0xf]
    %v8618 = vld [vmem:[%s11 + $0x80] sm:$0xf]
    %v8619 = vld [vmem:[%s11 + $0x84] sm:$0xf]
    %v8620 = vld [vmem:[%s11 + $0x88] sm:$0xf]
    %v8621 = vld [vmem:[%s11 + $0x8c] sm:$0xf]
    %v8622 = vld [vmem:[%s11 + $0x90] sm:$0xf]
    %v8623 = vld [vmem:[%s11 + $0x94] sm:$0xf]
    %v8624 = vld [vmem:[%s11 + $0x98] sm:$0xf]
    %v8625 = vld [vmem:[%s11 + $0x9c] sm:$0xf]
    %v8626 = vld [vmem:[%s11 + $0xa0] sm:$0xf]
    %v8627 = vld [vmem:[%s11 + $0xa4] sm:$0xf]
    %v8628 = vld [vmem:[%s11 + $0xa8] sm:$0xf]
    %v8629 = vld [vmem:[%s11 + $0xac] sm:$0xf]
    %v8630 = vld [vmem:[%s11 + $0xb0] sm:$0xf]
    %v8631 = vld [vmem:[%s11 + $0xb4] sm:$0xf]
    %v8632 = vld [vmem:[%s11 + $0xb8] sm:$0xf]
    %v8633 = vld [vmem:[%s11 + $0xbc] sm:$0xf]
    %v8634 = vld [vmem:[%s11 + $0xc0] sm:$0xf]
    %v8635 = vld [vmem:[%s11 + $0xc4] sm:$0xf]
    %v8636 = vld [vmem:[%s11 + $0xc8] sm:$0xf]
    %v8637 = vld [vmem:[%s11 + $0xcc] sm:$0xf]
    %v8638 = vld [vmem:[%s11 + $0xd0] sm:$0xf]
    %v8639 = vld [vmem:[%s11 + $0xd4] sm:$0xf]
    %v8640 = vld [vmem:[%s11 + $0xd8] sm:$0xf]
    %v8641 = vld [vmem:[%s11 + $0xdc] sm:$0xf]
    %v8642 = vld [vmem:[%s11 + $0xe0] sm:$0xf]
    %v8643 = vld [vmem:[%s11 + $0xe4] sm:$0xf]
    %v8644 = vld [vmem:[%s11 + $0xe8] sm:$0xf]
    %v8645 = vld [vmem:[%s11 + $0xec] sm:$0xf]
    %v8646 = vld [vmem:[%s11 + $0xf0] sm:$0xf]
    %v8647 = vld [vmem:[%s11 + $0xf4] sm:$0xf]
    %v8648 = vld [vmem:[%s11 + $0xf8] sm:$0x3]
    %v8649 = vld [vmem:[%s12] sm:$0x1]
    %v8651 = vlaneseq
    %v8652 = vshrl.u32 %v8651, 7
    %v8653 = vsub.s32 0, %v8652
    %v8654 = vrot.slane %v8649, %v8653
    %v8719 = vunpack.c.l.b16 %v8586
    %v8720 = vunpack.c.l.b16 %v8587
    %v8721 = vunpack.c.l.b16 %v8588
    %v8722 = vunpack.c.l.b16 %v8589
    %v8723 = vunpack.c.l.b16 %v8590
    %v8724 = vunpack.c.l.b16 %v8591
    %v8725 = vunpack.c.l.b16 %v8592
    %v8726 = vunpack.c.l.b16 %v8593
    %v8727 = vunpack.c.l.b16 %v8594
    %v8728 = vunpack.c.l.b16 %v8595
    %v8729 = vunpack.c.l.b16 %v8596
    %v8730 = vunpack.c.l.b16 %v8597
    %v8731 = vunpack.c.l.b16 %v8598
    %v8732 = vunpack.c.l.b16 %v8599
    %v8733 = vunpack.c.l.b16 %v8600
    %v8734 = vunpack.c.l.b16 %v8601
    %v8735 = vunpack.c.l.b16 %v8602
    %v8736 = vunpack.c.l.b16 %v8603
    %v8737 = vunpack.c.l.b16 %v8604
    %v8738 = vunpack.c.l.b16 %v8605
    %v8739 = vunpack.c.l.b16 %v8606
    %v8740 = vunpack.c.l.b16 %v8607
    %v8741 = vunpack.c.l.b16 %v8608
    %v8742 = vunpack.c.l.b16 %v8609
    %v8743 = vunpack.c.l.b16 %v8610
    %v8744 = vunpack.c.l.b16 %v8611
    %v8745 = vunpack.c.l.b16 %v8612
    %v8746 = vunpack.c.l.b16 %v8613
    %v8747 = vunpack.c.l.b16 %v8614
    %v8748 = vunpack.c.l.b16 %v8615
    %v8749 = vunpack.c.l.b16 %v8616
    %v8750 = vunpack.c.l.b16 %v8617
    %v8751 = vunpack.c.l.b16 %v8618
    %v8752 = vunpack.c.l.b16 %v8619
    %v8753 = vunpack.c.l.b16 %v8620
    %v8754 = vunpack.c.l.b16 %v8621
    %v8755 = vunpack.c.l.b16 %v8622
    %v8756 = vunpack.c.l.b16 %v8623
    %v8757 = vunpack.c.l.b16 %v8624
    %v8758 = vunpack.c.l.b16 %v8625
    %v8759 = vunpack.c.l.b16 %v8626
    %v8760 = vunpack.c.l.b16 %v8627
    %v8761 = vunpack.c.l.b16 %v8628
    %v8762 = vunpack.c.l.b16 %v8629
    %v8763 = vunpack.c.l.b16 %v8630
    %v8764 = vunpack.c.l.b16 %v8631
    %v8765 = vunpack.c.l.b16 %v8632
    %v8766 = vunpack.c.l.b16 %v8633
    %v8767 = vunpack.c.l.b16 %v8634
    %v8768 = vunpack.c.l.b16 %v8635
    %v8769 = vunpack.c.l.b16 %v8636
    %v8770 = vunpack.c.l.b16 %v8637
    %v8771 = vunpack.c.l.b16 %v8638
    %v8772 = vunpack.c.l.b16 %v8639
    %v8773 = vunpack.c.l.b16 %v8640
    %v8774 = vunpack.c.l.b16 %v8641
    %v8775 = vunpack.c.l.b16 %v8642
    %v8776 = vunpack.c.l.b16 %v8643
    %v8777 = vunpack.c.l.b16 %v8644
    %v8778 = vunpack.c.l.b16 %v8645
    %v8779 = vunpack.c.l.b16 %v8646
    %v8780 = vunpack.c.l.b16 %v8647
    %v8781 = vunpack.c.l.b16 %v8648
    %v8782 = vpack.c.b16 %v8720, %v8719
    %v8783 = vpack.c.b16 %v8722, %v8721
    %v8784 = vpack.c.b16 %v8724, %v8723
    %v8785 = vpack.c.b16 %v8726, %v8725
    %v8786 = vpack.c.b16 %v8728, %v8727
    %v8787 = vpack.c.b16 %v8730, %v8729
    %v8788 = vpack.c.b16 %v8732, %v8731
    %v8789 = vpack.c.b16 %v8734, %v8733
    %v8790 = vpack.c.b16 %v8736, %v8735
    %v8791 = vpack.c.b16 %v8738, %v8737
    %v8792 = vpack.c.b16 %v8740, %v8739
    %v8793 = vpack.c.b16 %v8742, %v8741
    %v8794 = vpack.c.b16 %v8744, %v8743
    %v8795 = vpack.c.b16 %v8746, %v8745
    %v8796 = vpack.c.b16 %v8748, %v8747
    %v8797 = vpack.c.b16 %v8750, %v8749
    %v8798 = vpack.c.b16 %v8752, %v8751
    %v8799 = vpack.c.b16 %v8754, %v8753
    %v8800 = vpack.c.b16 %v8756, %v8755
    %v8801 = vpack.c.b16 %v8758, %v8757
    %v8802 = vpack.c.b16 %v8760, %v8759
    %v8803 = vpack.c.b16 %v8762, %v8761
    %v8804 = vpack.c.b16 %v8764, %v8763
    %v8805 = vpack.c.b16 %v8766, %v8765
    %v8806 = vpack.c.b16 %v8768, %v8767
    %v8807 = vpack.c.b16 %v8770, %v8769
    %v8808 = vpack.c.b16 %v8772, %v8771
    %v8809 = vpack.c.b16 %v8774, %v8773
    %v8810 = vpack.c.b16 %v8776, %v8775
    %v8811 = vpack.c.b16 %v8778, %v8777
    %v8812 = vpack.c.b16 %v8780, %v8779
    %v8813 = vpack.c.b16 %v8781, %v8781
    %v8846 = vsel %vm8393, %v8585, 0
    %v8849 = vsel %vm8397, %v8813, 0
    %8851 = vmatprep.subr.bf16.mxu0 0
    %8852 = vmatpush1.bf16.msra.mxu0 %v8789
    %8853 = vmatprep.subr.bf16.mxu0 0
    %8854 = vmatpush1.bf16.msra.mxu0 %v8788
    %8855 = vmatprep.subr.bf16.mxu0 0
    %8856 = vmatpush1.bf16.msra.mxu0 %v8787
    %8857 = vmatprep.subr.bf16.mxu0 0
    %8858 = vmatpush1.bf16.msra.mxu0 %v8786
    %8859 = vmatprep.subr.bf16.mxu0 0
    %8860 = vmatpush1.bf16.msra.mxu0 %v8785
    %8861 = vmatprep.subr.bf16.mxu0 0
    %8862 = vmatpush1.bf16.msra.mxu0 %v8784
    %8863 = vmatprep.subr.bf16.mxu0 0
    %8864 = vmatpush1.bf16.msra.mxu0 %v8783
    %8865 = vmatprep.subr.bf16.mxu0 0
    %8866 = vmatpush1.bf16.msra.mxu0 %v8782
    %8867 = vmatprep.subr.bf16.mxu0 0
    %8868 = vmatpush2.bf16.msra.mxu0 %v8797
    %8869 = vmatprep.subr.bf16.mxu0 0
    %8870 = vmatpush2.bf16.msra.mxu0 %v8796
    %8871 = vmatprep.subr.bf16.mxu0 0
    %8872 = vmatpush2.bf16.msra.mxu0 %v8795
    %8873 = vmatprep.subr.bf16.mxu0 0
    %8874 = vmatpush2.bf16.msra.mxu0 %v8794
    %8875 = vmatprep.subr.bf16.mxu0 0
    %8876 = vmatpush2.bf16.msra.mxu0 %v8793
    %8877 = vmatprep.subr.bf16.mxu0 0
    %8878 = vmatpush2.bf16.msra.mxu0 %v8792
    %8879 = vmatprep.subr.bf16.mxu0 0
    %8880 = vmatpush2.bf16.msra.mxu0 %v8791
    %8881 = vmatprep.subr.bf16.mxu0 0
    %8882 = vmatpush2.bf16.msra.mxu0 %v8790
    %8883 = vmatprep.mubr.bf16.mxu0 %v8583
    %8884 = vmatmul.mubr.bf16.gmra.mxu0 %v8582
    %v8885 = vpop.f32.mrf.mxu0
    %v8886 = vadd.f32 %v8654, %v8885
    %v8887 = vpop.f32.mrf.mxu0
    %v8888 = vpop.f32.mrf.mxu0
    %v8889 = vpop.f32.mrf.mxu0
    %8890 = vdwg.mxu0
    %8891 = vmatprep.subr.bf16.mxu0 0
    %8892 = vmatpush1.bf16.msra.mxu0 %v8805
    %8893 = vmatprep.subr.bf16.mxu0 0
    %8894 = vmatpush1.bf16.msra.mxu0 %v8804
    %8895 = vmatprep.subr.bf16.mxu0 0
    %8896 = vmatpush1.bf16.msra.mxu0 %v8803
    %8897 = vmatprep.subr.bf16.mxu0 0
    %8898 = vmatpush1.bf16.msra.mxu0 %v8802
    %8899 = vmatprep.subr.bf16.mxu0 0
    %8900 = vmatpush1.bf16.msra.mxu0 %v8801
    %8901 = vmatprep.subr.bf16.mxu0 0
    %8902 = vmatpush1.bf16.msra.mxu0 %v8800
    %8903 = vmatprep.subr.bf16.mxu0 0
    %8904 = vmatpush1.bf16.msra.mxu0 %v8799
    %8905 = vmatprep.subr.bf16.mxu0 0
    %8906 = vmatpush1.bf16.msra.mxu0 %v8798
    %8907 = vmatprep.subr.bf16.mxu0 0
    %8908 = vmatpush2.bf16.msra.mxu0 %v8849
    %8909 = vmatprep.subr.bf16.mxu0 0
    %8910 = vmatpush2.bf16.msra.mxu0 %v8812
    %8911 = vmatprep.subr.bf16.mxu0 0
    %8912 = vmatpush2.bf16.msra.mxu0 %v8811
    %8913 = vmatprep.subr.bf16.mxu0 0
    %8914 = vmatpush2.bf16.msra.mxu0 %v8810
    %8915 = vmatprep.subr.bf16.mxu0 0
    %8916 = vmatpush2.bf16.msra.mxu0 %v8809
    %8917 = vmatprep.subr.bf16.mxu0 0
    %8918 = vmatpush2.bf16.msra.mxu0 %v8808
    %8919 = vmatprep.subr.bf16.mxu0 0
    %8920 = vmatpush2.bf16.msra.mxu0 %v8807
    %8921 = vmatprep.subr.bf16.mxu0 0
    %8922 = vmatpush2.bf16.msra.mxu0 %v8806
    %8923 = vmatprep.mubr.bf16.mxu0 %v8846
    %8924 = vmatmul.mubr.bf16.gmra.mxu0 %v8584
    %v8925 = vpop.f32.mrf.mxu0
    %v8926 = vadd.f32 %v8886, %v8925
    %v8927 = vpop.f32.mrf.mxu0
    %v8928 = vpop.f32.mrf.mxu0
    %v8929 = vpop.f32.mrf.mxu0
    %8930 = vdwg.mxu0
    %vm8931 = vcmask 80896
    %8932 = vst.msk [vmem:[%s13] sm:$0xff] %vm8931, %v8926
    // Predicated region
    $region58: #{forward.1} parent=1 // pred_check
      _
    $region59: #{forward.1} parent=1 // pred_check_branch
      %8934 = sbr.rel (0) target = $region61
    $region60: #{forward.1} parent=1 // pred_region
      _
    $region61: #{forward.1} parent=1 // pred_fallthru
      _
    // Predicated region
    $region62: #{forward.1} parent=1 // pred_check
      _
    $region63: #{forward.1} parent=1 // pred_check_branch
      %8936 = sbr.rel (0) target = $region65
    $region64: #{forward.1} parent=1 // pred_region
      _
    $region65: #{forward.1} parent=1 // pred_fallthru
      _
    // Predicated region
    $region66: #{forward.1} parent=1 // pred_check
      _
    $region67: #{forward.1} parent=1 // pred_check_branch
      %8938 = sbr.rel (0) target = $region69
    $region68: #{forward.1} parent=1 // pred_region
      _
    $region69: #{forward.1} parent=1 // pred_fallthru
      _
    // Predicated region
    $region70: #{forward.1} parent=1 // pred_check
      _
    $region71: #{forward.1} parent=1 // pred_check_branch
      %8940 = sbr.rel (0) target = $region73
    $region72: #{forward.1} parent=1 // pred_region
      _
    $region73: #{forward.1} parent=1 // pred_fallthru
      _
    %8941 = vsyncpa [#allocation3], 1

</llo_original>
